<compile_context>
chip_gen: v6e
topology: v6e:2x2x1
jax: 0.10.0
libtpu: 0.0.40
codegen_flags: <defaults>
</compile_context>

<pallas_src>
import functools

import jax
import jax.numpy as jnp
from jax.experimental import pallas as pl
from jax.experimental.pallas import tpu as pltpu


# Safe on v5e/v6e/v7x; actual tile usage is ~2 MiB (budgeted for v7x 64 MiB).
_VMEM_LIMIT = 32 * 1024 * 1024


def _round_up(x, m):
    return (x + m - 1) // m * m


def _row_tile(m, target):
    return target if m >= target else max(8, _round_up(m, 8))


def _pad_rows(x, mp):
    m = x.shape[0]
    if mp == m:
        return x
    return jnp.pad(x, [(0, mp - m)] + [(0, 0)] * (x.ndim - 1))


# ----------------------------------------------------------------------------
# Tiled matmul (+ bias, optional tanh) — the conv hot path
# ----------------------------------------------------------------------------
def _matmul_kernel(a_ref, w_ref, b_ref, o_ref, acc_ref, *, post_act):
    @pl.when(pl.program_id(2) == 0)
    def _init():
        acc_ref[...] = jnp.zeros_like(acc_ref)

    acc_ref[...] += jnp.dot(a_ref[...], w_ref[...],
                            preferred_element_type=jnp.float32)

    @pl.when(pl.program_id(2) == pl.num_programs(2) - 1)
    def _finalize():
        out = acc_ref[...] + b_ref[...]
        if post_act == "tanh":
            out = jnp.tanh(out)
        o_ref[...] = out


def matmul_bias_act(a, w, b, post_act=None):
    """[M,K] @ [K,N] + b (f32), optional tanh.  bf16 operands, f32 accumulate.

    N is padded to a multiple of 128 so output stores are lane-dense; the
    wrapper slices the valid [:M, :N] region back out.
    """
    M, K = a.shape
    K2, N = w.shape
    assert K == K2
    Np = _round_up(N, 128)
    tn = 256 if (Np >= 256 and Np % 256 == 0) else 128
    tm = _row_tile(M, 256)
    Mp = _round_up(M, tm)
    if K <= 512:
        tk = K
    else:
        tk = K
        for cand in (512, 256, 128):
            if K % cand == 0:
                tk = cand
                break

    a = _pad_rows(a.astype(jnp.bfloat16), Mp)
    w = w.astype(jnp.bfloat16)
    if Np != N:
        w = jnp.pad(w, ((0, 0), (0, Np - N)))
        b = jnp.pad(b, ((0, Np - N),))
    b = b.reshape(1, Np).astype(jnp.float32)

    out = pl.pallas_call(
        functools.partial(_matmul_kernel, post_act=post_act),
        out_shape=jax.ShapeDtypeStruct((Mp, Np), jnp.float32),
        grid_spec=pltpu.PrefetchScalarGridSpec(
            num_scalar_prefetch=0,
            grid=(Mp // tm, Np // tn, K // tk),
            in_specs=[
                pl.BlockSpec((tm, tk), lambda i, j, k: (i, k)),
                pl.BlockSpec((tk, tn), lambda i, j, k: (k, j)),
                pl.BlockSpec((1, tn), lambda i, j, k: (0, j)),
            ],
            out_specs=pl.BlockSpec((tm, tn), lambda i, j, k: (i, j)),
            scratch_shapes=[pltpu.VMEM((tm, tn), jnp.float32)],
        ),
        compiler_params=pltpu.CompilerParams(
            dimension_semantics=("parallel", "parallel", "arbitrary"),
            vmem_limit_bytes=_VMEM_LIMIT,
        ),
    )(a, w, b)
    return out[:M, :N]


# ----------------------------------------------------------------------------
# Elementwise pre-activation (LeakyReLU 0.2 / ReLU) on the compact [M, C] view
# ----------------------------------------------------------------------------
def _act_kernel(x_ref, o_ref, *, kind):
    x = x_ref[...]
    y = jnp.where(x >= 0.0, x, 0.2 * x) if kind == "leaky" else jnp.maximum(x, 0.0)
    o_ref[...] = y.astype(o_ref.dtype)


def apply_act(x2d, kind):
    """Activation applied once per element (not on 16x im2col rows); bf16 out."""
    M, C = x2d.shape
    total = M * C
    shaped = x2d.reshape(total // 128, 128) if (C < 128 and total % 128 == 0) else x2d
    R, Ccol = shaped.shape
    tr = _row_tile(R, 1024)
    Rp = _round_up(R, tr)
    xp = _pad_rows(shaped, Rp)
    out = pl.pallas_call(
        functools.partial(_act_kernel, kind=kind),
        out_shape=jax.ShapeDtypeStruct((Rp, Ccol), jnp.bfloat16),
        grid_spec=pltpu.PrefetchScalarGridSpec(
            num_scalar_prefetch=0,
            grid=(Rp // tr,),
            in_specs=[pl.BlockSpec((tr, Ccol), lambda i: (i, 0))],
            out_specs=pl.BlockSpec((tr, Ccol), lambda i: (i, 0)),
        ),
        compiler_params=pltpu.CompilerParams(
            dimension_semantics=("parallel",), vmem_limit_bytes=_VMEM_LIMIT),
    )(xp)
    return out[:R].reshape(M, C)


# ----------------------------------------------------------------------------
# BatchNorm2d (training-mode batch stats, eps=1e-5): tiled reduction + normalize
# ----------------------------------------------------------------------------
def _bn_stats_kernel(x_ref, s_ref, q_ref):
    @pl.when(pl.program_id(0) == 0)
    def _init():
        s_ref[...] = jnp.zeros_like(s_ref)
        q_ref[...] = jnp.zeros_like(q_ref)

    x = x_ref[...].astype(jnp.float32)
    s_ref[...] += jnp.sum(x, axis=0, keepdims=True)
    q_ref[...] += jnp.sum(x * x, axis=0, keepdims=True)


def _bn_scale_shift(h2d, gamma, beta, eps=1e-5):
    M, C = h2d.shape
    tm = _row_tile(M, 512)
    Mp = _round_up(M, tm)
    hp = _pad_rows(h2d, Mp)  # zero rows add 0 to both sums; true M used below
    ssum, ssq = pl.pallas_call(
        _bn_stats_kernel,
        out_shape=(jax.ShapeDtypeStruct((1, C), jnp.float32),
                   jax.ShapeDtypeStruct((1, C), jnp.float32)),
        grid_spec=pltpu.PrefetchScalarGridSpec(
            num_scalar_prefetch=0,
            grid=(Mp // tm,),
            in_specs=[pl.BlockSpec((tm, C), lambda i: (i, 0))],
            out_specs=(pl.BlockSpec((1, C), lambda i: (0, 0)),
                       pl.BlockSpec((1, C), lambda i: (0, 0))),
        ),
        compiler_params=pltpu.CompilerParams(
            dimension_semantics=("arbitrary",), vmem_limit_bytes=_VMEM_LIMIT),
    )(hp)
    inv_m = 1.0 / M
    mean = ssum * inv_m
    var = jnp.maximum(ssq * inv_m - mean * mean, 0.0)   # biased (training-mode)
    scale = gamma.reshape(1, C).astype(jnp.float32) * jax.lax.rsqrt(var + eps)
    shift = beta.reshape(1, C).astype(jnp.float32) - mean * scale
    return scale, shift


def _bn_norm_kernel(x_ref, sc_ref, sh_ref, o_ref):
    o_ref[...] = x_ref[...] * sc_ref[...] + sh_ref[...]


def batchnorm_nhwc(x_nhwc, gamma, beta):
    N, H, W, C = x_nhwc.shape
    x2d = x_nhwc.reshape(-1, C)
    scale, shift = _bn_scale_shift(x2d, gamma, beta)
    M = x2d.shape[0]
    tm = _row_tile(M, 512)
    Mp = _round_up(M, tm)
    xp = _pad_rows(x2d, Mp)
    out = pl.pallas_call(
        _bn_norm_kernel,
        out_shape=jax.ShapeDtypeStruct((Mp, C), jnp.float32),
        grid_spec=pltpu.PrefetchScalarGridSpec(
            num_scalar_prefetch=0,
            grid=(Mp // tm,),
            in_specs=[pl.BlockSpec((tm, C), lambda i: (i, 0)),
                      pl.BlockSpec((1, C), lambda i: (0, 0)),
                      pl.BlockSpec((1, C), lambda i: (0, 0))],
            out_specs=pl.BlockSpec((tm, C), lambda i: (i, 0)),
        ),
        compiler_params=pltpu.CompilerParams(
            dimension_semantics=("parallel",), vmem_limit_bytes=_VMEM_LIMIT),
    )(xp, scale, shift)
    return out[:M].reshape(N, H, W, C)


def _bn_concat_kernel(x_ref, h_ref, sc_ref, sh_ref, o_ref):
    hn = h_ref[...] * sc_ref[...] + sh_ref[...]
    o_ref[...] = jnp.concatenate([x_ref[...], hn], axis=1)


def batchnorm_concat_nhwc(skip_nhwc, h_nhwc, gamma, beta):
    """Fused upnorm + skip concat (NHWC last-dim concat): out = [skip, BN(h)]."""
    N, H, W, Cs = skip_nhwc.shape
    Ch = h_nhwc.shape[-1]
    h2d = h_nhwc.reshape(-1, Ch)
    scale, shift = _bn_scale_shift(h2d, gamma, beta)
    x2d = skip_nhwc.reshape(-1, Cs).astype(jnp.float32)
    M = x2d.shape[0]
    tm = _row_tile(M, 512)
    Mp = _round_up(M, tm)
    xp = _pad_rows(x2d, Mp)
    hp = _pad_rows(h2d, Mp)
    out = pl.pallas_call(
        _bn_concat_kernel,
        out_shape=jax.ShapeDtypeStruct((Mp, Cs + Ch), jnp.float32),
        grid_spec=pltpu.PrefetchScalarGridSpec(
            num_scalar_prefetch=0,
            grid=(Mp // tm,),
            in_specs=[pl.BlockSpec((tm, Cs), lambda i: (i, 0)),
                      pl.BlockSpec((tm, Ch), lambda i: (i, 0)),
                      pl.BlockSpec((1, Ch), lambda i: (0, 0)),
                      pl.BlockSpec((1, Ch), lambda i: (0, 0))],
            out_specs=pl.BlockSpec((tm, Cs + Ch), lambda i: (i, 0)),
        ),
        compiler_params=pltpu.CompilerParams(
            dimension_semantics=("parallel",), vmem_limit_bytes=_VMEM_LIMIT),
    )(xp, hp, scale, shift)
    return out[:M].reshape(N, H, W, Cs + Ch)


# ----------------------------------------------------------------------------
# Convolutions (NHWC glue around the Pallas matmul)
# ----------------------------------------------------------------------------
def _act_or_cast(x_nhwc, act):
    if act is None:
        return x_nhwc.astype(jnp.bfloat16)
    N, H, W, C = x_nhwc.shape
    return apply_act(x_nhwc.reshape(-1, C), act).reshape(N, H, W, C)


def conv_down(x_nhwc, w, act):
    """Conv2d(k=4, s=2, p=1, bias=False).  w: [C_out, C_in, 4, 4] (PyTorch)."""
    N, H, W, C = x_nhwc.shape
    Ho, Wo = H // 2, W // 2
    xa = _act_or_cast(x_nhwc, act)                              # bf16 NHWC
    xp = jnp.pad(xa, ((0, 0), (1, 1), (1, 1), (0, 0)))
    cols = []
    for kh in range(4):
        for kw in range(4):
            cols.append(xp[:, kh:kh + 2 * Ho - 1:2, kw:kw + 2 * Wo - 1:2, :])
    patches = jnp.stack(cols, axis=3).reshape(N * Ho * Wo, 16 * C)  # bf16
    c_out = w.shape[0]
    wm = jnp.transpose(w, (2, 3, 1, 0)).reshape(16 * C, c_out)   # K=(kh,kw,ci)
    bias = jnp.zeros((c_out,), jnp.float32)
    out = matmul_bias_act(patches, wm, bias)
    return out.reshape(N, Ho, Wo, c_out)


def conv_up(x_nhwc, w_t, bias, post_act=None):
    """ConvTranspose2d(k=4, s=2, p=1) as 4 sub-pixel 2x2 stride-1 convs.

    w_t: [C_in, C_out, 4, 4] (PyTorch layout).  uprelu is always applied first.
    """
    N, H, W, C = x_nhwc.shape
    c_out = w_t.shape[1]
    xa = _act_or_cast(x_nhwc, "relu")
    xp = jnp.pad(xa, ((0, 0), (1, 1), (1, 1), (0, 0)))
    b = bias if bias is not None else jnp.zeros((c_out,), jnp.float32)
    outs = []
    for py in (0, 1):
        for px in (0, 1):
            cols = []
            for dh in (0, 1):
                for dw in (0, 1):
                    cols.append(xp[:, py + dh:py + dh + H, px + dw:px + dw + W, :])
            patches = jnp.stack(cols, axis=3).reshape(N * H * W, 4 * C)
            w_sub = jnp.take(w_t, jnp.array([3 - py, 1 - py]), axis=2)
            w_sub = jnp.take(w_sub, jnp.array([3 - px, 1 - px]), axis=3)
            wm = jnp.transpose(w_sub, (2, 3, 0, 1)).reshape(4 * C, c_out)
            outs.append(matmul_bias_act(patches, wm, b, post_act=post_act))
    o = jnp.stack(outs, axis=0).reshape(2, 2, N, H, W, c_out)
    o = jnp.transpose(o, (2, 3, 0, 4, 1, 5)).reshape(N, 2 * H, 2 * W, c_out)
    return o


# ----------------------------------------------------------------------------
# U-Net generator (parameters + recursive forward mirroring UnetBlock)
# ----------------------------------------------------------------------------
def init_unet_block(key, nf, ni, submodule=None, input_c=None,
                    innermost=False, outermost=False):
    if input_c is None:
        input_c = nf
    k = jax.random.split(key, 3)
    blk = {"innermost": innermost, "outermost": outermost, "sub": submodule}
    blk["downconv_w"] = 0.05 * jax.random.normal(k[0], (ni, input_c, 4, 4), jnp.float32)
    if (not innermost) and (not outermost):
        blk["downnorm_g"] = jnp.ones((ni,), jnp.float32)
        blk["downnorm_b"] = jnp.zeros((ni,), jnp.float32)
    up_in = ni if innermost else ni * 2
    blk["upconv_w"] = 0.05 * jax.random.normal(k[1], (up_in, nf, 4, 4), jnp.float32)
    if outermost:
        blk["upconv_b"] = 0.05 * jax.random.normal(k[2], (nf,), jnp.float32)
    else:
        blk["upnorm_g"] = jnp.ones((nf,), jnp.float32)
        blk["upnorm_b"] = jnp.zeros((nf,), jnp.float32)
    return blk


def init_generator(key, input_c=1, output_c=2, n_down=8, num_filters=64):
    keys = iter(jax.random.split(key, n_down + 1))
    blk = init_unet_block(next(keys), num_filters * 8, num_filters * 8, innermost=True)
    for _ in range(n_down - 5):
        # TODO(synk): nn.Dropout(0.5) in these blocks is stochastic in training
        # mode; treated as identity (eval semantics) here.
        blk = init_unet_block(next(keys), num_filters * 8, num_filters * 8, submodule=blk)
    out_filters = num_filters * 8
    for _ in range(3):
        blk = init_unet_block(next(keys), out_filters // 2, out_filters, submodule=blk)
        out_filters //= 2
    return init_unet_block(next(keys), output_c, out_filters, input_c=input_c,
                           submodule=blk, outermost=True)


def unet_forward(blk, x):
    # x is NHWC internally.
    if blk["outermost"]:
        h = conv_down(x, blk["downconv_w"], act=None)
        h = unet_forward(blk["sub"], h)
        return conv_up(h, blk["upconv_w"], blk["upconv_b"], post_act="tanh")
    if blk["innermost"]:
        h = conv_down(x, blk["downconv_w"], act="leaky")
        h = conv_up(h, blk["upconv_w"], None)
        return batchnorm_concat_nhwc(x, h, blk["upnorm_g"], blk["upnorm_b"])
    # middle block
    h = conv_down(x, blk["downconv_w"], act="leaky")
    h = batchnorm_nhwc(h, blk["downnorm_g"], blk["downnorm_b"])
    h = unet_forward(blk["sub"], h)
    h = conv_up(h, blk["upconv_w"], None)
    return batchnorm_concat_nhwc(x, h, blk["upnorm_g"], blk["upnorm_b"])


def generator_forward(params, x_nchw):
    # NCHW <-> NHWC only at the module boundary.
    x = jnp.transpose(x_nchw, (0, 2, 3, 1))
    y = unet_forward(params, x)
    return jnp.transpose(y, (0, 3, 1, 2))


if __name__ == "__main__":
    key = jax.random.PRNGKey(0)
    pkey, xkey = jax.random.split(key)

    # Small but structurally complete Generator configuration
    # (exercises innermost, middle-with-dropout, 3 upscaling and outermost blocks).
    input_c, output_c, n_down, num_filters = 1, 2, 6, 4
    params = init_generator(pkey, input_c=input_c, output_c=output_c,
                            n_down=n_down, num_filters=num_filters)

    # Spatial size must be divisible by 2**n_down (here 64).
    x = jax.random.normal(xkey, (2, input_c, 64, 64), jnp.float32)

    fwd = jax.jit(lambda inp: generator_forward(params, inp))
    y = jax.block_until_ready(fwd(x))

    assert y.shape == (2, output_c, 64, 64), y.shape
    assert y.dtype == jnp.float32
    assert bool(jnp.all(jnp.isfinite(y)))
    assert bool(jnp.all(jnp.abs(y) <= 1.0 + 1e-6))  # tanh output range
    print("KERNEL_OK")
</pallas_src>

<mosaic_0001>
module attributes {stable_mosaic.version = 11 : i64} {
  func.func @_matmul_kernel(%arg0: i32, %arg1: i32, %arg2: i32, %arg3: memref<256x16xbf16, #tpu.memory_space<vmem>>, %arg4: memref<16x128xbf16, #tpu.memory_space<vmem>>, %arg5: memref<1x128xf32, #tpu.memory_space<vmem>>, %arg6: memref<256x128xf32, #tpu.memory_space<vmem>>, %arg7: memref<256x128xf32, #tpu.memory_space<vmem>>) attributes {dimension_semantics = [#tpu.dimension_semantics<parallel>, #tpu.dimension_semantics<parallel>, #tpu.dimension_semantics<arbitrary>], iteration_bounds = array<i64: 8, 1, 1>, scalar_prefetch = 0 : i64, scratch_operands = 1 : i64, tpu.core_type = #tpu.core_type<tc>, window_params = [{transform_indices = @transform_0, window_bounds = array<i64: 256, 16>}, {transform_indices = @transform_1, window_bounds = array<i64: 16, 128>}, {transform_indices = @transform_2, window_bounds = array<i64: 1, 128>}, {transform_indices = @transform_3, window_bounds = array<i64: 256, 128>}]} {
    %c0_i32 = arith.constant 0 : i32
    %0 = arith.cmpi eq, %arg2, %c0_i32 : i32
    %1 = arith.extui %0 : i1 to i32
    %c0_i32_0 = arith.constant 0 : i32
    %2 = arith.cmpi ne, %1, %c0_i32_0 : i32
    scf.if %2 {
      %cst_10 = arith.constant 0.000000e+00 : f32
      %12 = vector.broadcast %cst_10 : f32 to vector<256x128xf32>
      %c0_11 = arith.constant 0 : index
      %c0_12 = arith.constant 0 : index
      %13 = vector.load %arg7[%c0_11, %c0_12] : memref<256x128xf32, #tpu.memory_space<vmem>>, vector<256x128xf32>
      tpu.vector_store %arg7[%c0_11, %c0_12], %12 {strides = array<i32>} : memref<256x128xf32, #tpu.memory_space<vmem>>, vector<256x128xf32>,
    } else {
    }
    %c0 = arith.constant 0 : index
    %c0_1 = arith.constant 0 : index
    %3 = vector.load %arg7[%c0, %c0_1] : memref<256x128xf32, #tpu.memory_space<vmem>>, vector<256x128xf32>
    %c0_2 = arith.constant 0 : index
    %c0_3 = arith.constant 0 : index
    %4 = vector.load %arg3[%c0_2, %c0_3] : memref<256x16xbf16, #tpu.memory_space<vmem>>, vector<256x16xbf16>
    %c0_4 = arith.constant 0 : index
    %c0_5 = arith.constant 0 : index
    %5 = vector.load %arg4[%c0_4, %c0_5] : memref<16x128xbf16, #tpu.memory_space<vmem>>, vector<16x128xbf16>
    %cst = arith.constant dense<0.000000e+00> : vector<256x128xf32>
    %6 = tpu.matmul %4, %5, %cst {dimension_numbers = #tpu.dot_dimension_numbers<[1], [0], [0], [1], [0, 0, 1, 1], [], []>} : vector<256x16xbf16>, vector<16x128xbf16>, vector<256x128xf32> -> vector<256x128xf32>
    %7 = arith.addf %3, %6 : vector<256x128xf32>
    %c0_6 = arith.constant 0 : index
    %c0_7 = arith.constant 0 : index
    %8 = vector.load %arg7[%c0_6, %c0_7] : memref<256x128xf32, #tpu.memory_space<vmem>>, vector<256x128xf32>
    tpu.vector_store %arg7[%c0_6, %c0_7], %7 {strides = array<i32>} : memref<256x128xf32, #tpu.memory_space<vmem>>, vector<256x128xf32>,
    %c0_i32_8 = arith.constant 0 : i32
    %9 = arith.cmpi eq, %arg2, %c0_i32_8 : i32
    %10 = arith.extui %9 : i1 to i32
    %c0_i32_9 = arith.constant 0 : i32
    %11 = arith.cmpi ne, %10, %c0_i32_9 : i32
    scf.if %11 {
      %c0_10 = arith.constant 0 : index
      %c0_11 = arith.constant 0 : index
      %12 = vector.load %arg7[%c0_10, %c0_11] : memref<256x128xf32, #tpu.memory_space<vmem>>, vector<256x128xf32>
      %c0_12 = arith.constant 0 : index
      %c0_13 = arith.constant 0 : index
      %13 = vector.load %arg5[%c0_12, %c0_13] : memref<1x128xf32, #tpu.memory_space<vmem>>, vector<1x128xf32>
      %14 = vector.broadcast %13 : vector<1x128xf32> to vector<256x128xf32>
      %15 = arith.addf %12, %14 : vector<256x128xf32>
      %c0_14 = arith.constant 0 : index
      %c0_15 = arith.constant 0 : index
      %16 = vector.load %arg6[%c0_14, %c0_15] : memref<256x128xf32, #tpu.memory_space<vmem>>, vector<256x128xf32>
      tpu.vector_store %arg6[%c0_14, %c0_15], %15 {strides = array<i32>} : memref<256x128xf32, #tpu.memory_space<vmem>>, vector<256x128xf32>,
    } else {
    }
    return
  }
  func.func @transform_0(%arg0: i32, %arg1: i32, %arg2: i32) -> (i32, i32) {
    %c0_i32 = arith.constant 0 : i32
    return %arg0, %arg2 : i32, i32
  }
  func.func @transform_1(%arg0: i32, %arg1: i32, %arg2: i32) -> (i32, i32) {
    %c0_i32 = arith.constant 0 : i32
    return %arg2, %arg1 : i32, i32
  }
  func.func @transform_2(%arg0: i32, %arg1: i32, %arg2: i32) -> (i32, i32) {
    %c0_i32 = arith.constant 0 : i32
    %c0_i32_0 = arith.constant 0 : i32
    return %c0_i32, %arg1 : i32, i32
  }
  func.func @transform_3(%arg0: i32, %arg1: i32, %arg2: i32) -> (i32, i32) {
    %c0_i32 = arith.constant 0 : i32
    return %arg0, %arg1 : i32, i32
  }
}

module attributes {stable_mosaic.version = 11 : i64} {
  func.func @_act_kernel(%arg0: i32, %arg1: memref<64x128xf32, #tpu.memory_space<vmem>>, %arg2: memref<64x128xbf16, #tpu.memory_space<vmem>>) attributes {dimension_semantics = [#tpu.dimension_semantics<parallel>], iteration_bounds = array<i64: 1>, scalar_prefetch = 0 : i64, scratch_operands = 0 : i64, tpu.core_type = #tpu.core_type<tc>, window_params = [{transform_indices = @transform_0, window_bounds = array<i64: 64, 128>}, {transform_indices = @transform_1, window_bounds = array<i64: 64, 128>}]} {
    %c0 = arith.constant 0 : index
    %c0_0 = arith.constant 0 : index
    %0 = vector.load %arg1[%c0, %c0_0] : memref<64x128xf32, #tpu.memory_space<vmem>>, vector<64x128xf32>
    %cst = arith.constant 0.000000e+00 : f32
    %1 = vector.broadcast %cst : f32 to vector<64x128xf32>
    %2 = arith.cmpf oge, %0, %1 : vector<64x128xf32>
    %cst_1 = arith.constant 2.000000e-01 : f32
    %3 = vector.broadcast %cst_1 : f32 to vector<64x128xf32>
    %4 = arith.mulf %3, %0 : vector<64x128xf32>
    %5 = arith.select %2, %0, %4 : vector<64x128xi1>, vector<64x128xf32>
    %6 = arith.truncf %5 : vector<64x128xf32> to vector<64x128xbf16>
    %c0_2 = arith.constant 0 : index
    %c0_3 = arith.constant 0 : index
    %7 = vector.load %arg2[%c0_2, %c0_3] : memref<64x128xbf16, #tpu.memory_space<vmem>>, vector<64x128xbf16>
    tpu.vector_store %arg2[%c0_2, %c0_3], %6 {strides = array<i32>} : memref<64x128xbf16, #tpu.memory_space<vmem>>, vector<64x128xbf16>,
    return
  }
  func.func @transform_0(%arg0: i32) -> (i32, i32) {
    %c0_i32 = arith.constant 0 : i32
    %c0_i32_0 = arith.constant 0 : i32
    return %arg0, %c0_i32 : i32, i32
  }
  func.func @transform_1(%arg0: i32) -> (i32, i32) {
    %c0_i32 = arith.constant 0 : i32
    %c0_i32_0 = arith.constant 0 : i32
    return %arg0, %c0_i32 : i32, i32
  }
}

module attributes {stable_mosaic.version = 11 : i64} {
  func.func @_matmul_kernel(%arg0: i32, %arg1: i32, %arg2: i32, %arg3: memref<256x64xbf16, #tpu.memory_space<vmem>>, %arg4: memref<64x128xbf16, #tpu.memory_space<vmem>>, %arg5: memref<1x128xf32, #tpu.memory_space<vmem>>, %arg6: memref<256x128xf32, #tpu.memory_space<vmem>>, %arg7: memref<256x128xf32, #tpu.memory_space<vmem>>) attributes {dimension_semantics = [#tpu.dimension_semantics<parallel>, #tpu.dimension_semantics<parallel>, #tpu.dimension_semantics<arbitrary>], iteration_bounds = array<i64: 2, 1, 1>, scalar_prefetch = 0 : i64, scratch_operands = 1 : i64, tpu.core_type = #tpu.core_type<tc>, window_params = [{transform_indices = @transform_0, window_bounds = array<i64: 256, 64>}, {transform_indices = @transform_1, window_bounds = array<i64: 64, 128>}, {transform_indices = @transform_2, window_bounds = array<i64: 1, 128>}, {transform_indices = @transform_3, window_bounds = array<i64: 256, 128>}]} {
    %c0_i32 = arith.constant 0 : i32
    %0 = arith.cmpi eq, %arg2, %c0_i32 : i32
    %1 = arith.extui %0 : i1 to i32
    %c0_i32_0 = arith.constant 0 : i32
    %2 = arith.cmpi ne, %1, %c0_i32_0 : i32
    scf.if %2 {
      %cst_10 = arith.constant 0.000000e+00 : f32
      %12 = vector.broadcast %cst_10 : f32 to vector<256x128xf32>
      %c0_11 = arith.constant 0 : index
      %c0_12 = arith.constant 0 : index
      %13 = vector.load %arg7[%c0_11, %c0_12] : memref<256x128xf32, #tpu.memory_space<vmem>>, vector<256x128xf32>
      tpu.vector_store %arg7[%c0_11, %c0_12], %12 {strides = array<i32>} : memref<256x128xf32, #tpu.memory_space<vmem>>, vector<256x128xf32>,
    } else {
    }
    %c0 = arith.constant 0 : index
    %c0_1 = arith.constant 0 : index
    %3 = vector.load %arg7[%c0, %c0_1] : memref<256x128xf32, #tpu.memory_space<vmem>>, vector<256x128xf32>
    %c0_2 = arith.constant 0 : index
    %c0_3 = arith.constant 0 : index
    %4 = vector.load %arg3[%c0_2, %c0_3] : memref<256x64xbf16, #tpu.memory_space<vmem>>, vector<256x64xbf16>
    %c0_4 = arith.constant 0 : index
    %c0_5 = arith.constant 0 : index
    %5 = vector.load %arg4[%c0_4, %c0_5] : memref<64x128xbf16, #tpu.memory_space<vmem>>, vector<64x128xbf16>
    %cst = arith.constant dense<0.000000e+00> : vector<256x128xf32>
    %6 = tpu.matmul %4, %5, %cst {dimension_numbers = #tpu.dot_dimension_numbers<[1], [0], [0], [1], [0, 0, 1, 1], [], []>} : vector<256x64xbf16>, vector<64x128xbf16>, vector<256x128xf32> -> vector<256x128xf32>
    %7 = arith.addf %3, %6 : vector<256x128xf32>
    %c0_6 = arith.constant 0 : index
    %c0_7 = arith.constant 0 : index
    %8 = vector.load %arg7[%c0_6, %c0_7] : memref<256x128xf32, #tpu.memory_space<vmem>>, vector<256x128xf32>
    tpu.vector_store %arg7[%c0_6, %c0_7], %7 {strides = array<i32>} : memref<256x128xf32, #tpu.memory_space<vmem>>, vector<256x128xf32>,
    %c0_i32_8 = arith.constant 0 : i32
    %9 = arith.cmpi eq, %arg2, %c0_i32_8 : i32
    %10 = arith.extui %9 : i1 to i32
    %c0_i32_9 = arith.constant 0 : i32
    %11 = arith.cmpi ne, %10, %c0_i32_9 : i32
    scf.if %11 {
      %c0_10 = arith.constant 0 : index
      %c0_11 = arith.constant 0 : index
      %12 = vector.load %arg7[%c0_10, %c0_11] : memref<256x128xf32, #tpu.memory_space<vmem>>, vector<256x128xf32>
      %c0_12 = arith.constant 0 : index
      %c0_13 = arith.constant 0 : index
      %13 = vector.load %arg5[%c0_12, %c0_13] : memref<1x128xf32, #tpu.memory_space<vmem>>, vector<1x128xf32>
      %14 = vector.broadcast %13 : vector<1x128xf32> to vector<256x128xf32>
      %15 = arith.addf %12, %14 : vector<256x128xf32>
      %c0_14 = arith.constant 0 : index
      %c0_15 = arith.constant 0 : index
      %16 = vector.load %arg6[%c0_14, %c0_15] : memref<256x128xf32, #tpu.memory_space<vmem>>, vector<256x128xf32>
      tpu.vector_store %arg6[%c0_14, %c0_15], %15 {strides = array<i32>} : memref<256x128xf32, #tpu.memory_space<vmem>>, vector<256x128xf32>,
    } else {
    }
    return
  }
  func.func @transform_0(%arg0: i32, %arg1: i32, %arg2: i32) -> (i32, i32) {
    %c0_i32 = arith.constant 0 : i32
    return %arg0, %arg2 : i32, i32
  }
  func.func @transform_1(%arg0: i32, %arg1: i32, %arg2: i32) -> (i32, i32) {
    %c0_i32 = arith.constant 0 : i32
    return %arg2, %arg1 : i32, i32
  }
  func.func @transform_2(%arg0: i32, %arg1: i32, %arg2: i32) -> (i32, i32) {
    %c0_i32 = arith.constant 0 : i32
    %c0_i32_0 = arith.constant 0 : i32
    return %c0_i32, %arg1 : i32, i32
  }
  func.func @transform_3(%arg0: i32, %arg1: i32, %arg2: i32) -> (i32, i32) {
    %c0_i32 = arith.constant 0 : i32
    return %arg0, %arg1 : i32, i32
  }
}

module attributes {stable_mosaic.version = 11 : i64} {
  func.func @_bn_stats_kernel(%arg0: i32, %arg1: memref<512x8xf32, #tpu.memory_space<vmem>>, %arg2: memref<1x8xf32, #tpu.memory_space<vmem>>, %arg3: memref<1x8xf32, #tpu.memory_space<vmem>>) attributes {dimension_semantics = [#tpu.dimension_semantics<arbitrary>], iteration_bounds = array<i64: 1>, scalar_prefetch = 0 : i64, scratch_operands = 0 : i64, tpu.core_type = #tpu.core_type<tc>, window_params = [{transform_indices = @transform_0, window_bounds = array<i64: 512, 8>}, {pipeline_mode = #tpu.pipeline_mode<synchronous>, transform_indices = @transform_1, window_bounds = array<i64: 1, 8>}, {pipeline_mode = #tpu.pipeline_mode<synchronous>, transform_indices = @transform_2, window_bounds = array<i64: 1, 8>}]} {
    %c0_i32 = arith.constant 0 : i32
    %0 = arith.cmpi eq, %arg0, %c0_i32 : i32
    %1 = arith.extui %0 : i1 to i32
    %c0_i32_0 = arith.constant 0 : i32
    %2 = arith.cmpi ne, %1, %c0_i32_0 : i32
    scf.if %2 {
      %cst_11 = arith.constant 0.000000e+00 : f32
      %15 = vector.broadcast %cst_11 : f32 to vector<1x8xf32>
      %c0_12 = arith.constant 0 : index
      %c0_13 = arith.constant 0 : index
      %16 = vector.load %arg2[%c0_12, %c0_13] : memref<1x8xf32, #tpu.memory_space<vmem>>, vector<1x8xf32>
      tpu.vector_store %arg2[%c0_12, %c0_13], %15 {strides = array<i32>} : memref<1x8xf32, #tpu.memory_space<vmem>>, vector<1x8xf32>,
      %cst_14 = arith.constant 0.000000e+00 : f32
      %17 = vector.broadcast %cst_14 : f32 to vector<1x8xf32>
      %c0_15 = arith.constant 0 : index
      %c0_16 = arith.constant 0 : index
      %18 = vector.load %arg3[%c0_15, %c0_16] : memref<1x8xf32, #tpu.memory_space<vmem>>, vector<1x8xf32>
      tpu.vector_store %arg3[%c0_15, %c0_16], %17 {strides = array<i32>} : memref<1x8xf32, #tpu.memory_space<vmem>>, vector<1x8xf32>,
    } else {
    }
    %c0 = arith.constant 0 : index
    %c0_1 = arith.constant 0 : index
    %3 = vector.load %arg1[%c0, %c0_1] : memref<512x8xf32, #tpu.memory_space<vmem>>, vector<512x8xf32>
    %c0_2 = arith.constant 0 : index
    %c0_3 = arith.constant 0 : index
    %4 = vector.load %arg2[%c0_2, %c0_3] : memref<1x8xf32, #tpu.memory_space<vmem>>, vector<1x8xf32>
    %cst = arith.constant dense<0.000000e+00> : vector<8xf32>
    %5 = vector.multi_reduction <add>, %3, %cst [0] : vector<512x8xf32> to vector<8xf32>
    %6 = vector.shape_cast %5 : vector<8xf32> to vector<1x8xf32>
    %7 = arith.addf %4, %6 : vector<1x8xf32>
    %c0_4 = arith.constant 0 : index
    %c0_5 = arith.constant 0 : index
    %8 = vector.load %arg2[%c0_4, %c0_5] : memref<1x8xf32, #tpu.memory_space<vmem>>, vector<1x8xf32>
    tpu.vector_store %arg2[%c0_4, %c0_5], %7 {strides = array<i32>} : memref<1x8xf32, #tpu.memory_space<vmem>>, vector<1x8xf32>,
    %c0_6 = arith.constant 0 : index
    %c0_7 = arith.constant 0 : index
    %9 = vector.load %arg3[%c0_6, %c0_7] : memref<1x8xf32, #tpu.memory_space<vmem>>, vector<1x8xf32>
    %10 = arith.mulf %3, %3 : vector<512x8xf32>
    %cst_8 = arith.constant dense<0.000000e+00> : vector<8xf32>
    %11 = vector.multi_reduction <add>, %10, %cst_8 [0] : vector<512x8xf32> to vector<8xf32>
    %12 = vector.shape_cast %11 : vector<8xf32> to vector<1x8xf32>
    %13 = arith.addf %9, %12 : vector<1x8xf32>
    %c0_9 = arith.constant 0 : index
    %c0_10 = arith.constant 0 : index
    %14 = vector.load %arg3[%c0_9, %c0_10] : memref<1x8xf32, #tpu.memory_space<vmem>>, vector<1x8xf32>
    tpu.vector_store %arg3[%c0_9, %c0_10], %13 {strides = array<i32>} : memref<1x8xf32, #tpu.memory_space<vmem>>, vector<1x8xf32>,
    return
  }
  func.func @transform_0(%arg0: i32) -> (i32, i32) {
    %c0_i32 = arith.constant 0 : i32
    %c0_i32_0 = arith.constant 0 : i32
    return %arg0, %c0_i32 : i32, i32
  }
  func.func @transform_1(%arg0: i32) -> (i32, i32) {
    %c0_i32 = arith.constant 0 : i32
    %c0_i32_0 = arith.constant 0 : i32
    %c0_i32_1 = arith.constant 0 : i32
    return %c0_i32, %c0_i32_0 : i32, i32
  }
  func.func @transform_2(%arg0: i32) -> (i32, i32) {
    %c0_i32 = arith.constant 0 : i32
    %c0_i32_0 = arith.constant 0 : i32
    %c0_i32_1 = arith.constant 0 : i32
    return %c0_i32, %c0_i32_0 : i32, i32
  }
}

module attributes {stable_mosaic.version = 11 : i64} {
  func.func @_bn_norm_kernel(%arg0: i32, %arg1: memref<512x8xf32, #tpu.memory_space<vmem>>, %arg2: memref<1x8xf32, #tpu.memory_space<vmem>>, %arg3: memref<1x8xf32, #tpu.memory_space<vmem>>, %arg4: memref<512x8xf32, #tpu.memory_space<vmem>>) attributes {dimension_semantics = [#tpu.dimension_semantics<parallel>], iteration_bounds = array<i64: 1>, scalar_prefetch = 0 : i64, scratch_operands = 0 : i64, tpu.core_type = #tpu.core_type<tc>, window_params = [{transform_indices = @transform_0, window_bounds = array<i64: 512, 8>}, {pipeline_mode = #tpu.pipeline_mode<synchronous>, transform_indices = @transform_1, window_bounds = array<i64: 1, 8>}, {pipeline_mode = #tpu.pipeline_mode<synchronous>, transform_indices = @transform_2, window_bounds = array<i64: 1, 8>}, {transform_indices = @transform_3, window_bounds = array<i64: 512, 8>}]} {
    %c0 = arith.constant 0 : index
    %c0_0 = arith.constant 0 : index
    %0 = vector.load %arg1[%c0, %c0_0] : memref<512x8xf32, #tpu.memory_space<vmem>>, vector<512x8xf32>
    %c0_1 = arith.constant 0 : index
    %c0_2 = arith.constant 0 : index
    %1 = vector.load %arg2[%c0_1, %c0_2] : memref<1x8xf32, #tpu.memory_space<vmem>>, vector<1x8xf32>
    %2 = vector.broadcast %1 : vector<1x8xf32> to vector<512x8xf32>
    %3 = arith.mulf %0, %2 : vector<512x8xf32>
    %c0_3 = arith.constant 0 : index
    %c0_4 = arith.constant 0 : index
    %4 = vector.load %arg3[%c0_3, %c0_4] : memref<1x8xf32, #tpu.memory_space<vmem>>, vector<1x8xf32>
    %5 = vector.broadcast %4 : vector<1x8xf32> to vector<512x8xf32>
    %6 = arith.addf %3, %5 : vector<512x8xf32>
    %c0_5 = arith.constant 0 : index
    %c0_6 = arith.constant 0 : index
    %7 = vector.load %arg4[%c0_5, %c0_6] : memref<512x8xf32, #tpu.memory_space<vmem>>, vector<512x8xf32>
    tpu.vector_store %arg4[%c0_5, %c0_6], %6 {strides = array<i32>} : memref<512x8xf32, #tpu.memory_space<vmem>>, vector<512x8xf32>,
    return
  }
  func.func @transform_0(%arg0: i32) -> (i32, i32) {
    %c0_i32 = arith.constant 0 : i32
    %c0_i32_0 = arith.constant 0 : i32
    return %arg0, %c0_i32 : i32, i32
  }
  func.func @transform_1(%arg0: i32) -> (i32, i32) {
    %c0_i32 = arith.constant 0 : i32
    %c0_i32_0 = arith.constant 0 : i32
    %c0_i32_1 = arith.constant 0 : i32
    return %c0_i32, %c0_i32_0 : i32, i32
  }
  func.func @transform_2(%arg0: i32) -> (i32, i32) {
    %c0_i32 = arith.constant 0 : i32
    %c0_i32_0 = arith.constant 0 : i32
    %c0_i32_1 = arith.constant 0 : i32
    return %c0_i32, %c0_i32_0 : i32, i32
  }
  func.func @transform_3(%arg0: i32) -> (i32, i32) {
    %c0_i32 = arith.constant 0 : i32
    %c0_i32_0 = arith.constant 0 : i32
    return %arg0, %c0_i32 : i32, i32
  }
}

module attributes {stable_mosaic.version = 11 : i64} {
  func.func @_act_kernel(%arg0: i32, %arg1: memref<32x128xf32, #tpu.memory_space<vmem>>, %arg2: memref<32x128xbf16, #tpu.memory_space<vmem>>) attributes {dimension_semantics = [#tpu.dimension_semantics<parallel>], iteration_bounds = array<i64: 1>, scalar_prefetch = 0 : i64, scratch_operands = 0 : i64, tpu.core_type = #tpu.core_type<tc>, window_params = [{transform_indices = @transform_0, window_bounds = array<i64: 32, 128>}, {transform_indices = @transform_1, window_bounds = array<i64: 32, 128>}]} {
    %c0 = arith.constant 0 : index
    %c0_0 = arith.constant 0 : index
    %0 = vector.load %arg1[%c0, %c0_0] : memref<32x128xf32, #tpu.memory_space<vmem>>, vector<32x128xf32>
    %cst = arith.constant 0.000000e+00 : f32
    %1 = vector.broadcast %cst : f32 to vector<32x128xf32>
    %2 = arith.cmpf oge, %0, %1 : vector<32x128xf32>
    %cst_1 = arith.constant 2.000000e-01 : f32
    %3 = vector.broadcast %cst_1 : f32 to vector<32x128xf32>
    %4 = arith.mulf %3, %0 : vector<32x128xf32>
    %5 = arith.select %2, %0, %4 : vector<32x128xi1>, vector<32x128xf32>
    %6 = arith.truncf %5 : vector<32x128xf32> to vector<32x128xbf16>
    %c0_2 = arith.constant 0 : index
    %c0_3 = arith.constant 0 : index
    %7 = vector.load %arg2[%c0_2, %c0_3] : memref<32x128xbf16, #tpu.memory_space<vmem>>, vector<32x128xbf16>
    tpu.vector_store %arg2[%c0_2, %c0_3], %6 {strides = array<i32>} : memref<32x128xbf16, #tpu.memory_space<vmem>>, vector<32x128xbf16>,
    return
  }
  func.func @transform_0(%arg0: i32) -> (i32, i32) {
    %c0_i32 = arith.constant 0 : i32
    %c0_i32_0 = arith.constant 0 : i32
    return %arg0, %c0_i32 : i32, i32
  }
  func.func @transform_1(%arg0: i32) -> (i32, i32) {
    %c0_i32 = arith.constant 0 : i32
    %c0_i32_0 = arith.constant 0 : i32
    return %arg0, %c0_i32 : i32, i32
  }
}

module attributes {stable_mosaic.version = 11 : i64} {
  func.func @_matmul_kernel(%arg0: i32, %arg1: i32, %arg2: i32, %arg3: memref<128x128xbf16, #tpu.memory_space<vmem>>, %arg4: memref<128x128xbf16, #tpu.memory_space<vmem>>, %arg5: memref<1x128xf32, #tpu.memory_space<vmem>>, %arg6: memref<128x128xf32, #tpu.memory_space<vmem>>, %arg7: memref<128x128xf32, #tpu.memory_space<vmem>>) attributes {dimension_semantics = [#tpu.dimension_semantics<parallel>, #tpu.dimension_semantics<parallel>, #tpu.dimension_semantics<arbitrary>], iteration_bounds = array<i64: 1, 1, 1>, scalar_prefetch = 0 : i64, scratch_operands = 1 : i64, tpu.core_type = #tpu.core_type<tc>, window_params = [{transform_indices = @transform_0, window_bounds = array<i64: 128, 128>}, {transform_indices = @transform_1, window_bounds = array<i64: 128, 128>}, {transform_indices = @transform_2, window_bounds = array<i64: 1, 128>}, {transform_indices = @transform_3, window_bounds = array<i64: 128, 128>}]} {
    %c0_i32 = arith.constant 0 : i32
    %0 = arith.cmpi eq, %arg2, %c0_i32 : i32
    %1 = arith.extui %0 : i1 to i32
    %c0_i32_0 = arith.constant 0 : i32
    %2 = arith.cmpi ne, %1, %c0_i32_0 : i32
    scf.if %2 {
      %cst_10 = arith.constant 0.000000e+00 : f32
      %12 = vector.broadcast %cst_10 : f32 to vector<128x128xf32>
      %c0_11 = arith.constant 0 : index
      %c0_12 = arith.constant 0 : index
      %13 = vector.load %arg7[%c0_11, %c0_12] : memref<128x128xf32, #tpu.memory_space<vmem>>, vector<128x128xf32>
      tpu.vector_store %arg7[%c0_11, %c0_12], %12 {strides = array<i32>} : memref<128x128xf32, #tpu.memory_space<vmem>>, vector<128x128xf32>,
    } else {
    }
    %c0 = arith.constant 0 : index
    %c0_1 = arith.constant 0 : index
    %3 = vector.load %arg7[%c0, %c0_1] : memref<128x128xf32, #tpu.memory_space<vmem>>, vector<128x128xf32>
    %c0_2 = arith.constant 0 : index
    %c0_3 = arith.constant 0 : index
    %4 = vector.load %arg3[%c0_2, %c0_3] : memref<128x128xbf16, #tpu.memory_space<vmem>>, vector<128x128xbf16>
    %c0_4 = arith.constant 0 : index
    %c0_5 = arith.constant 0 : index
    %5 = vector.load %arg4[%c0_4, %c0_5] : memref<128x128xbf16, #tpu.memory_space<vmem>>, vector<128x128xbf16>
    %cst = arith.constant dense<0.000000e+00> : vector<128x128xf32>
    %6 = tpu.matmul %4, %5, %cst {dimension_numbers = #tpu.dot_dimension_numbers<[1], [0], [0], [1], [0, 0, 1, 1], [], []>} : vector<128x128xbf16>, vector<128x128xbf16>, vector<128x128xf32> -> vector<128x128xf32>
    %7 = arith.addf %3, %6 : vector<128x128xf32>
    %c0_6 = arith.constant 0 : index
    %c0_7 = arith.constant 0 : index
    %8 = vector.load %arg7[%c0_6, %c0_7] : memref<128x128xf32, #tpu.memory_space<vmem>>, vector<128x128xf32>
    tpu.vector_store %arg7[%c0_6, %c0_7], %7 {strides = array<i32>} : memref<128x128xf32, #tpu.memory_space<vmem>>, vector<128x128xf32>,
    %c0_i32_8 = arith.constant 0 : i32
    %9 = arith.cmpi eq, %arg2, %c0_i32_8 : i32
    %10 = arith.extui %9 : i1 to i32
    %c0_i32_9 = arith.constant 0 : i32
    %11 = arith.cmpi ne, %10, %c0_i32_9 : i32
    scf.if %11 {
      %c0_10 = arith.constant 0 : index
      %c0_11 = arith.constant 0 : index
      %12 = vector.load %arg7[%c0_10, %c0_11] : memref<128x128xf32, #tpu.memory_space<vmem>>, vector<128x128xf32>
      %c0_12 = arith.constant 0 : index
      %c0_13 = arith.constant 0 : index
      %13 = vector.load %arg5[%c0_12, %c0_13] : memref<1x128xf32, #tpu.memory_space<vmem>>, vector<1x128xf32>
      %14 = vector.broadcast %13 : vector<1x128xf32> to vector<128x128xf32>
      %15 = arith.addf %12, %14 : vector<128x128xf32>
      %c0_14 = arith.constant 0 : index
      %c0_15 = arith.constant 0 : index
      %16 = vector.load %arg6[%c0_14, %c0_15] : memref<128x128xf32, #tpu.memory_space<vmem>>, vector<128x128xf32>
      tpu.vector_store %arg6[%c0_14, %c0_15], %15 {strides = array<i32>} : memref<128x128xf32, #tpu.memory_space<vmem>>, vector<128x128xf32>,
    } else {
    }
    return
  }
  func.func @transform_0(%arg0: i32, %arg1: i32, %arg2: i32) -> (i32, i32) {
    %c0_i32 = arith.constant 0 : i32
    return %arg0, %arg2 : i32, i32
  }
  func.func @transform_1(%arg0: i32, %arg1: i32, %arg2: i32) -> (i32, i32) {
    %c0_i32 = arith.constant 0 : i32
    return %arg2, %arg1 : i32, i32
  }
  func.func @transform_2(%arg0: i32, %arg1: i32, %arg2: i32) -> (i32, i32) {
    %c0_i32 = arith.constant 0 : i32
    %c0_i32_0 = arith.constant 0 : i32
    return %c0_i32, %arg1 : i32, i32
  }
  func.func @transform_3(%arg0: i32, %arg1: i32, %arg2: i32) -> (i32, i32) {
    %c0_i32 = arith.constant 0 : i32
    return %arg0, %arg1 : i32, i32
  }
}

module attributes {stable_mosaic.version = 11 : i64} {
  func.func @_bn_stats_kernel(%arg0: i32, %arg1: memref<128x16xf32, #tpu.memory_space<vmem>>, %arg2: memref<1x16xf32, #tpu.memory_space<vmem>>, %arg3: memref<1x16xf32, #tpu.memory_space<vmem>>) attributes {dimension_semantics = [#tpu.dimension_semantics<arbitrary>], iteration_bounds = array<i64: 1>, scalar_prefetch = 0 : i64, scratch_operands = 0 : i64, tpu.core_type = #tpu.core_type<tc>, window_params = [{transform_indices = @transform_0, window_bounds = array<i64: 128, 16>}, {pipeline_mode = #tpu.pipeline_mode<synchronous>, transform_indices = @transform_1, window_bounds = array<i64: 1, 16>}, {pipeline_mode = #tpu.pipeline_mode<synchronous>, transform_indices = @transform_2, window_bounds = array<i64: 1, 16>}]} {
    %c0_i32 = arith.constant 0 : i32
    %0 = arith.cmpi eq, %arg0, %c0_i32 : i32
    %1 = arith.extui %0 : i1 to i32
    %c0_i32_0 = arith.constant 0 : i32
    %2 = arith.cmpi ne, %1, %c0_i32_0 : i32
    scf.if %2 {
      %cst_11 = arith.constant 0.000000e+00 : f32
      %15 = vector.broadcast %cst_11 : f32 to vector<1x16xf32>
      %c0_12 = arith.constant 0 : index
      %c0_13 = arith.constant 0 : index
      %16 = vector.load %arg2[%c0_12, %c0_13] : memref<1x16xf32, #tpu.memory_space<vmem>>, vector<1x16xf32>
      tpu.vector_store %arg2[%c0_12, %c0_13], %15 {strides = array<i32>} : memref<1x16xf32, #tpu.memory_space<vmem>>, vector<1x16xf32>,
      %cst_14 = arith.constant 0.000000e+00 : f32
      %17 = vector.broadcast %cst_14 : f32 to vector<1x16xf32>
      %c0_15 = arith.constant 0 : index
      %c0_16 = arith.constant 0 : index
      %18 = vector.load %arg3[%c0_15, %c0_16] : memref<1x16xf32, #tpu.memory_space<vmem>>, vector<1x16xf32>
      tpu.vector_store %arg3[%c0_15, %c0_16], %17 {strides = array<i32>} : memref<1x16xf32, #tpu.memory_space<vmem>>, vector<1x16xf32>,
    } else {
    }
    %c0 = arith.constant 0 : index
    %c0_1 = arith.constant 0 : index
    %3 = vector.load %arg1[%c0, %c0_1] : memref<128x16xf32, #tpu.memory_space<vmem>>, vector<128x16xf32>
    %c0_2 = arith.constant 0 : index
    %c0_3 = arith.constant 0 : index
    %4 = vector.load %arg2[%c0_2, %c0_3] : memref<1x16xf32, #tpu.memory_space<vmem>>, vector<1x16xf32>
    %cst = arith.constant dense<0.000000e+00> : vector<16xf32>
    %5 = vector.multi_reduction <add>, %3, %cst [0] : vector<128x16xf32> to vector<16xf32>
    %6 = vector.shape_cast %5 : vector<16xf32> to vector<1x16xf32>
    %7 = arith.addf %4, %6 : vector<1x16xf32>
    %c0_4 = arith.constant 0 : index
    %c0_5 = arith.constant 0 : index
    %8 = vector.load %arg2[%c0_4, %c0_5] : memref<1x16xf32, #tpu.memory_space<vmem>>, vector<1x16xf32>
    tpu.vector_store %arg2[%c0_4, %c0_5], %7 {strides = array<i32>} : memref<1x16xf32, #tpu.memory_space<vmem>>, vector<1x16xf32>,
    %c0_6 = arith.constant 0 : index
    %c0_7 = arith.constant 0 : index
    %9 = vector.load %arg3[%c0_6, %c0_7] : memref<1x16xf32, #tpu.memory_space<vmem>>, vector<1x16xf32>
    %10 = arith.mulf %3, %3 : vector<128x16xf32>
    %cst_8 = arith.constant dense<0.000000e+00> : vector<16xf32>
    %11 = vector.multi_reduction <add>, %10, %cst_8 [0] : vector<128x16xf32> to vector<16xf32>
    %12 = vector.shape_cast %11 : vector<16xf32> to vector<1x16xf32>
    %13 = arith.addf %9, %12 : vector<1x16xf32>
    %c0_9 = arith.constant 0 : index
    %c0_10 = arith.constant 0 : index
    %14 = vector.load %arg3[%c0_9, %c0_10] : memref<1x16xf32, #tpu.memory_space<vmem>>, vector<1x16xf32>
    tpu.vector_store %arg3[%c0_9, %c0_10], %13 {strides = array<i32>} : memref<1x16xf32, #tpu.memory_space<vmem>>, vector<1x16xf32>,
    return
  }
  func.func @transform_0(%arg0: i32) -> (i32, i32) {
    %c0_i32 = arith.constant 0 : i32
    %c0_i32_0 = arith.constant 0 : i32
    return %arg0, %c0_i32 : i32, i32
  }
  func.func @transform_1(%arg0: i32) -> (i32, i32) {
    %c0_i32 = arith.constant 0 : i32
    %c0_i32_0 = arith.constant 0 : i32
    %c0_i32_1 = arith.constant 0 : i32
    return %c0_i32, %c0_i32_0 : i32, i32
  }
  func.func @transform_2(%arg0: i32) -> (i32, i32) {
    %c0_i32 = arith.constant 0 : i32
    %c0_i32_0 = arith.constant 0 : i32
    %c0_i32_1 = arith.constant 0 : i32
    return %c0_i32, %c0_i32_0 : i32, i32
  }
}

module attributes {stable_mosaic.version = 11 : i64} {
  func.func @_bn_norm_kernel(%arg0: i32, %arg1: memref<128x16xf32, #tpu.memory_space<vmem>>, %arg2: memref<1x16xf32, #tpu.memory_space<vmem>>, %arg3: memref<1x16xf32, #tpu.memory_space<vmem>>, %arg4: memref<128x16xf32, #tpu.memory_space<vmem>>) attributes {dimension_semantics = [#tpu.dimension_semantics<parallel>], iteration_bounds = array<i64: 1>, scalar_prefetch = 0 : i64, scratch_operands = 0 : i64, tpu.core_type = #tpu.core_type<tc>, window_params = [{transform_indices = @transform_0, window_bounds = array<i64: 128, 16>}, {pipeline_mode = #tpu.pipeline_mode<synchronous>, transform_indices = @transform_1, window_bounds = array<i64: 1, 16>}, {pipeline_mode = #tpu.pipeline_mode<synchronous>, transform_indices = @transform_2, window_bounds = array<i64: 1, 16>}, {transform_indices = @transform_3, window_bounds = array<i64: 128, 16>}]} {
    %c0 = arith.constant 0 : index
    %c0_0 = arith.constant 0 : index
    %0 = vector.load %arg1[%c0, %c0_0] : memref<128x16xf32, #tpu.memory_space<vmem>>, vector<128x16xf32>
    %c0_1 = arith.constant 0 : index
    %c0_2 = arith.constant 0 : index
    %1 = vector.load %arg2[%c0_1, %c0_2] : memref<1x16xf32, #tpu.memory_space<vmem>>, vector<1x16xf32>
    %2 = vector.broadcast %1 : vector<1x16xf32> to vector<128x16xf32>
    %3 = arith.mulf %0, %2 : vector<128x16xf32>
    %c0_3 = arith.constant 0 : index
    %c0_4 = arith.constant 0 : index
    %4 = vector.load %arg3[%c0_3, %c0_4] : memref<1x16xf32, #tpu.memory_space<vmem>>, vector<1x16xf32>
    %5 = vector.broadcast %4 : vector<1x16xf32> to vector<128x16xf32>
    %6 = arith.addf %3, %5 : vector<128x16xf32>
    %c0_5 = arith.constant 0 : index
    %c0_6 = arith.constant 0 : index
    %7 = vector.load %arg4[%c0_5, %c0_6] : memref<128x16xf32, #tpu.memory_space<vmem>>, vector<128x16xf32>
    tpu.vector_store %arg4[%c0_5, %c0_6], %6 {strides = array<i32>} : memref<128x16xf32, #tpu.memory_space<vmem>>, vector<128x16xf32>,
    return
  }
  func.func @transform_0(%arg0: i32) -> (i32, i32) {
    %c0_i32 = arith.constant 0 : i32
    %c0_i32_0 = arith.constant 0 : i32
    return %arg0, %c0_i32 : i32, i32
  }
  func.func @transform_1(%arg0: i32) -> (i32, i32) {
    %c0_i32 = arith.constant 0 : i32
    %c0_i32_0 = arith.constant 0 : i32
    %c0_i32_1 = arith.constant 0 : i32
    return %c0_i32, %c0_i32_0 : i32, i32
  }
  func.func @transform_2(%arg0: i32) -> (i32, i32) {
    %c0_i32 = arith.constant 0 : i32
    %c0_i32_0 = arith.constant 0 : i32
    %c0_i32_1 = arith.constant 0 : i32
    return %c0_i32, %c0_i32_0 : i32, i32
  }
  func.func @transform_3(%arg0: i32) -> (i32, i32) {
    %c0_i32 = arith.constant 0 : i32
    %c0_i32_0 = arith.constant 0 : i32
    return %arg0, %c0_i32 : i32, i32
  }
}

module attributes {stable_mosaic.version = 11 : i64} {
  func.func @_act_kernel(%arg0: i32, %arg1: memref<16x128xf32, #tpu.memory_space<vmem>>, %arg2: memref<16x128xbf16, #tpu.memory_space<vmem>>) attributes {dimension_semantics = [#tpu.dimension_semantics<parallel>], iteration_bounds = array<i64: 1>, scalar_prefetch = 0 : i64, scratch_operands = 0 : i64, tpu.core_type = #tpu.core_type<tc>, window_params = [{transform_indices = @transform_0, window_bounds = array<i64: 16, 128>}, {transform_indices = @transform_1, window_bounds = array<i64: 16, 128>}]} {
    %c0 = arith.constant 0 : index
    %c0_0 = arith.constant 0 : index
    %0 = vector.load %arg1[%c0, %c0_0] : memref<16x128xf32, #tpu.memory_space<vmem>>, vector<16x128xf32>
    %cst = arith.constant 0.000000e+00 : f32
    %1 = vector.broadcast %cst : f32 to vector<16x128xf32>
    %2 = arith.cmpf oge, %0, %1 : vector<16x128xf32>
    %cst_1 = arith.constant 2.000000e-01 : f32
    %3 = vector.broadcast %cst_1 : f32 to vector<16x128xf32>
    %4 = arith.mulf %3, %0 : vector<16x128xf32>
    %5 = arith.select %2, %0, %4 : vector<16x128xi1>, vector<16x128xf32>
    %6 = arith.truncf %5 : vector<16x128xf32> to vector<16x128xbf16>
    %c0_2 = arith.constant 0 : index
    %c0_3 = arith.constant 0 : index
    %7 = vector.load %arg2[%c0_2, %c0_3] : memref<16x128xbf16, #tpu.memory_space<vmem>>, vector<16x128xbf16>
    tpu.vector_store %arg2[%c0_2, %c0_3], %6 {strides = array<i32>} : memref<16x128xbf16, #tpu.memory_space<vmem>>, vector<16x128xbf16>,
    return
  }
  func.func @transform_0(%arg0: i32) -> (i32, i32) {
    %c0_i32 = arith.constant 0 : i32
    %c0_i32_0 = arith.constant 0 : i32
    return %arg0, %c0_i32 : i32, i32
  }
  func.func @transform_1(%arg0: i32) -> (i32, i32) {
    %c0_i32 = arith.constant 0 : i32
    %c0_i32_0 = arith.constant 0 : i32
    return %arg0, %c0_i32 : i32, i32
  }
}

module attributes {stable_mosaic.version = 11 : i64} {
  func.func @_matmul_kernel(%arg0: i32, %arg1: i32, %arg2: i32, %arg3: memref<32x256xbf16, #tpu.memory_space<vmem>>, %arg4: memref<256x128xbf16, #tpu.memory_space<vmem>>, %arg5: memref<1x128xf32, #tpu.memory_space<vmem>>, %arg6: memref<32x128xf32, #tpu.memory_space<vmem>>, %arg7: memref<32x128xf32, #tpu.memory_space<vmem>>) attributes {dimension_semantics = [#tpu.dimension_semantics<parallel>, #tpu.dimension_semantics<parallel>, #tpu.dimension_semantics<arbitrary>], iteration_bounds = array<i64: 1, 1, 1>, scalar_prefetch = 0 : i64, scratch_operands = 1 : i64, tpu.core_type = #tpu.core_type<tc>, window_params = [{transform_indices = @transform_0, window_bounds = array<i64: 32, 256>}, {transform_indices = @transform_1, window_bounds = array<i64: 256, 128>}, {transform_indices = @transform_2, window_bounds = array<i64: 1, 128>}, {transform_indices = @transform_3, window_bounds = array<i64: 32, 128>}]} {
    %c0_i32 = arith.constant 0 : i32
    %0 = arith.cmpi eq, %arg2, %c0_i32 : i32
    %1 = arith.extui %0 : i1 to i32
    %c0_i32_0 = arith.constant 0 : i32
    %2 = arith.cmpi ne, %1, %c0_i32_0 : i32
    scf.if %2 {
      %cst_10 = arith.constant 0.000000e+00 : f32
      %12 = vector.broadcast %cst_10 : f32 to vector<32x128xf32>
      %c0_11 = arith.constant 0 : index
      %c0_12 = arith.constant 0 : index
      %13 = vector.load %arg7[%c0_11, %c0_12] : memref<32x128xf32, #tpu.memory_space<vmem>>, vector<32x128xf32>
      tpu.vector_store %arg7[%c0_11, %c0_12], %12 {strides = array<i32>} : memref<32x128xf32, #tpu.memory_space<vmem>>, vector<32x128xf32>,
    } else {
    }
    %c0 = arith.constant 0 : index
    %c0_1 = arith.constant 0 : index
    %3 = vector.load %arg7[%c0, %c0_1] : memref<32x128xf32, #tpu.memory_space<vmem>>, vector<32x128xf32>
    %c0_2 = arith.constant 0 : index
    %c0_3 = arith.constant 0 : index
    %4 = vector.load %arg3[%c0_2, %c0_3] : memref<32x256xbf16, #tpu.memory_space<vmem>>, vector<32x256xbf16>
    %c0_4 = arith.constant 0 : index
    %c0_5 = arith.constant 0 : index
    %5 = vector.load %arg4[%c0_4, %c0_5] : memref<256x128xbf16, #tpu.memory_space<vmem>>, vector<256x128xbf16>
    %cst = arith.constant dense<0.000000e+00> : vector<32x128xf32>
    %6 = tpu.matmul %4, %5, %cst {dimension_numbers = #tpu.dot_dimension_numbers<[1], [0], [0], [1], [0, 0, 1, 1], [], []>} : vector<32x256xbf16>, vector<256x128xbf16>, vector<32x128xf32> -> vector<32x128xf32>
    %7 = arith.addf %3, %6 : vector<32x128xf32>
    %c0_6 = arith.constant 0 : index
    %c0_7 = arith.constant 0 : index
    %8 = vector.load %arg7[%c0_6, %c0_7] : memref<32x128xf32, #tpu.memory_space<vmem>>, vector<32x128xf32>
    tpu.vector_store %arg7[%c0_6, %c0_7], %7 {strides = array<i32>} : memref<32x128xf32, #tpu.memory_space<vmem>>, vector<32x128xf32>,
    %c0_i32_8 = arith.constant 0 : i32
    %9 = arith.cmpi eq, %arg2, %c0_i32_8 : i32
    %10 = arith.extui %9 : i1 to i32
    %c0_i32_9 = arith.constant 0 : i32
    %11 = arith.cmpi ne, %10, %c0_i32_9 : i32
    scf.if %11 {
      %c0_10 = arith.constant 0 : index
      %c0_11 = arith.constant 0 : index
      %12 = vector.load %arg7[%c0_10, %c0_11] : memref<32x128xf32, #tpu.memory_space<vmem>>, vector<32x128xf32>
      %c0_12 = arith.constant 0 : index
      %c0_13 = arith.constant 0 : index
      %13 = vector.load %arg5[%c0_12, %c0_13] : memref<1x128xf32, #tpu.memory_space<vmem>>, vector<1x128xf32>
      %14 = vector.broadcast %13 : vector<1x128xf32> to vector<32x128xf32>
      %15 = arith.addf %12, %14 : vector<32x128xf32>
      %c0_14 = arith.constant 0 : index
      %c0_15 = arith.constant 0 : index
      %16 = vector.load %arg6[%c0_14, %c0_15] : memref<32x128xf32, #tpu.memory_space<vmem>>, vector<32x128xf32>
      tpu.vector_store %arg6[%c0_14, %c0_15], %15 {strides = array<i32>} : memref<32x128xf32, #tpu.memory_space<vmem>>, vector<32x128xf32>,
    } else {
    }
    return
  }
  func.func @transform_0(%arg0: i32, %arg1: i32, %arg2: i32) -> (i32, i32) {
    %c0_i32 = arith.constant 0 : i32
    return %arg0, %arg2 : i32, i32
  }
  func.func @transform_1(%arg0: i32, %arg1: i32, %arg2: i32) -> (i32, i32) {
    %c0_i32 = arith.constant 0 : i32
    return %arg2, %arg1 : i32, i32
  }
  func.func @transform_2(%arg0: i32, %arg1: i32, %arg2: i32) -> (i32, i32) {
    %c0_i32 = arith.constant 0 : i32
    %c0_i32_0 = arith.constant 0 : i32
    return %c0_i32, %arg1 : i32, i32
  }
  func.func @transform_3(%arg0: i32, %arg1: i32, %arg2: i32) -> (i32, i32) {
    %c0_i32 = arith.constant 0 : i32
    return %arg0, %arg1 : i32, i32
  }
}

module attributes {stable_mosaic.version = 11 : i64} {
  func.func @_bn_stats_kernel(%arg0: i32, %arg1: memref<32x32xf32, #tpu.memory_space<vmem>>, %arg2: memref<1x32xf32, #tpu.memory_space<vmem>>, %arg3: memref<1x32xf32, #tpu.memory_space<vmem>>) attributes {dimension_semantics = [#tpu.dimension_semantics<arbitrary>], iteration_bounds = array<i64: 1>, scalar_prefetch = 0 : i64, scratch_operands = 0 : i64, tpu.core_type = #tpu.core_type<tc>, window_params = [{transform_indices = @transform_0, window_bounds = array<i64: 32, 32>}, {pipeline_mode = #tpu.pipeline_mode<synchronous>, transform_indices = @transform_1, window_bounds = array<i64: 1, 32>}, {pipeline_mode = #tpu.pipeline_mode<synchronous>, transform_indices = @transform_2, window_bounds = array<i64: 1, 32>}]} {
    %c0_i32 = arith.constant 0 : i32
    %0 = arith.cmpi eq, %arg0, %c0_i32 : i32
    %1 = arith.extui %0 : i1 to i32
    %c0_i32_0 = arith.constant 0 : i32
    %2 = arith.cmpi ne, %1, %c0_i32_0 : i32
    scf.if %2 {
      %cst_11 = arith.constant 0.000000e+00 : f32
      %15 = vector.broadcast %cst_11 : f32 to vector<1x32xf32>
      %c0_12 = arith.constant 0 : index
      %c0_13 = arith.constant 0 : index
      %16 = vector.load %arg2[%c0_12, %c0_13] : memref<1x32xf32, #tpu.memory_space<vmem>>, vector<1x32xf32>
      tpu.vector_store %arg2[%c0_12, %c0_13], %15 {strides = array<i32>} : memref<1x32xf32, #tpu.memory_space<vmem>>, vector<1x32xf32>,
      %cst_14 = arith.constant 0.000000e+00 : f32
      %17 = vector.broadcast %cst_14 : f32 to vector<1x32xf32>
      %c0_15 = arith.constant 0 : index
      %c0_16 = arith.constant 0 : index
      %18 = vector.load %arg3[%c0_15, %c0_16] : memref<1x32xf32, #tpu.memory_space<vmem>>, vector<1x32xf32>
      tpu.vector_store %arg3[%c0_15, %c0_16], %17 {strides = array<i32>} : memref<1x32xf32, #tpu.memory_space<vmem>>, vector<1x32xf32>,
    } else {
    }
    %c0 = arith.constant 0 : index
    %c0_1 = arith.constant 0 : index
    %3 = vector.load %arg1[%c0, %c0_1] : memref<32x32xf32, #tpu.memory_space<vmem>>, vector<32x32xf32>
    %c0_2 = arith.constant 0 : index
    %c0_3 = arith.constant 0 : index
    %4 = vector.load %arg2[%c0_2, %c0_3] : memref<1x32xf32, #tpu.memory_space<vmem>>, vector<1x32xf32>
    %cst = arith.constant dense<0.000000e+00> : vector<32xf32>
    %5 = vector.multi_reduction <add>, %3, %cst [0] : vector<32x32xf32> to vector<32xf32>
    %6 = vector.shape_cast %5 : vector<32xf32> to vector<1x32xf32>
    %7 = arith.addf %4, %6 : vector<1x32xf32>
    %c0_4 = arith.constant 0 : index
    %c0_5 = arith.constant 0 : index
    %8 = vector.load %arg2[%c0_4, %c0_5] : memref<1x32xf32, #tpu.memory_space<vmem>>, vector<1x32xf32>
    tpu.vector_store %arg2[%c0_4, %c0_5], %7 {strides = array<i32>} : memref<1x32xf32, #tpu.memory_space<vmem>>, vector<1x32xf32>,
    %c0_6 = arith.constant 0 : index
    %c0_7 = arith.constant 0 : index
    %9 = vector.load %arg3[%c0_6, %c0_7] : memref<1x32xf32, #tpu.memory_space<vmem>>, vector<1x32xf32>
    %10 = arith.mulf %3, %3 : vector<32x32xf32>
    %cst_8 = arith.constant dense<0.000000e+00> : vector<32xf32>
    %11 = vector.multi_reduction <add>, %10, %cst_8 [0] : vector<32x32xf32> to vector<32xf32>
    %12 = vector.shape_cast %11 : vector<32xf32> to vector<1x32xf32>
    %13 = arith.addf %9, %12 : vector<1x32xf32>
    %c0_9 = arith.constant 0 : index
    %c0_10 = arith.constant 0 : index
    %14 = vector.load %arg3[%c0_9, %c0_10] : memref<1x32xf32, #tpu.memory_space<vmem>>, vector<1x32xf32>
    tpu.vector_store %arg3[%c0_9, %c0_10], %13 {strides = array<i32>} : memref<1x32xf32, #tpu.memory_space<vmem>>, vector<1x32xf32>,
    return
  }
  func.func @transform_0(%arg0: i32) -> (i32, i32) {
    %c0_i32 = arith.constant 0 : i32
    %c0_i32_0 = arith.constant 0 : i32
    return %arg0, %c0_i32 : i32, i32
  }
  func.func @transform_1(%arg0: i32) -> (i32, i32) {
    %c0_i32 = arith.constant 0 : i32
    %c0_i32_0 = arith.constant 0 : i32
    %c0_i32_1 = arith.constant 0 : i32
    return %c0_i32, %c0_i32_0 : i32, i32
  }
  func.func @transform_2(%arg0: i32) -> (i32, i32) {
    %c0_i32 = arith.constant 0 : i32
    %c0_i32_0 = arith.constant 0 : i32
    %c0_i32_1 = arith.constant 0 : i32
    return %c0_i32, %c0_i32_0 : i32, i32
  }
}

module attributes {stable_mosaic.version = 11 : i64} {
  func.func @_act_kernel(%arg0: i32, %arg1: memref<8x128xf32, #tpu.memory_space<vmem>>, %arg2: memref<8x128xbf16, #tpu.memory_space<vmem>>) attributes {dimension_semantics = [#tpu.dimension_semantics<parallel>], iteration_bounds = array<i64: 1>, scalar_prefetch = 0 : i64, scratch_operands = 0 : i64, tpu.core_type = #tpu.core_type<tc>, window_params = [{transform_indices = @transform_0, window_bounds = array<i64: 8, 128>}, {transform_indices = @transform_1, window_bounds = array<i64: 8, 128>}]} {
    %c0 = arith.constant 0 : index
    %c0_0 = arith.constant 0 : index
    %0 = vector.load %arg1[%c0, %c0_0] : memref<8x128xf32, #tpu.memory_space<vmem>>, vector<8x128xf32>
    %cst = arith.constant 0.000000e+00 : f32
    %1 = vector.broadcast %cst : f32 to vector<8x128xf32>
    %2 = arith.cmpf oge, %0, %1 : vector<8x128xf32>
    %cst_1 = arith.constant 2.000000e-01 : f32
    %3 = vector.broadcast %cst_1 : f32 to vector<8x128xf32>
    %4 = arith.mulf %3, %0 : vector<8x128xf32>
    %5 = arith.select %2, %0, %4 : vector<8x128xi1>, vector<8x128xf32>
    %6 = arith.truncf %5 : vector<8x128xf32> to vector<8x128xbf16>
    %c0_2 = arith.constant 0 : index
    %c0_3 = arith.constant 0 : index
    %7 = vector.load %arg2[%c0_2, %c0_3] : memref<8x128xbf16, #tpu.memory_space<vmem>>, vector<8x128xbf16>
    tpu.vector_store %arg2[%c0_2, %c0_3], %6 {strides = array<i32>} : memref<8x128xbf16, #tpu.memory_space<vmem>>, vector<8x128xbf16>,
    return
  }
  func.func @transform_0(%arg0: i32) -> (i32, i32) {
    %c0_i32 = arith.constant 0 : i32
    %c0_i32_0 = arith.constant 0 : i32
    return %arg0, %c0_i32 : i32, i32
  }
  func.func @transform_1(%arg0: i32) -> (i32, i32) {
    %c0_i32 = arith.constant 0 : i32
    %c0_i32_0 = arith.constant 0 : i32
    return %arg0, %c0_i32 : i32, i32
  }
}

module attributes {stable_mosaic.version = 11 : i64} {
  func.func @_bn_norm_kernel(%arg0: i32, %arg1: memref<32x32xf32, #tpu.memory_space<vmem>>, %arg2: memref<1x32xf32, #tpu.memory_space<vmem>>, %arg3: memref<1x32xf32, #tpu.memory_space<vmem>>, %arg4: memref<32x32xf32, #tpu.memory_space<vmem>>) attributes {dimension_semantics = [#tpu.dimension_semantics<parallel>], iteration_bounds = array<i64: 1>, scalar_prefetch = 0 : i64, scratch_operands = 0 : i64, tpu.core_type = #tpu.core_type<tc>, window_params = [{transform_indices = @transform_0, window_bounds = array<i64: 32, 32>}, {pipeline_mode = #tpu.pipeline_mode<synchronous>, transform_indices = @transform_1, window_bounds = array<i64: 1, 32>}, {pipeline_mode = #tpu.pipeline_mode<synchronous>, transform_indices = @transform_2, window_bounds = array<i64: 1, 32>}, {transform_indices = @transform_3, window_bounds = array<i64: 32, 32>}]} {
    %c0 = arith.constant 0 : index
    %c0_0 = arith.constant 0 : index
    %0 = vector.load %arg1[%c0, %c0_0] : memref<32x32xf32, #tpu.memory_space<vmem>>, vector<32x32xf32>
    %c0_1 = arith.constant 0 : index
    %c0_2 = arith.constant 0 : index
    %1 = vector.load %arg2[%c0_1, %c0_2] : memref<1x32xf32, #tpu.memory_space<vmem>>, vector<1x32xf32>
    %2 = vector.broadcast %1 : vector<1x32xf32> to vector<32x32xf32>
    %3 = arith.mulf %0, %2 : vector<32x32xf32>
    %c0_3 = arith.constant 0 : index
    %c0_4 = arith.constant 0 : index
    %4 = vector.load %arg3[%c0_3, %c0_4] : memref<1x32xf32, #tpu.memory_space<vmem>>, vector<1x32xf32>
    %5 = vector.broadcast %4 : vector<1x32xf32> to vector<32x32xf32>
    %6 = arith.addf %3, %5 : vector<32x32xf32>
    %c0_5 = arith.constant 0 : index
    %c0_6 = arith.constant 0 : index
    %7 = vector.load %arg4[%c0_5, %c0_6] : memref<32x32xf32, #tpu.memory_space<vmem>>, vector<32x32xf32>
    tpu.vector_store %arg4[%c0_5, %c0_6], %6 {strides = array<i32>} : memref<32x32xf32, #tpu.memory_space<vmem>>, vector<32x32xf32>,
    return
  }
  func.func @transform_0(%arg0: i32) -> (i32, i32) {
    %c0_i32 = arith.constant 0 : i32
    %c0_i32_0 = arith.constant 0 : i32
    return %arg0, %c0_i32 : i32, i32
  }
  func.func @transform_1(%arg0: i32) -> (i32, i32) {
    %c0_i32 = arith.constant 0 : i32
    %c0_i32_0 = arith.constant 0 : i32
    %c0_i32_1 = arith.constant 0 : i32
    return %c0_i32, %c0_i32_0 : i32, i32
  }
  func.func @transform_2(%arg0: i32) -> (i32, i32) {
    %c0_i32 = arith.constant 0 : i32
    %c0_i32_0 = arith.constant 0 : i32
    %c0_i32_1 = arith.constant 0 : i32
    return %c0_i32, %c0_i32_0 : i32, i32
  }
  func.func @transform_3(%arg0: i32) -> (i32, i32) {
    %c0_i32 = arith.constant 0 : i32
    %c0_i32_0 = arith.constant 0 : i32
    return %arg0, %c0_i32 : i32, i32
  }
}

module attributes {stable_mosaic.version = 11 : i64} {
  func.func @_bn_stats_kernel(%arg0: i32, %arg1: memref<8x32xf32, #tpu.memory_space<vmem>>, %arg2: memref<1x32xf32, #tpu.memory_space<vmem>>, %arg3: memref<1x32xf32, #tpu.memory_space<vmem>>) attributes {dimension_semantics = [#tpu.dimension_semantics<arbitrary>], iteration_bounds = array<i64: 1>, scalar_prefetch = 0 : i64, scratch_operands = 0 : i64, tpu.core_type = #tpu.core_type<tc>, window_params = [{transform_indices = @transform_0, window_bounds = array<i64: 8, 32>}, {pipeline_mode = #tpu.pipeline_mode<synchronous>, transform_indices = @transform_1, window_bounds = array<i64: 1, 32>}, {pipeline_mode = #tpu.pipeline_mode<synchronous>, transform_indices = @transform_2, window_bounds = array<i64: 1, 32>}]} {
    %c0_i32 = arith.constant 0 : i32
    %0 = arith.cmpi eq, %arg0, %c0_i32 : i32
    %1 = arith.extui %0 : i1 to i32
    %c0_i32_0 = arith.constant 0 : i32
    %2 = arith.cmpi ne, %1, %c0_i32_0 : i32
    scf.if %2 {
      %cst_11 = arith.constant 0.000000e+00 : f32
      %15 = vector.broadcast %cst_11 : f32 to vector<1x32xf32>
      %c0_12 = arith.constant 0 : index
      %c0_13 = arith.constant 0 : index
      %16 = vector.load %arg2[%c0_12, %c0_13] : memref<1x32xf32, #tpu.memory_space<vmem>>, vector<1x32xf32>
      tpu.vector_store %arg2[%c0_12, %c0_13], %15 {strides = array<i32>} : memref<1x32xf32, #tpu.memory_space<vmem>>, vector<1x32xf32>,
      %cst_14 = arith.constant 0.000000e+00 : f32
      %17 = vector.broadcast %cst_14 : f32 to vector<1x32xf32>
      %c0_15 = arith.constant 0 : index
      %c0_16 = arith.constant 0 : index
      %18 = vector.load %arg3[%c0_15, %c0_16] : memref<1x32xf32, #tpu.memory_space<vmem>>, vector<1x32xf32>
      tpu.vector_store %arg3[%c0_15, %c0_16], %17 {strides = array<i32>} : memref<1x32xf32, #tpu.memory_space<vmem>>, vector<1x32xf32>,
    } else {
    }
    %c0 = arith.constant 0 : index
    %c0_1 = arith.constant 0 : index
    %3 = vector.load %arg1[%c0, %c0_1] : memref<8x32xf32, #tpu.memory_space<vmem>>, vector<8x32xf32>
    %c0_2 = arith.constant 0 : index
    %c0_3 = arith.constant 0 : index
    %4 = vector.load %arg2[%c0_2, %c0_3] : memref<1x32xf32, #tpu.memory_space<vmem>>, vector<1x32xf32>
    %cst = arith.constant dense<0.000000e+00> : vector<32xf32>
    %5 = vector.multi_reduction <add>, %3, %cst [0] : vector<8x32xf32> to vector<32xf32>
    %6 = vector.shape_cast %5 : vector<32xf32> to vector<1x32xf32>
    %7 = arith.addf %4, %6 : vector<1x32xf32>
    %c0_4 = arith.constant 0 : index
    %c0_5 = arith.constant 0 : index
    %8 = vector.load %arg2[%c0_4, %c0_5] : memref<1x32xf32, #tpu.memory_space<vmem>>, vector<1x32xf32>
    tpu.vector_store %arg2[%c0_4, %c0_5], %7 {strides = array<i32>} : memref<1x32xf32, #tpu.memory_space<vmem>>, vector<1x32xf32>,
    %c0_6 = arith.constant 0 : index
    %c0_7 = arith.constant 0 : index
    %9 = vector.load %arg3[%c0_6, %c0_7] : memref<1x32xf32, #tpu.memory_space<vmem>>, vector<1x32xf32>
    %10 = arith.mulf %3, %3 : vector<8x32xf32>
    %cst_8 = arith.constant dense<0.000000e+00> : vector<32xf32>
    %11 = vector.multi_reduction <add>, %10, %cst_8 [0] : vector<8x32xf32> to vector<32xf32>
    %12 = vector.shape_cast %11 : vector<32xf32> to vector<1x32xf32>
    %13 = arith.addf %9, %12 : vector<1x32xf32>
    %c0_9 = arith.constant 0 : index
    %c0_10 = arith.constant 0 : index
    %14 = vector.load %arg3[%c0_9, %c0_10] : memref<1x32xf32, #tpu.memory_space<vmem>>, vector<1x32xf32>
    tpu.vector_store %arg3[%c0_9, %c0_10], %13 {strides = array<i32>} : memref<1x32xf32, #tpu.memory_space<vmem>>, vector<1x32xf32>,
    return
  }
  func.func @transform_0(%arg0: i32) -> (i32, i32) {
    %c0_i32 = arith.constant 0 : i32
    %c0_i32_0 = arith.constant 0 : i32
    return %arg0, %c0_i32 : i32, i32
  }
  func.func @transform_1(%arg0: i32) -> (i32, i32) {
    %c0_i32 = arith.constant 0 : i32
    %c0_i32_0 = arith.constant 0 : i32
    %c0_i32_1 = arith.constant 0 : i32
    return %c0_i32, %c0_i32_0 : i32, i32
  }
  func.func @transform_2(%arg0: i32) -> (i32, i32) {
    %c0_i32 = arith.constant 0 : i32
    %c0_i32_0 = arith.constant 0 : i32
    %c0_i32_1 = arith.constant 0 : i32
    return %c0_i32, %c0_i32_0 : i32, i32
  }
}

module attributes {stable_mosaic.version = 11 : i64} {
  func.func @_bn_norm_kernel(%arg0: i32, %arg1: memref<8x32xf32, #tpu.memory_space<vmem>>, %arg2: memref<1x32xf32, #tpu.memory_space<vmem>>, %arg3: memref<1x32xf32, #tpu.memory_space<vmem>>, %arg4: memref<8x32xf32, #tpu.memory_space<vmem>>) attributes {dimension_semantics = [#tpu.dimension_semantics<parallel>], iteration_bounds = array<i64: 1>, scalar_prefetch = 0 : i64, scratch_operands = 0 : i64, tpu.core_type = #tpu.core_type<tc>, window_params = [{transform_indices = @transform_0, window_bounds = array<i64: 8, 32>}, {pipeline_mode = #tpu.pipeline_mode<synchronous>, transform_indices = @transform_1, window_bounds = array<i64: 1, 32>}, {pipeline_mode = #tpu.pipeline_mode<synchronous>, transform_indices = @transform_2, window_bounds = array<i64: 1, 32>}, {transform_indices = @transform_3, window_bounds = array<i64: 8, 32>}]} {
    %c0 = arith.constant 0 : index
    %c0_0 = arith.constant 0 : index
    %0 = vector.load %arg1[%c0, %c0_0] : memref<8x32xf32, #tpu.memory_space<vmem>>, vector<8x32xf32>
    %c0_1 = arith.constant 0 : index
    %c0_2 = arith.constant 0 : index
    %1 = vector.load %arg2[%c0_1, %c0_2] : memref<1x32xf32, #tpu.memory_space<vmem>>, vector<1x32xf32>
    %2 = vector.broadcast %1 : vector<1x32xf32> to vector<8x32xf32>
    %3 = arith.mulf %0, %2 : vector<8x32xf32>
    %c0_3 = arith.constant 0 : index
    %c0_4 = arith.constant 0 : index
    %4 = vector.load %arg3[%c0_3, %c0_4] : memref<1x32xf32, #tpu.memory_space<vmem>>, vector<1x32xf32>
    %5 = vector.broadcast %4 : vector<1x32xf32> to vector<8x32xf32>
    %6 = arith.addf %3, %5 : vector<8x32xf32>
    %c0_5 = arith.constant 0 : index
    %c0_6 = arith.constant 0 : index
    %7 = vector.load %arg4[%c0_5, %c0_6] : memref<8x32xf32, #tpu.memory_space<vmem>>, vector<8x32xf32>
    tpu.vector_store %arg4[%c0_5, %c0_6], %6 {strides = array<i32>} : memref<8x32xf32, #tpu.memory_space<vmem>>, vector<8x32xf32>,
    return
  }
  func.func @transform_0(%arg0: i32) -> (i32, i32) {
    %c0_i32 = arith.constant 0 : i32
    %c0_i32_0 = arith.constant 0 : i32
    return %arg0, %c0_i32 : i32, i32
  }
  func.func @transform_1(%arg0: i32) -> (i32, i32) {
    %c0_i32 = arith.constant 0 : i32
    %c0_i32_0 = arith.constant 0 : i32
    %c0_i32_1 = arith.constant 0 : i32
    return %c0_i32, %c0_i32_0 : i32, i32
  }
  func.func @transform_2(%arg0: i32) -> (i32, i32) {
    %c0_i32 = arith.constant 0 : i32
    %c0_i32_0 = arith.constant 0 : i32
    %c0_i32_1 = arith.constant 0 : i32
    return %c0_i32, %c0_i32_0 : i32, i32
  }
  func.func @transform_3(%arg0: i32) -> (i32, i32) {
    %c0_i32 = arith.constant 0 : i32
    %c0_i32_0 = arith.constant 0 : i32
    return %arg0, %c0_i32 : i32, i32
  }
}

module attributes {stable_mosaic.version = 11 : i64} {
  func.func @_matmul_kernel(%arg0: i32, %arg1: i32, %arg2: i32, %arg3: memref<8x512xbf16, #tpu.memory_space<vmem>>, %arg4: memref<512x128xbf16, #tpu.memory_space<vmem>>, %arg5: memref<1x128xf32, #tpu.memory_space<vmem>>, %arg6: memref<8x128xf32, #tpu.memory_space<vmem>>, %arg7: memref<8x128xf32, #tpu.memory_space<vmem>>) attributes {dimension_semantics = [#tpu.dimension_semantics<parallel>, #tpu.dimension_semantics<parallel>, #tpu.dimension_semantics<arbitrary>], iteration_bounds = array<i64: 1, 1, 1>, scalar_prefetch = 0 : i64, scratch_operands = 1 : i64, tpu.core_type = #tpu.core_type<tc>, window_params = [{transform_indices = @transform_0, window_bounds = array<i64: 8, 512>}, {transform_indices = @transform_1, window_bounds = array<i64: 512, 128>}, {transform_indices = @transform_2, window_bounds = array<i64: 1, 128>}, {transform_indices = @transform_3, window_bounds = array<i64: 8, 128>}]} {
    %c0_i32 = arith.constant 0 : i32
    %0 = arith.cmpi eq, %arg2, %c0_i32 : i32
    %1 = arith.extui %0 : i1 to i32
    %c0_i32_0 = arith.constant 0 : i32
    %2 = arith.cmpi ne, %1, %c0_i32_0 : i32
    scf.if %2 {
      %cst_10 = arith.constant 0.000000e+00 : f32
      %12 = vector.broadcast %cst_10 : f32 to vector<8x128xf32>
      %c0_11 = arith.constant 0 : index
      %c0_12 = arith.constant 0 : index
      %13 = vector.load %arg7[%c0_11, %c0_12] : memref<8x128xf32, #tpu.memory_space<vmem>>, vector<8x128xf32>
      tpu.vector_store %arg7[%c0_11, %c0_12], %12 {strides = array<i32>} : memref<8x128xf32, #tpu.memory_space<vmem>>, vector<8x128xf32>,
    } else {
    }
    %c0 = arith.constant 0 : index
    %c0_1 = arith.constant 0 : index
    %3 = vector.load %arg7[%c0, %c0_1] : memref<8x128xf32, #tpu.memory_space<vmem>>, vector<8x128xf32>
    %c0_2 = arith.constant 0 : index
    %c0_3 = arith.constant 0 : index
    %4 = vector.load %arg3[%c0_2, %c0_3] : memref<8x512xbf16, #tpu.memory_space<vmem>>, vector<8x512xbf16>
    %c0_4 = arith.constant 0 : index
    %c0_5 = arith.constant 0 : index
    %5 = vector.load %arg4[%c0_4, %c0_5] : memref<512x128xbf16, #tpu.memory_space<vmem>>, vector<512x128xbf16>
    %cst = arith.constant dense<0.000000e+00> : vector<8x128xf32>
    %6 = tpu.matmul %4, %5, %cst {dimension_numbers = #tpu.dot_dimension_numbers<[1], [0], [0], [1], [0, 0, 1, 1], [], []>} : vector<8x512xbf16>, vector<512x128xbf16>, vector<8x128xf32> -> vector<8x128xf32>
    %7 = arith.addf %3, %6 : vector<8x128xf32>
    %c0_6 = arith.constant 0 : index
    %c0_7 = arith.constant 0 : index
    %8 = vector.load %arg7[%c0_6, %c0_7] : memref<8x128xf32, #tpu.memory_space<vmem>>, vector<8x128xf32>
    tpu.vector_store %arg7[%c0_6, %c0_7], %7 {strides = array<i32>} : memref<8x128xf32, #tpu.memory_space<vmem>>, vector<8x128xf32>,
    %c0_i32_8 = arith.constant 0 : i32
    %9 = arith.cmpi eq, %arg2, %c0_i32_8 : i32
    %10 = arith.extui %9 : i1 to i32
    %c0_i32_9 = arith.constant 0 : i32
    %11 = arith.cmpi ne, %10, %c0_i32_9 : i32
    scf.if %11 {
      %c0_10 = arith.constant 0 : index
      %c0_11 = arith.constant 0 : index
      %12 = vector.load %arg7[%c0_10, %c0_11] : memref<8x128xf32, #tpu.memory_space<vmem>>, vector<8x128xf32>
      %c0_12 = arith.constant 0 : index
      %c0_13 = arith.constant 0 : index
      %13 = vector.load %arg5[%c0_12, %c0_13] : memref<1x128xf32, #tpu.memory_space<vmem>>, vector<1x128xf32>
      %14 = vector.broadcast %13 : vector<1x128xf32> to vector<8x128xf32>
      %15 = arith.addf %12, %14 : vector<8x128xf32>
      %c0_14 = arith.constant 0 : index
      %c0_15 = arith.constant 0 : index
      %16 = vector.load %arg6[%c0_14, %c0_15] : memref<8x128xf32, #tpu.memory_space<vmem>>, vector<8x128xf32>
      tpu.vector_store %arg6[%c0_14, %c0_15], %15 {strides = array<i32>} : memref<8x128xf32, #tpu.memory_space<vmem>>, vector<8x128xf32>,
    } else {
    }
    return
  }
  func.func @transform_0(%arg0: i32, %arg1: i32, %arg2: i32) -> (i32, i32) {
    %c0_i32 = arith.constant 0 : i32
    return %arg0, %arg2 : i32, i32
  }
  func.func @transform_1(%arg0: i32, %arg1: i32, %arg2: i32) -> (i32, i32) {
    %c0_i32 = arith.constant 0 : i32
    return %arg2, %arg1 : i32, i32
  }
  func.func @transform_2(%arg0: i32, %arg1: i32, %arg2: i32) -> (i32, i32) {
    %c0_i32 = arith.constant 0 : i32
    %c0_i32_0 = arith.constant 0 : i32
    return %c0_i32, %arg1 : i32, i32
  }
  func.func @transform_3(%arg0: i32, %arg1: i32, %arg2: i32) -> (i32, i32) {
    %c0_i32 = arith.constant 0 : i32
    return %arg0, %arg1 : i32, i32
  }
}

module attributes {stable_mosaic.version = 11 : i64} {
  func.func @_act_kernel(%arg0: i32, %arg1: memref<8x32xf32, #tpu.memory_space<vmem>>, %arg2: memref<8x32xbf16, #tpu.memory_space<vmem>>) attributes {dimension_semantics = [#tpu.dimension_semantics<parallel>], iteration_bounds = array<i64: 1>, scalar_prefetch = 0 : i64, scratch_operands = 0 : i64, tpu.core_type = #tpu.core_type<tc>, window_params = [{transform_indices = @transform_0, window_bounds = array<i64: 8, 32>}, {transform_indices = @transform_1, window_bounds = array<i64: 8, 32>}]} {
    %c0 = arith.constant 0 : index
    %c0_0 = arith.constant 0 : index
    %0 = vector.load %arg1[%c0, %c0_0] : memref<8x32xf32, #tpu.memory_space<vmem>>, vector<8x32xf32>
    %cst = arith.constant 0.000000e+00 : f32
    %1 = vector.broadcast %cst : f32 to vector<8x32xf32>
    %2 = arith.maximumf %0, %1 : vector<8x32xf32>
    %3 = arith.truncf %2 : vector<8x32xf32> to vector<8x32xbf16>
    %c0_1 = arith.constant 0 : index
    %c0_2 = arith.constant 0 : index
    %4 = vector.load %arg2[%c0_1, %c0_2] : memref<8x32xbf16, #tpu.memory_space<vmem>>, vector<8x32xbf16>
    tpu.vector_store %arg2[%c0_1, %c0_2], %3 {strides = array<i32>} : memref<8x32xbf16, #tpu.memory_space<vmem>>, vector<8x32xbf16>,
    return
  }
  func.func @transform_0(%arg0: i32) -> (i32, i32) {
    %c0_i32 = arith.constant 0 : i32
    %c0_i32_0 = arith.constant 0 : i32
    return %arg0, %c0_i32 : i32, i32
  }
  func.func @transform_1(%arg0: i32) -> (i32, i32) {
    %c0_i32 = arith.constant 0 : i32
    %c0_i32_0 = arith.constant 0 : i32
    return %arg0, %c0_i32 : i32, i32
  }
}

module attributes {stable_mosaic.version = 11 : i64} {
  func.func @_matmul_kernel(%arg0: i32, %arg1: i32, %arg2: i32, %arg3: memref<8x128xbf16, #tpu.memory_space<vmem>>, %arg4: memref<128x128xbf16, #tpu.memory_space<vmem>>, %arg5: memref<1x128xf32, #tpu.memory_space<vmem>>, %arg6: memref<8x128xf32, #tpu.memory_space<vmem>>, %arg7: memref<8x128xf32, #tpu.memory_space<vmem>>) attributes {dimension_semantics = [#tpu.dimension_semantics<parallel>, #tpu.dimension_semantics<parallel>, #tpu.dimension_semantics<arbitrary>], iteration_bounds = array<i64: 1, 1, 1>, scalar_prefetch = 0 : i64, scratch_operands = 1 : i64, tpu.core_type = #tpu.core_type<tc>, window_params = [{transform_indices = @transform_0, window_bounds = array<i64: 8, 128>}, {transform_indices = @transform_1, window_bounds = array<i64: 128, 128>}, {transform_indices = @transform_2, window_bounds = array<i64: 1, 128>}, {transform_indices = @transform_3, window_bounds = array<i64: 8, 128>}]} {
    %c0_i32 = arith.constant 0 : i32
    %0 = arith.cmpi eq, %arg2, %c0_i32 : i32
    %1 = arith.extui %0 : i1 to i32
    %c0_i32_0 = arith.constant 0 : i32
    %2 = arith.cmpi ne, %1, %c0_i32_0 : i32
    scf.if %2 {
      %cst_10 = arith.constant 0.000000e+00 : f32
      %12 = vector.broadcast %cst_10 : f32 to vector<8x128xf32>
      %c0_11 = arith.constant 0 : index
      %c0_12 = arith.constant 0 : index
      %13 = vector.load %arg7[%c0_11, %c0_12] : memref<8x128xf32, #tpu.memory_space<vmem>>, vector<8x128xf32>
      tpu.vector_store %arg7[%c0_11, %c0_12], %12 {strides = array<i32>} : memref<8x128xf32, #tpu.memory_space<vmem>>, vector<8x128xf32>,
    } else {
    }
    %c0 = arith.constant 0 : index
    %c0_1 = arith.constant 0 : index
    %3 = vector.load %arg7[%c0, %c0_1] : memref<8x128xf32, #tpu.memory_space<vmem>>, vector<8x128xf32>
    %c0_2 = arith.constant 0 : index
    %c0_3 = arith.constant 0 : index
    %4 = vector.load %arg3[%c0_2, %c0_3] : memref<8x128xbf16, #tpu.memory_space<vmem>>, vector<8x128xbf16>
    %c0_4 = arith.constant 0 : index
    %c0_5 = arith.constant 0 : index
    %5 = vector.load %arg4[%c0_4, %c0_5] : memref<128x128xbf16, #tpu.memory_space<vmem>>, vector<128x128xbf16>
    %cst = arith.constant dense<0.000000e+00> : vector<8x128xf32>
    %6 = tpu.matmul %4, %5, %cst {dimension_numbers = #tpu.dot_dimension_numbers<[1], [0], [0], [1], [0, 0, 1, 1], [], []>} : vector<8x128xbf16>, vector<128x128xbf16>, vector<8x128xf32> -> vector<8x128xf32>
    %7 = arith.addf %3, %6 : vector<8x128xf32>
    %c0_6 = arith.constant 0 : index
    %c0_7 = arith.constant 0 : index
    %8 = vector.load %arg7[%c0_6, %c0_7] : memref<8x128xf32, #tpu.memory_space<vmem>>, vector<8x128xf32>
    tpu.vector_store %arg7[%c0_6, %c0_7], %7 {strides = array<i32>} : memref<8x128xf32, #tpu.memory_space<vmem>>, vector<8x128xf32>,
    %c0_i32_8 = arith.constant 0 : i32
    %9 = arith.cmpi eq, %arg2, %c0_i32_8 : i32
    %10 = arith.extui %9 : i1 to i32
    %c0_i32_9 = arith.constant 0 : i32
    %11 = arith.cmpi ne, %10, %c0_i32_9 : i32
    scf.if %11 {
      %c0_10 = arith.constant 0 : index
      %c0_11 = arith.constant 0 : index
      %12 = vector.load %arg7[%c0_10, %c0_11] : memref<8x128xf32, #tpu.memory_space<vmem>>, vector<8x128xf32>
      %c0_12 = arith.constant 0 : index
      %c0_13 = arith.constant 0 : index
      %13 = vector.load %arg5[%c0_12, %c0_13] : memref<1x128xf32, #tpu.memory_space<vmem>>, vector<1x128xf32>
      %14 = vector.broadcast %13 : vector<1x128xf32> to vector<8x128xf32>
      %15 = arith.addf %12, %14 : vector<8x128xf32>
      %c0_14 = arith.constant 0 : index
      %c0_15 = arith.constant 0 : index
      %16 = vector.load %arg6[%c0_14, %c0_15] : memref<8x128xf32, #tpu.memory_space<vmem>>, vector<8x128xf32>
      tpu.vector_store %arg6[%c0_14, %c0_15], %15 {strides = array<i32>} : memref<8x128xf32, #tpu.memory_space<vmem>>, vector<8x128xf32>,
    } else {
    }
    return
  }
  func.func @transform_0(%arg0: i32, %arg1: i32, %arg2: i32) -> (i32, i32) {
    %c0_i32 = arith.constant 0 : i32
    return %arg0, %arg2 : i32, i32
  }
  func.func @transform_1(%arg0: i32, %arg1: i32, %arg2: i32) -> (i32, i32) {
    %c0_i32 = arith.constant 0 : i32
    return %arg2, %arg1 : i32, i32
  }
  func.func @transform_2(%arg0: i32, %arg1: i32, %arg2: i32) -> (i32, i32) {
    %c0_i32 = arith.constant 0 : i32
    %c0_i32_0 = arith.constant 0 : i32
    return %c0_i32, %arg1 : i32, i32
  }
  func.func @transform_3(%arg0: i32, %arg1: i32, %arg2: i32) -> (i32, i32) {
    %c0_i32 = arith.constant 0 : i32
    return %arg0, %arg1 : i32, i32
  }
}

module attributes {stable_mosaic.version = 11 : i64} {
  func.func @_act_kernel(%arg0: i32, %arg1: memref<8x128xf32, #tpu.memory_space<vmem>>, %arg2: memref<8x128xbf16, #tpu.memory_space<vmem>>) attributes {dimension_semantics = [#tpu.dimension_semantics<parallel>], iteration_bounds = array<i64: 1>, scalar_prefetch = 0 : i64, scratch_operands = 0 : i64, tpu.core_type = #tpu.core_type<tc>, window_params = [{transform_indices = @transform_0, window_bounds = array<i64: 8, 128>}, {transform_indices = @transform_1, window_bounds = array<i64: 8, 128>}]} {
    %c0 = arith.constant 0 : index
    %c0_0 = arith.constant 0 : index
    %0 = vector.load %arg1[%c0, %c0_0] : memref<8x128xf32, #tpu.memory_space<vmem>>, vector<8x128xf32>
    %cst = arith.constant 0.000000e+00 : f32
    %1 = vector.broadcast %cst : f32 to vector<8x128xf32>
    %2 = arith.maximumf %0, %1 : vector<8x128xf32>
    %3 = arith.truncf %2 : vector<8x128xf32> to vector<8x128xbf16>
    %c0_1 = arith.constant 0 : index
    %c0_2 = arith.constant 0 : index
    %4 = vector.load %arg2[%c0_1, %c0_2] : memref<8x128xbf16, #tpu.memory_space<vmem>>, vector<8x128xbf16>
    tpu.vector_store %arg2[%c0_1, %c0_2], %3 {strides = array<i32>} : memref<8x128xbf16, #tpu.memory_space<vmem>>, vector<8x128xbf16>,
    return
  }
  func.func @transform_0(%arg0: i32) -> (i32, i32) {
    %c0_i32 = arith.constant 0 : i32
    %c0_i32_0 = arith.constant 0 : i32
    return %arg0, %c0_i32 : i32, i32
  }
  func.func @transform_1(%arg0: i32) -> (i32, i32) {
    %c0_i32 = arith.constant 0 : i32
    %c0_i32_0 = arith.constant 0 : i32
    return %arg0, %c0_i32 : i32, i32
  }
}

module attributes {stable_mosaic.version = 11 : i64} {
  func.func @_bn_concat_kernel(%arg0: i32, %arg1: memref<8x32xf32, #tpu.memory_space<vmem>>, %arg2: memref<8x32xf32, #tpu.memory_space<vmem>>, %arg3: memref<1x32xf32, #tpu.memory_space<vmem>>, %arg4: memref<1x32xf32, #tpu.memory_space<vmem>>, %arg5: memref<8x64xf32, #tpu.memory_space<vmem>>) attributes {dimension_semantics = [#tpu.dimension_semantics<parallel>], iteration_bounds = array<i64: 1>, scalar_prefetch = 0 : i64, scratch_operands = 0 : i64, tpu.core_type = #tpu.core_type<tc>, window_params = [{transform_indices = @transform_0, window_bounds = array<i64: 8, 32>}, {transform_indices = @transform_1, window_bounds = array<i64: 8, 32>}, {pipeline_mode = #tpu.pipeline_mode<synchronous>, transform_indices = @transform_2, window_bounds = array<i64: 1, 32>}, {pipeline_mode = #tpu.pipeline_mode<synchronous>, transform_indices = @transform_3, window_bounds = array<i64: 1, 32>}, {transform_indices = @transform_4, window_bounds = array<i64: 8, 64>}]} {
    %c0 = arith.constant 0 : index
    %c0_0 = arith.constant 0 : index
    %0 = vector.load %arg2[%c0, %c0_0] : memref<8x32xf32, #tpu.memory_space<vmem>>, vector<8x32xf32>
    %c0_1 = arith.constant 0 : index
    %c0_2 = arith.constant 0 : index
    %1 = vector.load %arg3[%c0_1, %c0_2] : memref<1x32xf32, #tpu.memory_space<vmem>>, vector<1x32xf32>
    %2 = vector.broadcast %1 : vector<1x32xf32> to vector<8x32xf32>
    %3 = arith.mulf %0, %2 : vector<8x32xf32>
    %c0_3 = arith.constant 0 : index
    %c0_4 = arith.constant 0 : index
    %4 = vector.load %arg4[%c0_3, %c0_4] : memref<1x32xf32, #tpu.memory_space<vmem>>, vector<1x32xf32>
    %5 = vector.broadcast %4 : vector<1x32xf32> to vector<8x32xf32>
    %6 = arith.addf %3, %5 : vector<8x32xf32>
    %c0_5 = arith.constant 0 : index
    %c0_6 = arith.constant 0 : index
    %7 = vector.load %arg1[%c0_5, %c0_6] : memref<8x32xf32, #tpu.memory_space<vmem>>, vector<8x32xf32>
    %8 = tpu.concatenate %7, %6 in 1 : vector<8x32xf32>, vector<8x32xf32> -> vector<8x64xf32>
    %c0_7 = arith.constant 0 : index
    %c0_8 = arith.constant 0 : index
    %9 = vector.load %arg5[%c0_7, %c0_8] : memref<8x64xf32, #tpu.memory_space<vmem>>, vector<8x64xf32>
    tpu.vector_store %arg5[%c0_7, %c0_8], %8 {strides = array<i32>} : memref<8x64xf32, #tpu.memory_space<vmem>>, vector<8x64xf32>,
    return
  }
  func.func @transform_0(%arg0: i32) -> (i32, i32) {
    %c0_i32 = arith.constant 0 : i32
    %c0_i32_0 = arith.constant 0 : i32
    return %arg0, %c0_i32 : i32, i32
  }
  func.func @transform_1(%arg0: i32) -> (i32, i32) {
    %c0_i32 = arith.constant 0 : i32
    %c0_i32_0 = arith.constant 0 : i32
    return %arg0, %c0_i32 : i32, i32
  }
  func.func @transform_2(%arg0: i32) -> (i32, i32) {
    %c0_i32 = arith.constant 0 : i32
    %c0_i32_0 = arith.constant 0 : i32
    %c0_i32_1 = arith.constant 0 : i32
    return %c0_i32, %c0_i32_0 : i32, i32
  }
  func.func @transform_3(%arg0: i32) -> (i32, i32) {
    %c0_i32 = arith.constant 0 : i32
    %c0_i32_0 = arith.constant 0 : i32
    %c0_i32_1 = arith.constant 0 : i32
    return %c0_i32, %c0_i32_0 : i32, i32
  }
  func.func @transform_4(%arg0: i32) -> (i32, i32) {
    %c0_i32 = arith.constant 0 : i32
    %c0_i32_0 = arith.constant 0 : i32
    return %arg0, %c0_i32 : i32, i32
  }
}

module attributes {stable_mosaic.version = 11 : i64} {
  func.func @_bn_concat_kernel(%arg0: i32, %arg1: memref<32x32xf32, #tpu.memory_space<vmem>>, %arg2: memref<32x32xf32, #tpu.memory_space<vmem>>, %arg3: memref<1x32xf32, #tpu.memory_space<vmem>>, %arg4: memref<1x32xf32, #tpu.memory_space<vmem>>, %arg5: memref<32x64xf32, #tpu.memory_space<vmem>>) attributes {dimension_semantics = [#tpu.dimension_semantics<parallel>], iteration_bounds = array<i64: 1>, scalar_prefetch = 0 : i64, scratch_operands = 0 : i64, tpu.core_type = #tpu.core_type<tc>, window_params = [{transform_indices = @transform_0, window_bounds = array<i64: 32, 32>}, {transform_indices = @transform_1, window_bounds = array<i64: 32, 32>}, {pipeline_mode = #tpu.pipeline_mode<synchronous>, transform_indices = @transform_2, window_bounds = array<i64: 1, 32>}, {pipeline_mode = #tpu.pipeline_mode<synchronous>, transform_indices = @transform_3, window_bounds = array<i64: 1, 32>}, {transform_indices = @transform_4, window_bounds = array<i64: 32, 64>}]} {
    %c0 = arith.constant 0 : index
    %c0_0 = arith.constant 0 : index
    %0 = vector.load %arg2[%c0, %c0_0] : memref<32x32xf32, #tpu.memory_space<vmem>>, vector<32x32xf32>
    %c0_1 = arith.constant 0 : index
    %c0_2 = arith.constant 0 : index
    %1 = vector.load %arg3[%c0_1, %c0_2] : memref<1x32xf32, #tpu.memory_space<vmem>>, vector<1x32xf32>
    %2 = vector.broadcast %1 : vector<1x32xf32> to vector<32x32xf32>
    %3 = arith.mulf %0, %2 : vector<32x32xf32>
    %c0_3 = arith.constant 0 : index
    %c0_4 = arith.constant 0 : index
    %4 = vector.load %arg4[%c0_3, %c0_4] : memref<1x32xf32, #tpu.memory_space<vmem>>, vector<1x32xf32>
    %5 = vector.broadcast %4 : vector<1x32xf32> to vector<32x32xf32>
    %6 = arith.addf %3, %5 : vector<32x32xf32>
    %c0_5 = arith.constant 0 : index
    %c0_6 = arith.constant 0 : index
    %7 = vector.load %arg1[%c0_5, %c0_6] : memref<32x32xf32, #tpu.memory_space<vmem>>, vector<32x32xf32>
    %8 = tpu.concatenate %7, %6 in 1 : vector<32x32xf32>, vector<32x32xf32> -> vector<32x64xf32>
    %c0_7 = arith.constant 0 : index
    %c0_8 = arith.constant 0 : index
    %9 = vector.load %arg5[%c0_7, %c0_8] : memref<32x64xf32, #tpu.memory_space<vmem>>, vector<32x64xf32>
    tpu.vector_store %arg5[%c0_7, %c0_8], %8 {strides = array<i32>} : memref<32x64xf32, #tpu.memory_space<vmem>>, vector<32x64xf32>,
    return
  }
  func.func @transform_0(%arg0: i32) -> (i32, i32) {
    %c0_i32 = arith.constant 0 : i32
    %c0_i32_0 = arith.constant 0 : i32
    return %arg0, %c0_i32 : i32, i32
  }
  func.func @transform_1(%arg0: i32) -> (i32, i32) {
    %c0_i32 = arith.constant 0 : i32
    %c0_i32_0 = arith.constant 0 : i32
    return %arg0, %c0_i32 : i32, i32
  }
  func.func @transform_2(%arg0: i32) -> (i32, i32) {
    %c0_i32 = arith.constant 0 : i32
    %c0_i32_0 = arith.constant 0 : i32
    %c0_i32_1 = arith.constant 0 : i32
    return %c0_i32, %c0_i32_0 : i32, i32
  }
  func.func @transform_3(%arg0: i32) -> (i32, i32) {
    %c0_i32 = arith.constant 0 : i32
    %c0_i32_0 = arith.constant 0 : i32
    %c0_i32_1 = arith.constant 0 : i32
    return %c0_i32, %c0_i32_0 : i32, i32
  }
  func.func @transform_4(%arg0: i32) -> (i32, i32) {
    %c0_i32 = arith.constant 0 : i32
    %c0_i32_0 = arith.constant 0 : i32
    return %arg0, %c0_i32 : i32, i32
  }
}

module attributes {stable_mosaic.version = 11 : i64} {
  func.func @_matmul_kernel(%arg0: i32, %arg1: i32, %arg2: i32, %arg3: memref<8x256xbf16, #tpu.memory_space<vmem>>, %arg4: memref<256x128xbf16, #tpu.memory_space<vmem>>, %arg5: memref<1x128xf32, #tpu.memory_space<vmem>>, %arg6: memref<8x128xf32, #tpu.memory_space<vmem>>, %arg7: memref<8x128xf32, #tpu.memory_space<vmem>>) attributes {dimension_semantics = [#tpu.dimension_semantics<parallel>, #tpu.dimension_semantics<parallel>, #tpu.dimension_semantics<arbitrary>], iteration_bounds = array<i64: 1, 1, 1>, scalar_prefetch = 0 : i64, scratch_operands = 1 : i64, tpu.core_type = #tpu.core_type<tc>, window_params = [{transform_indices = @transform_0, window_bounds = array<i64: 8, 256>}, {transform_indices = @transform_1, window_bounds = array<i64: 256, 128>}, {transform_indices = @transform_2, window_bounds = array<i64: 1, 128>}, {transform_indices = @transform_3, window_bounds = array<i64: 8, 128>}]} {
    %c0_i32 = arith.constant 0 : i32
    %0 = arith.cmpi eq, %arg2, %c0_i32 : i32
    %1 = arith.extui %0 : i1 to i32
    %c0_i32_0 = arith.constant 0 : i32
    %2 = arith.cmpi ne, %1, %c0_i32_0 : i32
    scf.if %2 {
      %cst_10 = arith.constant 0.000000e+00 : f32
      %12 = vector.broadcast %cst_10 : f32 to vector<8x128xf32>
      %c0_11 = arith.constant 0 : index
      %c0_12 = arith.constant 0 : index
      %13 = vector.load %arg7[%c0_11, %c0_12] : memref<8x128xf32, #tpu.memory_space<vmem>>, vector<8x128xf32>
      tpu.vector_store %arg7[%c0_11, %c0_12], %12 {strides = array<i32>} : memref<8x128xf32, #tpu.memory_space<vmem>>, vector<8x128xf32>,
    } else {
    }
    %c0 = arith.constant 0 : index
    %c0_1 = arith.constant 0 : index
    %3 = vector.load %arg7[%c0, %c0_1] : memref<8x128xf32, #tpu.memory_space<vmem>>, vector<8x128xf32>
    %c0_2 = arith.constant 0 : index
    %c0_3 = arith.constant 0 : index
    %4 = vector.load %arg3[%c0_2, %c0_3] : memref<8x256xbf16, #tpu.memory_space<vmem>>, vector<8x256xbf16>
    %c0_4 = arith.constant 0 : index
    %c0_5 = arith.constant 0 : index
    %5 = vector.load %arg4[%c0_4, %c0_5] : memref<256x128xbf16, #tpu.memory_space<vmem>>, vector<256x128xbf16>
    %cst = arith.constant dense<0.000000e+00> : vector<8x128xf32>
    %6 = tpu.matmul %4, %5, %cst {dimension_numbers = #tpu.dot_dimension_numbers<[1], [0], [0], [1], [0, 0, 1, 1], [], []>} : vector<8x256xbf16>, vector<256x128xbf16>, vector<8x128xf32> -> vector<8x128xf32>
    %7 = arith.addf %3, %6 : vector<8x128xf32>
    %c0_6 = arith.constant 0 : index
    %c0_7 = arith.constant 0 : index
    %8 = vector.load %arg7[%c0_6, %c0_7] : memref<8x128xf32, #tpu.memory_space<vmem>>, vector<8x128xf32>
    tpu.vector_store %arg7[%c0_6, %c0_7], %7 {strides = array<i32>} : memref<8x128xf32, #tpu.memory_space<vmem>>, vector<8x128xf32>,
    %c0_i32_8 = arith.constant 0 : i32
    %9 = arith.cmpi eq, %arg2, %c0_i32_8 : i32
    %10 = arith.extui %9 : i1 to i32
    %c0_i32_9 = arith.constant 0 : i32
    %11 = arith.cmpi ne, %10, %c0_i32_9 : i32
    scf.if %11 {
      %c0_10 = arith.constant 0 : index
      %c0_11 = arith.constant 0 : index
      %12 = vector.load %arg7[%c0_10, %c0_11] : memref<8x128xf32, #tpu.memory_space<vmem>>, vector<8x128xf32>
      %c0_12 = arith.constant 0 : index
      %c0_13 = arith.constant 0 : index
      %13 = vector.load %arg5[%c0_12, %c0_13] : memref<1x128xf32, #tpu.memory_space<vmem>>, vector<1x128xf32>
      %14 = vector.broadcast %13 : vector<1x128xf32> to vector<8x128xf32>
      %15 = arith.addf %12, %14 : vector<8x128xf32>
      %c0_14 = arith.constant 0 : index
      %c0_15 = arith.constant 0 : index
      %16 = vector.load %arg6[%c0_14, %c0_15] : memref<8x128xf32, #tpu.memory_space<vmem>>, vector<8x128xf32>
      tpu.vector_store %arg6[%c0_14, %c0_15], %15 {strides = array<i32>} : memref<8x128xf32, #tpu.memory_space<vmem>>, vector<8x128xf32>,
    } else {
    }
    return
  }
  func.func @transform_0(%arg0: i32, %arg1: i32, %arg2: i32) -> (i32, i32) {
    %c0_i32 = arith.constant 0 : i32
    return %arg0, %arg2 : i32, i32
  }
  func.func @transform_1(%arg0: i32, %arg1: i32, %arg2: i32) -> (i32, i32) {
    %c0_i32 = arith.constant 0 : i32
    return %arg2, %arg1 : i32, i32
  }
  func.func @transform_2(%arg0: i32, %arg1: i32, %arg2: i32) -> (i32, i32) {
    %c0_i32 = arith.constant 0 : i32
    %c0_i32_0 = arith.constant 0 : i32
    return %c0_i32, %arg1 : i32, i32
  }
  func.func @transform_3(%arg0: i32, %arg1: i32, %arg2: i32) -> (i32, i32) {
    %c0_i32 = arith.constant 0 : i32
    return %arg0, %arg1 : i32, i32
  }
}

module attributes {stable_mosaic.version = 11 : i64} {
  func.func @_act_kernel(%arg0: i32, %arg1: memref<16x128xf32, #tpu.memory_space<vmem>>, %arg2: memref<16x128xbf16, #tpu.memory_space<vmem>>) attributes {dimension_semantics = [#tpu.dimension_semantics<parallel>], iteration_bounds = array<i64: 1>, scalar_prefetch = 0 : i64, scratch_operands = 0 : i64, tpu.core_type = #tpu.core_type<tc>, window_params = [{transform_indices = @transform_0, window_bounds = array<i64: 16, 128>}, {transform_indices = @transform_1, window_bounds = array<i64: 16, 128>}]} {
    %c0 = arith.constant 0 : index
    %c0_0 = arith.constant 0 : index
    %0 = vector.load %arg1[%c0, %c0_0] : memref<16x128xf32, #tpu.memory_space<vmem>>, vector<16x128xf32>
    %cst = arith.constant 0.000000e+00 : f32
    %1 = vector.broadcast %cst : f32 to vector<16x128xf32>
    %2 = arith.maximumf %0, %1 : vector<16x128xf32>
    %3 = arith.truncf %2 : vector<16x128xf32> to vector<16x128xbf16>
    %c0_1 = arith.constant 0 : index
    %c0_2 = arith.constant 0 : index
    %4 = vector.load %arg2[%c0_1, %c0_2] : memref<16x128xbf16, #tpu.memory_space<vmem>>, vector<16x128xbf16>
    tpu.vector_store %arg2[%c0_1, %c0_2], %3 {strides = array<i32>} : memref<16x128xbf16, #tpu.memory_space<vmem>>, vector<16x128xbf16>,
    return
  }
  func.func @transform_0(%arg0: i32) -> (i32, i32) {
    %c0_i32 = arith.constant 0 : i32
    %c0_i32_0 = arith.constant 0 : i32
    return %arg0, %c0_i32 : i32, i32
  }
  func.func @transform_1(%arg0: i32) -> (i32, i32) {
    %c0_i32 = arith.constant 0 : i32
    %c0_i32_0 = arith.constant 0 : i32
    return %arg0, %c0_i32 : i32, i32
  }
}

module attributes {stable_mosaic.version = 11 : i64} {
  func.func @_bn_concat_kernel(%arg0: i32, %arg1: memref<128x16xf32, #tpu.memory_space<vmem>>, %arg2: memref<128x16xf32, #tpu.memory_space<vmem>>, %arg3: memref<1x16xf32, #tpu.memory_space<vmem>>, %arg4: memref<1x16xf32, #tpu.memory_space<vmem>>, %arg5: memref<128x32xf32, #tpu.memory_space<vmem>>) attributes {dimension_semantics = [#tpu.dimension_semantics<parallel>], iteration_bounds = array<i64: 1>, scalar_prefetch = 0 : i64, scratch_operands = 0 : i64, tpu.core_type = #tpu.core_type<tc>, window_params = [{transform_indices = @transform_0, window_bounds = array<i64: 128, 16>}, {transform_indices = @transform_1, window_bounds = array<i64: 128, 16>}, {pipeline_mode = #tpu.pipeline_mode<synchronous>, transform_indices = @transform_2, window_bounds = array<i64: 1, 16>}, {pipeline_mode = #tpu.pipeline_mode<synchronous>, transform_indices = @transform_3, window_bounds = array<i64: 1, 16>}, {transform_indices = @transform_4, window_bounds = array<i64: 128, 32>}]} {
    %c0 = arith.constant 0 : index
    %c0_0 = arith.constant 0 : index
    %0 = vector.load %arg2[%c0, %c0_0] : memref<128x16xf32, #tpu.memory_space<vmem>>, vector<128x16xf32>
    %c0_1 = arith.constant 0 : index
    %c0_2 = arith.constant 0 : index
    %1 = vector.load %arg3[%c0_1, %c0_2] : memref<1x16xf32, #tpu.memory_space<vmem>>, vector<1x16xf32>
    %2 = vector.broadcast %1 : vector<1x16xf32> to vector<128x16xf32>
    %3 = arith.mulf %0, %2 : vector<128x16xf32>
    %c0_3 = arith.constant 0 : index
    %c0_4 = arith.constant 0 : index
    %4 = vector.load %arg4[%c0_3, %c0_4] : memref<1x16xf32, #tpu.memory_space<vmem>>, vector<1x16xf32>
    %5 = vector.broadcast %4 : vector<1x16xf32> to vector<128x16xf32>
    %6 = arith.addf %3, %5 : vector<128x16xf32>
    %c0_5 = arith.constant 0 : index
    %c0_6 = arith.constant 0 : index
    %7 = vector.load %arg1[%c0_5, %c0_6] : memref<128x16xf32, #tpu.memory_space<vmem>>, vector<128x16xf32>
    %8 = tpu.concatenate %7, %6 in 1 : vector<128x16xf32>, vector<128x16xf32> -> vector<128x32xf32>
    %c0_7 = arith.constant 0 : index
    %c0_8 = arith.constant 0 : index
    %9 = vector.load %arg5[%c0_7, %c0_8] : memref<128x32xf32, #tpu.memory_space<vmem>>, vector<128x32xf32>
    tpu.vector_store %arg5[%c0_7, %c0_8], %8 {strides = array<i32>} : memref<128x32xf32, #tpu.memory_space<vmem>>, vector<128x32xf32>,
    return
  }
  func.func @transform_0(%arg0: i32) -> (i32, i32) {
    %c0_i32 = arith.constant 0 : i32
    %c0_i32_0 = arith.constant 0 : i32
    return %arg0, %c0_i32 : i32, i32
  }
  func.func @transform_1(%arg0: i32) -> (i32, i32) {
    %c0_i32 = arith.constant 0 : i32
    %c0_i32_0 = arith.constant 0 : i32
    return %arg0, %c0_i32 : i32, i32
  }
  func.func @transform_2(%arg0: i32) -> (i32, i32) {
    %c0_i32 = arith.constant 0 : i32
    %c0_i32_0 = arith.constant 0 : i32
    %c0_i32_1 = arith.constant 0 : i32
    return %c0_i32, %c0_i32_0 : i32, i32
  }
  func.func @transform_3(%arg0: i32) -> (i32, i32) {
    %c0_i32 = arith.constant 0 : i32
    %c0_i32_0 = arith.constant 0 : i32
    %c0_i32_1 = arith.constant 0 : i32
    return %c0_i32, %c0_i32_0 : i32, i32
  }
  func.func @transform_4(%arg0: i32) -> (i32, i32) {
    %c0_i32 = arith.constant 0 : i32
    %c0_i32_0 = arith.constant 0 : i32
    return %arg0, %c0_i32 : i32, i32
  }
}

module attributes {stable_mosaic.version = 11 : i64} {
  func.func @_act_kernel(%arg0: i32, %arg1: memref<32x128xf32, #tpu.memory_space<vmem>>, %arg2: memref<32x128xbf16, #tpu.memory_space<vmem>>) attributes {dimension_semantics = [#tpu.dimension_semantics<parallel>], iteration_bounds = array<i64: 1>, scalar_prefetch = 0 : i64, scratch_operands = 0 : i64, tpu.core_type = #tpu.core_type<tc>, window_params = [{transform_indices = @transform_0, window_bounds = array<i64: 32, 128>}, {transform_indices = @transform_1, window_bounds = array<i64: 32, 128>}]} {
    %c0 = arith.constant 0 : index
    %c0_0 = arith.constant 0 : index
    %0 = vector.load %arg1[%c0, %c0_0] : memref<32x128xf32, #tpu.memory_space<vmem>>, vector<32x128xf32>
    %cst = arith.constant 0.000000e+00 : f32
    %1 = vector.broadcast %cst : f32 to vector<32x128xf32>
    %2 = arith.maximumf %0, %1 : vector<32x128xf32>
    %3 = arith.truncf %2 : vector<32x128xf32> to vector<32x128xbf16>
    %c0_1 = arith.constant 0 : index
    %c0_2 = arith.constant 0 : index
    %4 = vector.load %arg2[%c0_1, %c0_2] : memref<32x128xbf16, #tpu.memory_space<vmem>>, vector<32x128xbf16>
    tpu.vector_store %arg2[%c0_1, %c0_2], %3 {strides = array<i32>} : memref<32x128xbf16, #tpu.memory_space<vmem>>, vector<32x128xbf16>,
    return
  }
  func.func @transform_0(%arg0: i32) -> (i32, i32) {
    %c0_i32 = arith.constant 0 : i32
    %c0_i32_0 = arith.constant 0 : i32
    return %arg0, %c0_i32 : i32, i32
  }
  func.func @transform_1(%arg0: i32) -> (i32, i32) {
    %c0_i32 = arith.constant 0 : i32
    %c0_i32_0 = arith.constant 0 : i32
    return %arg0, %c0_i32 : i32, i32
  }
}

module attributes {stable_mosaic.version = 11 : i64} {
  func.func @_bn_concat_kernel(%arg0: i32, %arg1: memref<512x8xf32, #tpu.memory_space<vmem>>, %arg2: memref<512x8xf32, #tpu.memory_space<vmem>>, %arg3: memref<1x8xf32, #tpu.memory_space<vmem>>, %arg4: memref<1x8xf32, #tpu.memory_space<vmem>>, %arg5: memref<512x16xf32, #tpu.memory_space<vmem>>) attributes {dimension_semantics = [#tpu.dimension_semantics<parallel>], iteration_bounds = array<i64: 1>, scalar_prefetch = 0 : i64, scratch_operands = 0 : i64, tpu.core_type = #tpu.core_type<tc>, window_params = [{transform_indices = @transform_0, window_bounds = array<i64: 512, 8>}, {transform_indices = @transform_1, window_bounds = array<i64: 512, 8>}, {pipeline_mode = #tpu.pipeline_mode<synchronous>, transform_indices = @transform_2, window_bounds = array<i64: 1, 8>}, {pipeline_mode = #tpu.pipeline_mode<synchronous>, transform_indices = @transform_3, window_bounds = array<i64: 1, 8>}, {transform_indices = @transform_4, window_bounds = array<i64: 512, 16>}]} {
    %c0 = arith.constant 0 : index
    %c0_0 = arith.constant 0 : index
    %0 = vector.load %arg2[%c0, %c0_0] : memref<512x8xf32, #tpu.memory_space<vmem>>, vector<512x8xf32>
    %c0_1 = arith.constant 0 : index
    %c0_2 = arith.constant 0 : index
    %1 = vector.load %arg3[%c0_1, %c0_2] : memref<1x8xf32, #tpu.memory_space<vmem>>, vector<1x8xf32>
    %2 = vector.broadcast %1 : vector<1x8xf32> to vector<512x8xf32>
    %3 = arith.mulf %0, %2 : vector<512x8xf32>
    %c0_3 = arith.constant 0 : index
    %c0_4 = arith.constant 0 : index
    %4 = vector.load %arg4[%c0_3, %c0_4] : memref<1x8xf32, #tpu.memory_space<vmem>>, vector<1x8xf32>
    %5 = vector.broadcast %4 : vector<1x8xf32> to vector<512x8xf32>
    %6 = arith.addf %3, %5 : vector<512x8xf32>
    %c0_5 = arith.constant 0 : index
    %c0_6 = arith.constant 0 : index
    %7 = vector.load %arg1[%c0_5, %c0_6] : memref<512x8xf32, #tpu.memory_space<vmem>>, vector<512x8xf32>
    %8 = tpu.concatenate %7, %6 in 1 : vector<512x8xf32>, vector<512x8xf32> -> vector<512x16xf32>
    %c0_7 = arith.constant 0 : index
    %c0_8 = arith.constant 0 : index
    %9 = vector.load %arg5[%c0_7, %c0_8] : memref<512x16xf32, #tpu.memory_space<vmem>>, vector<512x16xf32>
    tpu.vector_store %arg5[%c0_7, %c0_8], %8 {strides = array<i32>} : memref<512x16xf32, #tpu.memory_space<vmem>>, vector<512x16xf32>,
    return
  }
  func.func @transform_0(%arg0: i32) -> (i32, i32) {
    %c0_i32 = arith.constant 0 : i32
    %c0_i32_0 = arith.constant 0 : i32
    return %arg0, %c0_i32 : i32, i32
  }
  func.func @transform_1(%arg0: i32) -> (i32, i32) {
    %c0_i32 = arith.constant 0 : i32
    %c0_i32_0 = arith.constant 0 : i32
    return %arg0, %c0_i32 : i32, i32
  }
  func.func @transform_2(%arg0: i32) -> (i32, i32) {
    %c0_i32 = arith.constant 0 : i32
    %c0_i32_0 = arith.constant 0 : i32
    %c0_i32_1 = arith.constant 0 : i32
    return %c0_i32, %c0_i32_0 : i32, i32
  }
  func.func @transform_3(%arg0: i32) -> (i32, i32) {
    %c0_i32 = arith.constant 0 : i32
    %c0_i32_0 = arith.constant 0 : i32
    %c0_i32_1 = arith.constant 0 : i32
    return %c0_i32, %c0_i32_0 : i32, i32
  }
  func.func @transform_4(%arg0: i32) -> (i32, i32) {
    %c0_i32 = arith.constant 0 : i32
    %c0_i32_0 = arith.constant 0 : i32
    return %arg0, %c0_i32 : i32, i32
  }
}

module attributes {stable_mosaic.version = 11 : i64} {
  func.func @_act_kernel(%arg0: i32, %arg1: memref<64x128xf32, #tpu.memory_space<vmem>>, %arg2: memref<64x128xbf16, #tpu.memory_space<vmem>>) attributes {dimension_semantics = [#tpu.dimension_semantics<parallel>], iteration_bounds = array<i64: 1>, scalar_prefetch = 0 : i64, scratch_operands = 0 : i64, tpu.core_type = #tpu.core_type<tc>, window_params = [{transform_indices = @transform_0, window_bounds = array<i64: 64, 128>}, {transform_indices = @transform_1, window_bounds = array<i64: 64, 128>}]} {
    %c0 = arith.constant 0 : index
    %c0_0 = arith.constant 0 : index
    %0 = vector.load %arg1[%c0, %c0_0] : memref<64x128xf32, #tpu.memory_space<vmem>>, vector<64x128xf32>
    %cst = arith.constant 0.000000e+00 : f32
    %1 = vector.broadcast %cst : f32 to vector<64x128xf32>
    %2 = arith.maximumf %0, %1 : vector<64x128xf32>
    %3 = arith.truncf %2 : vector<64x128xf32> to vector<64x128xbf16>
    %c0_1 = arith.constant 0 : index
    %c0_2 = arith.constant 0 : index
    %4 = vector.load %arg2[%c0_1, %c0_2] : memref<64x128xbf16, #tpu.memory_space<vmem>>, vector<64x128xbf16>
    tpu.vector_store %arg2[%c0_1, %c0_2], %3 {strides = array<i32>} : memref<64x128xbf16, #tpu.memory_space<vmem>>, vector<64x128xbf16>,
    return
  }
  func.func @transform_0(%arg0: i32) -> (i32, i32) {
    %c0_i32 = arith.constant 0 : i32
    %c0_i32_0 = arith.constant 0 : i32
    return %arg0, %c0_i32 : i32, i32
  }
  func.func @transform_1(%arg0: i32) -> (i32, i32) {
    %c0_i32 = arith.constant 0 : i32
    %c0_i32_0 = arith.constant 0 : i32
    return %arg0, %c0_i32 : i32, i32
  }
}

module attributes {stable_mosaic.version = 11 : i64} {
  func.func @_bn_stats_kernel(%arg0: i32, %arg1: memref<512x4xf32, #tpu.memory_space<vmem>>, %arg2: memref<1x4xf32, #tpu.memory_space<vmem>>, %arg3: memref<1x4xf32, #tpu.memory_space<vmem>>) attributes {dimension_semantics = [#tpu.dimension_semantics<arbitrary>], iteration_bounds = array<i64: 4>, scalar_prefetch = 0 : i64, scratch_operands = 0 : i64, tpu.core_type = #tpu.core_type<tc>, window_params = [{transform_indices = @transform_0, window_bounds = array<i64: 512, 4>}, {pipeline_mode = #tpu.pipeline_mode<synchronous>, transform_indices = @transform_1, window_bounds = array<i64: 1, 4>}, {pipeline_mode = #tpu.pipeline_mode<synchronous>, transform_indices = @transform_2, window_bounds = array<i64: 1, 4>}]} {
    %c0_i32 = arith.constant 0 : i32
    %0 = arith.cmpi eq, %arg0, %c0_i32 : i32
    %1 = arith.extui %0 : i1 to i32
    %c0_i32_0 = arith.constant 0 : i32
    %2 = arith.cmpi ne, %1, %c0_i32_0 : i32
    scf.if %2 {
      %cst_11 = arith.constant 0.000000e+00 : f32
      %15 = vector.broadcast %cst_11 : f32 to vector<1x4xf32>
      %c0_12 = arith.constant 0 : index
      %c0_13 = arith.constant 0 : index
      %16 = vector.load %arg2[%c0_12, %c0_13] : memref<1x4xf32, #tpu.memory_space<vmem>>, vector<1x4xf32>
      tpu.vector_store %arg2[%c0_12, %c0_13], %15 {strides = array<i32>} : memref<1x4xf32, #tpu.memory_space<vmem>>, vector<1x4xf32>,
      %cst_14 = arith.constant 0.000000e+00 : f32
      %17 = vector.broadcast %cst_14 : f32 to vector<1x4xf32>
      %c0_15 = arith.constant 0 : index
      %c0_16 = arith.constant 0 : index
      %18 = vector.load %arg3[%c0_15, %c0_16] : memref<1x4xf32, #tpu.memory_space<vmem>>, vector<1x4xf32>
      tpu.vector_store %arg3[%c0_15, %c0_16], %17 {strides = array<i32>} : memref<1x4xf32, #tpu.memory_space<vmem>>, vector<1x4xf32>,
    } else {
    }
    %c0 = arith.constant 0 : index
    %c0_1 = arith.constant 0 : index
    %3 = vector.load %arg1[%c0, %c0_1] : memref<512x4xf32, #tpu.memory_space<vmem>>, vector<512x4xf32>
    %c0_2 = arith.constant 0 : index
    %c0_3 = arith.constant 0 : index
    %4 = vector.load %arg2[%c0_2, %c0_3] : memref<1x4xf32, #tpu.memory_space<vmem>>, vector<1x4xf32>
    %cst = arith.constant dense<0.000000e+00> : vector<4xf32>
    %5 = vector.multi_reduction <add>, %3, %cst [0] : vector<512x4xf32> to vector<4xf32>
    %6 = vector.shape_cast %5 : vector<4xf32> to vector<1x4xf32>
    %7 = arith.addf %4, %6 : vector<1x4xf32>
    %c0_4 = arith.constant 0 : index
    %c0_5 = arith.constant 0 : index
    %8 = vector.load %arg2[%c0_4, %c0_5] : memref<1x4xf32, #tpu.memory_space<vmem>>, vector<1x4xf32>
    tpu.vector_store %arg2[%c0_4, %c0_5], %7 {strides = array<i32>} : memref<1x4xf32, #tpu.memory_space<vmem>>, vector<1x4xf32>,
    %c0_6 = arith.constant 0 : index
    %c0_7 = arith.constant 0 : index
    %9 = vector.load %arg3[%c0_6, %c0_7] : memref<1x4xf32, #tpu.memory_space<vmem>>, vector<1x4xf32>
    %10 = arith.mulf %3, %3 : vector<512x4xf32>
    %cst_8 = arith.constant dense<0.000000e+00> : vector<4xf32>
    %11 = vector.multi_reduction <add>, %10, %cst_8 [0] : vector<512x4xf32> to vector<4xf32>
    %12 = vector.shape_cast %11 : vector<4xf32> to vector<1x4xf32>
    %13 = arith.addf %9, %12 : vector<1x4xf32>
    %c0_9 = arith.constant 0 : index
    %c0_10 = arith.constant 0 : index
    %14 = vector.load %arg3[%c0_9, %c0_10] : memref<1x4xf32, #tpu.memory_space<vmem>>, vector<1x4xf32>
    tpu.vector_store %arg3[%c0_9, %c0_10], %13 {strides = array<i32>} : memref<1x4xf32, #tpu.memory_space<vmem>>, vector<1x4xf32>,
    return
  }
  func.func @transform_0(%arg0: i32) -> (i32, i32) {
    %c0_i32 = arith.constant 0 : i32
    %c0_i32_0 = arith.constant 0 : i32
    return %arg0, %c0_i32 : i32, i32
  }
  func.func @transform_1(%arg0: i32) -> (i32, i32) {
    %c0_i32 = arith.constant 0 : i32
    %c0_i32_0 = arith.constant 0 : i32
    %c0_i32_1 = arith.constant 0 : i32
    return %c0_i32, %c0_i32_0 : i32, i32
  }
  func.func @transform_2(%arg0: i32) -> (i32, i32) {
    %c0_i32 = arith.constant 0 : i32
    %c0_i32_0 = arith.constant 0 : i32
    %c0_i32_1 = arith.constant 0 : i32
    return %c0_i32, %c0_i32_0 : i32, i32
  }
}

module attributes {stable_mosaic.version = 11 : i64} {
  func.func @_bn_concat_kernel(%arg0: i32, %arg1: memref<512x4xf32, #tpu.memory_space<vmem>>, %arg2: memref<512x4xf32, #tpu.memory_space<vmem>>, %arg3: memref<1x4xf32, #tpu.memory_space<vmem>>, %arg4: memref<1x4xf32, #tpu.memory_space<vmem>>, %arg5: memref<512x8xf32, #tpu.memory_space<vmem>>) attributes {dimension_semantics = [#tpu.dimension_semantics<parallel>], iteration_bounds = array<i64: 4>, scalar_prefetch = 0 : i64, scratch_operands = 0 : i64, tpu.core_type = #tpu.core_type<tc>, window_params = [{transform_indices = @transform_0, window_bounds = array<i64: 512, 4>}, {transform_indices = @transform_1, window_bounds = array<i64: 512, 4>}, {pipeline_mode = #tpu.pipeline_mode<synchronous>, transform_indices = @transform_2, window_bounds = array<i64: 1, 4>}, {pipeline_mode = #tpu.pipeline_mode<synchronous>, transform_indices = @transform_3, window_bounds = array<i64: 1, 4>}, {transform_indices = @transform_4, window_bounds = array<i64: 512, 8>}]} {
    %c0 = arith.constant 0 : index
    %c0_0 = arith.constant 0 : index
    %0 = vector.load %arg2[%c0, %c0_0] : memref<512x4xf32, #tpu.memory_space<vmem>>, vector<512x4xf32>
    %c0_1 = arith.constant 0 : index
    %c0_2 = arith.constant 0 : index
    %1 = vector.load %arg3[%c0_1, %c0_2] : memref<1x4xf32, #tpu.memory_space<vmem>>, vector<1x4xf32>
    %2 = vector.broadcast %1 : vector<1x4xf32> to vector<512x4xf32>
    %3 = arith.mulf %0, %2 : vector<512x4xf32>
    %c0_3 = arith.constant 0 : index
    %c0_4 = arith.constant 0 : index
    %4 = vector.load %arg4[%c0_3, %c0_4] : memref<1x4xf32, #tpu.memory_space<vmem>>, vector<1x4xf32>
    %5 = vector.broadcast %4 : vector<1x4xf32> to vector<512x4xf32>
    %6 = arith.addf %3, %5 : vector<512x4xf32>
    %c0_5 = arith.constant 0 : index
    %c0_6 = arith.constant 0 : index
    %7 = vector.load %arg1[%c0_5, %c0_6] : memref<512x4xf32, #tpu.memory_space<vmem>>, vector<512x4xf32>
    %8 = tpu.concatenate %7, %6 in 1 : vector<512x4xf32>, vector<512x4xf32> -> vector<512x8xf32>
    %c0_7 = arith.constant 0 : index
    %c0_8 = arith.constant 0 : index
    %9 = vector.load %arg5[%c0_7, %c0_8] : memref<512x8xf32, #tpu.memory_space<vmem>>, vector<512x8xf32>
    tpu.vector_store %arg5[%c0_7, %c0_8], %8 {strides = array<i32>} : memref<512x8xf32, #tpu.memory_space<vmem>>, vector<512x8xf32>,
    return
  }
  func.func @transform_0(%arg0: i32) -> (i32, i32) {
    %c0_i32 = arith.constant 0 : i32
    %c0_i32_0 = arith.constant 0 : i32
    return %arg0, %c0_i32 : i32, i32
  }
  func.func @transform_1(%arg0: i32) -> (i32, i32) {
    %c0_i32 = arith.constant 0 : i32
    %c0_i32_0 = arith.constant 0 : i32
    return %arg0, %c0_i32 : i32, i32
  }
  func.func @transform_2(%arg0: i32) -> (i32, i32) {
    %c0_i32 = arith.constant 0 : i32
    %c0_i32_0 = arith.constant 0 : i32
    %c0_i32_1 = arith.constant 0 : i32
    return %c0_i32, %c0_i32_0 : i32, i32
  }
  func.func @transform_3(%arg0: i32) -> (i32, i32) {
    %c0_i32 = arith.constant 0 : i32
    %c0_i32_0 = arith.constant 0 : i32
    %c0_i32_1 = arith.constant 0 : i32
    return %c0_i32, %c0_i32_0 : i32, i32
  }
  func.func @transform_4(%arg0: i32) -> (i32, i32) {
    %c0_i32 = arith.constant 0 : i32
    %c0_i32_0 = arith.constant 0 : i32
    return %arg0, %c0_i32 : i32, i32
  }
}

module attributes {stable_mosaic.version = 11 : i64} {
  func.func @_act_kernel(%arg0: i32, %arg1: memref<128x128xf32, #tpu.memory_space<vmem>>, %arg2: memref<128x128xbf16, #tpu.memory_space<vmem>>) attributes {dimension_semantics = [#tpu.dimension_semantics<parallel>], iteration_bounds = array<i64: 1>, scalar_prefetch = 0 : i64, scratch_operands = 0 : i64, tpu.core_type = #tpu.core_type<tc>, window_params = [{transform_indices = @transform_0, window_bounds = array<i64: 128, 128>}, {transform_indices = @transform_1, window_bounds = array<i64: 128, 128>}]} {
    %c0 = arith.constant 0 : index
    %c0_0 = arith.constant 0 : index
    %0 = vector.load %arg1[%c0, %c0_0] : memref<128x128xf32, #tpu.memory_space<vmem>>, vector<128x128xf32>
    %cst = arith.constant 0.000000e+00 : f32
    %1 = vector.broadcast %cst : f32 to vector<128x128xf32>
    %2 = arith.maximumf %0, %1 : vector<128x128xf32>
    %3 = arith.truncf %2 : vector<128x128xf32> to vector<128x128xbf16>
    %c0_1 = arith.constant 0 : index
    %c0_2 = arith.constant 0 : index
    %4 = vector.load %arg2[%c0_1, %c0_2] : memref<128x128xbf16, #tpu.memory_space<vmem>>, vector<128x128xbf16>
    tpu.vector_store %arg2[%c0_1, %c0_2], %3 {strides = array<i32>} : memref<128x128xbf16, #tpu.memory_space<vmem>>, vector<128x128xbf16>,
    return
  }
  func.func @transform_0(%arg0: i32) -> (i32, i32) {
    %c0_i32 = arith.constant 0 : i32
    %c0_i32_0 = arith.constant 0 : i32
    return %arg0, %c0_i32 : i32, i32
  }
  func.func @transform_1(%arg0: i32) -> (i32, i32) {
    %c0_i32 = arith.constant 0 : i32
    %c0_i32_0 = arith.constant 0 : i32
    return %arg0, %c0_i32 : i32, i32
  }
}

module attributes {stable_mosaic.version = 11 : i64} {
  func.func @_matmul_kernel(%arg0: i32, %arg1: i32, %arg2: i32, %arg3: memref<256x32xbf16, #tpu.memory_space<vmem>>, %arg4: memref<32x128xbf16, #tpu.memory_space<vmem>>, %arg5: memref<1x128xf32, #tpu.memory_space<vmem>>, %arg6: memref<256x128xf32, #tpu.memory_space<vmem>>, %arg7: memref<256x128xf32, #tpu.memory_space<vmem>>) attributes {dimension_semantics = [#tpu.dimension_semantics<parallel>, #tpu.dimension_semantics<parallel>, #tpu.dimension_semantics<arbitrary>], iteration_bounds = array<i64: 8, 1, 1>, scalar_prefetch = 0 : i64, scratch_operands = 1 : i64, tpu.core_type = #tpu.core_type<tc>, window_params = [{transform_indices = @transform_0, window_bounds = array<i64: 256, 32>}, {transform_indices = @transform_1, window_bounds = array<i64: 32, 128>}, {transform_indices = @transform_2, window_bounds = array<i64: 1, 128>}, {transform_indices = @transform_3, window_bounds = array<i64: 256, 128>}]} {
    %c0_i32 = arith.constant 0 : i32
    %0 = arith.cmpi eq, %arg2, %c0_i32 : i32
    %1 = arith.extui %0 : i1 to i32
    %c0_i32_0 = arith.constant 0 : i32
    %2 = arith.cmpi ne, %1, %c0_i32_0 : i32
    scf.if %2 {
      %cst_10 = arith.constant 0.000000e+00 : f32
      %12 = vector.broadcast %cst_10 : f32 to vector<256x128xf32>
      %c0_11 = arith.constant 0 : index
      %c0_12 = arith.constant 0 : index
      %13 = vector.load %arg7[%c0_11, %c0_12] : memref<256x128xf32, #tpu.memory_space<vmem>>, vector<256x128xf32>
      tpu.vector_store %arg7[%c0_11, %c0_12], %12 {strides = array<i32>} : memref<256x128xf32, #tpu.memory_space<vmem>>, vector<256x128xf32>,
    } else {
    }
    %c0 = arith.constant 0 : index
    %c0_1 = arith.constant 0 : index
    %3 = vector.load %arg7[%c0, %c0_1] : memref<256x128xf32, #tpu.memory_space<vmem>>, vector<256x128xf32>
    %c0_2 = arith.constant 0 : index
    %c0_3 = arith.constant 0 : index
    %4 = vector.load %arg3[%c0_2, %c0_3] : memref<256x32xbf16, #tpu.memory_space<vmem>>, vector<256x32xbf16>
    %c0_4 = arith.constant 0 : index
    %c0_5 = arith.constant 0 : index
    %5 = vector.load %arg4[%c0_4, %c0_5] : memref<32x128xbf16, #tpu.memory_space<vmem>>, vector<32x128xbf16>
    %cst = arith.constant dense<0.000000e+00> : vector<256x128xf32>
    %6 = tpu.matmul %4, %5, %cst {dimension_numbers = #tpu.dot_dimension_numbers<[1], [0], [0], [1], [0, 0, 1, 1], [], []>} : vector<256x32xbf16>, vector<32x128xbf16>, vector<256x128xf32> -> vector<256x128xf32>
    %7 = arith.addf %3, %6 : vector<256x128xf32>
    %c0_6 = arith.constant 0 : index
    %c0_7 = arith.constant 0 : index
    %8 = vector.load %arg7[%c0_6, %c0_7] : memref<256x128xf32, #tpu.memory_space<vmem>>, vector<256x128xf32>
    tpu.vector_store %arg7[%c0_6, %c0_7], %7 {strides = array<i32>} : memref<256x128xf32, #tpu.memory_space<vmem>>, vector<256x128xf32>,
    %c0_i32_8 = arith.constant 0 : i32
    %9 = arith.cmpi eq, %arg2, %c0_i32_8 : i32
    %10 = arith.extui %9 : i1 to i32
    %c0_i32_9 = arith.constant 0 : i32
    %11 = arith.cmpi ne, %10, %c0_i32_9 : i32
    scf.if %11 {
      %c0_10 = arith.constant 0 : index
      %c0_11 = arith.constant 0 : index
      %12 = vector.load %arg7[%c0_10, %c0_11] : memref<256x128xf32, #tpu.memory_space<vmem>>, vector<256x128xf32>
      %c0_12 = arith.constant 0 : index
      %c0_13 = arith.constant 0 : index
      %13 = vector.load %arg5[%c0_12, %c0_13] : memref<1x128xf32, #tpu.memory_space<vmem>>, vector<1x128xf32>
      %14 = vector.broadcast %13 : vector<1x128xf32> to vector<256x128xf32>
      %15 = arith.addf %12, %14 : vector<256x128xf32>
      %16 = math.tanh %15 : vector<256x128xf32>
      %c0_14 = arith.constant 0 : index
      %c0_15 = arith.constant 0 : index
      %17 = vector.load %arg6[%c0_14, %c0_15] : memref<256x128xf32, #tpu.memory_space<vmem>>, vector<256x128xf32>
      tpu.vector_store %arg6[%c0_14, %c0_15], %16 {strides = array<i32>} : memref<256x128xf32, #tpu.memory_space<vmem>>, vector<256x128xf32>,
    } else {
    }
    return
  }
  func.func @transform_0(%arg0: i32, %arg1: i32, %arg2: i32) -> (i32, i32) {
    %c0_i32 = arith.constant 0 : i32
    return %arg0, %arg2 : i32, i32
  }
  func.func @transform_1(%arg0: i32, %arg1: i32, %arg2: i32) -> (i32, i32) {
    %c0_i32 = arith.constant 0 : i32
    return %arg2, %arg1 : i32, i32
  }
  func.func @transform_2(%arg0: i32, %arg1: i32, %arg2: i32) -> (i32, i32) {
    %c0_i32 = arith.constant 0 : i32
    %c0_i32_0 = arith.constant 0 : i32
    return %c0_i32, %arg1 : i32, i32
  }
  func.func @transform_3(%arg0: i32, %arg1: i32, %arg2: i32) -> (i32, i32) {
    %c0_i32 = arith.constant 0 : i32
    return %arg0, %arg1 : i32, i32
  }
}

</mosaic_0001>

<llo_original>
// kernel: _lambda_.60
$region0: #{_lambda_.60}
  #allocation0 [shape = 'u32[]', space=smem, size = 0x4, offset = 0x4, fixed_abs, tag = 'smem constant byte address 0x4 - core index']
  #allocation1 [shape = 'u32[144,128]{1,0:T(1,128)}', space=vmem, size = 0x12000, scoped, tag = 'internal scratch']
  %s0 = inlined_call_operand.vmem [shape: f32[64,128], index: 0, kind: input, shape index: {}]
  %s1 = inlined_call_operand.vmem [shape: bf16[64,128], index: 1, kind: output, shape index: {}]
  %s2 = sld [smem:[#allocation0]]
  $region14: #{_lambda_.60} parent=0
    _
  %s4 = ssub.s32 1, %s2
  %s5 = scalar_select 0, %s4, %s2
  // Predicated region
  $region2: #{_lambda_.60} parent=0 // pred_check
    _
  $region3: #{_lambda_.60} parent=0 // pred_check_branch
    %7 = sbr.rel (0) target = $region5
  $region4: #{_lambda_.60} parent=0 // pred_region
    _
  $region5: #{_lambda_.60} parent=0 // pred_fallthru
    _
  %v8 = vld [vmem:[%s0] sm:$0xff]
  %v9 = vld [vmem:[%s0 + $0x8] sm:$0xff]
  %v10 = vld [vmem:[%s0 + $0x10] sm:$0xff]
  %v11 = vld [vmem:[%s0 + $0x18] sm:$0xff]
  %v12 = vld [vmem:[%s0 + $0x20] sm:$0xff]
  %v13 = vld [vmem:[%s0 + $0x28] sm:$0xff]
  %v14 = vld [vmem:[%s0 + $0x30] sm:$0xff]
  %v15 = vld [vmem:[%s0 + $0x38] sm:$0xff]
  %vm16 = vcmp.ge.f32.partialorder %v8, 0.0
  %vm17 = vcmp.ge.f32.partialorder %v9, 0.0
  %vm18 = vcmp.ge.f32.partialorder %v10, 0.0
  %vm19 = vcmp.ge.f32.partialorder %v11, 0.0
  %vm20 = vcmp.ge.f32.partialorder %v12, 0.0
  %vm21 = vcmp.ge.f32.partialorder %v13, 0.0
  %vm22 = vcmp.ge.f32.partialorder %v14, 0.0
  %vm23 = vcmp.ge.f32.partialorder %v15, 0.0
  %v24 = vmul.f32 %v8, 0.2
  %v25 = vmul.f32 %v9, 0.2
  %v26 = vmul.f32 %v10, 0.2
  %v27 = vmul.f32 %v11, 0.2
  %v28 = vmul.f32 %v12, 0.2
  %v29 = vmul.f32 %v13, 0.2
  %v30 = vmul.f32 %v14, 0.2
  %v31 = vmul.f32 %v15, 0.2
  %v32 = vsel %vm16, %v8, %v24
  %v33 = vsel %vm17, %v9, %v25
  %v34 = vsel %vm18, %v10, %v26
  %v35 = vsel %vm19, %v11, %v27
  %v36 = vsel %vm20, %v12, %v28
  %v37 = vsel %vm21, %v13, %v29
  %v38 = vsel %vm22, %v14, %v30
  %v39 = vsel %vm23, %v15, %v31
  %v40 = vpack.c.bf16 %v33, %v32
  %v41 = vpack.c.bf16 %v35, %v34
  %v42 = vpack.c.bf16 %v37, %v36
  %v43 = vpack.c.bf16 %v39, %v38
  %v48 = vunpack.c.l.b16 %v40
  %v49 = vunpack.c.h.b16 %v40
  %v50 = vunpack.c.l.b16 %v41
  %v51 = vunpack.c.h.b16 %v41
  %v52 = vunpack.c.l.b16 %v42
  %v53 = vunpack.c.h.b16 %v42
  %v54 = vunpack.c.l.b16 %v43
  %v55 = vunpack.c.h.b16 %v43
  %v56 = vpack.c.b16 %v48, %v48
  %v57 = vpack.c.b16 %v49, %v49
  %v58 = vpack.c.b16 %v50, %v50
  %v59 = vpack.c.b16 %v51, %v51
  %v60 = vpack.c.b16 %v52, %v52
  %v61 = vpack.c.b16 %v53, %v53
  %v62 = vpack.c.b16 %v54, %v54
  %v63 = vpack.c.b16 %v55, %v55
  %72 = vst [vmem:[%s1] sm:$0xf] %v56
  %73 = vst [vmem:[%s1 + $0x4] sm:$0xf] %v57
  %74 = vst [vmem:[%s1 + $0x8] sm:$0xf] %v58
  %75 = vst [vmem:[%s1 + $0xc] sm:$0xf] %v59
  %76 = vst [vmem:[%s1 + $0x10] sm:$0xf] %v60
  %77 = vst [vmem:[%s1 + $0x14] sm:$0xf] %v61
  %78 = vst [vmem:[%s1 + $0x18] sm:$0xf] %v62
  %79 = vst [vmem:[%s1 + $0x1c] sm:$0xf] %v63
  // Predicated region
  $region6: #{_lambda_.60} parent=0 // pred_check
    _
  $region7: #{_lambda_.60} parent=0 // pred_check_branch
    %81 = sbr.rel (0) target = $region9
  $region8: #{_lambda_.60} parent=0 // pred_region
    _
  $region9: #{_lambda_.60} parent=0 // pred_fallthru
    _
  // Predicated region
  $region10: #{_lambda_.60} parent=0 // pred_check
    _
  $region11: #{_lambda_.60} parent=0 // pred_check_branch
    %83 = sbr.rel (0) target = $region13
  $region12: #{_lambda_.60} parent=0 // pred_region
    _
  $region13: #{_lambda_.60} parent=0 // pred_fallthru
    _

// kernel: _lambda_.59
$region0: #{_lambda_.59}
  #allocation0 [shape = 'u32[]', space=smem, size = 0x4, offset = 0x4, fixed_abs, tag = 'smem constant byte address 0x4 - core index']
  #allocation1 [shape = 'u32[144,128]{1,0:T(1,128)}', space=vmem, size = 0x12000, scoped, tag = 'internal scratch']
  #allocation2 [shape = 'f32[256,128]{1,0:T(8,128)}', space=vmem, size = 0x20000, scoped, tag = 'scratch operand']
  %s0 = inlined_call_operand.vmem [shape: bf16[2048,16], index: 0, kind: input, shape index: {}]
  %s1 = inlined_call_operand.hbm [shape: bf16[16,128], index: 1, kind: input, shape index: {}]
  %s2 = inlined_call_operand.vmem [shape: f32[1,128], index: 2, kind: input, shape index: {}]
  %s3 = inlined_call_operand.vmem [shape: f32[2048,128], index: 3, kind: output, shape index: {}]
  %s4 = sld [smem:[#allocation0]]
  $region57: #{_lambda_.59} parent=0
    _
  %s6 = ssub.s32 1, %s4
  %s7 = scalar_select 0, %s6, %s4
  $region1: #{_lambda_.59} parent=0
    #allocation3 [shape = 'u8[4096]{0}', space=vmem, size = 0x1000, scoped, tag = 'input window, operand 1, single buffered']
    #allocation4 [shape = 's32[2]{0}', space=sflag, size = 0x8, scoped, tag = 'scoped memory for _lambda_.59']
    %8 = vsyncpa [#allocation4], 0
    loop: start=0, step=1, limit=10
    $region2: #{_lambda_.59} parent=1 // loop_pre_header
      _
    $region3: #{_lambda_.59} parent=1 // loop_header
      %s10 = sphi 0, %s14
      %p11 = scmp.ge.s32.totalorder %s10, 10
      %s17 = sphi 0, %s36
      %s18 = sphi 0, %s32
      %s19 = sphi 0, %s28
      %s20 = sphi 0, %s17
      %s21 = sphi 0, %s18
      %s22 = sphi 0, %s19
      %s23 = sphi 0, %s20
      %s24 = sphi 0, %s21
      %s25 = sphi 0, %s22
      %s41 = sphi 0, %s43
      %s44 = sphi 0, %s41
      %s45 = sphi 0, %s44
      %s61 = sphi 0, %s45
      %s69 = sphi 0, %s71
      %s72 = sphi 0, %s69
      %s73 = sphi 0, %s72
      %s89 = sphi 0, %s73
      %s95 = sphi 0, %s97
      %s98 = sphi 0, %s95
      %s99 = sphi 0, %s98
      %s115 = sphi 0, %s99
      %s123 = sphi 0, %s125
      %s126 = sphi 0, %s123
      %s127 = sphi 0, %s126
      %s143 = sphi 0, %s127
    $region4: #{_lambda_.59} parent=1 // loop_header_branch
      %13 = sbr.rel (%p11) target = $region8
    $region5: #{_lambda_.59} parent=1 // loop_body
      %s15 = ssub.s32 %s10, 1
      %s16 = ssub.s32 %s10, 2
      %s26 = sadd.s32 1, %s19
      %p27 = scmp.ge.s32.totalorder %s26, 1
      %s28 = scalar_select %p27, 0, %s26
      %s29 = sadd.s32 1, %s18
      %s30 = scalar_select %p27, %s29, %s18
      %p31 = scmp.ge.s32.totalorder %s30, 1
      %s32 = scalar_select %p31, 0, %s30
      %s33 = sadd.s32 1, %s17
      %s34 = scalar_select %p31, %s33, %s17
      %p35 = scmp.ge.s32.totalorder %s34, 8
      %s36 = scalar_select %p35, 0, %s34
      %s37 = ssub.s32 %s17, %s36
      %s38 = ssub.s32 %s19, %s28
      %s39 = sor.u32 %s37, %s38
      %p40 = scmp.eq.s32.totalorder %s39, 0
      %s42 = sadd.s32 %s41, 1
      %s43 = scalar_select %p40, %s41, %s42
      %p46 = pneg %p40
      %p47 = scmp.eq.s32.totalorder %s10, 7
      %p48 = por %p46, %p47
      %p49 = scmp.ne.s32.totalorder %s41, %s44
      %p50 = scmp.eq.s32.totalorder %s10, 0
      %p51 = por %p49, %p50
      %p52 = scmp.ne.s32.totalorder %s41, %s44
      %p53 = scmp.eq.s32.totalorder %s15, 7
      %p54 = por %p52, %p53
      %p55 = scmp.ne.s32.totalorder %s44, %s45
      %p56 = scmp.eq.s32.totalorder %s15, 0
      %p57 = por %p55, %p56
      %p58 = scmp.ne.s32.totalorder %s44, %s45
      %p59 = scmp.eq.s32.totalorder %s16, 7
      %p60 = por %p58, %p59
      %p62 = scmp.ne.s32.totalorder %s45, %s61
      %p63 = scmp.eq.s32.totalorder %s16, 0
      %p64 = por %p62, %p63
      %s65 = ssub.s32 %s19, %s28
      %s66 = ssub.s32 %s18, %s32
      %s67 = sor.u32 %s65, %s66
      %p68 = scmp.eq.s32.totalorder %s67, 0
      %s70 = sadd.s32 %s69, 1
      %s71 = scalar_select %p68, %s69, %s70
      %p74 = pneg %p68
      %p75 = scmp.eq.s32.totalorder %s10, 7
      %p76 = por %p74, %p75
      %p77 = scmp.ne.s32.totalorder %s69, %s72
      %p78 = scmp.eq.s32.totalorder %s10, 0
      %p79 = por %p77, %p78
      %p80 = scmp.ne.s32.totalorder %s69, %s72
      %p81 = scmp.eq.s32.totalorder %s15, 7
      %p82 = por %p80, %p81
      %p83 = scmp.ne.s32.totalorder %s72, %s73
      %p84 = scmp.eq.s32.totalorder %s15, 0
      %p85 = por %p83, %p84
      %p86 = scmp.ne.s32.totalorder %s72, %s73
      %p87 = scmp.eq.s32.totalorder %s16, 7
      %p88 = por %p86, %p87
      %p90 = scmp.ne.s32.totalorder %s73, %s89
      %p91 = scmp.eq.s32.totalorder %s16, 0
      %p92 = por %p90, %p91
      %s93 = ssub.s32 %s18, %s32
      %p94 = scmp.eq.s32.totalorder %s93, 0
      %s96 = sadd.s32 %s95, 1
      %s97 = scalar_select %p94, %s95, %s96
      %p100 = pneg %p94
      %p101 = scmp.eq.s32.totalorder %s10, 7
      %p102 = por %p100, %p101
      %p103 = scmp.ne.s32.totalorder %s95, %s98
      %p104 = scmp.eq.s32.totalorder %s10, 0
      %p105 = por %p103, %p104
      %p106 = scmp.ne.s32.totalorder %s95, %s98
      %p107 = scmp.eq.s32.totalorder %s15, 7
      %p108 = por %p106, %p107
      %p109 = scmp.ne.s32.totalorder %s98, %s99
      %p110 = scmp.eq.s32.totalorder %s15, 0
      %p111 = por %p109, %p110
      %p112 = scmp.ne.s32.totalorder %s98, %s99
      %p113 = scmp.eq.s32.totalorder %s16, 7
      %p114 = por %p112, %p113
      %p116 = scmp.ne.s32.totalorder %s99, %s115
      %p117 = scmp.eq.s32.totalorder %s16, 0
      %p118 = por %p116, %p117
      %s119 = ssub.s32 %s17, %s36
      %s120 = ssub.s32 %s18, %s32
      %s121 = sor.u32 %s119, %s120
      %p122 = scmp.eq.s32.totalorder %s121, 0
      %s124 = sadd.s32 %s123, 1
      %s125 = scalar_select %p122, %s123, %s124
      %p128 = pneg %p122
      %p129 = scmp.eq.s32.totalorder %s10, 7
      %p130 = por %p128, %p129
      %p131 = scmp.ne.s32.totalorder %s123, %s126
      %p132 = scmp.eq.s32.totalorder %s10, 0
      %p133 = por %p131, %p132
      %p134 = scmp.ne.s32.totalorder %s123, %s126
      %p135 = scmp.eq.s32.totalorder %s15, 7
      %p136 = por %p134, %p135
      %p137 = scmp.ne.s32.totalorder %s126, %s127
      %p138 = scmp.eq.s32.totalorder %s15, 0
      %p139 = por %p137, %p138
      %p140 = scmp.ne.s32.totalorder %s126, %s127
      %p141 = scmp.eq.s32.totalorder %s16, 7
      %p142 = por %p140, %p141
      %p144 = scmp.ne.s32.totalorder %s127, %s143
      %p145 = scmp.eq.s32.totalorder %s16, 0
      %p146 = por %p144, %p145
      %p147 = scmp.le.s32.totalorder 1, %s10
      %p148 = scmp.lt.s32.totalorder %s10, 9
      %p149 = pnand %p147, %p148
      %p150 = pneg %p149
      // Predicated region
      $region9: #{_lambda_.59} parent=5 // pred_check
        _
      $region10: #{_lambda_.59} parent=5 // pred_check_branch
        %152 = sbr.rel (%p149) target = $region12
      $region11: #{_lambda_.59} parent=5 // pred_region
        %s153 = ssub.s32 %s10, 1
        // Predicated region
        $region13: #{_lambda_.59} parent=11 // pred_check
          %p154 = pneg %p85
        $region14: #{_lambda_.59} parent=11 // pred_check_branch
          %156 = sbr.rel (%p154) target = $region16
        $region15: #{_lambda_.59} parent=11 // pred_region
          %s157 = smul.u32 2, %s22
          %s159 = ssub.s32 128, 128
          %160 = vsyncadd [#allocation4], %s159
          %s161 = sadd.s32 %s21, %s157
          %s162 = smul.addr %s161, 64
          %s163 = scalar_lea.hbm %s1, %s162
          %s164 = sshll.u32 [#allocation3], 4
          %s165 = int_to_ptr.vmem [resolvable:$true] %s164
          %170 = dma.hbm_to_vmem [thread:$0]  %s163, 128, %s165, [#allocation4], 64, 64, 4
        $region16: #{_lambda_.59} parent=11 // pred_fallthru
          _
        // Predicated region
        $region17: #{_lambda_.59} parent=11 // pred_check
          %p171 = pneg %p111
        $region18: #{_lambda_.59} parent=11 // pred_check_branch
          %173 = sbr.rel (%p171) target = $region20
        $region19: #{_lambda_.59} parent=11 // pred_region
          %p174 = scmp.lt.s32.totalorder %s21, 0
          %s175 = scalar_select %p174, %s21, 0
          %s176 = scalar_lea.vmem %s2, %s175
        $region20: #{_lambda_.59} parent=11 // pred_fallthru
          _
      $region12: #{_lambda_.59} parent=5 // pred_fallthru
        _
      %p177 = scmp.lt.s32.totalorder %s10, 8
      // Predicated region
      $region21: #{_lambda_.59} parent=5 // pred_check
        %p178 = pneg %p177
      $region22: #{_lambda_.59} parent=5 // pred_check_branch
        %180 = sbr.rel (%p178) target = $region24
      $region23: #{_lambda_.59} parent=5 // pred_region
        // Predicated region
        $region25: #{_lambda_.59} parent=23 // pred_check
          %p181 = pneg %p51
        $region26: #{_lambda_.59} parent=23 // pred_check_branch
          %183 = sbr.rel (%p181) target = $region28
        $region27: #{_lambda_.59} parent=23 // pred_region
          %s184 = smul.u32 32, %s17
          %p185 = scmp.lt.s32.totalorder %s184, 255
          %s186 = scalar_select %p185, %s184, 255
          %p187 = scmp.lt.s32.totalorder %s19, 0
          %s188 = scalar_select %p187, %s19, 0
          %s189 = sadd.s32 %s188, %s186
          %s190 = smul.addr %s189, 4
          %s191 = scalar_lea.vmem %s0, %s190
          %s192 = smul.u32 32, %s17
        $region28: #{_lambda_.59} parent=23 // pred_fallthru
          _
      $region24: #{_lambda_.59} parent=5 // pred_fallthru
        _
      %p193 = scmp.le.s32.totalorder 1, %s10
      %p194 = scmp.lt.s32.totalorder %s10, 9
      %p195 = pnand %p193, %p194
      %p196 = pneg %p195
      // Predicated region
      $region29: #{_lambda_.59} parent=5 // pred_check
        _
      $region30: #{_lambda_.59} parent=5 // pred_check_branch
        %198 = sbr.rel (%p195) target = $region32
      $region31: #{_lambda_.59} parent=5 // pred_region
        %s199 = ssub.s32 %s10, 1
        // Predicated region
        $region33: #{_lambda_.59} parent=31 // pred_check
          %p200 = pneg %p85
        $region34: #{_lambda_.59} parent=31 // pred_check_branch
          %202 = sbr.rel (%p200) target = $region36
        $region35: #{_lambda_.59} parent=31 // pred_region
          %203 = dma.done [#allocation4], 128
        $region36: #{_lambda_.59} parent=31 // pred_fallthru
          _
        %s204 = smul.u32 32, %s20
        %p205 = scmp.lt.s32.totalorder %s204, 255
        %s206 = scalar_select %p205, %s204, 255
        %p207 = scmp.lt.s32.totalorder %s22, 0
        %s208 = scalar_select %p207, %s22, 0
        %s209 = sadd.s32 %s208, %s206
        %s210 = smul.addr %s209, 4
        %s211 = scalar_lea.vmem %s0, %s210
        %p212 = pneg %p57
        %p213 = pneg %p54
        %p214 = pneg %p85
        %p215 = pneg %p82
        %p216 = scmp.lt.s32.totalorder %s21, 0
        %s217 = scalar_select %p216, %s21, 0
        %s218 = scalar_lea.vmem %s2, %s217
        %p219 = pneg %p111
        %p220 = pneg %p108
        %p221 = pneg %p139
        %p222 = pneg %p136
        %s223 = smul.u32 32, %s20
        %p224 = scmp.lt.s32.totalorder %s223, 255
        %s225 = scalar_select %p224, %s223, 255
        %p226 = scmp.lt.s32.totalorder %s21, 0
        %s227 = scalar_select %p226, %s21, 0
        %s228 = sadd.s32 %s227, %s225
        %s229 = smul.addr %s228, 8
        %s230 = scalar_lea.vmem %s3, %s229
        %s231 = smul.u32 32, %s20
        %p232 = scmp.lt.s32.totalorder %s231, 255
        %s233 = scalar_select %p232, %s231, 255
        %p234 = scmp.lt.s32.totalorder %s22, 0
        %s235 = scalar_select %p234, %s22, 0
        %s236 = sadd.s32 %s235, %s233
        %s237 = smul.addr %s236, 4
        %s238 = scalar_lea.vmem %s0, %s237
        %s239 = smul.u32 32, %s20
        %s240 = smul.u32 2, %s22
        %p241 = scmp.lt.s32.totalorder %s21, 0
        %s242 = scalar_select %p241, %s21, 0
        %s243 = scalar_lea.vmem %s2, %s242
        %s244 = smul.u32 32, %s20
        %p245 = scmp.lt.s32.totalorder %s244, 255
        %s246 = scalar_select %p245, %s244, 255
        %p247 = scmp.lt.s32.totalorder %s21, 0
        %s248 = scalar_select %p247, %s21, 0
        %s249 = sadd.s32 %s248, %s246
        %s250 = smul.addr %s249, 8
        %s251 = scalar_lea.vmem %s3, %s250
        %s252 = smul.u32 32, %s20
        %p254 = scmp.eq.s32.totalorder %s22, 0
        // Predicated region
        $region37: #{_lambda_.59} parent=31 // pred_check
          %p255 = pneg %p254
        $region38: #{_lambda_.59} parent=31 // pred_check_branch
          %257 = sbr.rel (%p255) target = $region40
        $region39: #{_lambda_.59} parent=31 // pred_region
          %258 = vst [vmem:[#allocation2] sm:$0xff] 0.0
          %259 = vst [vmem:[#allocation2 + $0x8] sm:$0xff] 0.0
          %260 = vst [vmem:[#allocation2 + $0x10] sm:$0xff] 0.0
          %261 = vst [vmem:[#allocation2 + $0x18] sm:$0xff] 0.0
          %262 = vst [vmem:[#allocation2 + $0x20] sm:$0xff] 0.0
          %263 = vst [vmem:[#allocation2 + $0x28] sm:$0xff] 0.0
          %264 = vst [vmem:[#allocation2 + $0x30] sm:$0xff] 0.0
          %265 = vst [vmem:[#allocation2 + $0x38] sm:$0xff] 0.0
          %266 = vst [vmem:[#allocation2 + $0x40] sm:$0xff] 0.0
          %267 = vst [vmem:[#allocation2 + $0x48] sm:$0xff] 0.0
          %268 = vst [vmem:[#allocation2 + $0x50] sm:$0xff] 0.0
          %269 = vst [vmem:[#allocation2 + $0x58] sm:$0xff] 0.0
          %270 = vst [vmem:[#allocation2 + $0x60] sm:$0xff] 0.0
          %271 = vst [vmem:[#allocation2 + $0x68] sm:$0xff] 0.0
          %272 = vst [vmem:[#allocation2 + $0x70] sm:$0xff] 0.0
          %273 = vst [vmem:[#allocation2 + $0x78] sm:$0xff] 0.0
          %274 = vst [vmem:[#allocation2 + $0x80] sm:$0xff] 0.0
          %275 = vst [vmem:[#allocation2 + $0x88] sm:$0xff] 0.0
          %276 = vst [vmem:[#allocation2 + $0x90] sm:$0xff] 0.0
          %277 = vst [vmem:[#allocation2 + $0x98] sm:$0xff] 0.0
          %278 = vst [vmem:[#allocation2 + $0xa0] sm:$0xff] 0.0
          %279 = vst [vmem:[#allocation2 + $0xa8] sm:$0xff] 0.0
          %280 = vst [vmem:[#allocation2 + $0xb0] sm:$0xff] 0.0
          %281 = vst [vmem:[#allocation2 + $0xb8] sm:$0xff] 0.0
          %282 = vst [vmem:[#allocation2 + $0xc0] sm:$0xff] 0.0
          %283 = vst [vmem:[#allocation2 + $0xc8] sm:$0xff] 0.0
          %284 = vst [vmem:[#allocation2 + $0xd0] sm:$0xff] 0.0
          %285 = vst [vmem:[#allocation2 + $0xd8] sm:$0xff] 0.0
          %286 = vst [vmem:[#allocation2 + $0xe0] sm:$0xff] 0.0
          %287 = vst [vmem:[#allocation2 + $0xe8] sm:$0xff] 0.0
          %288 = vst [vmem:[#allocation2 + $0xf0] sm:$0xff] 0.0
          %289 = vst [vmem:[#allocation2 + $0xf8] sm:$0xff] 0.0
        $region40: #{_lambda_.59} parent=31 // pred_fallthru
          _
        %v290 = vld [vmem:[#allocation2] sm:$0xff]
        %v291 = vld [vmem:[#allocation2 + $0x8] sm:$0xff]
        %v292 = vld [vmem:[#allocation2 + $0x10] sm:$0xff]
        %v293 = vld [vmem:[#allocation2 + $0x18] sm:$0xff]
        %v294 = vld [vmem:[#allocation2 + $0x20] sm:$0xff]
        %v295 = vld [vmem:[#allocation2 + $0x28] sm:$0xff]
        %v296 = vld [vmem:[#allocation2 + $0x30] sm:$0xff]
        %v297 = vld [vmem:[#allocation2 + $0x38] sm:$0xff]
        %v298 = vld [vmem:[#allocation2 + $0x40] sm:$0xff]
        %v299 = vld [vmem:[#allocation2 + $0x48] sm:$0xff]
        %v300 = vld [vmem:[#allocation2 + $0x50] sm:$0xff]
        %v301 = vld [vmem:[#allocation2 + $0x58] sm:$0xff]
        %v302 = vld [vmem:[#allocation2 + $0x60] sm:$0xff]
        %v303 = vld [vmem:[#allocation2 + $0x68] sm:$0xff]
        %v304 = vld [vmem:[#allocation2 + $0x70] sm:$0xff]
        %v305 = vld [vmem:[#allocation2 + $0x78] sm:$0xff]
        %v306 = vld [vmem:[#allocation2 + $0x80] sm:$0xff]
        %v307 = vld [vmem:[#allocation2 + $0x88] sm:$0xff]
        %v308 = vld [vmem:[#allocation2 + $0x90] sm:$0xff]
        %v309 = vld [vmem:[#allocation2 + $0x98] sm:$0xff]
        %v310 = vld [vmem:[#allocation2 + $0xa0] sm:$0xff]
        %v311 = vld [vmem:[#allocation2 + $0xa8] sm:$0xff]
        %v312 = vld [vmem:[#allocation2 + $0xb0] sm:$0xff]
        %v313 = vld [vmem:[#allocation2 + $0xb8] sm:$0xff]
        %v314 = vld [vmem:[#allocation2 + $0xc0] sm:$0xff]
        %v315 = vld [vmem:[#allocation2 + $0xc8] sm:$0xff]
        %v316 = vld [vmem:[#allocation2 + $0xd0] sm:$0xff]
        %v317 = vld [vmem:[#allocation2 + $0xd8] sm:$0xff]
        %v318 = vld [vmem:[#allocation2 + $0xe0] sm:$0xff]
        %v319 = vld [vmem:[#allocation2 + $0xe8] sm:$0xff]
        %v320 = vld [vmem:[#allocation2 + $0xf0] sm:$0xff]
        %v321 = vld [vmem:[#allocation2 + $0xf8] sm:$0xff]
        %v322 = vld [vmem:[%s238] sm:$0xf]
        %v323 = vld [vmem:[%s238 + $0x4] sm:$0xf]
        %v324 = vld [vmem:[%s238 + $0x8] sm:$0xf]
        %v325 = vld [vmem:[%s238 + $0xc] sm:$0xf]
        %v326 = vld [vmem:[%s238 + $0x10] sm:$0xf]
        %v327 = vld [vmem:[%s238 + $0x14] sm:$0xf]
        %v328 = vld [vmem:[%s238 + $0x18] sm:$0xf]
        %v329 = vld [vmem:[%s238 + $0x1c] sm:$0xf]
        %v330 = vld [vmem:[%s238 + $0x20] sm:$0xf]
        %v331 = vld [vmem:[%s238 + $0x24] sm:$0xf]
        %v332 = vld [vmem:[%s238 + $0x28] sm:$0xf]
        %v333 = vld [vmem:[%s238 + $0x2c] sm:$0xf]
        %v334 = vld [vmem:[%s238 + $0x30] sm:$0xf]
        %v335 = vld [vmem:[%s238 + $0x34] sm:$0xf]
        %v336 = vld [vmem:[%s238 + $0x38] sm:$0xf]
        %v337 = vld [vmem:[%s238 + $0x3c] sm:$0xf]
        %v338 = vld [vmem:[%s238 + $0x40] sm:$0xf]
        %v339 = vld [vmem:[%s238 + $0x44] sm:$0xf]
        %v340 = vld [vmem:[%s238 + $0x48] sm:$0xf]
        %v341 = vld [vmem:[%s238 + $0x4c] sm:$0xf]
        %v342 = vld [vmem:[%s238 + $0x50] sm:$0xf]
        %v343 = vld [vmem:[%s238 + $0x54] sm:$0xf]
        %v344 = vld [vmem:[%s238 + $0x58] sm:$0xf]
        %v345 = vld [vmem:[%s238 + $0x5c] sm:$0xf]
        %v346 = vld [vmem:[%s238 + $0x60] sm:$0xf]
        %v347 = vld [vmem:[%s238 + $0x64] sm:$0xf]
        %v348 = vld [vmem:[%s238 + $0x68] sm:$0xf]
        %v349 = vld [vmem:[%s238 + $0x6c] sm:$0xf]
        %v350 = vld [vmem:[%s238 + $0x70] sm:$0xf]
        %v351 = vld [vmem:[%s238 + $0x74] sm:$0xf]
        %v352 = vld [vmem:[%s238 + $0x78] sm:$0xf]
        %v353 = vld [vmem:[%s238 + $0x7c] sm:$0xf]
        %v354 = vld [vmem:[#allocation3] sm:$0xf]
        %v355 = vld [vmem:[#allocation3 + $0x4] sm:$0xf]
        %v388 = vunpack.c.l.b16 %v322
        %v389 = vunpack.c.l.b16 %v323
        %v390 = vunpack.c.l.b16 %v324
        %v391 = vunpack.c.l.b16 %v325
        %v392 = vunpack.c.l.b16 %v326
        %v393 = vunpack.c.l.b16 %v327
        %v394 = vunpack.c.l.b16 %v328
        %v395 = vunpack.c.l.b16 %v329
        %v396 = vunpack.c.l.b16 %v330
        %v397 = vunpack.c.l.b16 %v331
        %v398 = vunpack.c.l.b16 %v332
        %v399 = vunpack.c.l.b16 %v333
        %v400 = vunpack.c.l.b16 %v334
        %v401 = vunpack.c.l.b16 %v335
        %v402 = vunpack.c.l.b16 %v336
        %v403 = vunpack.c.l.b16 %v337
        %v404 = vunpack.c.l.b16 %v338
        %v405 = vunpack.c.l.b16 %v339
        %v406 = vunpack.c.l.b16 %v340
        %v407 = vunpack.c.l.b16 %v341
        %v408 = vunpack.c.l.b16 %v342
        %v409 = vunpack.c.l.b16 %v343
        %v410 = vunpack.c.l.b16 %v344
        %v411 = vunpack.c.l.b16 %v345
        %v412 = vunpack.c.l.b16 %v346
        %v413 = vunpack.c.l.b16 %v347
        %v414 = vunpack.c.l.b16 %v348
        %v415 = vunpack.c.l.b16 %v349
        %v416 = vunpack.c.l.b16 %v350
        %v417 = vunpack.c.l.b16 %v351
        %v418 = vunpack.c.l.b16 %v352
        %v419 = vunpack.c.l.b16 %v353
        %v420 = vpack.c.b16 %v389, %v388
        %v421 = vpack.c.b16 %v391, %v390
        %v422 = vpack.c.b16 %v393, %v392
        %v423 = vpack.c.b16 %v395, %v394
        %v424 = vpack.c.b16 %v397, %v396
        %v425 = vpack.c.b16 %v399, %v398
        %v426 = vpack.c.b16 %v401, %v400
        %v427 = vpack.c.b16 %v403, %v402
        %v428 = vpack.c.b16 %v405, %v404
        %v429 = vpack.c.b16 %v407, %v406
        %v430 = vpack.c.b16 %v409, %v408
        %v431 = vpack.c.b16 %v411, %v410
        %v432 = vpack.c.b16 %v413, %v412
        %v433 = vpack.c.b16 %v415, %v414
        %v434 = vpack.c.b16 %v417, %v416
        %v435 = vpack.c.b16 %v419, %v418
        %v438 = vunpack.c.l.b16 %v354
        %v439 = vunpack.c.l.b16 %v355
        %v440 = vpack.c.b16 %v439, %v438
        %vm442 = vcmask 130048
        %v444 = vsel %vm442, %v420, 0
        %v447 = vsel %vm442, %v421, 0
        %v450 = vsel %vm442, %v422, 0
        %v453 = vsel %vm442, %v423, 0
        %v456 = vsel %vm442, %v424, 0
        %v459 = vsel %vm442, %v425, 0
        %v462 = vsel %vm442, %v426, 0
        %v465 = vsel %vm442, %v427, 0
        %v468 = vsel %vm442, %v428, 0
        %v471 = vsel %vm442, %v429, 0
        %v474 = vsel %vm442, %v430, 0
        %v477 = vsel %vm442, %v431, 0
        %v480 = vsel %vm442, %v432, 0
        %v483 = vsel %vm442, %v433, 0
        %v486 = vsel %vm442, %v434, 0
        %v489 = vsel %vm442, %v435, 0
        %491 = vmatprep.subr.bf16.mxu0 0
        %492 = vmatpush1.bf16.msra.mxu0 0
        %493 = vmatprep.subr.bf16.mxu0 0
        %494 = vmatpush1.bf16.msra.mxu0 0
        %495 = vmatprep.subr.bf16.mxu0 0
        %496 = vmatpush1.bf16.msra.mxu0 0
        %497 = vmatprep.subr.bf16.mxu0 0
        %498 = vmatpush1.bf16.msra.mxu0 0
        %499 = vmatprep.subr.bf16.mxu0 0
        %500 = vmatpush1.bf16.msra.mxu0 0
        %501 = vmatprep.subr.bf16.mxu0 0
        %502 = vmatpush1.bf16.msra.mxu0 0
        %503 = vmatprep.subr.bf16.mxu0 0
        %504 = vmatpush1.bf16.msra.mxu0 0
        %505 = vmatprep.subr.bf16.mxu0 0
        %506 = vmatpush1.bf16.msra.mxu0 %v440
        %507 = vmatprep.subr.bf16.mxu0 0
        %508 = vmatpush2.bf16.msra.mxu0 0
        %509 = vmatprep.subr.bf16.mxu0 0
        %510 = vmatpush2.bf16.msra.mxu0 0
        %511 = vmatprep.subr.bf16.mxu0 0
        %512 = vmatpush2.bf16.msra.mxu0 0
        %513 = vmatprep.subr.bf16.mxu0 0
        %514 = vmatpush2.bf16.msra.mxu0 0
        %515 = vmatprep.subr.bf16.mxu0 0
        %516 = vmatpush2.bf16.msra.mxu0 0
        %517 = vmatprep.subr.bf16.mxu0 0
        %518 = vmatpush2.bf16.msra.mxu0 0
        %519 = vmatprep.subr.bf16.mxu0 0
        %520 = vmatpush2.bf16.msra.mxu0 0
        %521 = vmatprep.subr.bf16.mxu0 0
        %522 = vmatpush2.bf16.msra.mxu0 0
        %523 = vmatprep.mubr.bf16.mxu0 0
        %524 = vmatmul.mubr.bf16.gmra.mxu0 %v444
        %v525 = vpop.f32.mrf.mxu0
        %v526 = vadd.f32 0.0, %v525
        %v527 = vpop.f32.mrf.mxu0
        %v528 = vpop.f32.mrf.mxu0
        %v529 = vadd.f32 0.0, %v528
        %v530 = vpop.f32.mrf.mxu0
        %531 = vmatprep.mubr.bf16.mxu0 0
        %532 = vmatmul.mubr.bf16.gmra.mxu0 %v447
        %v533 = vpop.f32.mrf.mxu0
        %v534 = vadd.f32 0.0, %v533
        %v535 = vpop.f32.mrf.mxu0
        %v536 = vpop.f32.mrf.mxu0
        %v537 = vadd.f32 0.0, %v536
        %v538 = vpop.f32.mrf.mxu0
        %539 = vmatprep.mubr.bf16.mxu0 0
        %540 = vmatmul.mubr.bf16.gmra.mxu0 %v450
        %v541 = vpop.f32.mrf.mxu0
        %v542 = vadd.f32 0.0, %v541
        %v543 = vpop.f32.mrf.mxu0
        %v544 = vpop.f32.mrf.mxu0
        %v545 = vadd.f32 0.0, %v544
        %v546 = vpop.f32.mrf.mxu0
        %547 = vmatprep.mubr.bf16.mxu0 0
        %548 = vmatmul.mubr.bf16.gmra.mxu0 %v453
        %v549 = vpop.f32.mrf.mxu0
        %v550 = vadd.f32 0.0, %v549
        %v551 = vpop.f32.mrf.mxu0
        %v552 = vpop.f32.mrf.mxu0
        %v553 = vadd.f32 0.0, %v552
        %v554 = vpop.f32.mrf.mxu0
        %555 = vmatprep.mubr.bf16.mxu0 0
        %556 = vmatmul.mubr.bf16.gmra.mxu0 %v456
        %v557 = vpop.f32.mrf.mxu0
        %v558 = vadd.f32 0.0, %v557
        %v559 = vpop.f32.mrf.mxu0
        %v560 = vpop.f32.mrf.mxu0
        %v561 = vadd.f32 0.0, %v560
        %v562 = vpop.f32.mrf.mxu0
        %563 = vmatprep.mubr.bf16.mxu0 0
        %564 = vmatmul.mubr.bf16.gmra.mxu0 %v459
        %v565 = vpop.f32.mrf.mxu0
        %v566 = vadd.f32 0.0, %v565
        %v567 = vpop.f32.mrf.mxu0
        %v568 = vpop.f32.mrf.mxu0
        %v569 = vadd.f32 0.0, %v568
        %v570 = vpop.f32.mrf.mxu0
        %571 = vmatprep.mubr.bf16.mxu0 0
        %572 = vmatmul.mubr.bf16.gmra.mxu0 %v462
        %v573 = vpop.f32.mrf.mxu0
        %v574 = vadd.f32 0.0, %v573
        %v575 = vpop.f32.mrf.mxu0
        %v576 = vpop.f32.mrf.mxu0
        %v577 = vadd.f32 0.0, %v576
        %v578 = vpop.f32.mrf.mxu0
        %579 = vmatprep.mubr.bf16.mxu0 0
        %580 = vmatmul.mubr.bf16.gmra.mxu0 %v465
        %v581 = vpop.f32.mrf.mxu0
        %v582 = vadd.f32 0.0, %v581
        %v583 = vpop.f32.mrf.mxu0
        %v584 = vpop.f32.mrf.mxu0
        %v585 = vadd.f32 0.0, %v584
        %v586 = vpop.f32.mrf.mxu0
        %587 = vmatprep.mubr.bf16.mxu0 0
        %588 = vmatmul.mubr.bf16.gmra.mxu0 %v468
        %v589 = vpop.f32.mrf.mxu0
        %v590 = vadd.f32 0.0, %v589
        %v591 = vpop.f32.mrf.mxu0
        %v592 = vpop.f32.mrf.mxu0
        %v593 = vadd.f32 0.0, %v592
        %v594 = vpop.f32.mrf.mxu0
        %595 = vmatprep.mubr.bf16.mxu0 0
        %596 = vmatmul.mubr.bf16.gmra.mxu0 %v471
        %v597 = vpop.f32.mrf.mxu0
        %v598 = vadd.f32 0.0, %v597
        %v599 = vpop.f32.mrf.mxu0
        %v600 = vpop.f32.mrf.mxu0
        %v601 = vadd.f32 0.0, %v600
        %v602 = vpop.f32.mrf.mxu0
        %603 = vmatprep.mubr.bf16.mxu0 0
        %604 = vmatmul.mubr.bf16.gmra.mxu0 %v474
        %v605 = vpop.f32.mrf.mxu0
        %v606 = vadd.f32 0.0, %v605
        %v607 = vpop.f32.mrf.mxu0
        %v608 = vpop.f32.mrf.mxu0
        %v609 = vadd.f32 0.0, %v608
        %v610 = vpop.f32.mrf.mxu0
        %611 = vmatprep.mubr.bf16.mxu0 0
        %612 = vmatmul.mubr.bf16.gmra.mxu0 %v477
        %v613 = vpop.f32.mrf.mxu0
        %v614 = vadd.f32 0.0, %v613
        %v615 = vpop.f32.mrf.mxu0
        %v616 = vpop.f32.mrf.mxu0
        %v617 = vadd.f32 0.0, %v616
        %v618 = vpop.f32.mrf.mxu0
        %619 = vmatprep.mubr.bf16.mxu0 0
        %620 = vmatmul.mubr.bf16.gmra.mxu0 %v480
        %v621 = vpop.f32.mrf.mxu0
        %v622 = vadd.f32 0.0, %v621
        %v623 = vpop.f32.mrf.mxu0
        %v624 = vpop.f32.mrf.mxu0
        %v625 = vadd.f32 0.0, %v624
        %v626 = vpop.f32.mrf.mxu0
        %627 = vmatprep.mubr.bf16.mxu0 0
        %628 = vmatmul.mubr.bf16.gmra.mxu0 %v483
        %v629 = vpop.f32.mrf.mxu0
        %v630 = vadd.f32 0.0, %v629
        %v631 = vpop.f32.mrf.mxu0
        %v632 = vpop.f32.mrf.mxu0
        %v633 = vadd.f32 0.0, %v632
        %v634 = vpop.f32.mrf.mxu0
        %635 = vmatprep.mubr.bf16.mxu0 0
        %636 = vmatmul.mubr.bf16.gmra.mxu0 %v486
        %v637 = vpop.f32.mrf.mxu0
        %v638 = vadd.f32 0.0, %v637
        %v639 = vpop.f32.mrf.mxu0
        %v640 = vpop.f32.mrf.mxu0
        %v641 = vadd.f32 0.0, %v640
        %v642 = vpop.f32.mrf.mxu0
        %643 = vmatprep.mubr.bf16.mxu0 0
        %644 = vmatmul.mubr.bf16.gmra.mxu0 %v489
        %v645 = vpop.f32.mrf.mxu0
        %v646 = vadd.f32 0.0, %v645
        %v647 = vpop.f32.mrf.mxu0
        %v648 = vpop.f32.mrf.mxu0
        %v649 = vadd.f32 0.0, %v648
        %v650 = vpop.f32.mrf.mxu0
        %651 = vdwg.mxu0
        %v652 = vadd.f32 %v290, %v526
        %v653 = vadd.f32 %v291, %v529
        %v654 = vadd.f32 %v292, %v534
        %v655 = vadd.f32 %v293, %v537
        %v656 = vadd.f32 %v294, %v542
        %v657 = vadd.f32 %v295, %v545
        %v658 = vadd.f32 %v296, %v550
        %v659 = vadd.f32 %v297, %v553
        %v660 = vadd.f32 %v298, %v558
        %v661 = vadd.f32 %v299, %v561
        %v662 = vadd.f32 %v300, %v566
        %v663 = vadd.f32 %v301, %v569
        %v664 = vadd.f32 %v302, %v574
        %v665 = vadd.f32 %v303, %v577
        %v666 = vadd.f32 %v304, %v582
        %v667 = vadd.f32 %v305, %v585
        %v668 = vadd.f32 %v306, %v590
        %v669 = vadd.f32 %v307, %v593
        %v670 = vadd.f32 %v308, %v598
        %v671 = vadd.f32 %v309, %v601
        %v672 = vadd.f32 %v310, %v606
        %v673 = vadd.f32 %v311, %v609
        %v674 = vadd.f32 %v312, %v614
        %v675 = vadd.f32 %v313, %v617
        %v676 = vadd.f32 %v314, %v622
        %v677 = vadd.f32 %v315, %v625
        %v678 = vadd.f32 %v316, %v630
        %v679 = vadd.f32 %v317, %v633
        %v680 = vadd.f32 %v318, %v638
        %v681 = vadd.f32 %v319, %v641
        %v682 = vadd.f32 %v320, %v646
        %v683 = vadd.f32 %v321, %v649
        %684 = vst [vmem:[#allocation2] sm:$0xff] %v652
        %685 = vst [vmem:[#allocation2 + $0x8] sm:$0xff] %v653
        %686 = vst [vmem:[#allocation2 + $0x10] sm:$0xff] %v654
        %687 = vst [vmem:[#allocation2 + $0x18] sm:$0xff] %v655
        %688 = vst [vmem:[#allocation2 + $0x20] sm:$0xff] %v656
        %689 = vst [vmem:[#allocation2 + $0x28] sm:$0xff] %v657
        %690 = vst [vmem:[#allocation2 + $0x30] sm:$0xff] %v658
        %691 = vst [vmem:[#allocation2 + $0x38] sm:$0xff] %v659
        %692 = vst [vmem:[#allocation2 + $0x40] sm:$0xff] %v660
        %693 = vst [vmem:[#allocation2 + $0x48] sm:$0xff] %v661
        %694 = vst [vmem:[#allocation2 + $0x50] sm:$0xff] %v662
        %695 = vst [vmem:[#allocation2 + $0x58] sm:$0xff] %v663
        %696 = vst [vmem:[#allocation2 + $0x60] sm:$0xff] %v664
        %697 = vst [vmem:[#allocation2 + $0x68] sm:$0xff] %v665
        %698 = vst [vmem:[#allocation2 + $0x70] sm:$0xff] %v666
        %699 = vst [vmem:[#allocation2 + $0x78] sm:$0xff] %v667
        %700 = vst [vmem:[#allocation2 + $0x80] sm:$0xff] %v668
        %701 = vst [vmem:[#allocation2 + $0x88] sm:$0xff] %v669
        %702 = vst [vmem:[#allocation2 + $0x90] sm:$0xff] %v670
        %703 = vst [vmem:[#allocation2 + $0x98] sm:$0xff] %v671
        %704 = vst [vmem:[#allocation2 + $0xa0] sm:$0xff] %v672
        %705 = vst [vmem:[#allocation2 + $0xa8] sm:$0xff] %v673
        %706 = vst [vmem:[#allocation2 + $0xb0] sm:$0xff] %v674
        %707 = vst [vmem:[#allocation2 + $0xb8] sm:$0xff] %v675
        %708 = vst [vmem:[#allocation2 + $0xc0] sm:$0xff] %v676
        %709 = vst [vmem:[#allocation2 + $0xc8] sm:$0xff] %v677
        %710 = vst [vmem:[#allocation2 + $0xd0] sm:$0xff] %v678
        %711 = vst [vmem:[#allocation2 + $0xd8] sm:$0xff] %v679
        %712 = vst [vmem:[#allocation2 + $0xe0] sm:$0xff] %v680
        %713 = vst [vmem:[#allocation2 + $0xe8] sm:$0xff] %v681
        %714 = vst [vmem:[#allocation2 + $0xf0] sm:$0xff] %v682
        %715 = vst [vmem:[#allocation2 + $0xf8] sm:$0xff] %v683
        // Predicated region
        $region41: #{_lambda_.59} parent=31 // pred_check
          %p716 = pneg %p254
        $region42: #{_lambda_.59} parent=31 // pred_check_branch
          %718 = sbr.rel (%p716) target = $region44
        $region43: #{_lambda_.59} parent=31 // pred_region
          %v719 = vld [vmem:[#allocation2] sm:$0xff]
          %v720 = vld [vmem:[#allocation2 + $0x8] sm:$0xff]
          %v721 = vld [vmem:[#allocation2 + $0x10] sm:$0xff]
          %v722 = vld [vmem:[#allocation2 + $0x18] sm:$0xff]
          %v723 = vld [vmem:[#allocation2 + $0x20] sm:$0xff]
          %v724 = vld [vmem:[#allocation2 + $0x28] sm:$0xff]
          %v725 = vld [vmem:[#allocation2 + $0x30] sm:$0xff]
          %v726 = vld [vmem:[#allocation2 + $0x38] sm:$0xff]
          %v727 = vld [vmem:[#allocation2 + $0x40] sm:$0xff]
          %v728 = vld [vmem:[#allocation2 + $0x48] sm:$0xff]
          %v729 = vld [vmem:[#allocation2 + $0x50] sm:$0xff]
          %v730 = vld [vmem:[#allocation2 + $0x58] sm:$0xff]
          %v731 = vld [vmem:[#allocation2 + $0x60] sm:$0xff]
          %v732 = vld [vmem:[#allocation2 + $0x68] sm:$0xff]
          %v733 = vld [vmem:[#allocation2 + $0x70] sm:$0xff]
          %v734 = vld [vmem:[#allocation2 + $0x78] sm:$0xff]
          %v735 = vld [vmem:[#allocation2 + $0x80] sm:$0xff]
          %v736 = vld [vmem:[#allocation2 + $0x88] sm:$0xff]
          %v737 = vld [vmem:[#allocation2 + $0x90] sm:$0xff]
          %v738 = vld [vmem:[#allocation2 + $0x98] sm:$0xff]
          %v739 = vld [vmem:[#allocation2 + $0xa0] sm:$0xff]
          %v740 = vld [vmem:[#allocation2 + $0xa8] sm:$0xff]
          %v741 = vld [vmem:[#allocation2 + $0xb0] sm:$0xff]
          %v742 = vld [vmem:[#allocation2 + $0xb8] sm:$0xff]
          %v743 = vld [vmem:[#allocation2 + $0xc0] sm:$0xff]
          %v744 = vld [vmem:[#allocation2 + $0xc8] sm:$0xff]
          %v745 = vld [vmem:[#allocation2 + $0xd0] sm:$0xff]
          %v746 = vld [vmem:[#allocation2 + $0xd8] sm:$0xff]
          %v747 = vld [vmem:[#allocation2 + $0xe0] sm:$0xff]
          %v748 = vld [vmem:[#allocation2 + $0xe8] sm:$0xff]
          %v749 = vld [vmem:[#allocation2 + $0xf0] sm:$0xff]
          %v750 = vld [vmem:[#allocation2 + $0xf8] sm:$0xff]
          %v751 = vld [vmem:[%s243] sm:$0x1]
          %v753 = vlaneseq
          %v754 = vshrl.u32 %v753, 7
          %v755 = vsub.s32 0, %v754
          %v756 = vrot.slane %v751, %v755
          %v758 = vadd.f32 %v719, %v756
          %v759 = vadd.f32 %v720, %v756
          %v760 = vadd.f32 %v721, %v756
          %v761 = vadd.f32 %v722, %v756
          %v762 = vadd.f32 %v723, %v756
          %v763 = vadd.f32 %v724, %v756
          %v764 = vadd.f32 %v725, %v756
          %v765 = vadd.f32 %v726, %v756
          %v766 = vadd.f32 %v727, %v756
          %v767 = vadd.f32 %v728, %v756
          %v768 = vadd.f32 %v729, %v756
          %v769 = vadd.f32 %v730, %v756
          %v770 = vadd.f32 %v731, %v756
          %v771 = vadd.f32 %v732, %v756
          %v772 = vadd.f32 %v733, %v756
          %v773 = vadd.f32 %v734, %v756
          %v774 = vadd.f32 %v735, %v756
          %v775 = vadd.f32 %v736, %v756
          %v776 = vadd.f32 %v737, %v756
          %v777 = vadd.f32 %v738, %v756
          %v778 = vadd.f32 %v739, %v756
          %v779 = vadd.f32 %v740, %v756
          %v780 = vadd.f32 %v741, %v756
          %v781 = vadd.f32 %v742, %v756
          %v782 = vadd.f32 %v743, %v756
          %v783 = vadd.f32 %v744, %v756
          %v784 = vadd.f32 %v745, %v756
          %v785 = vadd.f32 %v746, %v756
          %v786 = vadd.f32 %v747, %v756
          %v787 = vadd.f32 %v748, %v756
          %v788 = vadd.f32 %v749, %v756
          %v789 = vadd.f32 %v750, %v756
          %790 = vst [vmem:[%s251] sm:$0xff] %v758
          %791 = vst [vmem:[%s251 + $0x8] sm:$0xff] %v759
          %792 = vst [vmem:[%s251 + $0x10] sm:$0xff] %v760
          %793 = vst [vmem:[%s251 + $0x18] sm:$0xff] %v761
          %794 = vst [vmem:[%s251 + $0x20] sm:$0xff] %v762
          %795 = vst [vmem:[%s251 + $0x28] sm:$0xff] %v763
          %796 = vst [vmem:[%s251 + $0x30] sm:$0xff] %v764
          %797 = vst [vmem:[%s251 + $0x38] sm:$0xff] %v765
          %798 = vst [vmem:[%s251 + $0x40] sm:$0xff] %v766
          %799 = vst [vmem:[%s251 + $0x48] sm:$0xff] %v767
          %800 = vst [vmem:[%s251 + $0x50] sm:$0xff] %v768
          %801 = vst [vmem:[%s251 + $0x58] sm:$0xff] %v769
          %802 = vst [vmem:[%s251 + $0x60] sm:$0xff] %v770
          %803 = vst [vmem:[%s251 + $0x68] sm:$0xff] %v771
          %804 = vst [vmem:[%s251 + $0x70] sm:$0xff] %v772
          %805 = vst [vmem:[%s251 + $0x78] sm:$0xff] %v773
          %806 = vst [vmem:[%s251 + $0x80] sm:$0xff] %v774
          %807 = vst [vmem:[%s251 + $0x88] sm:$0xff] %v775
          %808 = vst [vmem:[%s251 + $0x90] sm:$0xff] %v776
          %809 = vst [vmem:[%s251 + $0x98] sm:$0xff] %v777
          %810 = vst [vmem:[%s251 + $0xa0] sm:$0xff] %v778
          %811 = vst [vmem:[%s251 + $0xa8] sm:$0xff] %v779
          %812 = vst [vmem:[%s251 + $0xb0] sm:$0xff] %v780
          %813 = vst [vmem:[%s251 + $0xb8] sm:$0xff] %v781
          %814 = vst [vmem:[%s251 + $0xc0] sm:$0xff] %v782
          %815 = vst [vmem:[%s251 + $0xc8] sm:$0xff] %v783
          %816 = vst [vmem:[%s251 + $0xd0] sm:$0xff] %v784
          %817 = vst [vmem:[%s251 + $0xd8] sm:$0xff] %v785
          %818 = vst [vmem:[%s251 + $0xe0] sm:$0xff] %v786
          %819 = vst [vmem:[%s251 + $0xe8] sm:$0xff] %v787
          %820 = vst [vmem:[%s251 + $0xf0] sm:$0xff] %v788
          %821 = vst [vmem:[%s251 + $0xf8] sm:$0xff] %v789
        $region44: #{_lambda_.59} parent=31 // pred_fallthru
          _
        %s822 = smul.u32 32, %s20
        %p823 = scmp.lt.s32.totalorder %s822, 255
        %s824 = scalar_select %p823, %s822, 255
        %p825 = scmp.lt.s32.totalorder %s21, 0
        %s826 = scalar_select %p825, %s21, 0
        %s827 = sadd.s32 %s826, %s824
        %s828 = smul.addr %s827, 8
        %s829 = scalar_lea.vmem %s3, %s828
        // Predicated region
        $region45: #{_lambda_.59} parent=31 // pred_check
          %p830 = pneg %p136
        $region46: #{_lambda_.59} parent=31 // pred_check_branch
          %832 = sbr.rel (%p830) target = $region48
        $region47: #{_lambda_.59} parent=31 // pred_region
          %s833 = smul.u32 32, %s20
        $region48: #{_lambda_.59} parent=31 // pred_fallthru
          _
      $region32: #{_lambda_.59} parent=5 // pred_fallthru
        _
      %p834 = scmp.le.s32.totalorder 2, %s10
      // Predicated region
      $region49: #{_lambda_.59} parent=5 // pred_check
        %p835 = pneg %p834
      $region50: #{_lambda_.59} parent=5 // pred_check_branch
        %837 = sbr.rel (%p835) target = $region52
      $region51: #{_lambda_.59} parent=5 // pred_region
        %s838 = ssub.s32 %s10, 2
        // Predicated region
        $region53: #{_lambda_.59} parent=51 // pred_check
          %p839 = pneg %p142
        $region54: #{_lambda_.59} parent=51 // pred_check_branch
          %841 = sbr.rel (%p839) target = $region56
        $region55: #{_lambda_.59} parent=51 // pred_region
          %s842 = smul.u32 32, %s23
          %p843 = scmp.lt.s32.totalorder %s842, 255
          %s844 = scalar_select %p843, %s842, 255
          %p845 = scmp.lt.s32.totalorder %s24, 0
          %s846 = scalar_select %p845, %s24, 0
          %s847 = sadd.s32 %s846, %s844
          %s848 = smul.addr %s847, 8
          %s849 = scalar_lea.vmem %s3, %s848
        $region56: #{_lambda_.59} parent=51 // pred_fallthru
          _
      $region52: #{_lambda_.59} parent=5 // pred_fallthru
        _
    $region6: #{_lambda_.59} parent=1 // loop_footer
      %s14 = sadd.s32 1, %s10
    $region7: #{_lambda_.59} parent=1 // loop_footer_branch
      %9 = sbr.rel target = $region3
    $region8: #{_lambda_.59} parent=1 // loop_exit
      _
    %850 = vsyncpa [#allocation4], 1
    %s851 = scalar_lea.sflag [#allocation4], 1
    %852 = vsyncpa %s851, 1

// kernel: _lambda_.61
$region0: #{_lambda_.61}
  #allocation0 [shape = 'u32[]', space=smem, size = 0x4, offset = 0x4, fixed_abs, tag = 'smem constant byte address 0x4 - core index']
  #allocation1 [shape = 'u32[144,128]{1,0:T(1,128)}', space=vmem, size = 0x12000, scoped, tag = 'internal scratch']
  #allocation2 [shape = 'f32[256,128]{1,0:T(8,128)}', space=vmem, size = 0x20000, scoped, tag = 'scratch operand']
  %s0 = inlined_call_operand.vmem [shape: bf16[512,64], index: 0, kind: input, shape index: {}]
  %s1 = inlined_call_operand.vmem [shape: bf16[64,128], index: 1, kind: input, shape index: {}]
  %s2 = inlined_call_operand.vmem [shape: f32[1,128], index: 2, kind: input, shape index: {}]
  %s3 = inlined_call_operand.vmem [shape: f32[512,128], index: 3, kind: output, shape index: {}]
  %s4 = sld [smem:[#allocation0]]
  $region53: #{_lambda_.61} parent=0
    _
  %s6 = ssub.s32 1, %s4
  %s7 = scalar_select 0, %s6, %s4
  loop: start=0, step=1, limit=4
  $region2: #{_lambda_.61} parent=0 // loop_pre_header
    _
  $region3: #{_lambda_.61} parent=0 // loop_header
    %s9 = sphi 0, %s13
    %p10 = scmp.ge.s32.totalorder %s9, 4
    %s16 = sphi 0, %s35
    %s17 = sphi 0, %s31
    %s18 = sphi 0, %s27
    %s19 = sphi 0, %s16
    %s20 = sphi 0, %s17
    %s21 = sphi 0, %s18
    %s22 = sphi 0, %s19
    %s23 = sphi 0, %s20
    %s24 = sphi 0, %s21
    %s40 = sphi 0, %s42
    %s43 = sphi 0, %s40
    %s44 = sphi 0, %s43
    %s60 = sphi 0, %s44
    %s68 = sphi 0, %s70
    %s71 = sphi 0, %s68
    %s72 = sphi 0, %s71
    %s88 = sphi 0, %s72
    %s94 = sphi 0, %s96
    %s97 = sphi 0, %s94
    %s98 = sphi 0, %s97
    %s114 = sphi 0, %s98
    %s122 = sphi 0, %s124
    %s125 = sphi 0, %s122
    %s126 = sphi 0, %s125
    %s142 = sphi 0, %s126
  $region4: #{_lambda_.61} parent=0 // loop_header_branch
    %12 = sbr.rel (%p10) target = $region8
  $region5: #{_lambda_.61} parent=0 // loop_body
    %s14 = ssub.s32 %s9, 1
    %s15 = ssub.s32 %s9, 2
    %s25 = sadd.s32 1, %s18
    %p26 = scmp.ge.s32.totalorder %s25, 1
    %s27 = scalar_select %p26, 0, %s25
    %s28 = sadd.s32 1, %s17
    %s29 = scalar_select %p26, %s28, %s17
    %p30 = scmp.ge.s32.totalorder %s29, 1
    %s31 = scalar_select %p30, 0, %s29
    %s32 = sadd.s32 1, %s16
    %s33 = scalar_select %p30, %s32, %s16
    %p34 = scmp.ge.s32.totalorder %s33, 2
    %s35 = scalar_select %p34, 0, %s33
    %s36 = ssub.s32 %s16, %s35
    %s37 = ssub.s32 %s18, %s27
    %s38 = sor.u32 %s36, %s37
    %p39 = scmp.eq.s32.totalorder %s38, 0
    %s41 = sadd.s32 %s40, 1
    %s42 = scalar_select %p39, %s40, %s41
    %p45 = pneg %p39
    %p46 = scmp.eq.s32.totalorder %s9, 1
    %p47 = por %p45, %p46
    %p48 = scmp.ne.s32.totalorder %s40, %s43
    %p49 = scmp.eq.s32.totalorder %s9, 0
    %p50 = por %p48, %p49
    %p51 = scmp.ne.s32.totalorder %s40, %s43
    %p52 = scmp.eq.s32.totalorder %s14, 1
    %p53 = por %p51, %p52
    %p54 = scmp.ne.s32.totalorder %s43, %s44
    %p55 = scmp.eq.s32.totalorder %s14, 0
    %p56 = por %p54, %p55
    %p57 = scmp.ne.s32.totalorder %s43, %s44
    %p58 = scmp.eq.s32.totalorder %s15, 1
    %p59 = por %p57, %p58
    %p61 = scmp.ne.s32.totalorder %s44, %s60
    %p62 = scmp.eq.s32.totalorder %s15, 0
    %p63 = por %p61, %p62
    %s64 = ssub.s32 %s18, %s27
    %s65 = ssub.s32 %s17, %s31
    %s66 = sor.u32 %s64, %s65
    %p67 = scmp.eq.s32.totalorder %s66, 0
    %s69 = sadd.s32 %s68, 1
    %s70 = scalar_select %p67, %s68, %s69
    %p73 = pneg %p67
    %p74 = scmp.eq.s32.totalorder %s9, 1
    %p75 = por %p73, %p74
    %p76 = scmp.ne.s32.totalorder %s68, %s71
    %p77 = scmp.eq.s32.totalorder %s9, 0
    %p78 = por %p76, %p77
    %p79 = scmp.ne.s32.totalorder %s68, %s71
    %p80 = scmp.eq.s32.totalorder %s14, 1
    %p81 = por %p79, %p80
    %p82 = scmp.ne.s32.totalorder %s71, %s72
    %p83 = scmp.eq.s32.totalorder %s14, 0
    %p84 = por %p82, %p83
    %p85 = scmp.ne.s32.totalorder %s71, %s72
    %p86 = scmp.eq.s32.totalorder %s15, 1
    %p87 = por %p85, %p86
    %p89 = scmp.ne.s32.totalorder %s72, %s88
    %p90 = scmp.eq.s32.totalorder %s15, 0
    %p91 = por %p89, %p90
    %s92 = ssub.s32 %s17, %s31
    %p93 = scmp.eq.s32.totalorder %s92, 0
    %s95 = sadd.s32 %s94, 1
    %s96 = scalar_select %p93, %s94, %s95
    %p99 = pneg %p93
    %p100 = scmp.eq.s32.totalorder %s9, 1
    %p101 = por %p99, %p100
    %p102 = scmp.ne.s32.totalorder %s94, %s97
    %p103 = scmp.eq.s32.totalorder %s9, 0
    %p104 = por %p102, %p103
    %p105 = scmp.ne.s32.totalorder %s94, %s97
    %p106 = scmp.eq.s32.totalorder %s14, 1
    %p107 = por %p105, %p106
    %p108 = scmp.ne.s32.totalorder %s97, %s98
    %p109 = scmp.eq.s32.totalorder %s14, 0
    %p110 = por %p108, %p109
    %p111 = scmp.ne.s32.totalorder %s97, %s98
    %p112 = scmp.eq.s32.totalorder %s15, 1
    %p113 = por %p111, %p112
    %p115 = scmp.ne.s32.totalorder %s98, %s114
    %p116 = scmp.eq.s32.totalorder %s15, 0
    %p117 = por %p115, %p116
    %s118 = ssub.s32 %s16, %s35
    %s119 = ssub.s32 %s17, %s31
    %s120 = sor.u32 %s118, %s119
    %p121 = scmp.eq.s32.totalorder %s120, 0
    %s123 = sadd.s32 %s122, 1
    %s124 = scalar_select %p121, %s122, %s123
    %p127 = pneg %p121
    %p128 = scmp.eq.s32.totalorder %s9, 1
    %p129 = por %p127, %p128
    %p130 = scmp.ne.s32.totalorder %s122, %s125
    %p131 = scmp.eq.s32.totalorder %s9, 0
    %p132 = por %p130, %p131
    %p133 = scmp.ne.s32.totalorder %s122, %s125
    %p134 = scmp.eq.s32.totalorder %s14, 1
    %p135 = por %p133, %p134
    %p136 = scmp.ne.s32.totalorder %s125, %s126
    %p137 = scmp.eq.s32.totalorder %s14, 0
    %p138 = por %p136, %p137
    %p139 = scmp.ne.s32.totalorder %s125, %s126
    %p140 = scmp.eq.s32.totalorder %s15, 1
    %p141 = por %p139, %p140
    %p143 = scmp.ne.s32.totalorder %s126, %s142
    %p144 = scmp.eq.s32.totalorder %s15, 0
    %p145 = por %p143, %p144
    %p146 = scmp.le.s32.totalorder 1, %s9
    %p147 = scmp.lt.s32.totalorder %s9, 3
    %p148 = pnand %p146, %p147
    %p149 = pneg %p148
    // Predicated region
    $region9: #{_lambda_.61} parent=5 // pred_check
      _
    $region10: #{_lambda_.61} parent=5 // pred_check_branch
      %151 = sbr.rel (%p148) target = $region12
    $region11: #{_lambda_.61} parent=5 // pred_region
      %s152 = ssub.s32 %s9, 1
      // Predicated region
      $region13: #{_lambda_.61} parent=11 // pred_check
        %p153 = pneg %p84
      $region14: #{_lambda_.61} parent=11 // pred_check_branch
        %155 = sbr.rel (%p153) target = $region16
      $region15: #{_lambda_.61} parent=11 // pred_region
        %s156 = smul.u32 8, %s21
        %p157 = scmp.lt.s32.totalorder %s156, 7
        %s158 = scalar_select %p157, %s156, 7
        %p159 = scmp.lt.s32.totalorder %s20, 0
        %s160 = scalar_select %p159, %s20, 0
        %s161 = sadd.s32 %s160, %s158
        %s162 = smul.addr %s161, 4
        %s163 = scalar_lea.vmem %s1, %s162
        %s164 = smul.u32 8, %s21
      $region16: #{_lambda_.61} parent=11 // pred_fallthru
        _
      // Predicated region
      $region17: #{_lambda_.61} parent=11 // pred_check
        %p165 = pneg %p110
      $region18: #{_lambda_.61} parent=11 // pred_check_branch
        %167 = sbr.rel (%p165) target = $region20
      $region19: #{_lambda_.61} parent=11 // pred_region
        %p168 = scmp.lt.s32.totalorder %s20, 0
        %s169 = scalar_select %p168, %s20, 0
        %s170 = scalar_lea.vmem %s2, %s169
      $region20: #{_lambda_.61} parent=11 // pred_fallthru
        _
    $region12: #{_lambda_.61} parent=5 // pred_fallthru
      _
    %p171 = scmp.lt.s32.totalorder %s9, 2
    // Predicated region
    $region21: #{_lambda_.61} parent=5 // pred_check
      %p172 = pneg %p171
    $region22: #{_lambda_.61} parent=5 // pred_check_branch
      %174 = sbr.rel (%p172) target = $region24
    $region23: #{_lambda_.61} parent=5 // pred_region
      // Predicated region
      $region25: #{_lambda_.61} parent=23 // pred_check
        %p175 = pneg %p50
      $region26: #{_lambda_.61} parent=23 // pred_check_branch
        %177 = sbr.rel (%p175) target = $region28
      $region27: #{_lambda_.61} parent=23 // pred_region
        %s178 = smul.u32 32, %s16
        %p179 = scmp.lt.s32.totalorder %s178, 63
        %s180 = scalar_select %p179, %s178, 63
        %p181 = scmp.lt.s32.totalorder %s18, 0
        %s182 = scalar_select %p181, %s18, 0
        %s183 = sadd.s32 %s182, %s180
        %s184 = smul.addr %s183, 4
        %s185 = scalar_lea.vmem %s0, %s184
        %s186 = smul.u32 32, %s16
      $region28: #{_lambda_.61} parent=23 // pred_fallthru
        _
    $region24: #{_lambda_.61} parent=5 // pred_fallthru
      _
    %p187 = scmp.le.s32.totalorder 1, %s9
    %p188 = scmp.lt.s32.totalorder %s9, 3
    %p189 = pnand %p187, %p188
    %p190 = pneg %p189
    // Predicated region
    $region29: #{_lambda_.61} parent=5 // pred_check
      _
    $region30: #{_lambda_.61} parent=5 // pred_check_branch
      %192 = sbr.rel (%p189) target = $region32
    $region31: #{_lambda_.61} parent=5 // pred_region
      %s193 = ssub.s32 %s9, 1
      %s194 = smul.u32 32, %s19
      %p195 = scmp.lt.s32.totalorder %s194, 63
      %s196 = scalar_select %p195, %s194, 63
      %p197 = scmp.lt.s32.totalorder %s21, 0
      %s198 = scalar_select %p197, %s21, 0
      %s199 = sadd.s32 %s198, %s196
      %s200 = smul.addr %s199, 4
      %s201 = scalar_lea.vmem %s0, %s200
      %p202 = pneg %p56
      %p203 = pneg %p53
      %s204 = smul.u32 8, %s21
      %p205 = scmp.lt.s32.totalorder %s204, 7
      %s206 = scalar_select %p205, %s204, 7
      %p207 = scmp.lt.s32.totalorder %s20, 0
      %s208 = scalar_select %p207, %s20, 0
      %s209 = sadd.s32 %s208, %s206
      %s210 = smul.addr %s209, 4
      %s211 = scalar_lea.vmem %s1, %s210
      %p212 = pneg %p84
      %p213 = pneg %p81
      %p214 = scmp.lt.s32.totalorder %s20, 0
      %s215 = scalar_select %p214, %s20, 0
      %s216 = scalar_lea.vmem %s2, %s215
      %p217 = pneg %p110
      %p218 = pneg %p107
      %p219 = pneg %p138
      %p220 = pneg %p135
      %s221 = smul.u32 32, %s19
      %p222 = scmp.lt.s32.totalorder %s221, 63
      %s223 = scalar_select %p222, %s221, 63
      %p224 = scmp.lt.s32.totalorder %s20, 0
      %s225 = scalar_select %p224, %s20, 0
      %s226 = sadd.s32 %s225, %s223
      %s227 = smul.addr %s226, 8
      %s228 = scalar_lea.vmem %s3, %s227
      %s229 = smul.u32 32, %s19
      %p230 = scmp.lt.s32.totalorder %s229, 63
      %s231 = scalar_select %p230, %s229, 63
      %p232 = scmp.lt.s32.totalorder %s21, 0
      %s233 = scalar_select %p232, %s21, 0
      %s234 = sadd.s32 %s233, %s231
      %s235 = smul.addr %s234, 4
      %s236 = scalar_lea.vmem %s0, %s235
      %s237 = smul.u32 32, %s19
      %s238 = smul.u32 8, %s21
      %p239 = scmp.lt.s32.totalorder %s238, 7
      %s240 = scalar_select %p239, %s238, 7
      %p241 = scmp.lt.s32.totalorder %s20, 0
      %s242 = scalar_select %p241, %s20, 0
      %s243 = sadd.s32 %s242, %s240
      %s244 = smul.addr %s243, 4
      %s245 = scalar_lea.vmem %s1, %s244
      %s246 = smul.u32 8, %s21
      %p247 = scmp.lt.s32.totalorder %s20, 0
      %s248 = scalar_select %p247, %s20, 0
      %s249 = scalar_lea.vmem %s2, %s248
      %s250 = smul.u32 32, %s19
      %p251 = scmp.lt.s32.totalorder %s250, 63
      %s252 = scalar_select %p251, %s250, 63
      %p253 = scmp.lt.s32.totalorder %s20, 0
      %s254 = scalar_select %p253, %s20, 0
      %s255 = sadd.s32 %s254, %s252
      %s256 = smul.addr %s255, 8
      %s257 = scalar_lea.vmem %s3, %s256
      %s258 = smul.u32 32, %s19
      %p260 = scmp.eq.s32.totalorder %s21, 0
      // Predicated region
      $region33: #{_lambda_.61} parent=31 // pred_check
        %p261 = pneg %p260
      $region34: #{_lambda_.61} parent=31 // pred_check_branch
        %263 = sbr.rel (%p261) target = $region36
      $region35: #{_lambda_.61} parent=31 // pred_region
        %264 = vst [vmem:[#allocation2] sm:$0xff] 0.0
        %265 = vst [vmem:[#allocation2 + $0x8] sm:$0xff] 0.0
        %266 = vst [vmem:[#allocation2 + $0x10] sm:$0xff] 0.0
        %267 = vst [vmem:[#allocation2 + $0x18] sm:$0xff] 0.0
        %268 = vst [vmem:[#allocation2 + $0x20] sm:$0xff] 0.0
        %269 = vst [vmem:[#allocation2 + $0x28] sm:$0xff] 0.0
        %270 = vst [vmem:[#allocation2 + $0x30] sm:$0xff] 0.0
        %271 = vst [vmem:[#allocation2 + $0x38] sm:$0xff] 0.0
        %272 = vst [vmem:[#allocation2 + $0x40] sm:$0xff] 0.0
        %273 = vst [vmem:[#allocation2 + $0x48] sm:$0xff] 0.0
        %274 = vst [vmem:[#allocation2 + $0x50] sm:$0xff] 0.0
        %275 = vst [vmem:[#allocation2 + $0x58] sm:$0xff] 0.0
        %276 = vst [vmem:[#allocation2 + $0x60] sm:$0xff] 0.0
        %277 = vst [vmem:[#allocation2 + $0x68] sm:$0xff] 0.0
        %278 = vst [vmem:[#allocation2 + $0x70] sm:$0xff] 0.0
        %279 = vst [vmem:[#allocation2 + $0x78] sm:$0xff] 0.0
        %280 = vst [vmem:[#allocation2 + $0x80] sm:$0xff] 0.0
        %281 = vst [vmem:[#allocation2 + $0x88] sm:$0xff] 0.0
        %282 = vst [vmem:[#allocation2 + $0x90] sm:$0xff] 0.0
        %283 = vst [vmem:[#allocation2 + $0x98] sm:$0xff] 0.0
        %284 = vst [vmem:[#allocation2 + $0xa0] sm:$0xff] 0.0
        %285 = vst [vmem:[#allocation2 + $0xa8] sm:$0xff] 0.0
        %286 = vst [vmem:[#allocation2 + $0xb0] sm:$0xff] 0.0
        %287 = vst [vmem:[#allocation2 + $0xb8] sm:$0xff] 0.0
        %288 = vst [vmem:[#allocation2 + $0xc0] sm:$0xff] 0.0
        %289 = vst [vmem:[#allocation2 + $0xc8] sm:$0xff] 0.0
        %290 = vst [vmem:[#allocation2 + $0xd0] sm:$0xff] 0.0
        %291 = vst [vmem:[#allocation2 + $0xd8] sm:$0xff] 0.0
        %292 = vst [vmem:[#allocation2 + $0xe0] sm:$0xff] 0.0
        %293 = vst [vmem:[#allocation2 + $0xe8] sm:$0xff] 0.0
        %294 = vst [vmem:[#allocation2 + $0xf0] sm:$0xff] 0.0
        %295 = vst [vmem:[#allocation2 + $0xf8] sm:$0xff] 0.0
      $region36: #{_lambda_.61} parent=31 // pred_fallthru
        _
      %v296 = vld [vmem:[#allocation2] sm:$0xff]
      %v297 = vld [vmem:[#allocation2 + $0x8] sm:$0xff]
      %v298 = vld [vmem:[#allocation2 + $0x10] sm:$0xff]
      %v299 = vld [vmem:[#allocation2 + $0x18] sm:$0xff]
      %v300 = vld [vmem:[#allocation2 + $0x20] sm:$0xff]
      %v301 = vld [vmem:[#allocation2 + $0x28] sm:$0xff]
      %v302 = vld [vmem:[#allocation2 + $0x30] sm:$0xff]
      %v303 = vld [vmem:[#allocation2 + $0x38] sm:$0xff]
      %v304 = vld [vmem:[#allocation2 + $0x40] sm:$0xff]
      %v305 = vld [vmem:[#allocation2 + $0x48] sm:$0xff]
      %v306 = vld [vmem:[#allocation2 + $0x50] sm:$0xff]
      %v307 = vld [vmem:[#allocation2 + $0x58] sm:$0xff]
      %v308 = vld [vmem:[#allocation2 + $0x60] sm:$0xff]
      %v309 = vld [vmem:[#allocation2 + $0x68] sm:$0xff]
      %v310 = vld [vmem:[#allocation2 + $0x70] sm:$0xff]
      %v311 = vld [vmem:[#allocation2 + $0x78] sm:$0xff]
      %v312 = vld [vmem:[#allocation2 + $0x80] sm:$0xff]
      %v313 = vld [vmem:[#allocation2 + $0x88] sm:$0xff]
      %v314 = vld [vmem:[#allocation2 + $0x90] sm:$0xff]
      %v315 = vld [vmem:[#allocation2 + $0x98] sm:$0xff]
      %v316 = vld [vmem:[#allocation2 + $0xa0] sm:$0xff]
      %v317 = vld [vmem:[#allocation2 + $0xa8] sm:$0xff]
      %v318 = vld [vmem:[#allocation2 + $0xb0] sm:$0xff]
      %v319 = vld [vmem:[#allocation2 + $0xb8] sm:$0xff]
      %v320 = vld [vmem:[#allocation2 + $0xc0] sm:$0xff]
      %v321 = vld [vmem:[#allocation2 + $0xc8] sm:$0xff]
      %v322 = vld [vmem:[#allocation2 + $0xd0] sm:$0xff]
      %v323 = vld [vmem:[#allocation2 + $0xd8] sm:$0xff]
      %v324 = vld [vmem:[#allocation2 + $0xe0] sm:$0xff]
      %v325 = vld [vmem:[#allocation2 + $0xe8] sm:$0xff]
      %v326 = vld [vmem:[#allocation2 + $0xf0] sm:$0xff]
      %v327 = vld [vmem:[#allocation2 + $0xf8] sm:$0xff]
      %v328 = vld [vmem:[%s236] sm:$0xf]
      %v329 = vld [vmem:[%s236 + $0x4] sm:$0xf]
      %v330 = vld [vmem:[%s236 + $0x8] sm:$0xf]
      %v331 = vld [vmem:[%s236 + $0xc] sm:$0xf]
      %v332 = vld [vmem:[%s236 + $0x10] sm:$0xf]
      %v333 = vld [vmem:[%s236 + $0x14] sm:$0xf]
      %v334 = vld [vmem:[%s236 + $0x18] sm:$0xf]
      %v335 = vld [vmem:[%s236 + $0x1c] sm:$0xf]
      %v336 = vld [vmem:[%s236 + $0x20] sm:$0xf]
      %v337 = vld [vmem:[%s236 + $0x24] sm:$0xf]
      %v338 = vld [vmem:[%s236 + $0x28] sm:$0xf]
      %v339 = vld [vmem:[%s236 + $0x2c] sm:$0xf]
      %v340 = vld [vmem:[%s236 + $0x30] sm:$0xf]
      %v341 = vld [vmem:[%s236 + $0x34] sm:$0xf]
      %v342 = vld [vmem:[%s236 + $0x38] sm:$0xf]
      %v343 = vld [vmem:[%s236 + $0x3c] sm:$0xf]
      %v344 = vld [vmem:[%s236 + $0x40] sm:$0xf]
      %v345 = vld [vmem:[%s236 + $0x44] sm:$0xf]
      %v346 = vld [vmem:[%s236 + $0x48] sm:$0xf]
      %v347 = vld [vmem:[%s236 + $0x4c] sm:$0xf]
      %v348 = vld [vmem:[%s236 + $0x50] sm:$0xf]
      %v349 = vld [vmem:[%s236 + $0x54] sm:$0xf]
      %v350 = vld [vmem:[%s236 + $0x58] sm:$0xf]
      %v351 = vld [vmem:[%s236 + $0x5c] sm:$0xf]
      %v352 = vld [vmem:[%s236 + $0x60] sm:$0xf]
      %v353 = vld [vmem:[%s236 + $0x64] sm:$0xf]
      %v354 = vld [vmem:[%s236 + $0x68] sm:$0xf]
      %v355 = vld [vmem:[%s236 + $0x6c] sm:$0xf]
      %v356 = vld [vmem:[%s236 + $0x70] sm:$0xf]
      %v357 = vld [vmem:[%s236 + $0x74] sm:$0xf]
      %v358 = vld [vmem:[%s236 + $0x78] sm:$0xf]
      %v359 = vld [vmem:[%s236 + $0x7c] sm:$0xf]
      %v360 = vld [vmem:[%s245] sm:$0xf]
      %v361 = vld [vmem:[%s245 + $0x4] sm:$0xf]
      %v362 = vld [vmem:[%s245 + $0x8] sm:$0xf]
      %v363 = vld [vmem:[%s245 + $0xc] sm:$0xf]
      %v364 = vld [vmem:[%s245 + $0x10] sm:$0xf]
      %v365 = vld [vmem:[%s245 + $0x14] sm:$0xf]
      %v366 = vld [vmem:[%s245 + $0x18] sm:$0xf]
      %v367 = vld [vmem:[%s245 + $0x1c] sm:$0xf]
      %v400 = vunpack.c.l.b16 %v328
      %v401 = vunpack.c.l.b16 %v329
      %v402 = vunpack.c.l.b16 %v330
      %v403 = vunpack.c.l.b16 %v331
      %v404 = vunpack.c.l.b16 %v332
      %v405 = vunpack.c.l.b16 %v333
      %v406 = vunpack.c.l.b16 %v334
      %v407 = vunpack.c.l.b16 %v335
      %v408 = vunpack.c.l.b16 %v336
      %v409 = vunpack.c.l.b16 %v337
      %v410 = vunpack.c.l.b16 %v338
      %v411 = vunpack.c.l.b16 %v339
      %v412 = vunpack.c.l.b16 %v340
      %v413 = vunpack.c.l.b16 %v341
      %v414 = vunpack.c.l.b16 %v342
      %v415 = vunpack.c.l.b16 %v343
      %v416 = vunpack.c.l.b16 %v344
      %v417 = vunpack.c.l.b16 %v345
      %v418 = vunpack.c.l.b16 %v346
      %v419 = vunpack.c.l.b16 %v347
      %v420 = vunpack.c.l.b16 %v348
      %v421 = vunpack.c.l.b16 %v349
      %v422 = vunpack.c.l.b16 %v350
      %v423 = vunpack.c.l.b16 %v351
      %v424 = vunpack.c.l.b16 %v352
      %v425 = vunpack.c.l.b16 %v353
      %v426 = vunpack.c.l.b16 %v354
      %v427 = vunpack.c.l.b16 %v355
      %v428 = vunpack.c.l.b16 %v356
      %v429 = vunpack.c.l.b16 %v357
      %v430 = vunpack.c.l.b16 %v358
      %v431 = vunpack.c.l.b16 %v359
      %v432 = vpack.c.b16 %v401, %v400
      %v433 = vpack.c.b16 %v403, %v402
      %v434 = vpack.c.b16 %v405, %v404
      %v435 = vpack.c.b16 %v407, %v406
      %v436 = vpack.c.b16 %v409, %v408
      %v437 = vpack.c.b16 %v411, %v410
      %v438 = vpack.c.b16 %v413, %v412
      %v439 = vpack.c.b16 %v415, %v414
      %v440 = vpack.c.b16 %v417, %v416
      %v441 = vpack.c.b16 %v419, %v418
      %v442 = vpack.c.b16 %v421, %v420
      %v443 = vpack.c.b16 %v423, %v422
      %v444 = vpack.c.b16 %v425, %v424
      %v445 = vpack.c.b16 %v427, %v426
      %v446 = vpack.c.b16 %v429, %v428
      %v447 = vpack.c.b16 %v431, %v430
      %v456 = vunpack.c.l.b16 %v360
      %v457 = vunpack.c.l.b16 %v361
      %v458 = vunpack.c.l.b16 %v362
      %v459 = vunpack.c.l.b16 %v363
      %v460 = vunpack.c.l.b16 %v364
      %v461 = vunpack.c.l.b16 %v365
      %v462 = vunpack.c.l.b16 %v366
      %v463 = vunpack.c.l.b16 %v367
      %v464 = vpack.c.b16 %v457, %v456
      %v465 = vpack.c.b16 %v459, %v458
      %v466 = vpack.c.b16 %v461, %v460
      %v467 = vpack.c.b16 %v463, %v462
      %vm472 = vcmask 523264
      %v474 = vsel %vm472, %v432, 0
      %v477 = vsel %vm472, %v433, 0
      %v480 = vsel %vm472, %v434, 0
      %v483 = vsel %vm472, %v435, 0
      %v486 = vsel %vm472, %v436, 0
      %v489 = vsel %vm472, %v437, 0
      %v492 = vsel %vm472, %v438, 0
      %v495 = vsel %vm472, %v439, 0
      %v498 = vsel %vm472, %v440, 0
      %v501 = vsel %vm472, %v441, 0
      %v504 = vsel %vm472, %v442, 0
      %v507 = vsel %vm472, %v443, 0
      %v510 = vsel %vm472, %v444, 0
      %v513 = vsel %vm472, %v445, 0
      %v516 = vsel %vm472, %v446, 0
      %v519 = vsel %vm472, %v447, 0
      %521 = vmatprep.subr.bf16.mxu0 0
      %522 = vmatpush1.bf16.msra.mxu0 0
      %523 = vmatprep.subr.bf16.mxu0 0
      %524 = vmatpush1.bf16.msra.mxu0 0
      %525 = vmatprep.subr.bf16.mxu0 0
      %526 = vmatpush1.bf16.msra.mxu0 0
      %527 = vmatprep.subr.bf16.mxu0 0
      %528 = vmatpush1.bf16.msra.mxu0 0
      %529 = vmatprep.subr.bf16.mxu0 0
      %530 = vmatpush1.bf16.msra.mxu0 %v467
      %531 = vmatprep.subr.bf16.mxu0 0
      %532 = vmatpush1.bf16.msra.mxu0 %v466
      %533 = vmatprep.subr.bf16.mxu0 0
      %534 = vmatpush1.bf16.msra.mxu0 %v465
      %535 = vmatprep.subr.bf16.mxu0 0
      %536 = vmatpush1.bf16.msra.mxu0 %v464
      %537 = vmatprep.subr.bf16.mxu0 0
      %538 = vmatpush2.bf16.msra.mxu0 0
      %539 = vmatprep.subr.bf16.mxu0 0
      %540 = vmatpush2.bf16.msra.mxu0 0
      %541 = vmatprep.subr.bf16.mxu0 0
      %542 = vmatpush2.bf16.msra.mxu0 0
      %543 = vmatprep.subr.bf16.mxu0 0
      %544 = vmatpush2.bf16.msra.mxu0 0
      %545 = vmatprep.subr.bf16.mxu0 0
      %546 = vmatpush2.bf16.msra.mxu0 0
      %547 = vmatprep.subr.bf16.mxu0 0
      %548 = vmatpush2.bf16.msra.mxu0 0
      %549 = vmatprep.subr.bf16.mxu0 0
      %550 = vmatpush2.bf16.msra.mxu0 0
      %551 = vmatprep.subr.bf16.mxu0 0
      %552 = vmatpush2.bf16.msra.mxu0 0
      %553 = vmatprep.mubr.bf16.mxu0 0
      %554 = vmatmul.mubr.bf16.gmra.mxu0 %v474
      %v555 = vpop.f32.mrf.mxu0
      %v556 = vadd.f32 0.0, %v555
      %v557 = vpop.f32.mrf.mxu0
      %v558 = vpop.f32.mrf.mxu0
      %v559 = vadd.f32 0.0, %v558
      %v560 = vpop.f32.mrf.mxu0
      %561 = vmatprep.mubr.bf16.mxu0 0
      %562 = vmatmul.mubr.bf16.gmra.mxu0 %v477
      %v563 = vpop.f32.mrf.mxu0
      %v564 = vadd.f32 0.0, %v563
      %v565 = vpop.f32.mrf.mxu0
      %v566 = vpop.f32.mrf.mxu0
      %v567 = vadd.f32 0.0, %v566
      %v568 = vpop.f32.mrf.mxu0
      %569 = vmatprep.mubr.bf16.mxu0 0
      %570 = vmatmul.mubr.bf16.gmra.mxu0 %v480
      %v571 = vpop.f32.mrf.mxu0
      %v572 = vadd.f32 0.0, %v571
      %v573 = vpop.f32.mrf.mxu0
      %v574 = vpop.f32.mrf.mxu0
      %v575 = vadd.f32 0.0, %v574
      %v576 = vpop.f32.mrf.mxu0
      %577 = vmatprep.mubr.bf16.mxu0 0
      %578 = vmatmul.mubr.bf16.gmra.mxu0 %v483
      %v579 = vpop.f32.mrf.mxu0
      %v580 = vadd.f32 0.0, %v579
      %v581 = vpop.f32.mrf.mxu0
      %v582 = vpop.f32.mrf.mxu0
      %v583 = vadd.f32 0.0, %v582
      %v584 = vpop.f32.mrf.mxu0
      %585 = vmatprep.mubr.bf16.mxu0 0
      %586 = vmatmul.mubr.bf16.gmra.mxu0 %v486
      %v587 = vpop.f32.mrf.mxu0
      %v588 = vadd.f32 0.0, %v587
      %v589 = vpop.f32.mrf.mxu0
      %v590 = vpop.f32.mrf.mxu0
      %v591 = vadd.f32 0.0, %v590
      %v592 = vpop.f32.mrf.mxu0
      %593 = vmatprep.mubr.bf16.mxu0 0
      %594 = vmatmul.mubr.bf16.gmra.mxu0 %v489
      %v595 = vpop.f32.mrf.mxu0
      %v596 = vadd.f32 0.0, %v595
      %v597 = vpop.f32.mrf.mxu0
      %v598 = vpop.f32.mrf.mxu0
      %v599 = vadd.f32 0.0, %v598
      %v600 = vpop.f32.mrf.mxu0
      %601 = vmatprep.mubr.bf16.mxu0 0
      %602 = vmatmul.mubr.bf16.gmra.mxu0 %v492
      %v603 = vpop.f32.mrf.mxu0
      %v604 = vadd.f32 0.0, %v603
      %v605 = vpop.f32.mrf.mxu0
      %v606 = vpop.f32.mrf.mxu0
      %v607 = vadd.f32 0.0, %v606
      %v608 = vpop.f32.mrf.mxu0
      %609 = vmatprep.mubr.bf16.mxu0 0
      %610 = vmatmul.mubr.bf16.gmra.mxu0 %v495
      %v611 = vpop.f32.mrf.mxu0
      %v612 = vadd.f32 0.0, %v611
      %v613 = vpop.f32.mrf.mxu0
      %v614 = vpop.f32.mrf.mxu0
      %v615 = vadd.f32 0.0, %v614
      %v616 = vpop.f32.mrf.mxu0
      %617 = vmatprep.mubr.bf16.mxu0 0
      %618 = vmatmul.mubr.bf16.gmra.mxu0 %v498
      %v619 = vpop.f32.mrf.mxu0
      %v620 = vadd.f32 0.0, %v619
      %v621 = vpop.f32.mrf.mxu0
      %v622 = vpop.f32.mrf.mxu0
      %v623 = vadd.f32 0.0, %v622
      %v624 = vpop.f32.mrf.mxu0
      %625 = vmatprep.mubr.bf16.mxu0 0
      %626 = vmatmul.mubr.bf16.gmra.mxu0 %v501
      %v627 = vpop.f32.mrf.mxu0
      %v628 = vadd.f32 0.0, %v627
      %v629 = vpop.f32.mrf.mxu0
      %v630 = vpop.f32.mrf.mxu0
      %v631 = vadd.f32 0.0, %v630
      %v632 = vpop.f32.mrf.mxu0
      %633 = vmatprep.mubr.bf16.mxu0 0
      %634 = vmatmul.mubr.bf16.gmra.mxu0 %v504
      %v635 = vpop.f32.mrf.mxu0
      %v636 = vadd.f32 0.0, %v635
      %v637 = vpop.f32.mrf.mxu0
      %v638 = vpop.f32.mrf.mxu0
      %v639 = vadd.f32 0.0, %v638
      %v640 = vpop.f32.mrf.mxu0
      %641 = vmatprep.mubr.bf16.mxu0 0
      %642 = vmatmul.mubr.bf16.gmra.mxu0 %v507
      %v643 = vpop.f32.mrf.mxu0
      %v644 = vadd.f32 0.0, %v643
      %v645 = vpop.f32.mrf.mxu0
      %v646 = vpop.f32.mrf.mxu0
      %v647 = vadd.f32 0.0, %v646
      %v648 = vpop.f32.mrf.mxu0
      %649 = vmatprep.mubr.bf16.mxu0 0
      %650 = vmatmul.mubr.bf16.gmra.mxu0 %v510
      %v651 = vpop.f32.mrf.mxu0
      %v652 = vadd.f32 0.0, %v651
      %v653 = vpop.f32.mrf.mxu0
      %v654 = vpop.f32.mrf.mxu0
      %v655 = vadd.f32 0.0, %v654
      %v656 = vpop.f32.mrf.mxu0
      %657 = vmatprep.mubr.bf16.mxu0 0
      %658 = vmatmul.mubr.bf16.gmra.mxu0 %v513
      %v659 = vpop.f32.mrf.mxu0
      %v660 = vadd.f32 0.0, %v659
      %v661 = vpop.f32.mrf.mxu0
      %v662 = vpop.f32.mrf.mxu0
      %v663 = vadd.f32 0.0, %v662
      %v664 = vpop.f32.mrf.mxu0
      %665 = vmatprep.mubr.bf16.mxu0 0
      %666 = vmatmul.mubr.bf16.gmra.mxu0 %v516
      %v667 = vpop.f32.mrf.mxu0
      %v668 = vadd.f32 0.0, %v667
      %v669 = vpop.f32.mrf.mxu0
      %v670 = vpop.f32.mrf.mxu0
      %v671 = vadd.f32 0.0, %v670
      %v672 = vpop.f32.mrf.mxu0
      %673 = vmatprep.mubr.bf16.mxu0 0
      %674 = vmatmul.mubr.bf16.gmra.mxu0 %v519
      %v675 = vpop.f32.mrf.mxu0
      %v676 = vadd.f32 0.0, %v675
      %v677 = vpop.f32.mrf.mxu0
      %v678 = vpop.f32.mrf.mxu0
      %v679 = vadd.f32 0.0, %v678
      %v680 = vpop.f32.mrf.mxu0
      %681 = vdwg.mxu0
      %v682 = vadd.f32 %v296, %v556
      %v683 = vadd.f32 %v297, %v559
      %v684 = vadd.f32 %v298, %v564
      %v685 = vadd.f32 %v299, %v567
      %v686 = vadd.f32 %v300, %v572
      %v687 = vadd.f32 %v301, %v575
      %v688 = vadd.f32 %v302, %v580
      %v689 = vadd.f32 %v303, %v583
      %v690 = vadd.f32 %v304, %v588
      %v691 = vadd.f32 %v305, %v591
      %v692 = vadd.f32 %v306, %v596
      %v693 = vadd.f32 %v307, %v599
      %v694 = vadd.f32 %v308, %v604
      %v695 = vadd.f32 %v309, %v607
      %v696 = vadd.f32 %v310, %v612
      %v697 = vadd.f32 %v311, %v615
      %v698 = vadd.f32 %v312, %v620
      %v699 = vadd.f32 %v313, %v623
      %v700 = vadd.f32 %v314, %v628
      %v701 = vadd.f32 %v315, %v631
      %v702 = vadd.f32 %v316, %v636
      %v703 = vadd.f32 %v317, %v639
      %v704 = vadd.f32 %v318, %v644
      %v705 = vadd.f32 %v319, %v647
      %v706 = vadd.f32 %v320, %v652
      %v707 = vadd.f32 %v321, %v655
      %v708 = vadd.f32 %v322, %v660
      %v709 = vadd.f32 %v323, %v663
      %v710 = vadd.f32 %v324, %v668
      %v711 = vadd.f32 %v325, %v671
      %v712 = vadd.f32 %v326, %v676
      %v713 = vadd.f32 %v327, %v679
      %714 = vst [vmem:[#allocation2] sm:$0xff] %v682
      %715 = vst [vmem:[#allocation2 + $0x8] sm:$0xff] %v683
      %716 = vst [vmem:[#allocation2 + $0x10] sm:$0xff] %v684
      %717 = vst [vmem:[#allocation2 + $0x18] sm:$0xff] %v685
      %718 = vst [vmem:[#allocation2 + $0x20] sm:$0xff] %v686
      %719 = vst [vmem:[#allocation2 + $0x28] sm:$0xff] %v687
      %720 = vst [vmem:[#allocation2 + $0x30] sm:$0xff] %v688
      %721 = vst [vmem:[#allocation2 + $0x38] sm:$0xff] %v689
      %722 = vst [vmem:[#allocation2 + $0x40] sm:$0xff] %v690
      %723 = vst [vmem:[#allocation2 + $0x48] sm:$0xff] %v691
      %724 = vst [vmem:[#allocation2 + $0x50] sm:$0xff] %v692
      %725 = vst [vmem:[#allocation2 + $0x58] sm:$0xff] %v693
      %726 = vst [vmem:[#allocation2 + $0x60] sm:$0xff] %v694
      %727 = vst [vmem:[#allocation2 + $0x68] sm:$0xff] %v695
      %728 = vst [vmem:[#allocation2 + $0x70] sm:$0xff] %v696
      %729 = vst [vmem:[#allocation2 + $0x78] sm:$0xff] %v697
      %730 = vst [vmem:[#allocation2 + $0x80] sm:$0xff] %v698
      %731 = vst [vmem:[#allocation2 + $0x88] sm:$0xff] %v699
      %732 = vst [vmem:[#allocation2 + $0x90] sm:$0xff] %v700
      %733 = vst [vmem:[#allocation2 + $0x98] sm:$0xff] %v701
      %734 = vst [vmem:[#allocation2 + $0xa0] sm:$0xff] %v702
      %735 = vst [vmem:[#allocation2 + $0xa8] sm:$0xff] %v703
      %736 = vst [vmem:[#allocation2 + $0xb0] sm:$0xff] %v704
      %737 = vst [vmem:[#allocation2 + $0xb8] sm:$0xff] %v705
      %738 = vst [vmem:[#allocation2 + $0xc0] sm:$0xff] %v706
      %739 = vst [vmem:[#allocation2 + $0xc8] sm:$0xff] %v707
      %740 = vst [vmem:[#allocation2 + $0xd0] sm:$0xff] %v708
      %741 = vst [vmem:[#allocation2 + $0xd8] sm:$0xff] %v709
      %742 = vst [vmem:[#allocation2 + $0xe0] sm:$0xff] %v710
      %743 = vst [vmem:[#allocation2 + $0xe8] sm:$0xff] %v711
      %744 = vst [vmem:[#allocation2 + $0xf0] sm:$0xff] %v712
      %745 = vst [vmem:[#allocation2 + $0xf8] sm:$0xff] %v713
      // Predicated region
      $region37: #{_lambda_.61} parent=31 // pred_check
        %p746 = pneg %p260
      $region38: #{_lambda_.61} parent=31 // pred_check_branch
        %748 = sbr.rel (%p746) target = $region40
      $region39: #{_lambda_.61} parent=31 // pred_region
        %v749 = vld [vmem:[#allocation2] sm:$0xff]
        %v750 = vld [vmem:[#allocation2 + $0x8] sm:$0xff]
        %v751 = vld [vmem:[#allocation2 + $0x10] sm:$0xff]
        %v752 = vld [vmem:[#allocation2 + $0x18] sm:$0xff]
        %v753 = vld [vmem:[#allocation2 + $0x20] sm:$0xff]
        %v754 = vld [vmem:[#allocation2 + $0x28] sm:$0xff]
        %v755 = vld [vmem:[#allocation2 + $0x30] sm:$0xff]
        %v756 = vld [vmem:[#allocation2 + $0x38] sm:$0xff]
        %v757 = vld [vmem:[#allocation2 + $0x40] sm:$0xff]
        %v758 = vld [vmem:[#allocation2 + $0x48] sm:$0xff]
        %v759 = vld [vmem:[#allocation2 + $0x50] sm:$0xff]
        %v760 = vld [vmem:[#allocation2 + $0x58] sm:$0xff]
        %v761 = vld [vmem:[#allocation2 + $0x60] sm:$0xff]
        %v762 = vld [vmem:[#allocation2 + $0x68] sm:$0xff]
        %v763 = vld [vmem:[#allocation2 + $0x70] sm:$0xff]
        %v764 = vld [vmem:[#allocation2 + $0x78] sm:$0xff]
        %v765 = vld [vmem:[#allocation2 + $0x80] sm:$0xff]
        %v766 = vld [vmem:[#allocation2 + $0x88] sm:$0xff]
        %v767 = vld [vmem:[#allocation2 + $0x90] sm:$0xff]
        %v768 = vld [vmem:[#allocation2 + $0x98] sm:$0xff]
        %v769 = vld [vmem:[#allocation2 + $0xa0] sm:$0xff]
        %v770 = vld [vmem:[#allocation2 + $0xa8] sm:$0xff]
        %v771 = vld [vmem:[#allocation2 + $0xb0] sm:$0xff]
        %v772 = vld [vmem:[#allocation2 + $0xb8] sm:$0xff]
        %v773 = vld [vmem:[#allocation2 + $0xc0] sm:$0xff]
        %v774 = vld [vmem:[#allocation2 + $0xc8] sm:$0xff]
        %v775 = vld [vmem:[#allocation2 + $0xd0] sm:$0xff]
        %v776 = vld [vmem:[#allocation2 + $0xd8] sm:$0xff]
        %v777 = vld [vmem:[#allocation2 + $0xe0] sm:$0xff]
        %v778 = vld [vmem:[#allocation2 + $0xe8] sm:$0xff]
        %v779 = vld [vmem:[#allocation2 + $0xf0] sm:$0xff]
        %v780 = vld [vmem:[#allocation2 + $0xf8] sm:$0xff]
        %v781 = vld [vmem:[%s249] sm:$0x1]
        %v783 = vlaneseq
        %v784 = vshrl.u32 %v783, 7
        %v785 = vsub.s32 0, %v784
        %v786 = vrot.slane %v781, %v785
        %v788 = vadd.f32 %v749, %v786
        %v789 = vadd.f32 %v750, %v786
        %v790 = vadd.f32 %v751, %v786
        %v791 = vadd.f32 %v752, %v786
        %v792 = vadd.f32 %v753, %v786
        %v793 = vadd.f32 %v754, %v786
        %v794 = vadd.f32 %v755, %v786
        %v795 = vadd.f32 %v756, %v786
        %v796 = vadd.f32 %v757, %v786
        %v797 = vadd.f32 %v758, %v786
        %v798 = vadd.f32 %v759, %v786
        %v799 = vadd.f32 %v760, %v786
        %v800 = vadd.f32 %v761, %v786
        %v801 = vadd.f32 %v762, %v786
        %v802 = vadd.f32 %v763, %v786
        %v803 = vadd.f32 %v764, %v786
        %v804 = vadd.f32 %v765, %v786
        %v805 = vadd.f32 %v766, %v786
        %v806 = vadd.f32 %v767, %v786
        %v807 = vadd.f32 %v768, %v786
        %v808 = vadd.f32 %v769, %v786
        %v809 = vadd.f32 %v770, %v786
        %v810 = vadd.f32 %v771, %v786
        %v811 = vadd.f32 %v772, %v786
        %v812 = vadd.f32 %v773, %v786
        %v813 = vadd.f32 %v774, %v786
        %v814 = vadd.f32 %v775, %v786
        %v815 = vadd.f32 %v776, %v786
        %v816 = vadd.f32 %v777, %v786
        %v817 = vadd.f32 %v778, %v786
        %v818 = vadd.f32 %v779, %v786
        %v819 = vadd.f32 %v780, %v786
        %820 = vst [vmem:[%s257] sm:$0xff] %v788
        %821 = vst [vmem:[%s257 + $0x8] sm:$0xff] %v789
        %822 = vst [vmem:[%s257 + $0x10] sm:$0xff] %v790
        %823 = vst [vmem:[%s257 + $0x18] sm:$0xff] %v791
        %824 = vst [vmem:[%s257 + $0x20] sm:$0xff] %v792
        %825 = vst [vmem:[%s257 + $0x28] sm:$0xff] %v793
        %826 = vst [vmem:[%s257 + $0x30] sm:$0xff] %v794
        %827 = vst [vmem:[%s257 + $0x38] sm:$0xff] %v795
        %828 = vst [vmem:[%s257 + $0x40] sm:$0xff] %v796
        %829 = vst [vmem:[%s257 + $0x48] sm:$0xff] %v797
        %830 = vst [vmem:[%s257 + $0x50] sm:$0xff] %v798
        %831 = vst [vmem:[%s257 + $0x58] sm:$0xff] %v799
        %832 = vst [vmem:[%s257 + $0x60] sm:$0xff] %v800
        %833 = vst [vmem:[%s257 + $0x68] sm:$0xff] %v801
        %834 = vst [vmem:[%s257 + $0x70] sm:$0xff] %v802
        %835 = vst [vmem:[%s257 + $0x78] sm:$0xff] %v803
        %836 = vst [vmem:[%s257 + $0x80] sm:$0xff] %v804
        %837 = vst [vmem:[%s257 + $0x88] sm:$0xff] %v805
        %838 = vst [vmem:[%s257 + $0x90] sm:$0xff] %v806
        %839 = vst [vmem:[%s257 + $0x98] sm:$0xff] %v807
        %840 = vst [vmem:[%s257 + $0xa0] sm:$0xff] %v808
        %841 = vst [vmem:[%s257 + $0xa8] sm:$0xff] %v809
        %842 = vst [vmem:[%s257 + $0xb0] sm:$0xff] %v810
        %843 = vst [vmem:[%s257 + $0xb8] sm:$0xff] %v811
        %844 = vst [vmem:[%s257 + $0xc0] sm:$0xff] %v812
        %845 = vst [vmem:[%s257 + $0xc8] sm:$0xff] %v813
        %846 = vst [vmem:[%s257 + $0xd0] sm:$0xff] %v814
        %847 = vst [vmem:[%s257 + $0xd8] sm:$0xff] %v815
        %848 = vst [vmem:[%s257 + $0xe0] sm:$0xff] %v816
        %849 = vst [vmem:[%s257 + $0xe8] sm:$0xff] %v817
        %850 = vst [vmem:[%s257 + $0xf0] sm:$0xff] %v818
        %851 = vst [vmem:[%s257 + $0xf8] sm:$0xff] %v819
      $region40: #{_lambda_.61} parent=31 // pred_fallthru
        _
      %s852 = smul.u32 32, %s19
      %p853 = scmp.lt.s32.totalorder %s852, 63
      %s854 = scalar_select %p853, %s852, 63
      %p855 = scmp.lt.s32.totalorder %s20, 0
      %s856 = scalar_select %p855, %s20, 0
      %s857 = sadd.s32 %s856, %s854
      %s858 = smul.addr %s857, 8
      %s859 = scalar_lea.vmem %s3, %s858
      // Predicated region
      $region41: #{_lambda_.61} parent=31 // pred_check
        %p860 = pneg %p135
      $region42: #{_lambda_.61} parent=31 // pred_check_branch
        %862 = sbr.rel (%p860) target = $region44
      $region43: #{_lambda_.61} parent=31 // pred_region
        %s863 = smul.u32 32, %s19
      $region44: #{_lambda_.61} parent=31 // pred_fallthru
        _
    $region32: #{_lambda_.61} parent=5 // pred_fallthru
      _
    %p864 = scmp.le.s32.totalorder 2, %s9
    // Predicated region
    $region45: #{_lambda_.61} parent=5 // pred_check
      %p865 = pneg %p864
    $region46: #{_lambda_.61} parent=5 // pred_check_branch
      %867 = sbr.rel (%p865) target = $region48
    $region47: #{_lambda_.61} parent=5 // pred_region
      %s868 = ssub.s32 %s9, 2
      // Predicated region
      $region49: #{_lambda_.61} parent=47 // pred_check
        %p869 = pneg %p141
      $region50: #{_lambda_.61} parent=47 // pred_check_branch
        %871 = sbr.rel (%p869) target = $region52
      $region51: #{_lambda_.61} parent=47 // pred_region
        %s872 = smul.u32 32, %s22
        %p873 = scmp.lt.s32.totalorder %s872, 63
        %s874 = scalar_select %p873, %s872, 63
        %p875 = scmp.lt.s32.totalorder %s23, 0
        %s876 = scalar_select %p875, %s23, 0
        %s877 = sadd.s32 %s876, %s874
        %s878 = smul.addr %s877, 8
        %s879 = scalar_lea.vmem %s3, %s878
      $region52: #{_lambda_.61} parent=47 // pred_fallthru
        _
    $region48: #{_lambda_.61} parent=5 // pred_fallthru
      _
  $region6: #{_lambda_.61} parent=0 // loop_footer
    %s13 = sadd.s32 1, %s9
  $region7: #{_lambda_.61} parent=0 // loop_footer_branch
    %8 = sbr.rel target = $region3
  $region8: #{_lambda_.61} parent=0 // loop_exit
    _

// kernel: _lambda_.62
$region0: #{_lambda_.62}
  #allocation0 [shape = 'u32[]', space=smem, size = 0x4, offset = 0x4, fixed_abs, tag = 'smem constant byte address 0x4 - core index']
  #allocation1 [shape = 'u32[144,128]{1,0:T(1,128)}', space=vmem, size = 0x12000, scoped, tag = 'internal scratch']
  %s0 = inlined_call_operand.vmem [shape: f32[512,8], index: 0, kind: input, shape index: {}]
  %s1 = inlined_call_operand.vmem [shape: f32[1,8], index: 1, kind: output, shape index: {0}]
  %s2 = inlined_call_operand.vmem [shape: f32[1,8], index: 2, kind: output, shape index: {1}]
  %3 = xla_tuple %s1, %s2
  %s4 = sld [smem:[#allocation0]]
  $region26: #{_lambda_.62} parent=0
    _
  %s6 = ssub.s32 1, %s4
  %s7 = scalar_select 0, %s6, %s4
  // Predicated region
  $region2: #{_lambda_.62} parent=0 // pred_check
    _
  $region3: #{_lambda_.62} parent=0 // pred_check_branch
    %9 = sbr.rel (0) target = $region5
  $region4: #{_lambda_.62} parent=0 // pred_region
    _
  $region5: #{_lambda_.62} parent=0 // pred_fallthru
    _
  %p10 = scmp.eq.s32.totalorder 0, 0
  // Predicated region
  $region6: #{_lambda_.62} parent=0 // pred_check
    %p11 = pneg %p10
  $region7: #{_lambda_.62} parent=0 // pred_check_branch
    %13 = sbr.rel (%p11) target = $region9
  $region8: #{_lambda_.62} parent=0 // pred_region
    %vm14 = vcmask 57344
    %15 = vst.msk [vmem:[%s1] sm:$0x1] %vm14, 0.0
    %16 = vst.msk [vmem:[%s2] sm:$0x1] %vm14, 0.0
  $region9: #{_lambda_.62} parent=0 // pred_fallthru
    _
  %v17 = vld [vmem:[%s0] sm:$0xff]
  %v18 = vld [vmem:[%s0 + $0x8] sm:$0xff]
  %v19 = vld [vmem:[%s0 + $0x10] sm:$0xff]
  %v20 = vld [vmem:[%s0 + $0x18] sm:$0xff]
  %v21 = vld [vmem:[%s0 + $0x20] sm:$0xff]
  %v22 = vld [vmem:[%s0 + $0x28] sm:$0xff]
  %v23 = vld [vmem:[%s0 + $0x30] sm:$0xff]
  %v24 = vld [vmem:[%s0 + $0x38] sm:$0xff]
  %v25 = vld [vmem:[%s0 + $0x40] sm:$0xff]
  %v26 = vld [vmem:[%s0 + $0x48] sm:$0xff]
  %v27 = vld [vmem:[%s0 + $0x50] sm:$0xff]
  %v28 = vld [vmem:[%s0 + $0x58] sm:$0xff]
  %v29 = vld [vmem:[%s0 + $0x60] sm:$0xff]
  %v30 = vld [vmem:[%s0 + $0x68] sm:$0xff]
  %v31 = vld [vmem:[%s0 + $0x70] sm:$0xff]
  %v32 = vld [vmem:[%s0 + $0x78] sm:$0xff]
  %v33 = vld [vmem:[%s0 + $0x80] sm:$0xff]
  %v34 = vld [vmem:[%s0 + $0x88] sm:$0xff]
  %v35 = vld [vmem:[%s0 + $0x90] sm:$0xff]
  %v36 = vld [vmem:[%s0 + $0x98] sm:$0xff]
  %v37 = vld [vmem:[%s0 + $0xa0] sm:$0xff]
  %v38 = vld [vmem:[%s0 + $0xa8] sm:$0xff]
  %v39 = vld [vmem:[%s0 + $0xb0] sm:$0xff]
  %v40 = vld [vmem:[%s0 + $0xb8] sm:$0xff]
  %v41 = vld [vmem:[%s0 + $0xc0] sm:$0xff]
  %v42 = vld [vmem:[%s0 + $0xc8] sm:$0xff]
  %v43 = vld [vmem:[%s0 + $0xd0] sm:$0xff]
  %v44 = vld [vmem:[%s0 + $0xd8] sm:$0xff]
  %v45 = vld [vmem:[%s0 + $0xe0] sm:$0xff]
  %v46 = vld [vmem:[%s0 + $0xe8] sm:$0xff]
  %v47 = vld [vmem:[%s0 + $0xf0] sm:$0xff]
  %v48 = vld [vmem:[%s0 + $0xf8] sm:$0xff]
  %v49 = vld [vmem:[%s0 + $0x100] sm:$0xff]
  %v50 = vld [vmem:[%s0 + $0x108] sm:$0xff]
  %v51 = vld [vmem:[%s0 + $0x110] sm:$0xff]
  %v52 = vld [vmem:[%s0 + $0x118] sm:$0xff]
  %v53 = vld [vmem:[%s0 + $0x120] sm:$0xff]
  %v54 = vld [vmem:[%s0 + $0x128] sm:$0xff]
  %v55 = vld [vmem:[%s0 + $0x130] sm:$0xff]
  %v56 = vld [vmem:[%s0 + $0x138] sm:$0xff]
  %v57 = vld [vmem:[%s0 + $0x140] sm:$0xff]
  %v58 = vld [vmem:[%s0 + $0x148] sm:$0xff]
  %v59 = vld [vmem:[%s0 + $0x150] sm:$0xff]
  %v60 = vld [vmem:[%s0 + $0x158] sm:$0xff]
  %v61 = vld [vmem:[%s0 + $0x160] sm:$0xff]
  %v62 = vld [vmem:[%s0 + $0x168] sm:$0xff]
  %v63 = vld [vmem:[%s0 + $0x170] sm:$0xff]
  %v64 = vld [vmem:[%s0 + $0x178] sm:$0xff]
  %v65 = vld [vmem:[%s0 + $0x180] sm:$0xff]
  %v66 = vld [vmem:[%s0 + $0x188] sm:$0xff]
  %v67 = vld [vmem:[%s0 + $0x190] sm:$0xff]
  %v68 = vld [vmem:[%s0 + $0x198] sm:$0xff]
  %v69 = vld [vmem:[%s0 + $0x1a0] sm:$0xff]
  %v70 = vld [vmem:[%s0 + $0x1a8] sm:$0xff]
  %v71 = vld [vmem:[%s0 + $0x1b0] sm:$0xff]
  %v72 = vld [vmem:[%s0 + $0x1b8] sm:$0xff]
  %v73 = vld [vmem:[%s0 + $0x1c0] sm:$0xff]
  %v74 = vld [vmem:[%s0 + $0x1c8] sm:$0xff]
  %v75 = vld [vmem:[%s0 + $0x1d0] sm:$0xff]
  %v76 = vld [vmem:[%s0 + $0x1d8] sm:$0xff]
  %v77 = vld [vmem:[%s0 + $0x1e0] sm:$0xff]
  %v78 = vld [vmem:[%s0 + $0x1e8] sm:$0xff]
  %v79 = vld [vmem:[%s0 + $0x1f0] sm:$0xff]
  %v80 = vld [vmem:[%s0 + $0x1f8] sm:$0xff]
  %v81 = vld [vmem:[%s1] sm:$0x1]
  %vm82 = vcmask 64512
  %v83 = vsel %vm82, %v17, 0.0
  %v84 = vsel %vm82, %v18, 0.0
  %v85 = vadd.f32 %v83, %v84
  %v86 = vsel %vm82, %v19, 0.0
  %v87 = vadd.f32 %v85, %v86
  %v88 = vsel %vm82, %v20, 0.0
  %v89 = vadd.f32 %v87, %v88
  %v90 = vsel %vm82, %v21, 0.0
  %v91 = vadd.f32 %v89, %v90
  %v92 = vsel %vm82, %v22, 0.0
  %v93 = vadd.f32 %v91, %v92
  %v94 = vsel %vm82, %v23, 0.0
  %v95 = vadd.f32 %v93, %v94
  %v96 = vsel %vm82, %v24, 0.0
  %v97 = vadd.f32 %v95, %v96
  %v98 = vsel %vm82, %v25, 0.0
  %v99 = vadd.f32 %v97, %v98
  %v100 = vsel %vm82, %v26, 0.0
  %v101 = vadd.f32 %v99, %v100
  %v102 = vsel %vm82, %v27, 0.0
  %v103 = vadd.f32 %v101, %v102
  %v104 = vsel %vm82, %v28, 0.0
  %v105 = vadd.f32 %v103, %v104
  %v106 = vsel %vm82, %v29, 0.0
  %v107 = vadd.f32 %v105, %v106
  %v108 = vsel %vm82, %v30, 0.0
  %v109 = vadd.f32 %v107, %v108
  %v110 = vsel %vm82, %v31, 0.0
  %v111 = vadd.f32 %v109, %v110
  %v112 = vsel %vm82, %v32, 0.0
  %v113 = vadd.f32 %v111, %v112
  %v114 = vsel %vm82, %v33, 0.0
  %v115 = vadd.f32 %v113, %v114
  %v116 = vsel %vm82, %v34, 0.0
  %v117 = vadd.f32 %v115, %v116
  %v118 = vsel %vm82, %v35, 0.0
  %v119 = vadd.f32 %v117, %v118
  %v120 = vsel %vm82, %v36, 0.0
  %v121 = vadd.f32 %v119, %v120
  %v122 = vsel %vm82, %v37, 0.0
  %v123 = vadd.f32 %v121, %v122
  %v124 = vsel %vm82, %v38, 0.0
  %v125 = vadd.f32 %v123, %v124
  %v126 = vsel %vm82, %v39, 0.0
  %v127 = vadd.f32 %v125, %v126
  %v128 = vsel %vm82, %v40, 0.0
  %v129 = vadd.f32 %v127, %v128
  %v130 = vsel %vm82, %v41, 0.0
  %v131 = vadd.f32 %v129, %v130
  %v132 = vsel %vm82, %v42, 0.0
  %v133 = vadd.f32 %v131, %v132
  %v134 = vsel %vm82, %v43, 0.0
  %v135 = vadd.f32 %v133, %v134
  %v136 = vsel %vm82, %v44, 0.0
  %v137 = vadd.f32 %v135, %v136
  %v138 = vsel %vm82, %v45, 0.0
  %v139 = vadd.f32 %v137, %v138
  %v140 = vsel %vm82, %v46, 0.0
  %v141 = vadd.f32 %v139, %v140
  %v142 = vsel %vm82, %v47, 0.0
  %v143 = vadd.f32 %v141, %v142
  %v144 = vsel %vm82, %v48, 0.0
  %v145 = vadd.f32 %v143, %v144
  %v146 = vsel %vm82, %v49, 0.0
  %v147 = vadd.f32 %v145, %v146
  %v148 = vsel %vm82, %v50, 0.0
  %v149 = vadd.f32 %v147, %v148
  %v150 = vsel %vm82, %v51, 0.0
  %v151 = vadd.f32 %v149, %v150
  %v152 = vsel %vm82, %v52, 0.0
  %v153 = vadd.f32 %v151, %v152
  %v154 = vsel %vm82, %v53, 0.0
  %v155 = vadd.f32 %v153, %v154
  %v156 = vsel %vm82, %v54, 0.0
  %v157 = vadd.f32 %v155, %v156
  %v158 = vsel %vm82, %v55, 0.0
  %v159 = vadd.f32 %v157, %v158
  %v160 = vsel %vm82, %v56, 0.0
  %v161 = vadd.f32 %v159, %v160
  %v162 = vsel %vm82, %v57, 0.0
  %v163 = vadd.f32 %v161, %v162
  %v164 = vsel %vm82, %v58, 0.0
  %v165 = vadd.f32 %v163, %v164
  %v166 = vsel %vm82, %v59, 0.0
  %v167 = vadd.f32 %v165, %v166
  %v168 = vsel %vm82, %v60, 0.0
  %v169 = vadd.f32 %v167, %v168
  %v170 = vsel %vm82, %v61, 0.0
  %v171 = vadd.f32 %v169, %v170
  %v172 = vsel %vm82, %v62, 0.0
  %v173 = vadd.f32 %v171, %v172
  %v174 = vsel %vm82, %v63, 0.0
  %v175 = vadd.f32 %v173, %v174
  %v176 = vsel %vm82, %v64, 0.0
  %v177 = vadd.f32 %v175, %v176
  %v178 = vsel %vm82, %v65, 0.0
  %v179 = vadd.f32 %v177, %v178
  %v180 = vsel %vm82, %v66, 0.0
  %v181 = vadd.f32 %v179, %v180
  %v182 = vsel %vm82, %v67, 0.0
  %v183 = vadd.f32 %v181, %v182
  %v184 = vsel %vm82, %v68, 0.0
  %v185 = vadd.f32 %v183, %v184
  %v186 = vsel %vm82, %v69, 0.0
  %v187 = vadd.f32 %v185, %v186
  %v188 = vsel %vm82, %v70, 0.0
  %v189 = vadd.f32 %v187, %v188
  %v190 = vsel %vm82, %v71, 0.0
  %v191 = vadd.f32 %v189, %v190
  %v192 = vsel %vm82, %v72, 0.0
  %v193 = vadd.f32 %v191, %v192
  %v194 = vsel %vm82, %v73, 0.0
  %v195 = vadd.f32 %v193, %v194
  %v196 = vsel %vm82, %v74, 0.0
  %v197 = vadd.f32 %v195, %v196
  %v198 = vsel %vm82, %v75, 0.0
  %v199 = vadd.f32 %v197, %v198
  %v200 = vsel %vm82, %v76, 0.0
  %v201 = vadd.f32 %v199, %v200
  %v202 = vsel %vm82, %v77, 0.0
  %v203 = vadd.f32 %v201, %v202
  %v204 = vsel %vm82, %v78, 0.0
  %v205 = vadd.f32 %v203, %v204
  %v206 = vsel %vm82, %v79, 0.0
  %v207 = vadd.f32 %v205, %v206
  %v208 = vsel %vm82, %v80, 0.0
  %v209 = vadd.f32 %v207, %v208
  %v210 = vrot.slane %v209, 4
  %v211 = vadd.f32 %v209, %v210
  %v212 = vrot.slane %v211, 2
  %v213 = vadd.f32 %v211, %v212
  %v214 = vrot.slane %v213, 1
  %v215 = vadd.f32 %v213, %v214
  %v216 = vadd.f32 %v81, %v215
  %vm217 = vcmask 57344
  %218 = vst.msk [vmem:[%s1] sm:$0x1] %vm217, %v216
  %v219 = vld [vmem:[%s2] sm:$0x1]
  %v220 = vmul.f32 %v17, %v17
  %v221 = vmul.f32 %v18, %v18
  %v222 = vmul.f32 %v19, %v19
  %v223 = vmul.f32 %v20, %v20
  %v224 = vmul.f32 %v21, %v21
  %v225 = vmul.f32 %v22, %v22
  %v226 = vmul.f32 %v23, %v23
  %v227 = vmul.f32 %v24, %v24
  %v228 = vmul.f32 %v25, %v25
  %v229 = vmul.f32 %v26, %v26
  %v230 = vmul.f32 %v27, %v27
  %v231 = vmul.f32 %v28, %v28
  %v232 = vmul.f32 %v29, %v29
  %v233 = vmul.f32 %v30, %v30
  %v234 = vmul.f32 %v31, %v31
  %v235 = vmul.f32 %v32, %v32
  %v236 = vmul.f32 %v33, %v33
  %v237 = vmul.f32 %v34, %v34
  %v238 = vmul.f32 %v35, %v35
  %v239 = vmul.f32 %v36, %v36
  %v240 = vmul.f32 %v37, %v37
  %v241 = vmul.f32 %v38, %v38
  %v242 = vmul.f32 %v39, %v39
  %v243 = vmul.f32 %v40, %v40
  %v244 = vmul.f32 %v41, %v41
  %v245 = vmul.f32 %v42, %v42
  %v246 = vmul.f32 %v43, %v43
  %v247 = vmul.f32 %v44, %v44
  %v248 = vmul.f32 %v45, %v45
  %v249 = vmul.f32 %v46, %v46
  %v250 = vmul.f32 %v47, %v47
  %v251 = vmul.f32 %v48, %v48
  %v252 = vmul.f32 %v49, %v49
  %v253 = vmul.f32 %v50, %v50
  %v254 = vmul.f32 %v51, %v51
  %v255 = vmul.f32 %v52, %v52
  %v256 = vmul.f32 %v53, %v53
  %v257 = vmul.f32 %v54, %v54
  %v258 = vmul.f32 %v55, %v55
  %v259 = vmul.f32 %v56, %v56
  %v260 = vmul.f32 %v57, %v57
  %v261 = vmul.f32 %v58, %v58
  %v262 = vmul.f32 %v59, %v59
  %v263 = vmul.f32 %v60, %v60
  %v264 = vmul.f32 %v61, %v61
  %v265 = vmul.f32 %v62, %v62
  %v266 = vmul.f32 %v63, %v63
  %v267 = vmul.f32 %v64, %v64
  %v268 = vmul.f32 %v65, %v65
  %v269 = vmul.f32 %v66, %v66
  %v270 = vmul.f32 %v67, %v67
  %v271 = vmul.f32 %v68, %v68
  %v272 = vmul.f32 %v69, %v69
  %v273 = vmul.f32 %v70, %v70
  %v274 = vmul.f32 %v71, %v71
  %v275 = vmul.f32 %v72, %v72
  %v276 = vmul.f32 %v73, %v73
  %v277 = vmul.f32 %v74, %v74
  %v278 = vmul.f32 %v75, %v75
  %v279 = vmul.f32 %v76, %v76
  %v280 = vmul.f32 %v77, %v77
  %v281 = vmul.f32 %v78, %v78
  %v282 = vmul.f32 %v79, %v79
  %v283 = vmul.f32 %v80, %v80
  %v284 = vsel %vm82, %v220, 0.0
  %v285 = vsel %vm82, %v221, 0.0
  %v286 = vadd.f32 %v284, %v285
  %v287 = vsel %vm82, %v222, 0.0
  %v288 = vadd.f32 %v286, %v287
  %v289 = vsel %vm82, %v223, 0.0
  %v290 = vadd.f32 %v288, %v289
  %v291 = vsel %vm82, %v224, 0.0
  %v292 = vadd.f32 %v290, %v291
  %v293 = vsel %vm82, %v225, 0.0
  %v294 = vadd.f32 %v292, %v293
  %v295 = vsel %vm82, %v226, 0.0
  %v296 = vadd.f32 %v294, %v295
  %v297 = vsel %vm82, %v227, 0.0
  %v298 = vadd.f32 %v296, %v297
  %v299 = vsel %vm82, %v228, 0.0
  %v300 = vadd.f32 %v298, %v299
  %v301 = vsel %vm82, %v229, 0.0
  %v302 = vadd.f32 %v300, %v301
  %v303 = vsel %vm82, %v230, 0.0
  %v304 = vadd.f32 %v302, %v303
  %v305 = vsel %vm82, %v231, 0.0
  %v306 = vadd.f32 %v304, %v305
  %v307 = vsel %vm82, %v232, 0.0
  %v308 = vadd.f32 %v306, %v307
  %v309 = vsel %vm82, %v233, 0.0
  %v310 = vadd.f32 %v308, %v309
  %v311 = vsel %vm82, %v234, 0.0
  %v312 = vadd.f32 %v310, %v311
  %v313 = vsel %vm82, %v235, 0.0
  %v314 = vadd.f32 %v312, %v313
  %v315 = vsel %vm82, %v236, 0.0
  %v316 = vadd.f32 %v314, %v315
  %v317 = vsel %vm82, %v237, 0.0
  %v318 = vadd.f32 %v316, %v317
  %v319 = vsel %vm82, %v238, 0.0
  %v320 = vadd.f32 %v318, %v319
  %v321 = vsel %vm82, %v239, 0.0
  %v322 = vadd.f32 %v320, %v321
  %v323 = vsel %vm82, %v240, 0.0
  %v324 = vadd.f32 %v322, %v323
  %v325 = vsel %vm82, %v241, 0.0
  %v326 = vadd.f32 %v324, %v325
  %v327 = vsel %vm82, %v242, 0.0
  %v328 = vadd.f32 %v326, %v327
  %v329 = vsel %vm82, %v243, 0.0
  %v330 = vadd.f32 %v328, %v329
  %v331 = vsel %vm82, %v244, 0.0
  %v332 = vadd.f32 %v330, %v331
  %v333 = vsel %vm82, %v245, 0.0
  %v334 = vadd.f32 %v332, %v333
  %v335 = vsel %vm82, %v246, 0.0
  %v336 = vadd.f32 %v334, %v335
  %v337 = vsel %vm82, %v247, 0.0
  %v338 = vadd.f32 %v336, %v337
  %v339 = vsel %vm82, %v248, 0.0
  %v340 = vadd.f32 %v338, %v339
  %v341 = vsel %vm82, %v249, 0.0
  %v342 = vadd.f32 %v340, %v341
  %v343 = vsel %vm82, %v250, 0.0
  %v344 = vadd.f32 %v342, %v343
  %v345 = vsel %vm82, %v251, 0.0
  %v346 = vadd.f32 %v344, %v345
  %v347 = vsel %vm82, %v252, 0.0
  %v348 = vadd.f32 %v346, %v347
  %v349 = vsel %vm82, %v253, 0.0
  %v350 = vadd.f32 %v348, %v349
  %v351 = vsel %vm82, %v254, 0.0
  %v352 = vadd.f32 %v350, %v351
  %v353 = vsel %vm82, %v255, 0.0
  %v354 = vadd.f32 %v352, %v353
  %v355 = vsel %vm82, %v256, 0.0
  %v356 = vadd.f32 %v354, %v355
  %v357 = vsel %vm82, %v257, 0.0
  %v358 = vadd.f32 %v356, %v357
  %v359 = vsel %vm82, %v258, 0.0
  %v360 = vadd.f32 %v358, %v359
  %v361 = vsel %vm82, %v259, 0.0
  %v362 = vadd.f32 %v360, %v361
  %v363 = vsel %vm82, %v260, 0.0
  %v364 = vadd.f32 %v362, %v363
  %v365 = vsel %vm82, %v261, 0.0
  %v366 = vadd.f32 %v364, %v365
  %v367 = vsel %vm82, %v262, 0.0
  %v368 = vadd.f32 %v366, %v367
  %v369 = vsel %vm82, %v263, 0.0
  %v370 = vadd.f32 %v368, %v369
  %v371 = vsel %vm82, %v264, 0.0
  %v372 = vadd.f32 %v370, %v371
  %v373 = vsel %vm82, %v265, 0.0
  %v374 = vadd.f32 %v372, %v373
  %v375 = vsel %vm82, %v266, 0.0
  %v376 = vadd.f32 %v374, %v375
  %v377 = vsel %vm82, %v267, 0.0
  %v378 = vadd.f32 %v376, %v377
  %v379 = vsel %vm82, %v268, 0.0
  %v380 = vadd.f32 %v378, %v379
  %v381 = vsel %vm82, %v269, 0.0
  %v382 = vadd.f32 %v380, %v381
  %v383 = vsel %vm82, %v270, 0.0
  %v384 = vadd.f32 %v382, %v383
  %v385 = vsel %vm82, %v271, 0.0
  %v386 = vadd.f32 %v384, %v385
  %v387 = vsel %vm82, %v272, 0.0
  %v388 = vadd.f32 %v386, %v387
  %v389 = vsel %vm82, %v273, 0.0
  %v390 = vadd.f32 %v388, %v389
  %v391 = vsel %vm82, %v274, 0.0
  %v392 = vadd.f32 %v390, %v391
  %v393 = vsel %vm82, %v275, 0.0
  %v394 = vadd.f32 %v392, %v393
  %v395 = vsel %vm82, %v276, 0.0
  %v396 = vadd.f32 %v394, %v395
  %v397 = vsel %vm82, %v277, 0.0
  %v398 = vadd.f32 %v396, %v397
  %v399 = vsel %vm82, %v278, 0.0
  %v400 = vadd.f32 %v398, %v399
  %v401 = vsel %vm82, %v279, 0.0
  %v402 = vadd.f32 %v400, %v401
  %v403 = vsel %vm82, %v280, 0.0
  %v404 = vadd.f32 %v402, %v403
  %v405 = vsel %vm82, %v281, 0.0
  %v406 = vadd.f32 %v404, %v405
  %v407 = vsel %vm82, %v282, 0.0
  %v408 = vadd.f32 %v406, %v407
  %v409 = vsel %vm82, %v283, 0.0
  %v410 = vadd.f32 %v408, %v409
  %v411 = vrot.slane %v410, 4
  %v412 = vadd.f32 %v410, %v411
  %v413 = vrot.slane %v412, 2
  %v414 = vadd.f32 %v412, %v413
  %v415 = vrot.slane %v414, 1
  %v416 = vadd.f32 %v414, %v415
  %v417 = vadd.f32 %v219, %v416
  %418 = vst.msk [vmem:[%s2] sm:$0x1] %vm217, %v417
  // Predicated region
  $region10: #{_lambda_.62} parent=0 // pred_check
    _
  $region11: #{_lambda_.62} parent=0 // pred_check_branch
    %420 = sbr.rel (0) target = $region13
  $region12: #{_lambda_.62} parent=0 // pred_region
    _
  $region13: #{_lambda_.62} parent=0 // pred_fallthru
    _
  // Predicated region
  $region14: #{_lambda_.62} parent=0 // pred_check
    _
  $region15: #{_lambda_.62} parent=0 // pred_check_branch
    %422 = sbr.rel (0) target = $region17
  $region16: #{_lambda_.62} parent=0 // pred_region
    _
  $region17: #{_lambda_.62} parent=0 // pred_fallthru
    _
  // Predicated region
  $region18: #{_lambda_.62} parent=0 // pred_check
    _
  $region19: #{_lambda_.62} parent=0 // pred_check_branch
    %424 = sbr.rel (0) target = $region21
  $region20: #{_lambda_.62} parent=0 // pred_region
    _
  $region21: #{_lambda_.62} parent=0 // pred_fallthru
    _
  // Predicated region
  $region22: #{_lambda_.62} parent=0 // pred_check
    _
  $region23: #{_lambda_.62} parent=0 // pred_check_branch
    %426 = sbr.rel (0) target = $region25
  $region24: #{_lambda_.62} parent=0 // pred_region
    _
  $region25: #{_lambda_.62} parent=0 // pred_fallthru
    _

// kernel: _lambda_.63
$region0: #{_lambda_.63}
  #allocation0 [shape = 'u32[]', space=smem, size = 0x4, offset = 0x4, fixed_abs, tag = 'smem constant byte address 0x4 - core index']
  #allocation1 [shape = 'u32[144,128]{1,0:T(1,128)}', space=vmem, size = 0x12000, scoped, tag = 'internal scratch']
  %s0 = inlined_call_operand.vmem [shape: f32[512,8], index: 0, kind: input, shape index: {}]
  %s1 = inlined_call_operand.vmem [shape: f32[1,8], index: 1, kind: input, shape index: {}]
  %s2 = inlined_call_operand.vmem [shape: f32[1,8], index: 2, kind: input, shape index: {}]
  %s3 = inlined_call_operand.vmem [shape: f32[512,8], index: 3, kind: output, shape index: {}]
  %s4 = sld [smem:[#allocation0]]
  $region22: #{_lambda_.63} parent=0
    _
  %s6 = ssub.s32 1, %s4
  %s7 = scalar_select 0, %s6, %s4
  // Predicated region
  $region2: #{_lambda_.63} parent=0 // pred_check
    _
  $region3: #{_lambda_.63} parent=0 // pred_check_branch
    %9 = sbr.rel (0) target = $region5
  $region4: #{_lambda_.63} parent=0 // pred_region
    _
  $region5: #{_lambda_.63} parent=0 // pred_fallthru
    _
  // Predicated region
  $region6: #{_lambda_.63} parent=0 // pred_check
    _
  $region7: #{_lambda_.63} parent=0 // pred_check_branch
    %11 = sbr.rel (0) target = $region9
  $region8: #{_lambda_.63} parent=0 // pred_region
    _
  $region9: #{_lambda_.63} parent=0 // pred_fallthru
    _
  // Predicated region
  $region10: #{_lambda_.63} parent=0 // pred_check
    _
  $region11: #{_lambda_.63} parent=0 // pred_check_branch
    %13 = sbr.rel (0) target = $region13
  $region12: #{_lambda_.63} parent=0 // pred_region
    _
  $region13: #{_lambda_.63} parent=0 // pred_fallthru
    _
  %v14 = vld [vmem:[%s0] sm:$0xff]
  %v15 = vld [vmem:[%s0 + $0x8] sm:$0xff]
  %v16 = vld [vmem:[%s0 + $0x10] sm:$0xff]
  %v17 = vld [vmem:[%s0 + $0x18] sm:$0xff]
  %v18 = vld [vmem:[%s0 + $0x20] sm:$0xff]
  %v19 = vld [vmem:[%s0 + $0x28] sm:$0xff]
  %v20 = vld [vmem:[%s0 + $0x30] sm:$0xff]
  %v21 = vld [vmem:[%s0 + $0x38] sm:$0xff]
  %v22 = vld [vmem:[%s0 + $0x40] sm:$0xff]
  %v23 = vld [vmem:[%s0 + $0x48] sm:$0xff]
  %v24 = vld [vmem:[%s0 + $0x50] sm:$0xff]
  %v25 = vld [vmem:[%s0 + $0x58] sm:$0xff]
  %v26 = vld [vmem:[%s0 + $0x60] sm:$0xff]
  %v27 = vld [vmem:[%s0 + $0x68] sm:$0xff]
  %v28 = vld [vmem:[%s0 + $0x70] sm:$0xff]
  %v29 = vld [vmem:[%s0 + $0x78] sm:$0xff]
  %v30 = vld [vmem:[%s0 + $0x80] sm:$0xff]
  %v31 = vld [vmem:[%s0 + $0x88] sm:$0xff]
  %v32 = vld [vmem:[%s0 + $0x90] sm:$0xff]
  %v33 = vld [vmem:[%s0 + $0x98] sm:$0xff]
  %v34 = vld [vmem:[%s0 + $0xa0] sm:$0xff]
  %v35 = vld [vmem:[%s0 + $0xa8] sm:$0xff]
  %v36 = vld [vmem:[%s0 + $0xb0] sm:$0xff]
  %v37 = vld [vmem:[%s0 + $0xb8] sm:$0xff]
  %v38 = vld [vmem:[%s0 + $0xc0] sm:$0xff]
  %v39 = vld [vmem:[%s0 + $0xc8] sm:$0xff]
  %v40 = vld [vmem:[%s0 + $0xd0] sm:$0xff]
  %v41 = vld [vmem:[%s0 + $0xd8] sm:$0xff]
  %v42 = vld [vmem:[%s0 + $0xe0] sm:$0xff]
  %v43 = vld [vmem:[%s0 + $0xe8] sm:$0xff]
  %v44 = vld [vmem:[%s0 + $0xf0] sm:$0xff]
  %v45 = vld [vmem:[%s0 + $0xf8] sm:$0xff]
  %v46 = vld [vmem:[%s0 + $0x100] sm:$0xff]
  %v47 = vld [vmem:[%s0 + $0x108] sm:$0xff]
  %v48 = vld [vmem:[%s0 + $0x110] sm:$0xff]
  %v49 = vld [vmem:[%s0 + $0x118] sm:$0xff]
  %v50 = vld [vmem:[%s0 + $0x120] sm:$0xff]
  %v51 = vld [vmem:[%s0 + $0x128] sm:$0xff]
  %v52 = vld [vmem:[%s0 + $0x130] sm:$0xff]
  %v53 = vld [vmem:[%s0 + $0x138] sm:$0xff]
  %v54 = vld [vmem:[%s0 + $0x140] sm:$0xff]
  %v55 = vld [vmem:[%s0 + $0x148] sm:$0xff]
  %v56 = vld [vmem:[%s0 + $0x150] sm:$0xff]
  %v57 = vld [vmem:[%s0 + $0x158] sm:$0xff]
  %v58 = vld [vmem:[%s0 + $0x160] sm:$0xff]
  %v59 = vld [vmem:[%s0 + $0x168] sm:$0xff]
  %v60 = vld [vmem:[%s0 + $0x170] sm:$0xff]
  %v61 = vld [vmem:[%s0 + $0x178] sm:$0xff]
  %v62 = vld [vmem:[%s0 + $0x180] sm:$0xff]
  %v63 = vld [vmem:[%s0 + $0x188] sm:$0xff]
  %v64 = vld [vmem:[%s0 + $0x190] sm:$0xff]
  %v65 = vld [vmem:[%s0 + $0x198] sm:$0xff]
  %v66 = vld [vmem:[%s0 + $0x1a0] sm:$0xff]
  %v67 = vld [vmem:[%s0 + $0x1a8] sm:$0xff]
  %v68 = vld [vmem:[%s0 + $0x1b0] sm:$0xff]
  %v69 = vld [vmem:[%s0 + $0x1b8] sm:$0xff]
  %v70 = vld [vmem:[%s0 + $0x1c0] sm:$0xff]
  %v71 = vld [vmem:[%s0 + $0x1c8] sm:$0xff]
  %v72 = vld [vmem:[%s0 + $0x1d0] sm:$0xff]
  %v73 = vld [vmem:[%s0 + $0x1d8] sm:$0xff]
  %v74 = vld [vmem:[%s0 + $0x1e0] sm:$0xff]
  %v75 = vld [vmem:[%s0 + $0x1e8] sm:$0xff]
  %v76 = vld [vmem:[%s0 + $0x1f0] sm:$0xff]
  %v77 = vld [vmem:[%s0 + $0x1f8] sm:$0xff]
  %v78 = vld [vmem:[%s1] sm:$0x1]
  %v80 = vlaneseq
  %v81 = vshrl.u32 %v80, 7
  %v82 = vsub.s32 0, %v81
  %v83 = vrot.slane %v78, %v82
  %v85 = vmul.f32 %v14, %v83
  %v86 = vmul.f32 %v15, %v83
  %v87 = vmul.f32 %v16, %v83
  %v88 = vmul.f32 %v17, %v83
  %v89 = vmul.f32 %v18, %v83
  %v90 = vmul.f32 %v19, %v83
  %v91 = vmul.f32 %v20, %v83
  %v92 = vmul.f32 %v21, %v83
  %v93 = vmul.f32 %v22, %v83
  %v94 = vmul.f32 %v23, %v83
  %v95 = vmul.f32 %v24, %v83
  %v96 = vmul.f32 %v25, %v83
  %v97 = vmul.f32 %v26, %v83
  %v98 = vmul.f32 %v27, %v83
  %v99 = vmul.f32 %v28, %v83
  %v100 = vmul.f32 %v29, %v83
  %v101 = vmul.f32 %v30, %v83
  %v102 = vmul.f32 %v31, %v83
  %v103 = vmul.f32 %v32, %v83
  %v104 = vmul.f32 %v33, %v83
  %v105 = vmul.f32 %v34, %v83
  %v106 = vmul.f32 %v35, %v83
  %v107 = vmul.f32 %v36, %v83
  %v108 = vmul.f32 %v37, %v83
  %v109 = vmul.f32 %v38, %v83
  %v110 = vmul.f32 %v39, %v83
  %v111 = vmul.f32 %v40, %v83
  %v112 = vmul.f32 %v41, %v83
  %v113 = vmul.f32 %v42, %v83
  %v114 = vmul.f32 %v43, %v83
  %v115 = vmul.f32 %v44, %v83
  %v116 = vmul.f32 %v45, %v83
  %v117 = vmul.f32 %v46, %v83
  %v118 = vmul.f32 %v47, %v83
  %v119 = vmul.f32 %v48, %v83
  %v120 = vmul.f32 %v49, %v83
  %v121 = vmul.f32 %v50, %v83
  %v122 = vmul.f32 %v51, %v83
  %v123 = vmul.f32 %v52, %v83
  %v124 = vmul.f32 %v53, %v83
  %v125 = vmul.f32 %v54, %v83
  %v126 = vmul.f32 %v55, %v83
  %v127 = vmul.f32 %v56, %v83
  %v128 = vmul.f32 %v57, %v83
  %v129 = vmul.f32 %v58, %v83
  %v130 = vmul.f32 %v59, %v83
  %v131 = vmul.f32 %v60, %v83
  %v132 = vmul.f32 %v61, %v83
  %v133 = vmul.f32 %v62, %v83
  %v134 = vmul.f32 %v63, %v83
  %v135 = vmul.f32 %v64, %v83
  %v136 = vmul.f32 %v65, %v83
  %v137 = vmul.f32 %v66, %v83
  %v138 = vmul.f32 %v67, %v83
  %v139 = vmul.f32 %v68, %v83
  %v140 = vmul.f32 %v69, %v83
  %v141 = vmul.f32 %v70, %v83
  %v142 = vmul.f32 %v71, %v83
  %v143 = vmul.f32 %v72, %v83
  %v144 = vmul.f32 %v73, %v83
  %v145 = vmul.f32 %v74, %v83
  %v146 = vmul.f32 %v75, %v83
  %v147 = vmul.f32 %v76, %v83
  %v148 = vmul.f32 %v77, %v83
  %v149 = vld [vmem:[%s2] sm:$0x1]
  %v151 = vlaneseq
  %v152 = vshrl.u32 %v151, 7
  %v153 = vsub.s32 0, %v152
  %v154 = vrot.slane %v149, %v153
  %v156 = vadd.f32 %v85, %v154
  %v157 = vadd.f32 %v86, %v154
  %v158 = vadd.f32 %v87, %v154
  %v159 = vadd.f32 %v88, %v154
  %v160 = vadd.f32 %v89, %v154
  %v161 = vadd.f32 %v90, %v154
  %v162 = vadd.f32 %v91, %v154
  %v163 = vadd.f32 %v92, %v154
  %v164 = vadd.f32 %v93, %v154
  %v165 = vadd.f32 %v94, %v154
  %v166 = vadd.f32 %v95, %v154
  %v167 = vadd.f32 %v96, %v154
  %v168 = vadd.f32 %v97, %v154
  %v169 = vadd.f32 %v98, %v154
  %v170 = vadd.f32 %v99, %v154
  %v171 = vadd.f32 %v100, %v154
  %v172 = vadd.f32 %v101, %v154
  %v173 = vadd.f32 %v102, %v154
  %v174 = vadd.f32 %v103, %v154
  %v175 = vadd.f32 %v104, %v154
  %v176 = vadd.f32 %v105, %v154
  %v177 = vadd.f32 %v106, %v154
  %v178 = vadd.f32 %v107, %v154
  %v179 = vadd.f32 %v108, %v154
  %v180 = vadd.f32 %v109, %v154
  %v181 = vadd.f32 %v110, %v154
  %v182 = vadd.f32 %v111, %v154
  %v183 = vadd.f32 %v112, %v154
  %v184 = vadd.f32 %v113, %v154
  %v185 = vadd.f32 %v114, %v154
  %v186 = vadd.f32 %v115, %v154
  %v187 = vadd.f32 %v116, %v154
  %v188 = vadd.f32 %v117, %v154
  %v189 = vadd.f32 %v118, %v154
  %v190 = vadd.f32 %v119, %v154
  %v191 = vadd.f32 %v120, %v154
  %v192 = vadd.f32 %v121, %v154
  %v193 = vadd.f32 %v122, %v154
  %v194 = vadd.f32 %v123, %v154
  %v195 = vadd.f32 %v124, %v154
  %v196 = vadd.f32 %v125, %v154
  %v197 = vadd.f32 %v126, %v154
  %v198 = vadd.f32 %v127, %v154
  %v199 = vadd.f32 %v128, %v154
  %v200 = vadd.f32 %v129, %v154
  %v201 = vadd.f32 %v130, %v154
  %v202 = vadd.f32 %v131, %v154
  %v203 = vadd.f32 %v132, %v154
  %v204 = vadd.f32 %v133, %v154
  %v205 = vadd.f32 %v134, %v154
  %v206 = vadd.f32 %v135, %v154
  %v207 = vadd.f32 %v136, %v154
  %v208 = vadd.f32 %v137, %v154
  %v209 = vadd.f32 %v138, %v154
  %v210 = vadd.f32 %v139, %v154
  %v211 = vadd.f32 %v140, %v154
  %v212 = vadd.f32 %v141, %v154
  %v213 = vadd.f32 %v142, %v154
  %v214 = vadd.f32 %v143, %v154
  %v215 = vadd.f32 %v144, %v154
  %v216 = vadd.f32 %v145, %v154
  %v217 = vadd.f32 %v146, %v154
  %v218 = vadd.f32 %v147, %v154
  %v219 = vadd.f32 %v148, %v154
  %vm220 = vcmask 64512
  %221 = vst.msk [vmem:[%s3] sm:$0xff] %vm220, %v156
  %222 = vst.msk [vmem:[%s3 + $0x8] sm:$0xff] %vm220, %v157
  %223 = vst.msk [vmem:[%s3 + $0x10] sm:$0xff] %vm220, %v158
  %224 = vst.msk [vmem:[%s3 + $0x18] sm:$0xff] %vm220, %v159
  %225 = vst.msk [vmem:[%s3 + $0x20] sm:$0xff] %vm220, %v160
  %226 = vst.msk [vmem:[%s3 + $0x28] sm:$0xff] %vm220, %v161
  %227 = vst.msk [vmem:[%s3 + $0x30] sm:$0xff] %vm220, %v162
  %228 = vst.msk [vmem:[%s3 + $0x38] sm:$0xff] %vm220, %v163
  %229 = vst.msk [vmem:[%s3 + $0x40] sm:$0xff] %vm220, %v164
  %230 = vst.msk [vmem:[%s3 + $0x48] sm:$0xff] %vm220, %v165
  %231 = vst.msk [vmem:[%s3 + $0x50] sm:$0xff] %vm220, %v166
  %232 = vst.msk [vmem:[%s3 + $0x58] sm:$0xff] %vm220, %v167
  %233 = vst.msk [vmem:[%s3 + $0x60] sm:$0xff] %vm220, %v168
  %234 = vst.msk [vmem:[%s3 + $0x68] sm:$0xff] %vm220, %v169
  %235 = vst.msk [vmem:[%s3 + $0x70] sm:$0xff] %vm220, %v170
  %236 = vst.msk [vmem:[%s3 + $0x78] sm:$0xff] %vm220, %v171
  %237 = vst.msk [vmem:[%s3 + $0x80] sm:$0xff] %vm220, %v172
  %238 = vst.msk [vmem:[%s3 + $0x88] sm:$0xff] %vm220, %v173
  %239 = vst.msk [vmem:[%s3 + $0x90] sm:$0xff] %vm220, %v174
  %240 = vst.msk [vmem:[%s3 + $0x98] sm:$0xff] %vm220, %v175
  %241 = vst.msk [vmem:[%s3 + $0xa0] sm:$0xff] %vm220, %v176
  %242 = vst.msk [vmem:[%s3 + $0xa8] sm:$0xff] %vm220, %v177
  %243 = vst.msk [vmem:[%s3 + $0xb0] sm:$0xff] %vm220, %v178
  %244 = vst.msk [vmem:[%s3 + $0xb8] sm:$0xff] %vm220, %v179
  %245 = vst.msk [vmem:[%s3 + $0xc0] sm:$0xff] %vm220, %v180
  %246 = vst.msk [vmem:[%s3 + $0xc8] sm:$0xff] %vm220, %v181
  %247 = vst.msk [vmem:[%s3 + $0xd0] sm:$0xff] %vm220, %v182
  %248 = vst.msk [vmem:[%s3 + $0xd8] sm:$0xff] %vm220, %v183
  %249 = vst.msk [vmem:[%s3 + $0xe0] sm:$0xff] %vm220, %v184
  %250 = vst.msk [vmem:[%s3 + $0xe8] sm:$0xff] %vm220, %v185
  %251 = vst.msk [vmem:[%s3 + $0xf0] sm:$0xff] %vm220, %v186
  %252 = vst.msk [vmem:[%s3 + $0xf8] sm:$0xff] %vm220, %v187
  %253 = vst.msk [vmem:[%s3 + $0x100] sm:$0xff] %vm220, %v188
  %254 = vst.msk [vmem:[%s3 + $0x108] sm:$0xff] %vm220, %v189
  %255 = vst.msk [vmem:[%s3 + $0x110] sm:$0xff] %vm220, %v190
  %256 = vst.msk [vmem:[%s3 + $0x118] sm:$0xff] %vm220, %v191
  %257 = vst.msk [vmem:[%s3 + $0x120] sm:$0xff] %vm220, %v192
  %258 = vst.msk [vmem:[%s3 + $0x128] sm:$0xff] %vm220, %v193
  %259 = vst.msk [vmem:[%s3 + $0x130] sm:$0xff] %vm220, %v194
  %260 = vst.msk [vmem:[%s3 + $0x138] sm:$0xff] %vm220, %v195
  %261 = vst.msk [vmem:[%s3 + $0x140] sm:$0xff] %vm220, %v196
  %262 = vst.msk [vmem:[%s3 + $0x148] sm:$0xff] %vm220, %v197
  %263 = vst.msk [vmem:[%s3 + $0x150] sm:$0xff] %vm220, %v198
  %264 = vst.msk [vmem:[%s3 + $0x158] sm:$0xff] %vm220, %v199
  %265 = vst.msk [vmem:[%s3 + $0x160] sm:$0xff] %vm220, %v200
  %266 = vst.msk [vmem:[%s3 + $0x168] sm:$0xff] %vm220, %v201
  %267 = vst.msk [vmem:[%s3 + $0x170] sm:$0xff] %vm220, %v202
  %268 = vst.msk [vmem:[%s3 + $0x178] sm:$0xff] %vm220, %v203
  %269 = vst.msk [vmem:[%s3 + $0x180] sm:$0xff] %vm220, %v204
  %270 = vst.msk [vmem:[%s3 + $0x188] sm:$0xff] %vm220, %v205
  %271 = vst.msk [vmem:[%s3 + $0x190] sm:$0xff] %vm220, %v206
  %272 = vst.msk [vmem:[%s3 + $0x198] sm:$0xff] %vm220, %v207
  %273 = vst.msk [vmem:[%s3 + $0x1a0] sm:$0xff] %vm220, %v208
  %274 = vst.msk [vmem:[%s3 + $0x1a8] sm:$0xff] %vm220, %v209
  %275 = vst.msk [vmem:[%s3 + $0x1b0] sm:$0xff] %vm220, %v210
  %276 = vst.msk [vmem:[%s3 + $0x1b8] sm:$0xff] %vm220, %v211
  %277 = vst.msk [vmem:[%s3 + $0x1c0] sm:$0xff] %vm220, %v212
  %278 = vst.msk [vmem:[%s3 + $0x1c8] sm:$0xff] %vm220, %v213
  %279 = vst.msk [vmem:[%s3 + $0x1d0] sm:$0xff] %vm220, %v214
  %280 = vst.msk [vmem:[%s3 + $0x1d8] sm:$0xff] %vm220, %v215
  %281 = vst.msk [vmem:[%s3 + $0x1e0] sm:$0xff] %vm220, %v216
  %282 = vst.msk [vmem:[%s3 + $0x1e8] sm:$0xff] %vm220, %v217
  %283 = vst.msk [vmem:[%s3 + $0x1f0] sm:$0xff] %vm220, %v218
  %284 = vst.msk [vmem:[%s3 + $0x1f8] sm:$0xff] %vm220, %v219
  // Predicated region
  $region14: #{_lambda_.63} parent=0 // pred_check
    _
  $region15: #{_lambda_.63} parent=0 // pred_check_branch
    %286 = sbr.rel (0) target = $region17
  $region16: #{_lambda_.63} parent=0 // pred_region
    _
  $region17: #{_lambda_.63} parent=0 // pred_fallthru
    _
  // Predicated region
  $region18: #{_lambda_.63} parent=0 // pred_check
    _
  $region19: #{_lambda_.63} parent=0 // pred_check_branch
    %288 = sbr.rel (0) target = $region21
  $region20: #{_lambda_.63} parent=0 // pred_region
    _
  $region21: #{_lambda_.63} parent=0 // pred_fallthru
    _

// kernel: _lambda_.64
$region0: #{_lambda_.64}
  #allocation0 [shape = 'u32[]', space=smem, size = 0x4, offset = 0x4, fixed_abs, tag = 'smem constant byte address 0x4 - core index']
  #allocation1 [shape = 'u32[144,128]{1,0:T(1,128)}', space=vmem, size = 0x12000, scoped, tag = 'internal scratch']
  %s0 = inlined_call_operand.vmem [shape: f32[32,128], index: 0, kind: input, shape index: {}]
  %s1 = inlined_call_operand.vmem [shape: bf16[32,128], index: 1, kind: output, shape index: {}]
  %s2 = sld [smem:[#allocation0]]
  $region14: #{_lambda_.64} parent=0
    _
  %s4 = ssub.s32 1, %s2
  %s5 = scalar_select 0, %s4, %s2
  // Predicated region
  $region2: #{_lambda_.64} parent=0 // pred_check
    _
  $region3: #{_lambda_.64} parent=0 // pred_check_branch
    %7 = sbr.rel (0) target = $region5
  $region4: #{_lambda_.64} parent=0 // pred_region
    _
  $region5: #{_lambda_.64} parent=0 // pred_fallthru
    _
  %v8 = vld [vmem:[%s0] sm:$0xff]
  %v9 = vld [vmem:[%s0 + $0x8] sm:$0xff]
  %v10 = vld [vmem:[%s0 + $0x10] sm:$0xff]
  %v11 = vld [vmem:[%s0 + $0x18] sm:$0xff]
  %vm12 = vcmp.ge.f32.partialorder %v8, 0.0
  %vm13 = vcmp.ge.f32.partialorder %v9, 0.0
  %vm14 = vcmp.ge.f32.partialorder %v10, 0.0
  %vm15 = vcmp.ge.f32.partialorder %v11, 0.0
  %v16 = vmul.f32 %v8, 0.2
  %v17 = vmul.f32 %v9, 0.2
  %v18 = vmul.f32 %v10, 0.2
  %v19 = vmul.f32 %v11, 0.2
  %v20 = vsel %vm12, %v8, %v16
  %v21 = vsel %vm13, %v9, %v17
  %v22 = vsel %vm14, %v10, %v18
  %v23 = vsel %vm15, %v11, %v19
  %v24 = vpack.c.bf16 %v21, %v20
  %v25 = vpack.c.bf16 %v23, %v22
  %v28 = vunpack.c.l.b16 %v24
  %v29 = vunpack.c.h.b16 %v24
  %v30 = vunpack.c.l.b16 %v25
  %v31 = vunpack.c.h.b16 %v25
  %v32 = vpack.c.b16 %v28, %v28
  %v33 = vpack.c.b16 %v29, %v29
  %v34 = vpack.c.b16 %v30, %v30
  %v35 = vpack.c.b16 %v31, %v31
  %40 = vst [vmem:[%s1] sm:$0xf] %v32
  %41 = vst [vmem:[%s1 + $0x4] sm:$0xf] %v33
  %42 = vst [vmem:[%s1 + $0x8] sm:$0xf] %v34
  %43 = vst [vmem:[%s1 + $0xc] sm:$0xf] %v35
  // Predicated region
  $region6: #{_lambda_.64} parent=0 // pred_check
    _
  $region7: #{_lambda_.64} parent=0 // pred_check_branch
    %45 = sbr.rel (0) target = $region9
  $region8: #{_lambda_.64} parent=0 // pred_region
    _
  $region9: #{_lambda_.64} parent=0 // pred_fallthru
    _
  // Predicated region
  $region10: #{_lambda_.64} parent=0 // pred_check
    _
  $region11: #{_lambda_.64} parent=0 // pred_check_branch
    %47 = sbr.rel (0) target = $region13
  $region12: #{_lambda_.64} parent=0 // pred_region
    _
  $region13: #{_lambda_.64} parent=0 // pred_fallthru
    _

// kernel: _lambda_.66
$region0: #{_lambda_.66}
  #allocation0 [shape = 'u32[]', space=smem, size = 0x4, offset = 0x4, fixed_abs, tag = 'smem constant byte address 0x4 - core index']
  #allocation1 [shape = 'u32[144,128]{1,0:T(1,128)}', space=vmem, size = 0x12000, scoped, tag = 'internal scratch']
  %s0 = inlined_call_operand.vmem [shape: f32[128,16], index: 0, kind: input, shape index: {}]
  %s1 = inlined_call_operand.vmem [shape: f32[1,16], index: 1, kind: output, shape index: {0}]
  %s2 = inlined_call_operand.vmem [shape: f32[1,16], index: 2, kind: output, shape index: {1}]
  %3 = xla_tuple %s1, %s2
  %s4 = sld [smem:[#allocation0]]
  $region26: #{_lambda_.66} parent=0
    _
  %s6 = ssub.s32 1, %s4
  %s7 = scalar_select 0, %s6, %s4
  // Predicated region
  $region2: #{_lambda_.66} parent=0 // pred_check
    _
  $region3: #{_lambda_.66} parent=0 // pred_check_branch
    %9 = sbr.rel (0) target = $region5
  $region4: #{_lambda_.66} parent=0 // pred_region
    _
  $region5: #{_lambda_.66} parent=0 // pred_fallthru
    _
  %p10 = scmp.eq.s32.totalorder 0, 0
  // Predicated region
  $region6: #{_lambda_.66} parent=0 // pred_check
    %p11 = pneg %p10
  $region7: #{_lambda_.66} parent=0 // pred_check_branch
    %13 = sbr.rel (%p11) target = $region9
  $region8: #{_lambda_.66} parent=0 // pred_region
    %vm14 = vcmask 122880
    %15 = vst.msk [vmem:[%s1] sm:$0x1] %vm14, 0.0
    %16 = vst.msk [vmem:[%s2] sm:$0x1] %vm14, 0.0
  $region9: #{_lambda_.66} parent=0 // pred_fallthru
    _
  %v17 = vld [vmem:[%s0] sm:$0xff]
  %v18 = vld [vmem:[%s0 + $0x8] sm:$0xff]
  %v19 = vld [vmem:[%s0 + $0x10] sm:$0xff]
  %v20 = vld [vmem:[%s0 + $0x18] sm:$0xff]
  %v21 = vld [vmem:[%s0 + $0x20] sm:$0xff]
  %v22 = vld [vmem:[%s0 + $0x28] sm:$0xff]
  %v23 = vld [vmem:[%s0 + $0x30] sm:$0xff]
  %v24 = vld [vmem:[%s0 + $0x38] sm:$0xff]
  %v25 = vld [vmem:[%s0 + $0x40] sm:$0xff]
  %v26 = vld [vmem:[%s0 + $0x48] sm:$0xff]
  %v27 = vld [vmem:[%s0 + $0x50] sm:$0xff]
  %v28 = vld [vmem:[%s0 + $0x58] sm:$0xff]
  %v29 = vld [vmem:[%s0 + $0x60] sm:$0xff]
  %v30 = vld [vmem:[%s0 + $0x68] sm:$0xff]
  %v31 = vld [vmem:[%s0 + $0x70] sm:$0xff]
  %v32 = vld [vmem:[%s0 + $0x78] sm:$0xff]
  %v33 = vld [vmem:[%s1] sm:$0x1]
  %vm34 = vcmask 130048
  %v35 = vsel %vm34, %v17, 0.0
  %v36 = vsel %vm34, %v18, 0.0
  %v37 = vadd.f32 %v35, %v36
  %v38 = vsel %vm34, %v19, 0.0
  %v39 = vadd.f32 %v37, %v38
  %v40 = vsel %vm34, %v20, 0.0
  %v41 = vadd.f32 %v39, %v40
  %v42 = vsel %vm34, %v21, 0.0
  %v43 = vadd.f32 %v41, %v42
  %v44 = vsel %vm34, %v22, 0.0
  %v45 = vadd.f32 %v43, %v44
  %v46 = vsel %vm34, %v23, 0.0
  %v47 = vadd.f32 %v45, %v46
  %v48 = vsel %vm34, %v24, 0.0
  %v49 = vadd.f32 %v47, %v48
  %v50 = vsel %vm34, %v25, 0.0
  %v51 = vadd.f32 %v49, %v50
  %v52 = vsel %vm34, %v26, 0.0
  %v53 = vadd.f32 %v51, %v52
  %v54 = vsel %vm34, %v27, 0.0
  %v55 = vadd.f32 %v53, %v54
  %v56 = vsel %vm34, %v28, 0.0
  %v57 = vadd.f32 %v55, %v56
  %v58 = vsel %vm34, %v29, 0.0
  %v59 = vadd.f32 %v57, %v58
  %v60 = vsel %vm34, %v30, 0.0
  %v61 = vadd.f32 %v59, %v60
  %v62 = vsel %vm34, %v31, 0.0
  %v63 = vadd.f32 %v61, %v62
  %v64 = vsel %vm34, %v32, 0.0
  %v65 = vadd.f32 %v63, %v64
  %v66 = vrot.slane %v65, 4
  %v67 = vadd.f32 %v65, %v66
  %v68 = vrot.slane %v67, 2
  %v69 = vadd.f32 %v67, %v68
  %v70 = vrot.slane %v69, 1
  %v71 = vadd.f32 %v69, %v70
  %v72 = vadd.f32 %v33, %v71
  %vm73 = vcmask 122880
  %74 = vst.msk [vmem:[%s1] sm:$0x1] %vm73, %v72
  %v75 = vld [vmem:[%s2] sm:$0x1]
  %v76 = vmul.f32 %v17, %v17
  %v77 = vmul.f32 %v18, %v18
  %v78 = vmul.f32 %v19, %v19
  %v79 = vmul.f32 %v20, %v20
  %v80 = vmul.f32 %v21, %v21
  %v81 = vmul.f32 %v22, %v22
  %v82 = vmul.f32 %v23, %v23
  %v83 = vmul.f32 %v24, %v24
  %v84 = vmul.f32 %v25, %v25
  %v85 = vmul.f32 %v26, %v26
  %v86 = vmul.f32 %v27, %v27
  %v87 = vmul.f32 %v28, %v28
  %v88 = vmul.f32 %v29, %v29
  %v89 = vmul.f32 %v30, %v30
  %v90 = vmul.f32 %v31, %v31
  %v91 = vmul.f32 %v32, %v32
  %v92 = vsel %vm34, %v76, 0.0
  %v93 = vsel %vm34, %v77, 0.0
  %v94 = vadd.f32 %v92, %v93
  %v95 = vsel %vm34, %v78, 0.0
  %v96 = vadd.f32 %v94, %v95
  %v97 = vsel %vm34, %v79, 0.0
  %v98 = vadd.f32 %v96, %v97
  %v99 = vsel %vm34, %v80, 0.0
  %v100 = vadd.f32 %v98, %v99
  %v101 = vsel %vm34, %v81, 0.0
  %v102 = vadd.f32 %v100, %v101
  %v103 = vsel %vm34, %v82, 0.0
  %v104 = vadd.f32 %v102, %v103
  %v105 = vsel %vm34, %v83, 0.0
  %v106 = vadd.f32 %v104, %v105
  %v107 = vsel %vm34, %v84, 0.0
  %v108 = vadd.f32 %v106, %v107
  %v109 = vsel %vm34, %v85, 0.0
  %v110 = vadd.f32 %v108, %v109
  %v111 = vsel %vm34, %v86, 0.0
  %v112 = vadd.f32 %v110, %v111
  %v113 = vsel %vm34, %v87, 0.0
  %v114 = vadd.f32 %v112, %v113
  %v115 = vsel %vm34, %v88, 0.0
  %v116 = vadd.f32 %v114, %v115
  %v117 = vsel %vm34, %v89, 0.0
  %v118 = vadd.f32 %v116, %v117
  %v119 = vsel %vm34, %v90, 0.0
  %v120 = vadd.f32 %v118, %v119
  %v121 = vsel %vm34, %v91, 0.0
  %v122 = vadd.f32 %v120, %v121
  %v123 = vrot.slane %v122, 4
  %v124 = vadd.f32 %v122, %v123
  %v125 = vrot.slane %v124, 2
  %v126 = vadd.f32 %v124, %v125
  %v127 = vrot.slane %v126, 1
  %v128 = vadd.f32 %v126, %v127
  %v129 = vadd.f32 %v75, %v128
  %130 = vst.msk [vmem:[%s2] sm:$0x1] %vm73, %v129
  // Predicated region
  $region10: #{_lambda_.66} parent=0 // pred_check
    _
  $region11: #{_lambda_.66} parent=0 // pred_check_branch
    %132 = sbr.rel (0) target = $region13
  $region12: #{_lambda_.66} parent=0 // pred_region
    _
  $region13: #{_lambda_.66} parent=0 // pred_fallthru
    _
  // Predicated region
  $region14: #{_lambda_.66} parent=0 // pred_check
    _
  $region15: #{_lambda_.66} parent=0 // pred_check_branch
    %134 = sbr.rel (0) target = $region17
  $region16: #{_lambda_.66} parent=0 // pred_region
    _
  $region17: #{_lambda_.66} parent=0 // pred_fallthru
    _
  // Predicated region
  $region18: #{_lambda_.66} parent=0 // pred_check
    _
  $region19: #{_lambda_.66} parent=0 // pred_check_branch
    %136 = sbr.rel (0) target = $region21
  $region20: #{_lambda_.66} parent=0 // pred_region
    _
  $region21: #{_lambda_.66} parent=0 // pred_fallthru
    _
  // Predicated region
  $region22: #{_lambda_.66} parent=0 // pred_check
    _
  $region23: #{_lambda_.66} parent=0 // pred_check_branch
    %138 = sbr.rel (0) target = $region25
  $region24: #{_lambda_.66} parent=0 // pred_region
    _
  $region25: #{_lambda_.66} parent=0 // pred_fallthru
    _

// kernel: _lambda_.65
$region0: #{_lambda_.65}
  #allocation0 [shape = 'u32[]', space=smem, size = 0x4, offset = 0x4, fixed_abs, tag = 'smem constant byte address 0x4 - core index']
  #allocation1 [shape = 'u32[144,128]{1,0:T(1,128)}', space=vmem, size = 0x12000, scoped, tag = 'internal scratch']
  #allocation2 [shape = 'f32[128,128]{1,0:T(8,128)}', space=vmem, size = 0x10000, scoped, tag = 'scratch operand']
  %s0 = inlined_call_operand.vmem [shape: bf16[128,128], index: 0, kind: input, shape index: {}]
  %s1 = inlined_call_operand.vmem [shape: bf16[128,128], index: 1, kind: input, shape index: {}]
  %s2 = inlined_call_operand.vmem [shape: f32[1,128], index: 2, kind: input, shape index: {}]
  %s3 = inlined_call_operand.vmem [shape: f32[128,128], index: 3, kind: output, shape index: {}]
  %s4 = sld [smem:[#allocation0]]
  $region30: #{_lambda_.65} parent=0
    _
  %s6 = ssub.s32 1, %s4
  %s7 = scalar_select 0, %s6, %s4
  // Predicated region
  $region2: #{_lambda_.65} parent=0 // pred_check
    _
  $region3: #{_lambda_.65} parent=0 // pred_check_branch
    %9 = sbr.rel (0) target = $region5
  $region4: #{_lambda_.65} parent=0 // pred_region
    _
  $region5: #{_lambda_.65} parent=0 // pred_fallthru
    _
  // Predicated region
  $region6: #{_lambda_.65} parent=0 // pred_check
    _
  $region7: #{_lambda_.65} parent=0 // pred_check_branch
    %11 = sbr.rel (0) target = $region9
  $region8: #{_lambda_.65} parent=0 // pred_region
    _
  $region9: #{_lambda_.65} parent=0 // pred_fallthru
    _
  // Predicated region
  $region10: #{_lambda_.65} parent=0 // pred_check
    _
  $region11: #{_lambda_.65} parent=0 // pred_check_branch
    %13 = sbr.rel (0) target = $region13
  $region12: #{_lambda_.65} parent=0 // pred_region
    _
  $region13: #{_lambda_.65} parent=0 // pred_fallthru
    _
  %p15 = scmp.eq.s32.totalorder 0, 0
  // Predicated region
  $region14: #{_lambda_.65} parent=0 // pred_check
    %p16 = pneg %p15
  $region15: #{_lambda_.65} parent=0 // pred_check_branch
    %18 = sbr.rel (%p16) target = $region17
  $region16: #{_lambda_.65} parent=0 // pred_region
    %19 = vst [vmem:[#allocation2] sm:$0xff] 0.0
    %20 = vst [vmem:[#allocation2 + $0x8] sm:$0xff] 0.0
    %21 = vst [vmem:[#allocation2 + $0x10] sm:$0xff] 0.0
    %22 = vst [vmem:[#allocation2 + $0x18] sm:$0xff] 0.0
    %23 = vst [vmem:[#allocation2 + $0x20] sm:$0xff] 0.0
    %24 = vst [vmem:[#allocation2 + $0x28] sm:$0xff] 0.0
    %25 = vst [vmem:[#allocation2 + $0x30] sm:$0xff] 0.0
    %26 = vst [vmem:[#allocation2 + $0x38] sm:$0xff] 0.0
    %27 = vst [vmem:[#allocation2 + $0x40] sm:$0xff] 0.0
    %28 = vst [vmem:[#allocation2 + $0x48] sm:$0xff] 0.0
    %29 = vst [vmem:[#allocation2 + $0x50] sm:$0xff] 0.0
    %30 = vst [vmem:[#allocation2 + $0x58] sm:$0xff] 0.0
    %31 = vst [vmem:[#allocation2 + $0x60] sm:$0xff] 0.0
    %32 = vst [vmem:[#allocation2 + $0x68] sm:$0xff] 0.0
    %33 = vst [vmem:[#allocation2 + $0x70] sm:$0xff] 0.0
    %34 = vst [vmem:[#allocation2 + $0x78] sm:$0xff] 0.0
  $region17: #{_lambda_.65} parent=0 // pred_fallthru
    _
  %v35 = vld [vmem:[#allocation2] sm:$0xff]
  %v36 = vld [vmem:[#allocation2 + $0x8] sm:$0xff]
  %v37 = vld [vmem:[#allocation2 + $0x10] sm:$0xff]
  %v38 = vld [vmem:[#allocation2 + $0x18] sm:$0xff]
  %v39 = vld [vmem:[#allocation2 + $0x20] sm:$0xff]
  %v40 = vld [vmem:[#allocation2 + $0x28] sm:$0xff]
  %v41 = vld [vmem:[#allocation2 + $0x30] sm:$0xff]
  %v42 = vld [vmem:[#allocation2 + $0x38] sm:$0xff]
  %v43 = vld [vmem:[#allocation2 + $0x40] sm:$0xff]
  %v44 = vld [vmem:[#allocation2 + $0x48] sm:$0xff]
  %v45 = vld [vmem:[#allocation2 + $0x50] sm:$0xff]
  %v46 = vld [vmem:[#allocation2 + $0x58] sm:$0xff]
  %v47 = vld [vmem:[#allocation2 + $0x60] sm:$0xff]
  %v48 = vld [vmem:[#allocation2 + $0x68] sm:$0xff]
  %v49 = vld [vmem:[#allocation2 + $0x70] sm:$0xff]
  %v50 = vld [vmem:[#allocation2 + $0x78] sm:$0xff]
  %v51 = vld [vmem:[%s0] sm:$0xf]
  %v52 = vld [vmem:[%s0 + $0x4] sm:$0xf]
  %v53 = vld [vmem:[%s0 + $0x8] sm:$0xf]
  %v54 = vld [vmem:[%s0 + $0xc] sm:$0xf]
  %v55 = vld [vmem:[%s0 + $0x10] sm:$0xf]
  %v56 = vld [vmem:[%s0 + $0x14] sm:$0xf]
  %v57 = vld [vmem:[%s0 + $0x18] sm:$0xf]
  %v58 = vld [vmem:[%s0 + $0x1c] sm:$0xf]
  %v59 = vld [vmem:[%s0 + $0x20] sm:$0xf]
  %v60 = vld [vmem:[%s0 + $0x24] sm:$0xf]
  %v61 = vld [vmem:[%s0 + $0x28] sm:$0xf]
  %v62 = vld [vmem:[%s0 + $0x2c] sm:$0xf]
  %v63 = vld [vmem:[%s0 + $0x30] sm:$0xf]
  %v64 = vld [vmem:[%s0 + $0x34] sm:$0xf]
  %v65 = vld [vmem:[%s0 + $0x38] sm:$0xf]
  %v66 = vld [vmem:[%s0 + $0x3c] sm:$0xf]
  %v67 = vld [vmem:[%s1] sm:$0xf]
  %v68 = vld [vmem:[%s1 + $0x4] sm:$0xf]
  %v69 = vld [vmem:[%s1 + $0x8] sm:$0xf]
  %v70 = vld [vmem:[%s1 + $0xc] sm:$0xf]
  %v71 = vld [vmem:[%s1 + $0x10] sm:$0xf]
  %v72 = vld [vmem:[%s1 + $0x14] sm:$0xf]
  %v73 = vld [vmem:[%s1 + $0x18] sm:$0xf]
  %v74 = vld [vmem:[%s1 + $0x1c] sm:$0xf]
  %v75 = vld [vmem:[%s1 + $0x20] sm:$0xf]
  %v76 = vld [vmem:[%s1 + $0x24] sm:$0xf]
  %v77 = vld [vmem:[%s1 + $0x28] sm:$0xf]
  %v78 = vld [vmem:[%s1 + $0x2c] sm:$0xf]
  %v79 = vld [vmem:[%s1 + $0x30] sm:$0xf]
  %v80 = vld [vmem:[%s1 + $0x34] sm:$0xf]
  %v81 = vld [vmem:[%s1 + $0x38] sm:$0xf]
  %v82 = vld [vmem:[%s1 + $0x3c] sm:$0xf]
  %v99 = vunpack.c.l.b16 %v51
  %v100 = vunpack.c.l.b16 %v52
  %v101 = vunpack.c.l.b16 %v53
  %v102 = vunpack.c.l.b16 %v54
  %v103 = vunpack.c.l.b16 %v55
  %v104 = vunpack.c.l.b16 %v56
  %v105 = vunpack.c.l.b16 %v57
  %v106 = vunpack.c.l.b16 %v58
  %v107 = vunpack.c.l.b16 %v59
  %v108 = vunpack.c.l.b16 %v60
  %v109 = vunpack.c.l.b16 %v61
  %v110 = vunpack.c.l.b16 %v62
  %v111 = vunpack.c.l.b16 %v63
  %v112 = vunpack.c.l.b16 %v64
  %v113 = vunpack.c.l.b16 %v65
  %v114 = vunpack.c.l.b16 %v66
  %v115 = vpack.c.b16 %v100, %v99
  %v116 = vpack.c.b16 %v102, %v101
  %v117 = vpack.c.b16 %v104, %v103
  %v118 = vpack.c.b16 %v106, %v105
  %v119 = vpack.c.b16 %v108, %v107
  %v120 = vpack.c.b16 %v110, %v109
  %v121 = vpack.c.b16 %v112, %v111
  %v122 = vpack.c.b16 %v114, %v113
  %v147 = vunpack.c.l.b16 %v67
  %v148 = vunpack.c.l.b16 %v68
  %v149 = vunpack.c.l.b16 %v69
  %v150 = vunpack.c.l.b16 %v70
  %v151 = vunpack.c.l.b16 %v71
  %v152 = vunpack.c.l.b16 %v72
  %v153 = vunpack.c.l.b16 %v73
  %v154 = vunpack.c.l.b16 %v74
  %v155 = vunpack.c.l.b16 %v75
  %v156 = vunpack.c.l.b16 %v76
  %v157 = vunpack.c.l.b16 %v77
  %v158 = vunpack.c.l.b16 %v78
  %v159 = vunpack.c.l.b16 %v79
  %v160 = vunpack.c.l.b16 %v80
  %v161 = vunpack.c.l.b16 %v81
  %v162 = vunpack.c.l.b16 %v82
  %v163 = vpack.c.b16 %v148, %v147
  %v164 = vpack.c.b16 %v150, %v149
  %v165 = vpack.c.b16 %v152, %v151
  %v166 = vpack.c.b16 %v154, %v153
  %v167 = vpack.c.b16 %v156, %v155
  %v168 = vpack.c.b16 %v158, %v157
  %v169 = vpack.c.b16 %v160, %v159
  %v170 = vpack.c.b16 %v162, %v161
  %179 = vmatprep.subr.bf16.mxu0 0
  %180 = vmatpush1.bf16.msra.mxu0 %v170
  %181 = vmatprep.subr.bf16.mxu0 0
  %182 = vmatpush1.bf16.msra.mxu0 %v169
  %183 = vmatprep.subr.bf16.mxu0 0
  %184 = vmatpush1.bf16.msra.mxu0 %v168
  %185 = vmatprep.subr.bf16.mxu0 0
  %186 = vmatpush1.bf16.msra.mxu0 %v167
  %187 = vmatprep.subr.bf16.mxu0 0
  %188 = vmatpush1.bf16.msra.mxu0 %v166
  %189 = vmatprep.subr.bf16.mxu0 0
  %190 = vmatpush1.bf16.msra.mxu0 %v165
  %191 = vmatprep.subr.bf16.mxu0 0
  %192 = vmatpush1.bf16.msra.mxu0 %v164
  %193 = vmatprep.subr.bf16.mxu0 0
  %194 = vmatpush1.bf16.msra.mxu0 %v163
  %195 = vmatprep.subr.bf16.mxu0 0
  %196 = vmatpush2.bf16.msra.mxu0 0
  %197 = vmatprep.subr.bf16.mxu0 0
  %198 = vmatpush2.bf16.msra.mxu0 0
  %199 = vmatprep.subr.bf16.mxu0 0
  %200 = vmatpush2.bf16.msra.mxu0 0
  %201 = vmatprep.subr.bf16.mxu0 0
  %202 = vmatpush2.bf16.msra.mxu0 0
  %203 = vmatprep.subr.bf16.mxu0 0
  %204 = vmatpush2.bf16.msra.mxu0 0
  %205 = vmatprep.subr.bf16.mxu0 0
  %206 = vmatpush2.bf16.msra.mxu0 0
  %207 = vmatprep.subr.bf16.mxu0 0
  %208 = vmatpush2.bf16.msra.mxu0 0
  %209 = vmatprep.subr.bf16.mxu0 0
  %210 = vmatpush2.bf16.msra.mxu0 0
  %211 = vmatprep.mubr.bf16.mxu0 0
  %212 = vmatmul.mubr.bf16.gmra.mxu0 %v115
  %v213 = vpop.f32.mrf.mxu0
  %v214 = vadd.f32 0.0, %v213
  %v215 = vpop.f32.mrf.mxu0
  %v216 = vpop.f32.mrf.mxu0
  %v217 = vadd.f32 0.0, %v216
  %v218 = vpop.f32.mrf.mxu0
  %219 = vmatprep.mubr.bf16.mxu0 0
  %220 = vmatmul.mubr.bf16.gmra.mxu0 %v116
  %v221 = vpop.f32.mrf.mxu0
  %v222 = vadd.f32 0.0, %v221
  %v223 = vpop.f32.mrf.mxu0
  %v224 = vpop.f32.mrf.mxu0
  %v225 = vadd.f32 0.0, %v224
  %v226 = vpop.f32.mrf.mxu0
  %227 = vmatprep.mubr.bf16.mxu0 0
  %228 = vmatmul.mubr.bf16.gmra.mxu0 %v117
  %v229 = vpop.f32.mrf.mxu0
  %v230 = vadd.f32 0.0, %v229
  %v231 = vpop.f32.mrf.mxu0
  %v232 = vpop.f32.mrf.mxu0
  %v233 = vadd.f32 0.0, %v232
  %v234 = vpop.f32.mrf.mxu0
  %235 = vmatprep.mubr.bf16.mxu0 0
  %236 = vmatmul.mubr.bf16.gmra.mxu0 %v118
  %v237 = vpop.f32.mrf.mxu0
  %v238 = vadd.f32 0.0, %v237
  %v239 = vpop.f32.mrf.mxu0
  %v240 = vpop.f32.mrf.mxu0
  %v241 = vadd.f32 0.0, %v240
  %v242 = vpop.f32.mrf.mxu0
  %243 = vmatprep.mubr.bf16.mxu0 0
  %244 = vmatmul.mubr.bf16.gmra.mxu0 %v119
  %v245 = vpop.f32.mrf.mxu0
  %v246 = vadd.f32 0.0, %v245
  %v247 = vpop.f32.mrf.mxu0
  %v248 = vpop.f32.mrf.mxu0
  %v249 = vadd.f32 0.0, %v248
  %v250 = vpop.f32.mrf.mxu0
  %251 = vmatprep.mubr.bf16.mxu0 0
  %252 = vmatmul.mubr.bf16.gmra.mxu0 %v120
  %v253 = vpop.f32.mrf.mxu0
  %v254 = vadd.f32 0.0, %v253
  %v255 = vpop.f32.mrf.mxu0
  %v256 = vpop.f32.mrf.mxu0
  %v257 = vadd.f32 0.0, %v256
  %v258 = vpop.f32.mrf.mxu0
  %259 = vmatprep.mubr.bf16.mxu0 0
  %260 = vmatmul.mubr.bf16.gmra.mxu0 %v121
  %v261 = vpop.f32.mrf.mxu0
  %v262 = vadd.f32 0.0, %v261
  %v263 = vpop.f32.mrf.mxu0
  %v264 = vpop.f32.mrf.mxu0
  %v265 = vadd.f32 0.0, %v264
  %v266 = vpop.f32.mrf.mxu0
  %267 = vmatprep.mubr.bf16.mxu0 0
  %268 = vmatmul.mubr.bf16.gmra.mxu0 %v122
  %v269 = vpop.f32.mrf.mxu0
  %v270 = vadd.f32 0.0, %v269
  %v271 = vpop.f32.mrf.mxu0
  %v272 = vpop.f32.mrf.mxu0
  %v273 = vadd.f32 0.0, %v272
  %v274 = vpop.f32.mrf.mxu0
  %275 = vdwg.mxu0
  %v276 = vadd.f32 %v35, %v214
  %v277 = vadd.f32 %v36, %v217
  %v278 = vadd.f32 %v37, %v222
  %v279 = vadd.f32 %v38, %v225
  %v280 = vadd.f32 %v39, %v230
  %v281 = vadd.f32 %v40, %v233
  %v282 = vadd.f32 %v41, %v238
  %v283 = vadd.f32 %v42, %v241
  %v284 = vadd.f32 %v43, %v246
  %v285 = vadd.f32 %v44, %v249
  %v286 = vadd.f32 %v45, %v254
  %v287 = vadd.f32 %v46, %v257
  %v288 = vadd.f32 %v47, %v262
  %v289 = vadd.f32 %v48, %v265
  %v290 = vadd.f32 %v49, %v270
  %v291 = vadd.f32 %v50, %v273
  %292 = vst [vmem:[#allocation2] sm:$0xff] %v276
  %293 = vst [vmem:[#allocation2 + $0x8] sm:$0xff] %v277
  %294 = vst [vmem:[#allocation2 + $0x10] sm:$0xff] %v278
  %295 = vst [vmem:[#allocation2 + $0x18] sm:$0xff] %v279
  %296 = vst [vmem:[#allocation2 + $0x20] sm:$0xff] %v280
  %297 = vst [vmem:[#allocation2 + $0x28] sm:$0xff] %v281
  %298 = vst [vmem:[#allocation2 + $0x30] sm:$0xff] %v282
  %299 = vst [vmem:[#allocation2 + $0x38] sm:$0xff] %v283
  %300 = vst [vmem:[#allocation2 + $0x40] sm:$0xff] %v284
  %301 = vst [vmem:[#allocation2 + $0x48] sm:$0xff] %v285
  %302 = vst [vmem:[#allocation2 + $0x50] sm:$0xff] %v286
  %303 = vst [vmem:[#allocation2 + $0x58] sm:$0xff] %v287
  %304 = vst [vmem:[#allocation2 + $0x60] sm:$0xff] %v288
  %305 = vst [vmem:[#allocation2 + $0x68] sm:$0xff] %v289
  %306 = vst [vmem:[#allocation2 + $0x70] sm:$0xff] %v290
  %307 = vst [vmem:[#allocation2 + $0x78] sm:$0xff] %v291
  // Predicated region
  $region18: #{_lambda_.65} parent=0 // pred_check
    %p308 = pneg %p15
  $region19: #{_lambda_.65} parent=0 // pred_check_branch
    %310 = sbr.rel (%p308) target = $region21
  $region20: #{_lambda_.65} parent=0 // pred_region
    %v311 = vld [vmem:[#allocation2] sm:$0xff]
    %v312 = vld [vmem:[#allocation2 + $0x8] sm:$0xff]
    %v313 = vld [vmem:[#allocation2 + $0x10] sm:$0xff]
    %v314 = vld [vmem:[#allocation2 + $0x18] sm:$0xff]
    %v315 = vld [vmem:[#allocation2 + $0x20] sm:$0xff]
    %v316 = vld [vmem:[#allocation2 + $0x28] sm:$0xff]
    %v317 = vld [vmem:[#allocation2 + $0x30] sm:$0xff]
    %v318 = vld [vmem:[#allocation2 + $0x38] sm:$0xff]
    %v319 = vld [vmem:[#allocation2 + $0x40] sm:$0xff]
    %v320 = vld [vmem:[#allocation2 + $0x48] sm:$0xff]
    %v321 = vld [vmem:[#allocation2 + $0x50] sm:$0xff]
    %v322 = vld [vmem:[#allocation2 + $0x58] sm:$0xff]
    %v323 = vld [vmem:[#allocation2 + $0x60] sm:$0xff]
    %v324 = vld [vmem:[#allocation2 + $0x68] sm:$0xff]
    %v325 = vld [vmem:[#allocation2 + $0x70] sm:$0xff]
    %v326 = vld [vmem:[#allocation2 + $0x78] sm:$0xff]
    %v327 = vld [vmem:[%s2] sm:$0x1]
    %v329 = vlaneseq
    %v330 = vshrl.u32 %v329, 7
    %v331 = vsub.s32 0, %v330
    %v332 = vrot.slane %v327, %v331
    %v334 = vadd.f32 %v311, %v332
    %v335 = vadd.f32 %v312, %v332
    %v336 = vadd.f32 %v313, %v332
    %v337 = vadd.f32 %v314, %v332
    %v338 = vadd.f32 %v315, %v332
    %v339 = vadd.f32 %v316, %v332
    %v340 = vadd.f32 %v317, %v332
    %v341 = vadd.f32 %v318, %v332
    %v342 = vadd.f32 %v319, %v332
    %v343 = vadd.f32 %v320, %v332
    %v344 = vadd.f32 %v321, %v332
    %v345 = vadd.f32 %v322, %v332
    %v346 = vadd.f32 %v323, %v332
    %v347 = vadd.f32 %v324, %v332
    %v348 = vadd.f32 %v325, %v332
    %v349 = vadd.f32 %v326, %v332
    %350 = vst [vmem:[%s3] sm:$0xff] %v334
    %351 = vst [vmem:[%s3 + $0x8] sm:$0xff] %v335
    %352 = vst [vmem:[%s3 + $0x10] sm:$0xff] %v336
    %353 = vst [vmem:[%s3 + $0x18] sm:$0xff] %v337
    %354 = vst [vmem:[%s3 + $0x20] sm:$0xff] %v338
    %355 = vst [vmem:[%s3 + $0x28] sm:$0xff] %v339
    %356 = vst [vmem:[%s3 + $0x30] sm:$0xff] %v340
    %357 = vst [vmem:[%s3 + $0x38] sm:$0xff] %v341
    %358 = vst [vmem:[%s3 + $0x40] sm:$0xff] %v342
    %359 = vst [vmem:[%s3 + $0x48] sm:$0xff] %v343
    %360 = vst [vmem:[%s3 + $0x50] sm:$0xff] %v344
    %361 = vst [vmem:[%s3 + $0x58] sm:$0xff] %v345
    %362 = vst [vmem:[%s3 + $0x60] sm:$0xff] %v346
    %363 = vst [vmem:[%s3 + $0x68] sm:$0xff] %v347
    %364 = vst [vmem:[%s3 + $0x70] sm:$0xff] %v348
    %365 = vst [vmem:[%s3 + $0x78] sm:$0xff] %v349
  $region21: #{_lambda_.65} parent=0 // pred_fallthru
    _
  // Predicated region
  $region22: #{_lambda_.65} parent=0 // pred_check
    _
  $region23: #{_lambda_.65} parent=0 // pred_check_branch
    %367 = sbr.rel (0) target = $region25
  $region24: #{_lambda_.65} parent=0 // pred_region
    _
  $region25: #{_lambda_.65} parent=0 // pred_fallthru
    _
  // Predicated region
  $region26: #{_lambda_.65} parent=0 // pred_check
    _
  $region27: #{_lambda_.65} parent=0 // pred_check_branch
    %369 = sbr.rel (0) target = $region29
  $region28: #{_lambda_.65} parent=0 // pred_region
    _
  $region29: #{_lambda_.65} parent=0 // pred_fallthru
    _

// kernel: _lambda_.67
$region0: #{_lambda_.67}
  #allocation0 [shape = 'u32[]', space=smem, size = 0x4, offset = 0x4, fixed_abs, tag = 'smem constant byte address 0x4 - core index']
  #allocation1 [shape = 'u32[144,128]{1,0:T(1,128)}', space=vmem, size = 0x12000, scoped, tag = 'internal scratch']
  %s0 = inlined_call_operand.vmem [shape: f32[128,16], index: 0, kind: input, shape index: {}]
  %s1 = inlined_call_operand.vmem [shape: f32[1,16], index: 1, kind: input, shape index: {}]
  %s2 = inlined_call_operand.vmem [shape: f32[1,16], index: 2, kind: input, shape index: {}]
  %s3 = inlined_call_operand.vmem [shape: f32[128,16], index: 3, kind: output, shape index: {}]
  %s4 = sld [smem:[#allocation0]]
  $region22: #{_lambda_.67} parent=0
    _
  %s6 = ssub.s32 1, %s4
  %s7 = scalar_select 0, %s6, %s4
  // Predicated region
  $region2: #{_lambda_.67} parent=0 // pred_check
    _
  $region3: #{_lambda_.67} parent=0 // pred_check_branch
    %9 = sbr.rel (0) target = $region5
  $region4: #{_lambda_.67} parent=0 // pred_region
    _
  $region5: #{_lambda_.67} parent=0 // pred_fallthru
    _
  // Predicated region
  $region6: #{_lambda_.67} parent=0 // pred_check
    _
  $region7: #{_lambda_.67} parent=0 // pred_check_branch
    %11 = sbr.rel (0) target = $region9
  $region8: #{_lambda_.67} parent=0 // pred_region
    _
  $region9: #{_lambda_.67} parent=0 // pred_fallthru
    _
  // Predicated region
  $region10: #{_lambda_.67} parent=0 // pred_check
    _
  $region11: #{_lambda_.67} parent=0 // pred_check_branch
    %13 = sbr.rel (0) target = $region13
  $region12: #{_lambda_.67} parent=0 // pred_region
    _
  $region13: #{_lambda_.67} parent=0 // pred_fallthru
    _
  %v14 = vld [vmem:[%s0] sm:$0xff]
  %v15 = vld [vmem:[%s0 + $0x8] sm:$0xff]
  %v16 = vld [vmem:[%s0 + $0x10] sm:$0xff]
  %v17 = vld [vmem:[%s0 + $0x18] sm:$0xff]
  %v18 = vld [vmem:[%s0 + $0x20] sm:$0xff]
  %v19 = vld [vmem:[%s0 + $0x28] sm:$0xff]
  %v20 = vld [vmem:[%s0 + $0x30] sm:$0xff]
  %v21 = vld [vmem:[%s0 + $0x38] sm:$0xff]
  %v22 = vld [vmem:[%s0 + $0x40] sm:$0xff]
  %v23 = vld [vmem:[%s0 + $0x48] sm:$0xff]
  %v24 = vld [vmem:[%s0 + $0x50] sm:$0xff]
  %v25 = vld [vmem:[%s0 + $0x58] sm:$0xff]
  %v26 = vld [vmem:[%s0 + $0x60] sm:$0xff]
  %v27 = vld [vmem:[%s0 + $0x68] sm:$0xff]
  %v28 = vld [vmem:[%s0 + $0x70] sm:$0xff]
  %v29 = vld [vmem:[%s0 + $0x78] sm:$0xff]
  %v30 = vld [vmem:[%s1] sm:$0x1]
  %v32 = vlaneseq
  %v33 = vshrl.u32 %v32, 7
  %v34 = vsub.s32 0, %v33
  %v35 = vrot.slane %v30, %v34
  %v37 = vmul.f32 %v14, %v35
  %v38 = vmul.f32 %v15, %v35
  %v39 = vmul.f32 %v16, %v35
  %v40 = vmul.f32 %v17, %v35
  %v41 = vmul.f32 %v18, %v35
  %v42 = vmul.f32 %v19, %v35
  %v43 = vmul.f32 %v20, %v35
  %v44 = vmul.f32 %v21, %v35
  %v45 = vmul.f32 %v22, %v35
  %v46 = vmul.f32 %v23, %v35
  %v47 = vmul.f32 %v24, %v35
  %v48 = vmul.f32 %v25, %v35
  %v49 = vmul.f32 %v26, %v35
  %v50 = vmul.f32 %v27, %v35
  %v51 = vmul.f32 %v28, %v35
  %v52 = vmul.f32 %v29, %v35
  %v53 = vld [vmem:[%s2] sm:$0x1]
  %v55 = vlaneseq
  %v56 = vshrl.u32 %v55, 7
  %v57 = vsub.s32 0, %v56
  %v58 = vrot.slane %v53, %v57
  %v60 = vadd.f32 %v37, %v58
  %v61 = vadd.f32 %v38, %v58
  %v62 = vadd.f32 %v39, %v58
  %v63 = vadd.f32 %v40, %v58
  %v64 = vadd.f32 %v41, %v58
  %v65 = vadd.f32 %v42, %v58
  %v66 = vadd.f32 %v43, %v58
  %v67 = vadd.f32 %v44, %v58
  %v68 = vadd.f32 %v45, %v58
  %v69 = vadd.f32 %v46, %v58
  %v70 = vadd.f32 %v47, %v58
  %v71 = vadd.f32 %v48, %v58
  %v72 = vadd.f32 %v49, %v58
  %v73 = vadd.f32 %v50, %v58
  %v74 = vadd.f32 %v51, %v58
  %v75 = vadd.f32 %v52, %v58
  %vm76 = vcmask 130048
  %77 = vst.msk [vmem:[%s3] sm:$0xff] %vm76, %v60
  %78 = vst.msk [vmem:[%s3 + $0x8] sm:$0xff] %vm76, %v61
  %79 = vst.msk [vmem:[%s3 + $0x10] sm:$0xff] %vm76, %v62
  %80 = vst.msk [vmem:[%s3 + $0x18] sm:$0xff] %vm76, %v63
  %81 = vst.msk [vmem:[%s3 + $0x20] sm:$0xff] %vm76, %v64
  %82 = vst.msk [vmem:[%s3 + $0x28] sm:$0xff] %vm76, %v65
  %83 = vst.msk [vmem:[%s3 + $0x30] sm:$0xff] %vm76, %v66
  %84 = vst.msk [vmem:[%s3 + $0x38] sm:$0xff] %vm76, %v67
  %85 = vst.msk [vmem:[%s3 + $0x40] sm:$0xff] %vm76, %v68
  %86 = vst.msk [vmem:[%s3 + $0x48] sm:$0xff] %vm76, %v69
  %87 = vst.msk [vmem:[%s3 + $0x50] sm:$0xff] %vm76, %v70
  %88 = vst.msk [vmem:[%s3 + $0x58] sm:$0xff] %vm76, %v71
  %89 = vst.msk [vmem:[%s3 + $0x60] sm:$0xff] %vm76, %v72
  %90 = vst.msk [vmem:[%s3 + $0x68] sm:$0xff] %vm76, %v73
  %91 = vst.msk [vmem:[%s3 + $0x70] sm:$0xff] %vm76, %v74
  %92 = vst.msk [vmem:[%s3 + $0x78] sm:$0xff] %vm76, %v75
  // Predicated region
  $region14: #{_lambda_.67} parent=0 // pred_check
    _
  $region15: #{_lambda_.67} parent=0 // pred_check_branch
    %94 = sbr.rel (0) target = $region17
  $region16: #{_lambda_.67} parent=0 // pred_region
    _
  $region17: #{_lambda_.67} parent=0 // pred_fallthru
    _
  // Predicated region
  $region18: #{_lambda_.67} parent=0 // pred_check
    _
  $region19: #{_lambda_.67} parent=0 // pred_check_branch
    %96 = sbr.rel (0) target = $region21
  $region20: #{_lambda_.67} parent=0 // pred_region
    _
  $region21: #{_lambda_.67} parent=0 // pred_fallthru
    _

// kernel: _lambda_.68
$region0: #{_lambda_.68}
  #allocation0 [shape = 'u32[]', space=smem, size = 0x4, offset = 0x4, fixed_abs, tag = 'smem constant byte address 0x4 - core index']
  #allocation1 [shape = 'u32[144,128]{1,0:T(1,128)}', space=vmem, size = 0x12000, scoped, tag = 'internal scratch']
  %s0 = inlined_call_operand.vmem [shape: f32[16,128], index: 0, kind: input, shape index: {}]
  %s1 = inlined_call_operand.vmem [shape: bf16[16,128], index: 1, kind: output, shape index: {}]
  %s2 = sld [smem:[#allocation0]]
  $region14: #{_lambda_.68} parent=0
    _
  %s4 = ssub.s32 1, %s2
  %s5 = scalar_select 0, %s4, %s2
  // Predicated region
  $region2: #{_lambda_.68} parent=0 // pred_check
    _
  $region3: #{_lambda_.68} parent=0 // pred_check_branch
    %7 = sbr.rel (0) target = $region5
  $region4: #{_lambda_.68} parent=0 // pred_region
    _
  $region5: #{_lambda_.68} parent=0 // pred_fallthru
    _
  %v8 = vld [vmem:[%s0] sm:$0xff]
  %v9 = vld [vmem:[%s0 + $0x8] sm:$0xff]
  %vm10 = vcmp.ge.f32.partialorder %v8, 0.0
  %vm11 = vcmp.ge.f32.partialorder %v9, 0.0
  %v12 = vmul.f32 %v8, 0.2
  %v13 = vmul.f32 %v9, 0.2
  %v14 = vsel %vm10, %v8, %v12
  %v15 = vsel %vm11, %v9, %v13
  %v16 = vpack.c.bf16 %v15, %v14
  %v18 = vunpack.c.l.b16 %v16
  %v19 = vunpack.c.h.b16 %v16
  %v20 = vpack.c.b16 %v18, %v18
  %v21 = vpack.c.b16 %v19, %v19
  %24 = vst [vmem:[%s1] sm:$0xf] %v20
  %25 = vst [vmem:[%s1 + $0x4] sm:$0xf] %v21
  // Predicated region
  $region6: #{_lambda_.68} parent=0 // pred_check
    _
  $region7: #{_lambda_.68} parent=0 // pred_check_branch
    %27 = sbr.rel (0) target = $region9
  $region8: #{_lambda_.68} parent=0 // pred_region
    _
  $region9: #{_lambda_.68} parent=0 // pred_fallthru
    _
  // Predicated region
  $region10: #{_lambda_.68} parent=0 // pred_check
    _
  $region11: #{_lambda_.68} parent=0 // pred_check_branch
    %29 = sbr.rel (0) target = $region13
  $region12: #{_lambda_.68} parent=0 // pred_region
    _
  $region13: #{_lambda_.68} parent=0 // pred_fallthru
    _

// kernel: _lambda_.69
$region0: #{_lambda_.69}
  #allocation0 [shape = 'u32[]', space=smem, size = 0x4, offset = 0x4, fixed_abs, tag = 'smem constant byte address 0x4 - core index']
  #allocation1 [shape = 'u32[144,128]{1,0:T(1,128)}', space=vmem, size = 0x12000, scoped, tag = 'internal scratch']
  #allocation2 [shape = 'f32[32,128]{1,0:T(8,128)}', space=vmem, size = 0x4000, scoped, tag = 'scratch operand']
  %s0 = inlined_call_operand.vmem [shape: bf16[32,256], index: 0, kind: input, shape index: {}]
  %s1 = inlined_call_operand.vmem [shape: bf16[256,128], index: 1, kind: input, shape index: {}]
  %s2 = inlined_call_operand.vmem [shape: f32[1,128], index: 2, kind: input, shape index: {}]
  %s3 = inlined_call_operand.vmem [shape: f32[32,128], index: 3, kind: output, shape index: {}]
  %s4 = sld [smem:[#allocation0]]
  $region30: #{_lambda_.69} parent=0
    _
  %s6 = ssub.s32 1, %s4
  %s7 = scalar_select 0, %s6, %s4
  // Predicated region
  $region2: #{_lambda_.69} parent=0 // pred_check
    _
  $region3: #{_lambda_.69} parent=0 // pred_check_branch
    %9 = sbr.rel (0) target = $region5
  $region4: #{_lambda_.69} parent=0 // pred_region
    _
  $region5: #{_lambda_.69} parent=0 // pred_fallthru
    _
  // Predicated region
  $region6: #{_lambda_.69} parent=0 // pred_check
    _
  $region7: #{_lambda_.69} parent=0 // pred_check_branch
    %11 = sbr.rel (0) target = $region9
  $region8: #{_lambda_.69} parent=0 // pred_region
    _
  $region9: #{_lambda_.69} parent=0 // pred_fallthru
    _
  // Predicated region
  $region10: #{_lambda_.69} parent=0 // pred_check
    _
  $region11: #{_lambda_.69} parent=0 // pred_check_branch
    %13 = sbr.rel (0) target = $region13
  $region12: #{_lambda_.69} parent=0 // pred_region
    _
  $region13: #{_lambda_.69} parent=0 // pred_fallthru
    _
  %p15 = scmp.eq.s32.totalorder 0, 0
  // Predicated region
  $region14: #{_lambda_.69} parent=0 // pred_check
    %p16 = pneg %p15
  $region15: #{_lambda_.69} parent=0 // pred_check_branch
    %18 = sbr.rel (%p16) target = $region17
  $region16: #{_lambda_.69} parent=0 // pred_region
    %19 = vst [vmem:[#allocation2] sm:$0xff] 0.0
    %20 = vst [vmem:[#allocation2 + $0x8] sm:$0xff] 0.0
    %21 = vst [vmem:[#allocation2 + $0x10] sm:$0xff] 0.0
    %22 = vst [vmem:[#allocation2 + $0x18] sm:$0xff] 0.0
  $region17: #{_lambda_.69} parent=0 // pred_fallthru
    _
  %v23 = vld [vmem:[#allocation2] sm:$0xff]
  %v24 = vld [vmem:[#allocation2 + $0x8] sm:$0xff]
  %v25 = vld [vmem:[#allocation2 + $0x10] sm:$0xff]
  %v26 = vld [vmem:[#allocation2 + $0x18] sm:$0xff]
  %v27 = vld [vmem:[%s0] sm:$0xff]
  %v28 = vld [vmem:[%s0 + $0x8] sm:$0xff]
  %v29 = vld [vmem:[%s0 + $0x10] sm:$0xff]
  %v30 = vld [vmem:[%s0 + $0x18] sm:$0xff]
  %v31 = vld [vmem:[%s1] sm:$0xf]
  %v32 = vld [vmem:[%s1 + $0x4] sm:$0xf]
  %v33 = vld [vmem:[%s1 + $0x8] sm:$0xf]
  %v34 = vld [vmem:[%s1 + $0xc] sm:$0xf]
  %v35 = vld [vmem:[%s1 + $0x10] sm:$0xf]
  %v36 = vld [vmem:[%s1 + $0x14] sm:$0xf]
  %v37 = vld [vmem:[%s1 + $0x18] sm:$0xf]
  %v38 = vld [vmem:[%s1 + $0x1c] sm:$0xf]
  %v39 = vld [vmem:[%s1 + $0x20] sm:$0xf]
  %v40 = vld [vmem:[%s1 + $0x24] sm:$0xf]
  %v41 = vld [vmem:[%s1 + $0x28] sm:$0xf]
  %v42 = vld [vmem:[%s1 + $0x2c] sm:$0xf]
  %v43 = vld [vmem:[%s1 + $0x30] sm:$0xf]
  %v44 = vld [vmem:[%s1 + $0x34] sm:$0xf]
  %v45 = vld [vmem:[%s1 + $0x38] sm:$0xf]
  %v46 = vld [vmem:[%s1 + $0x3c] sm:$0xf]
  %v47 = vld [vmem:[%s1 + $0x40] sm:$0xf]
  %v48 = vld [vmem:[%s1 + $0x44] sm:$0xf]
  %v49 = vld [vmem:[%s1 + $0x48] sm:$0xf]
  %v50 = vld [vmem:[%s1 + $0x4c] sm:$0xf]
  %v51 = vld [vmem:[%s1 + $0x50] sm:$0xf]
  %v52 = vld [vmem:[%s1 + $0x54] sm:$0xf]
  %v53 = vld [vmem:[%s1 + $0x58] sm:$0xf]
  %v54 = vld [vmem:[%s1 + $0x5c] sm:$0xf]
  %v55 = vld [vmem:[%s1 + $0x60] sm:$0xf]
  %v56 = vld [vmem:[%s1 + $0x64] sm:$0xf]
  %v57 = vld [vmem:[%s1 + $0x68] sm:$0xf]
  %v58 = vld [vmem:[%s1 + $0x6c] sm:$0xf]
  %v59 = vld [vmem:[%s1 + $0x70] sm:$0xf]
  %v60 = vld [vmem:[%s1 + $0x74] sm:$0xf]
  %v61 = vld [vmem:[%s1 + $0x78] sm:$0xf]
  %v62 = vld [vmem:[%s1 + $0x7c] sm:$0xf]
  %v67 = vunpack.c.l.b16 %v27
  %v68 = vunpack.c.h.b16 %v27
  %v69 = vunpack.c.l.b16 %v28
  %v70 = vunpack.c.h.b16 %v28
  %v71 = vunpack.c.l.b16 %v29
  %v72 = vunpack.c.h.b16 %v29
  %v73 = vunpack.c.l.b16 %v30
  %v74 = vunpack.c.h.b16 %v30
  %v75 = vpack.c.b16 %v69, %v67
  %v76 = vpack.c.b16 %v70, %v68
  %v77 = vpack.c.b16 %v73, %v71
  %v78 = vpack.c.b16 %v74, %v72
  %v115 = vunpack.c.l.b16 %v31
  %v116 = vunpack.c.l.b16 %v32
  %v117 = vunpack.c.l.b16 %v33
  %v118 = vunpack.c.l.b16 %v34
  %v119 = vunpack.c.l.b16 %v35
  %v120 = vunpack.c.l.b16 %v36
  %v121 = vunpack.c.l.b16 %v37
  %v122 = vunpack.c.l.b16 %v38
  %v123 = vunpack.c.l.b16 %v39
  %v124 = vunpack.c.l.b16 %v40
  %v125 = vunpack.c.l.b16 %v41
  %v126 = vunpack.c.l.b16 %v42
  %v127 = vunpack.c.l.b16 %v43
  %v128 = vunpack.c.l.b16 %v44
  %v129 = vunpack.c.l.b16 %v45
  %v130 = vunpack.c.l.b16 %v46
  %v131 = vunpack.c.l.b16 %v47
  %v132 = vunpack.c.l.b16 %v48
  %v133 = vunpack.c.l.b16 %v49
  %v134 = vunpack.c.l.b16 %v50
  %v135 = vunpack.c.l.b16 %v51
  %v136 = vunpack.c.l.b16 %v52
  %v137 = vunpack.c.l.b16 %v53
  %v138 = vunpack.c.l.b16 %v54
  %v139 = vunpack.c.l.b16 %v55
  %v140 = vunpack.c.l.b16 %v56
  %v141 = vunpack.c.l.b16 %v57
  %v142 = vunpack.c.l.b16 %v58
  %v143 = vunpack.c.l.b16 %v59
  %v144 = vunpack.c.l.b16 %v60
  %v145 = vunpack.c.l.b16 %v61
  %v146 = vunpack.c.l.b16 %v62
  %v147 = vpack.c.b16 %v116, %v115
  %v148 = vpack.c.b16 %v118, %v117
  %v149 = vpack.c.b16 %v120, %v119
  %v150 = vpack.c.b16 %v122, %v121
  %v151 = vpack.c.b16 %v124, %v123
  %v152 = vpack.c.b16 %v126, %v125
  %v153 = vpack.c.b16 %v128, %v127
  %v154 = vpack.c.b16 %v130, %v129
  %v155 = vpack.c.b16 %v132, %v131
  %v156 = vpack.c.b16 %v134, %v133
  %v157 = vpack.c.b16 %v136, %v135
  %v158 = vpack.c.b16 %v138, %v137
  %v159 = vpack.c.b16 %v140, %v139
  %v160 = vpack.c.b16 %v142, %v141
  %v161 = vpack.c.b16 %v144, %v143
  %v162 = vpack.c.b16 %v146, %v145
  %179 = vmatprep.subr.bf16.mxu0 0
  %180 = vmatpush1.bf16.msra.mxu0 %v154
  %181 = vmatprep.subr.bf16.mxu0 0
  %182 = vmatpush1.bf16.msra.mxu0 %v153
  %183 = vmatprep.subr.bf16.mxu0 0
  %184 = vmatpush1.bf16.msra.mxu0 %v152
  %185 = vmatprep.subr.bf16.mxu0 0
  %186 = vmatpush1.bf16.msra.mxu0 %v151
  %187 = vmatprep.subr.bf16.mxu0 0
  %188 = vmatpush1.bf16.msra.mxu0 %v150
  %189 = vmatprep.subr.bf16.mxu0 0
  %190 = vmatpush1.bf16.msra.mxu0 %v149
  %191 = vmatprep.subr.bf16.mxu0 0
  %192 = vmatpush1.bf16.msra.mxu0 %v148
  %193 = vmatprep.subr.bf16.mxu0 0
  %194 = vmatpush1.bf16.msra.mxu0 %v147
  %195 = vmatprep.subr.bf16.mxu0 0
  %196 = vmatpush2.bf16.msra.mxu0 %v162
  %197 = vmatprep.subr.bf16.mxu0 0
  %198 = vmatpush2.bf16.msra.mxu0 %v161
  %199 = vmatprep.subr.bf16.mxu0 0
  %200 = vmatpush2.bf16.msra.mxu0 %v160
  %201 = vmatprep.subr.bf16.mxu0 0
  %202 = vmatpush2.bf16.msra.mxu0 %v159
  %203 = vmatprep.subr.bf16.mxu0 0
  %204 = vmatpush2.bf16.msra.mxu0 %v158
  %205 = vmatprep.subr.bf16.mxu0 0
  %206 = vmatpush2.bf16.msra.mxu0 %v157
  %207 = vmatprep.subr.bf16.mxu0 0
  %208 = vmatpush2.bf16.msra.mxu0 %v156
  %209 = vmatprep.subr.bf16.mxu0 0
  %210 = vmatpush2.bf16.msra.mxu0 %v155
  %211 = vmatprep.mubr.bf16.mxu0 %v76
  %212 = vmatmul.mubr.bf16.gmra.mxu0 %v75
  %v213 = vpop.f32.mrf.mxu0
  %v214 = vadd.f32 0.0, %v213
  %v215 = vpop.f32.mrf.mxu0
  %v216 = vpop.f32.mrf.mxu0
  %v217 = vadd.f32 0.0, %v216
  %v218 = vpop.f32.mrf.mxu0
  %219 = vmatprep.mubr.bf16.mxu0 %v78
  %220 = vmatmul.mubr.bf16.gmra.mxu0 %v77
  %v221 = vpop.f32.mrf.mxu0
  %v222 = vadd.f32 0.0, %v221
  %v223 = vpop.f32.mrf.mxu0
  %v224 = vpop.f32.mrf.mxu0
  %v225 = vadd.f32 0.0, %v224
  %v226 = vpop.f32.mrf.mxu0
  %227 = vdwg.mxu0
  %v228 = vadd.f32 %v23, %v214
  %v229 = vadd.f32 %v24, %v217
  %v230 = vadd.f32 %v25, %v222
  %v231 = vadd.f32 %v26, %v225
  %232 = vst [vmem:[#allocation2] sm:$0xff] %v228
  %233 = vst [vmem:[#allocation2 + $0x8] sm:$0xff] %v229
  %234 = vst [vmem:[#allocation2 + $0x10] sm:$0xff] %v230
  %235 = vst [vmem:[#allocation2 + $0x18] sm:$0xff] %v231
  // Predicated region
  $region18: #{_lambda_.69} parent=0 // pred_check
    %p236 = pneg %p15
  $region19: #{_lambda_.69} parent=0 // pred_check_branch
    %238 = sbr.rel (%p236) target = $region21
  $region20: #{_lambda_.69} parent=0 // pred_region
    %v239 = vld [vmem:[#allocation2] sm:$0xff]
    %v240 = vld [vmem:[#allocation2 + $0x8] sm:$0xff]
    %v241 = vld [vmem:[#allocation2 + $0x10] sm:$0xff]
    %v242 = vld [vmem:[#allocation2 + $0x18] sm:$0xff]
    %v243 = vld [vmem:[%s2] sm:$0x1]
    %v245 = vlaneseq
    %v246 = vshrl.u32 %v245, 7
    %v247 = vsub.s32 0, %v246
    %v248 = vrot.slane %v243, %v247
    %v250 = vadd.f32 %v239, %v248
    %v251 = vadd.f32 %v240, %v248
    %v252 = vadd.f32 %v241, %v248
    %v253 = vadd.f32 %v242, %v248
    %254 = vst [vmem:[%s3] sm:$0xff] %v250
    %255 = vst [vmem:[%s3 + $0x8] sm:$0xff] %v251
    %256 = vst [vmem:[%s3 + $0x10] sm:$0xff] %v252
    %257 = vst [vmem:[%s3 + $0x18] sm:$0xff] %v253
  $region21: #{_lambda_.69} parent=0 // pred_fallthru
    _
  // Predicated region
  $region22: #{_lambda_.69} parent=0 // pred_check
    _
  $region23: #{_lambda_.69} parent=0 // pred_check_branch
    %259 = sbr.rel (0) target = $region25
  $region24: #{_lambda_.69} parent=0 // pred_region
    _
  $region25: #{_lambda_.69} parent=0 // pred_fallthru
    _
  // Predicated region
  $region26: #{_lambda_.69} parent=0 // pred_check
    _
  $region27: #{_lambda_.69} parent=0 // pred_check_branch
    %261 = sbr.rel (0) target = $region29
  $region28: #{_lambda_.69} parent=0 // pred_region
    _
  $region29: #{_lambda_.69} parent=0 // pred_fallthru
    _

// kernel: _lambda_.70
$region0: #{_lambda_.70}
  #allocation0 [shape = 'u32[]', space=smem, size = 0x4, offset = 0x4, fixed_abs, tag = 'smem constant byte address 0x4 - core index']
  #allocation1 [shape = 'u32[144,128]{1,0:T(1,128)}', space=vmem, size = 0x12000, scoped, tag = 'internal scratch']
  %s0 = inlined_call_operand.vmem [shape: f32[32,32], index: 0, kind: input, shape index: {}]
  %s1 = inlined_call_operand.vmem [shape: f32[1,32], index: 1, kind: output, shape index: {0}]
  %s2 = inlined_call_operand.vmem [shape: f32[1,32], index: 2, kind: output, shape index: {1}]
  %3 = xla_tuple %s1, %s2
  %s4 = sld [smem:[#allocation0]]
  $region26: #{_lambda_.70} parent=0
    _
  %s6 = ssub.s32 1, %s4
  %s7 = scalar_select 0, %s6, %s4
  // Predicated region
  $region2: #{_lambda_.70} parent=0 // pred_check
    _
  $region3: #{_lambda_.70} parent=0 // pred_check_branch
    %9 = sbr.rel (0) target = $region5
  $region4: #{_lambda_.70} parent=0 // pred_region
    _
  $region5: #{_lambda_.70} parent=0 // pred_fallthru
    _
  %p10 = scmp.eq.s32.totalorder 0, 0
  // Predicated region
  $region6: #{_lambda_.70} parent=0 // pred_check
    %p11 = pneg %p10
  $region7: #{_lambda_.70} parent=0 // pred_check_branch
    %13 = sbr.rel (%p11) target = $region9
  $region8: #{_lambda_.70} parent=0 // pred_region
    %vm14 = vcmask 253952
    %15 = vst.msk [vmem:[%s1] sm:$0x1] %vm14, 0.0
    %16 = vst.msk [vmem:[%s2] sm:$0x1] %vm14, 0.0
  $region9: #{_lambda_.70} parent=0 // pred_fallthru
    _
  %v17 = vld [vmem:[%s0] sm:$0xff]
  %v18 = vld [vmem:[%s0 + $0x8] sm:$0xff]
  %v19 = vld [vmem:[%s0 + $0x10] sm:$0xff]
  %v20 = vld [vmem:[%s0 + $0x18] sm:$0xff]
  %v21 = vld [vmem:[%s1] sm:$0x1]
  %vm22 = vcmask 261120
  %v23 = vsel %vm22, %v17, 0.0
  %v24 = vsel %vm22, %v18, 0.0
  %v25 = vadd.f32 %v23, %v24
  %v26 = vsel %vm22, %v19, 0.0
  %v27 = vadd.f32 %v25, %v26
  %v28 = vsel %vm22, %v20, 0.0
  %v29 = vadd.f32 %v27, %v28
  %v30 = vrot.slane %v29, 4
  %v31 = vadd.f32 %v29, %v30
  %v32 = vrot.slane %v31, 2
  %v33 = vadd.f32 %v31, %v32
  %v34 = vrot.slane %v33, 1
  %v35 = vadd.f32 %v33, %v34
  %v36 = vadd.f32 %v21, %v35
  %vm37 = vcmask 253952
  %38 = vst.msk [vmem:[%s1] sm:$0x1] %vm37, %v36
  %v39 = vld [vmem:[%s2] sm:$0x1]
  %v40 = vmul.f32 %v17, %v17
  %v41 = vmul.f32 %v18, %v18
  %v42 = vmul.f32 %v19, %v19
  %v43 = vmul.f32 %v20, %v20
  %v44 = vsel %vm22, %v40, 0.0
  %v45 = vsel %vm22, %v41, 0.0
  %v46 = vadd.f32 %v44, %v45
  %v47 = vsel %vm22, %v42, 0.0
  %v48 = vadd.f32 %v46, %v47
  %v49 = vsel %vm22, %v43, 0.0
  %v50 = vadd.f32 %v48, %v49
  %v51 = vrot.slane %v50, 4
  %v52 = vadd.f32 %v50, %v51
  %v53 = vrot.slane %v52, 2
  %v54 = vadd.f32 %v52, %v53
  %v55 = vrot.slane %v54, 1
  %v56 = vadd.f32 %v54, %v55
  %v57 = vadd.f32 %v39, %v56
  %58 = vst.msk [vmem:[%s2] sm:$0x1] %vm37, %v57
  // Predicated region
  $region10: #{_lambda_.70} parent=0 // pred_check
    _
  $region11: #{_lambda_.70} parent=0 // pred_check_branch
    %60 = sbr.rel (0) target = $region13
  $region12: #{_lambda_.70} parent=0 // pred_region
    _
  $region13: #{_lambda_.70} parent=0 // pred_fallthru
    _
  // Predicated region
  $region14: #{_lambda_.70} parent=0 // pred_check
    _
  $region15: #{_lambda_.70} parent=0 // pred_check_branch
    %62 = sbr.rel (0) target = $region17
  $region16: #{_lambda_.70} parent=0 // pred_region
    _
  $region17: #{_lambda_.70} parent=0 // pred_fallthru
    _
  // Predicated region
  $region18: #{_lambda_.70} parent=0 // pred_check
    _
  $region19: #{_lambda_.70} parent=0 // pred_check_branch
    %64 = sbr.rel (0) target = $region21
  $region20: #{_lambda_.70} parent=0 // pred_region
    _
  $region21: #{_lambda_.70} parent=0 // pred_fallthru
    _
  // Predicated region
  $region22: #{_lambda_.70} parent=0 // pred_check
    _
  $region23: #{_lambda_.70} parent=0 // pred_check_branch
    %66 = sbr.rel (0) target = $region25
  $region24: #{_lambda_.70} parent=0 // pred_region
    _
  $region25: #{_lambda_.70} parent=0 // pred_fallthru
    _

// kernel: _lambda_.72
$region0: #{_lambda_.72}
  #allocation0 [shape = 'u32[]', space=smem, size = 0x4, offset = 0x4, fixed_abs, tag = 'smem constant byte address 0x4 - core index']
  #allocation1 [shape = 'u32[144,128]{1,0:T(1,128)}', space=vmem, size = 0x12000, scoped, tag = 'internal scratch']
  %s0 = inlined_call_operand.vmem [shape: f32[8,128], index: 0, kind: input, shape index: {}]
  %s1 = inlined_call_operand.vmem [shape: bf16[8,128], index: 1, kind: output, shape index: {}]
  %s2 = sld [smem:[#allocation0]]
  $region14: #{_lambda_.72} parent=0
    _
  %s4 = ssub.s32 1, %s2
  %s5 = scalar_select 0, %s4, %s2
  // Predicated region
  $region2: #{_lambda_.72} parent=0 // pred_check
    _
  $region3: #{_lambda_.72} parent=0 // pred_check_branch
    %7 = sbr.rel (0) target = $region5
  $region4: #{_lambda_.72} parent=0 // pred_region
    _
  $region5: #{_lambda_.72} parent=0 // pred_fallthru
    _
  %v8 = vld [vmem:[%s0] sm:$0xff]
  %vm9 = vcmp.ge.f32.partialorder %v8, 0.0
  %v10 = vmul.f32 %v8, 0.2
  %v11 = vsel %vm9, %v8, %v10
  %v12 = vpack.c.bf16 %v11, %v11
  %13 = vst [vmem:[%s1] sm:$0xf] %v12
  // Predicated region
  $region6: #{_lambda_.72} parent=0 // pred_check
    _
  $region7: #{_lambda_.72} parent=0 // pred_check_branch
    %15 = sbr.rel (0) target = $region9
  $region8: #{_lambda_.72} parent=0 // pred_region
    _
  $region9: #{_lambda_.72} parent=0 // pred_fallthru
    _
  // Predicated region
  $region10: #{_lambda_.72} parent=0 // pred_check
    _
  $region11: #{_lambda_.72} parent=0 // pred_check_branch
    %17 = sbr.rel (0) target = $region13
  $region12: #{_lambda_.72} parent=0 // pred_region
    _
  $region13: #{_lambda_.72} parent=0 // pred_fallthru
    _

// kernel: _lambda_.71
$region0: #{_lambda_.71}
  #allocation0 [shape = 'u32[]', space=smem, size = 0x4, offset = 0x4, fixed_abs, tag = 'smem constant byte address 0x4 - core index']
  #allocation1 [shape = 'u32[144,128]{1,0:T(1,128)}', space=vmem, size = 0x12000, scoped, tag = 'internal scratch']
  %s0 = inlined_call_operand.vmem [shape: f32[32,32], index: 0, kind: input, shape index: {}]
  %s1 = inlined_call_operand.vmem [shape: f32[1,32], index: 1, kind: input, shape index: {}]
  %s2 = inlined_call_operand.vmem [shape: f32[1,32], index: 2, kind: input, shape index: {}]
  %s3 = inlined_call_operand.vmem [shape: f32[32,32], index: 3, kind: output, shape index: {}]
  %s4 = sld [smem:[#allocation0]]
  $region22: #{_lambda_.71} parent=0
    _
  %s6 = ssub.s32 1, %s4
  %s7 = scalar_select 0, %s6, %s4
  // Predicated region
  $region2: #{_lambda_.71} parent=0 // pred_check
    _
  $region3: #{_lambda_.71} parent=0 // pred_check_branch
    %9 = sbr.rel (0) target = $region5
  $region4: #{_lambda_.71} parent=0 // pred_region
    _
  $region5: #{_lambda_.71} parent=0 // pred_fallthru
    _
  // Predicated region
  $region6: #{_lambda_.71} parent=0 // pred_check
    _
  $region7: #{_lambda_.71} parent=0 // pred_check_branch
    %11 = sbr.rel (0) target = $region9
  $region8: #{_lambda_.71} parent=0 // pred_region
    _
  $region9: #{_lambda_.71} parent=0 // pred_fallthru
    _
  // Predicated region
  $region10: #{_lambda_.71} parent=0 // pred_check
    _
  $region11: #{_lambda_.71} parent=0 // pred_check_branch
    %13 = sbr.rel (0) target = $region13
  $region12: #{_lambda_.71} parent=0 // pred_region
    _
  $region13: #{_lambda_.71} parent=0 // pred_fallthru
    _
  %v14 = vld [vmem:[%s0] sm:$0xff]
  %v15 = vld [vmem:[%s0 + $0x8] sm:$0xff]
  %v16 = vld [vmem:[%s0 + $0x10] sm:$0xff]
  %v17 = vld [vmem:[%s0 + $0x18] sm:$0xff]
  %v18 = vld [vmem:[%s1] sm:$0x1]
  %v20 = vlaneseq
  %v21 = vshrl.u32 %v20, 7
  %v22 = vsub.s32 0, %v21
  %v23 = vrot.slane %v18, %v22
  %v25 = vmul.f32 %v14, %v23
  %v26 = vmul.f32 %v15, %v23
  %v27 = vmul.f32 %v16, %v23
  %v28 = vmul.f32 %v17, %v23
  %v29 = vld [vmem:[%s2] sm:$0x1]
  %v31 = vlaneseq
  %v32 = vshrl.u32 %v31, 7
  %v33 = vsub.s32 0, %v32
  %v34 = vrot.slane %v29, %v33
  %v36 = vadd.f32 %v25, %v34
  %v37 = vadd.f32 %v26, %v34
  %v38 = vadd.f32 %v27, %v34
  %v39 = vadd.f32 %v28, %v34
  %vm40 = vcmask 261120
  %41 = vst.msk [vmem:[%s3] sm:$0xff] %vm40, %v36
  %42 = vst.msk [vmem:[%s3 + $0x8] sm:$0xff] %vm40, %v37
  %43 = vst.msk [vmem:[%s3 + $0x10] sm:$0xff] %vm40, %v38
  %44 = vst.msk [vmem:[%s3 + $0x18] sm:$0xff] %vm40, %v39
  // Predicated region
  $region14: #{_lambda_.71} parent=0 // pred_check
    _
  $region15: #{_lambda_.71} parent=0 // pred_check_branch
    %46 = sbr.rel (0) target = $region17
  $region16: #{_lambda_.71} parent=0 // pred_region
    _
  $region17: #{_lambda_.71} parent=0 // pred_fallthru
    _
  // Predicated region
  $region18: #{_lambda_.71} parent=0 // pred_check
    _
  $region19: #{_lambda_.71} parent=0 // pred_check_branch
    %48 = sbr.rel (0) target = $region21
  $region20: #{_lambda_.71} parent=0 // pred_region
    _
  $region21: #{_lambda_.71} parent=0 // pred_fallthru
    _

// kernel: _lambda_.74
$region0: #{_lambda_.74}
  #allocation0 [shape = 'u32[]', space=smem, size = 0x4, offset = 0x4, fixed_abs, tag = 'smem constant byte address 0x4 - core index']
  #allocation1 [shape = 'u32[144,128]{1,0:T(1,128)}', space=vmem, size = 0x12000, scoped, tag = 'internal scratch']
  %s0 = inlined_call_operand.vmem [shape: f32[8,32], index: 0, kind: input, shape index: {}]
  %s1 = inlined_call_operand.vmem [shape: f32[1,32], index: 1, kind: output, shape index: {0}]
  %s2 = inlined_call_operand.vmem [shape: f32[1,32], index: 2, kind: output, shape index: {1}]
  %3 = xla_tuple %s1, %s2
  %s4 = sld [smem:[#allocation0]]
  $region26: #{_lambda_.74} parent=0
    _
  %s6 = ssub.s32 1, %s4
  %s7 = scalar_select 0, %s6, %s4
  // Predicated region
  $region2: #{_lambda_.74} parent=0 // pred_check
    _
  $region3: #{_lambda_.74} parent=0 // pred_check_branch
    %9 = sbr.rel (0) target = $region5
  $region4: #{_lambda_.74} parent=0 // pred_region
    _
  $region5: #{_lambda_.74} parent=0 // pred_fallthru
    _
  %p10 = scmp.eq.s32.totalorder 0, 0
  // Predicated region
  $region6: #{_lambda_.74} parent=0 // pred_check
    %p11 = pneg %p10
  $region7: #{_lambda_.74} parent=0 // pred_check_branch
    %13 = sbr.rel (%p11) target = $region9
  $region8: #{_lambda_.74} parent=0 // pred_region
    %vm14 = vcmask 253952
    %15 = vst.msk [vmem:[%s1] sm:$0x1] %vm14, 0.0
    %16 = vst.msk [vmem:[%s2] sm:$0x1] %vm14, 0.0
  $region9: #{_lambda_.74} parent=0 // pred_fallthru
    _
  %v17 = vld [vmem:[%s0] sm:$0xff]
  %v18 = vld [vmem:[%s1] sm:$0x1]
  %vm19 = vcmask 261120
  %v20 = vsel %vm19, %v17, 0.0
  %v21 = vrot.slane %v20, 4
  %v22 = vadd.f32 %v20, %v21
  %v23 = vrot.slane %v22, 2
  %v24 = vadd.f32 %v22, %v23
  %v25 = vrot.slane %v24, 1
  %v26 = vadd.f32 %v24, %v25
  %v27 = vadd.f32 %v18, %v26
  %vm28 = vcmask 253952
  %29 = vst.msk [vmem:[%s1] sm:$0x1] %vm28, %v27
  %v30 = vld [vmem:[%s2] sm:$0x1]
  %v31 = vmul.f32 %v17, %v17
  %v32 = vsel %vm19, %v31, 0.0
  %v33 = vrot.slane %v32, 4
  %v34 = vadd.f32 %v32, %v33
  %v35 = vrot.slane %v34, 2
  %v36 = vadd.f32 %v34, %v35
  %v37 = vrot.slane %v36, 1
  %v38 = vadd.f32 %v36, %v37
  %v39 = vadd.f32 %v30, %v38
  %40 = vst.msk [vmem:[%s2] sm:$0x1] %vm28, %v39
  // Predicated region
  $region10: #{_lambda_.74} parent=0 // pred_check
    _
  $region11: #{_lambda_.74} parent=0 // pred_check_branch
    %42 = sbr.rel (0) target = $region13
  $region12: #{_lambda_.74} parent=0 // pred_region
    _
  $region13: #{_lambda_.74} parent=0 // pred_fallthru
    _
  // Predicated region
  $region14: #{_lambda_.74} parent=0 // pred_check
    _
  $region15: #{_lambda_.74} parent=0 // pred_check_branch
    %44 = sbr.rel (0) target = $region17
  $region16: #{_lambda_.74} parent=0 // pred_region
    _
  $region17: #{_lambda_.74} parent=0 // pred_fallthru
    _
  // Predicated region
  $region18: #{_lambda_.74} parent=0 // pred_check
    _
  $region19: #{_lambda_.74} parent=0 // pred_check_branch
    %46 = sbr.rel (0) target = $region21
  $region20: #{_lambda_.74} parent=0 // pred_region
    _
  $region21: #{_lambda_.74} parent=0 // pred_fallthru
    _
  // Predicated region
  $region22: #{_lambda_.74} parent=0 // pred_check
    _
  $region23: #{_lambda_.74} parent=0 // pred_check_branch
    %48 = sbr.rel (0) target = $region25
  $region24: #{_lambda_.74} parent=0 // pred_region
    _
  $region25: #{_lambda_.74} parent=0 // pred_fallthru
    _

// kernel: _lambda_.75
$region0: #{_lambda_.75}
  #allocation0 [shape = 'u32[]', space=smem, size = 0x4, offset = 0x4, fixed_abs, tag = 'smem constant byte address 0x4 - core index']
  #allocation1 [shape = 'u32[144,128]{1,0:T(1,128)}', space=vmem, size = 0x12000, scoped, tag = 'internal scratch']
  %s0 = inlined_call_operand.vmem [shape: f32[8,32], index: 0, kind: input, shape index: {}]
  %s1 = inlined_call_operand.vmem [shape: f32[1,32], index: 1, kind: input, shape index: {}]
  %s2 = inlined_call_operand.vmem [shape: f32[1,32], index: 2, kind: input, shape index: {}]
  %s3 = inlined_call_operand.vmem [shape: f32[8,32], index: 3, kind: output, shape index: {}]
  %s4 = sld [smem:[#allocation0]]
  $region22: #{_lambda_.75} parent=0
    _
  %s6 = ssub.s32 1, %s4
  %s7 = scalar_select 0, %s6, %s4
  // Predicated region
  $region2: #{_lambda_.75} parent=0 // pred_check
    _
  $region3: #{_lambda_.75} parent=0 // pred_check_branch
    %9 = sbr.rel (0) target = $region5
  $region4: #{_lambda_.75} parent=0 // pred_region
    _
  $region5: #{_lambda_.75} parent=0 // pred_fallthru
    _
  // Predicated region
  $region6: #{_lambda_.75} parent=0 // pred_check
    _
  $region7: #{_lambda_.75} parent=0 // pred_check_branch
    %11 = sbr.rel (0) target = $region9
  $region8: #{_lambda_.75} parent=0 // pred_region
    _
  $region9: #{_lambda_.75} parent=0 // pred_fallthru
    _
  // Predicated region
  $region10: #{_lambda_.75} parent=0 // pred_check
    _
  $region11: #{_lambda_.75} parent=0 // pred_check_branch
    %13 = sbr.rel (0) target = $region13
  $region12: #{_lambda_.75} parent=0 // pred_region
    _
  $region13: #{_lambda_.75} parent=0 // pred_fallthru
    _
  %v14 = vld [vmem:[%s0] sm:$0xff]
  %v15 = vld [vmem:[%s1] sm:$0x1]
  %v17 = vlaneseq
  %v18 = vshrl.u32 %v17, 7
  %v19 = vsub.s32 0, %v18
  %v20 = vrot.slane %v15, %v19
  %v22 = vmul.f32 %v14, %v20
  %v23 = vld [vmem:[%s2] sm:$0x1]
  %v25 = vlaneseq
  %v26 = vshrl.u32 %v25, 7
  %v27 = vsub.s32 0, %v26
  %v28 = vrot.slane %v23, %v27
  %v30 = vadd.f32 %v22, %v28
  %vm31 = vcmask 261120
  %32 = vst.msk [vmem:[%s3] sm:$0xff] %vm31, %v30
  // Predicated region
  $region14: #{_lambda_.75} parent=0 // pred_check
    _
  $region15: #{_lambda_.75} parent=0 // pred_check_branch
    %34 = sbr.rel (0) target = $region17
  $region16: #{_lambda_.75} parent=0 // pred_region
    _
  $region17: #{_lambda_.75} parent=0 // pred_fallthru
    _
  // Predicated region
  $region18: #{_lambda_.75} parent=0 // pred_check
    _
  $region19: #{_lambda_.75} parent=0 // pred_check_branch
    %36 = sbr.rel (0) target = $region21
  $region20: #{_lambda_.75} parent=0 // pred_region
    _
  $region21: #{_lambda_.75} parent=0 // pred_fallthru
    _

// kernel: _lambda_.73
$region0: #{_lambda_.73}
  #allocation0 [shape = 'u32[]', space=smem, size = 0x4, offset = 0x4, fixed_abs, tag = 'smem constant byte address 0x4 - core index']
  #allocation1 [shape = 'u32[144,128]{1,0:T(1,128)}', space=vmem, size = 0x12000, scoped, tag = 'internal scratch']
  #allocation2 [shape = 'f32[8,128]{1,0:T(8,128)}', space=vmem, size = 0x1000, scoped, tag = 'scratch operand']
  %s0 = inlined_call_operand.vmem [shape: bf16[8,512], index: 0, kind: input, shape index: {}]
  %s1 = inlined_call_operand.vmem [shape: bf16[512,128], index: 1, kind: input, shape index: {}]
  %s2 = inlined_call_operand.vmem [shape: f32[1,128], index: 2, kind: input, shape index: {}]
  %s3 = inlined_call_operand.vmem [shape: f32[8,128], index: 3, kind: output, shape index: {}]
  %s4 = sld [smem:[#allocation0]]
  $region30: #{_lambda_.73} parent=0
    _
  %s6 = ssub.s32 1, %s4
  %s7 = scalar_select 0, %s6, %s4
  // Predicated region
  $region2: #{_lambda_.73} parent=0 // pred_check
    _
  $region3: #{_lambda_.73} parent=0 // pred_check_branch
    %9 = sbr.rel (0) target = $region5
  $region4: #{_lambda_.73} parent=0 // pred_region
    _
  $region5: #{_lambda_.73} parent=0 // pred_fallthru
    _
  // Predicated region
  $region6: #{_lambda_.73} parent=0 // pred_check
    _
  $region7: #{_lambda_.73} parent=0 // pred_check_branch
    %11 = sbr.rel (0) target = $region9
  $region8: #{_lambda_.73} parent=0 // pred_region
    _
  $region9: #{_lambda_.73} parent=0 // pred_fallthru
    _
  // Predicated region
  $region10: #{_lambda_.73} parent=0 // pred_check
    _
  $region11: #{_lambda_.73} parent=0 // pred_check_branch
    %13 = sbr.rel (0) target = $region13
  $region12: #{_lambda_.73} parent=0 // pred_region
    _
  $region13: #{_lambda_.73} parent=0 // pred_fallthru
    _
  %p15 = scmp.eq.s32.totalorder 0, 0
  // Predicated region
  $region14: #{_lambda_.73} parent=0 // pred_check
    %p16 = pneg %p15
  $region15: #{_lambda_.73} parent=0 // pred_check_branch
    %18 = sbr.rel (%p16) target = $region17
  $region16: #{_lambda_.73} parent=0 // pred_region
    %19 = vst [vmem:[#allocation2] sm:$0xff] 0.0
  $region17: #{_lambda_.73} parent=0 // pred_fallthru
    _
  %v20 = vld [vmem:[#allocation2] sm:$0xff]
  %v21 = vld [vmem:[%s0] sm:$0xff]
  %v22 = vld [vmem:[%s0 + $0x8] sm:$0xff]
  %v23 = vld [vmem:[%s1] sm:$0xf]
  %v24 = vld [vmem:[%s1 + $0x4] sm:$0xf]
  %v25 = vld [vmem:[%s1 + $0x8] sm:$0xf]
  %v26 = vld [vmem:[%s1 + $0xc] sm:$0xf]
  %v27 = vld [vmem:[%s1 + $0x10] sm:$0xf]
  %v28 = vld [vmem:[%s1 + $0x14] sm:$0xf]
  %v29 = vld [vmem:[%s1 + $0x18] sm:$0xf]
  %v30 = vld [vmem:[%s1 + $0x1c] sm:$0xf]
  %v31 = vld [vmem:[%s1 + $0x20] sm:$0xf]
  %v32 = vld [vmem:[%s1 + $0x24] sm:$0xf]
  %v33 = vld [vmem:[%s1 + $0x28] sm:$0xf]
  %v34 = vld [vmem:[%s1 + $0x2c] sm:$0xf]
  %v35 = vld [vmem:[%s1 + $0x30] sm:$0xf]
  %v36 = vld [vmem:[%s1 + $0x34] sm:$0xf]
  %v37 = vld [vmem:[%s1 + $0x38] sm:$0xf]
  %v38 = vld [vmem:[%s1 + $0x3c] sm:$0xf]
  %v39 = vld [vmem:[%s1 + $0x40] sm:$0xf]
  %v40 = vld [vmem:[%s1 + $0x44] sm:$0xf]
  %v41 = vld [vmem:[%s1 + $0x48] sm:$0xf]
  %v42 = vld [vmem:[%s1 + $0x4c] sm:$0xf]
  %v43 = vld [vmem:[%s1 + $0x50] sm:$0xf]
  %v44 = vld [vmem:[%s1 + $0x54] sm:$0xf]
  %v45 = vld [vmem:[%s1 + $0x58] sm:$0xf]
  %v46 = vld [vmem:[%s1 + $0x5c] sm:$0xf]
  %v47 = vld [vmem:[%s1 + $0x60] sm:$0xf]
  %v48 = vld [vmem:[%s1 + $0x64] sm:$0xf]
  %v49 = vld [vmem:[%s1 + $0x68] sm:$0xf]
  %v50 = vld [vmem:[%s1 + $0x6c] sm:$0xf]
  %v51 = vld [vmem:[%s1 + $0x70] sm:$0xf]
  %v52 = vld [vmem:[%s1 + $0x74] sm:$0xf]
  %v53 = vld [vmem:[%s1 + $0x78] sm:$0xf]
  %v54 = vld [vmem:[%s1 + $0x7c] sm:$0xf]
  %v55 = vld [vmem:[%s1 + $0x80] sm:$0xf]
  %v56 = vld [vmem:[%s1 + $0x84] sm:$0xf]
  %v57 = vld [vmem:[%s1 + $0x88] sm:$0xf]
  %v58 = vld [vmem:[%s1 + $0x8c] sm:$0xf]
  %v59 = vld [vmem:[%s1 + $0x90] sm:$0xf]
  %v60 = vld [vmem:[%s1 + $0x94] sm:$0xf]
  %v61 = vld [vmem:[%s1 + $0x98] sm:$0xf]
  %v62 = vld [vmem:[%s1 + $0x9c] sm:$0xf]
  %v63 = vld [vmem:[%s1 + $0xa0] sm:$0xf]
  %v64 = vld [vmem:[%s1 + $0xa4] sm:$0xf]
  %v65 = vld [vmem:[%s1 + $0xa8] sm:$0xf]
  %v66 = vld [vmem:[%s1 + $0xac] sm:$0xf]
  %v67 = vld [vmem:[%s1 + $0xb0] sm:$0xf]
  %v68 = vld [vmem:[%s1 + $0xb4] sm:$0xf]
  %v69 = vld [vmem:[%s1 + $0xb8] sm:$0xf]
  %v70 = vld [vmem:[%s1 + $0xbc] sm:$0xf]
  %v71 = vld [vmem:[%s1 + $0xc0] sm:$0xf]
  %v72 = vld [vmem:[%s1 + $0xc4] sm:$0xf]
  %v73 = vld [vmem:[%s1 + $0xc8] sm:$0xf]
  %v74 = vld [vmem:[%s1 + $0xcc] sm:$0xf]
  %v75 = vld [vmem:[%s1 + $0xd0] sm:$0xf]
  %v76 = vld [vmem:[%s1 + $0xd4] sm:$0xf]
  %v77 = vld [vmem:[%s1 + $0xd8] sm:$0xf]
  %v78 = vld [vmem:[%s1 + $0xdc] sm:$0xf]
  %v79 = vld [vmem:[%s1 + $0xe0] sm:$0xf]
  %v80 = vld [vmem:[%s1 + $0xe4] sm:$0xf]
  %v81 = vld [vmem:[%s1 + $0xe8] sm:$0xf]
  %v82 = vld [vmem:[%s1 + $0xec] sm:$0xf]
  %v83 = vld [vmem:[%s1 + $0xf0] sm:$0xf]
  %v84 = vld [vmem:[%s1 + $0xf4] sm:$0xf]
  %v85 = vld [vmem:[%s1 + $0xf8] sm:$0xf]
  %v86 = vld [vmem:[%s1 + $0xfc] sm:$0xf]
  %v89 = vunpack.c.l.b16 %v21
  %v90 = vunpack.c.h.b16 %v21
  %v91 = vunpack.c.l.b16 %v22
  %v92 = vunpack.c.h.b16 %v22
  %v93 = vpack.c.b16 %v89, %v89
  %v94 = vpack.c.b16 %v90, %v90
  %v95 = vpack.c.b16 %v91, %v91
  %v96 = vpack.c.b16 %v92, %v92
  %v165 = vunpack.c.l.b16 %v23
  %v166 = vunpack.c.l.b16 %v24
  %v167 = vunpack.c.l.b16 %v25
  %v168 = vunpack.c.l.b16 %v26
  %v169 = vunpack.c.l.b16 %v27
  %v170 = vunpack.c.l.b16 %v28
  %v171 = vunpack.c.l.b16 %v29
  %v172 = vunpack.c.l.b16 %v30
  %v173 = vunpack.c.l.b16 %v31
  %v174 = vunpack.c.l.b16 %v32
  %v175 = vunpack.c.l.b16 %v33
  %v176 = vunpack.c.l.b16 %v34
  %v177 = vunpack.c.l.b16 %v35
  %v178 = vunpack.c.l.b16 %v36
  %v179 = vunpack.c.l.b16 %v37
  %v180 = vunpack.c.l.b16 %v38
  %v181 = vunpack.c.l.b16 %v39
  %v182 = vunpack.c.l.b16 %v40
  %v183 = vunpack.c.l.b16 %v41
  %v184 = vunpack.c.l.b16 %v42
  %v185 = vunpack.c.l.b16 %v43
  %v186 = vunpack.c.l.b16 %v44
  %v187 = vunpack.c.l.b16 %v45
  %v188 = vunpack.c.l.b16 %v46
  %v189 = vunpack.c.l.b16 %v47
  %v190 = vunpack.c.l.b16 %v48
  %v191 = vunpack.c.l.b16 %v49
  %v192 = vunpack.c.l.b16 %v50
  %v193 = vunpack.c.l.b16 %v51
  %v194 = vunpack.c.l.b16 %v52
  %v195 = vunpack.c.l.b16 %v53
  %v196 = vunpack.c.l.b16 %v54
  %v197 = vunpack.c.l.b16 %v55
  %v198 = vunpack.c.l.b16 %v56
  %v199 = vunpack.c.l.b16 %v57
  %v200 = vunpack.c.l.b16 %v58
  %v201 = vunpack.c.l.b16 %v59
  %v202 = vunpack.c.l.b16 %v60
  %v203 = vunpack.c.l.b16 %v61
  %v204 = vunpack.c.l.b16 %v62
  %v205 = vunpack.c.l.b16 %v63
  %v206 = vunpack.c.l.b16 %v64
  %v207 = vunpack.c.l.b16 %v65
  %v208 = vunpack.c.l.b16 %v66
  %v209 = vunpack.c.l.b16 %v67
  %v210 = vunpack.c.l.b16 %v68
  %v211 = vunpack.c.l.b16 %v69
  %v212 = vunpack.c.l.b16 %v70
  %v213 = vunpack.c.l.b16 %v71
  %v214 = vunpack.c.l.b16 %v72
  %v215 = vunpack.c.l.b16 %v73
  %v216 = vunpack.c.l.b16 %v74
  %v217 = vunpack.c.l.b16 %v75
  %v218 = vunpack.c.l.b16 %v76
  %v219 = vunpack.c.l.b16 %v77
  %v220 = vunpack.c.l.b16 %v78
  %v221 = vunpack.c.l.b16 %v79
  %v222 = vunpack.c.l.b16 %v80
  %v223 = vunpack.c.l.b16 %v81
  %v224 = vunpack.c.l.b16 %v82
  %v225 = vunpack.c.l.b16 %v83
  %v226 = vunpack.c.l.b16 %v84
  %v227 = vunpack.c.l.b16 %v85
  %v228 = vunpack.c.l.b16 %v86
  %v229 = vpack.c.b16 %v166, %v165
  %v230 = vpack.c.b16 %v168, %v167
  %v231 = vpack.c.b16 %v170, %v169
  %v232 = vpack.c.b16 %v172, %v171
  %v233 = vpack.c.b16 %v174, %v173
  %v234 = vpack.c.b16 %v176, %v175
  %v235 = vpack.c.b16 %v178, %v177
  %v236 = vpack.c.b16 %v180, %v179
  %v237 = vpack.c.b16 %v182, %v181
  %v238 = vpack.c.b16 %v184, %v183
  %v239 = vpack.c.b16 %v186, %v185
  %v240 = vpack.c.b16 %v188, %v187
  %v241 = vpack.c.b16 %v190, %v189
  %v242 = vpack.c.b16 %v192, %v191
  %v243 = vpack.c.b16 %v194, %v193
  %v244 = vpack.c.b16 %v196, %v195
  %v245 = vpack.c.b16 %v198, %v197
  %v246 = vpack.c.b16 %v200, %v199
  %v247 = vpack.c.b16 %v202, %v201
  %v248 = vpack.c.b16 %v204, %v203
  %v249 = vpack.c.b16 %v206, %v205
  %v250 = vpack.c.b16 %v208, %v207
  %v251 = vpack.c.b16 %v210, %v209
  %v252 = vpack.c.b16 %v212, %v211
  %v253 = vpack.c.b16 %v214, %v213
  %v254 = vpack.c.b16 %v216, %v215
  %v255 = vpack.c.b16 %v218, %v217
  %v256 = vpack.c.b16 %v220, %v219
  %v257 = vpack.c.b16 %v222, %v221
  %v258 = vpack.c.b16 %v224, %v223
  %v259 = vpack.c.b16 %v226, %v225
  %v260 = vpack.c.b16 %v228, %v227
  %293 = vmatprep.subr.bf16.mxu0 0
  %294 = vmatpush1.bf16.msra.mxu0 %v236
  %295 = vmatprep.subr.bf16.mxu0 0
  %296 = vmatpush1.bf16.msra.mxu0 %v235
  %297 = vmatprep.subr.bf16.mxu0 0
  %298 = vmatpush1.bf16.msra.mxu0 %v234
  %299 = vmatprep.subr.bf16.mxu0 0
  %300 = vmatpush1.bf16.msra.mxu0 %v233
  %301 = vmatprep.subr.bf16.mxu0 0
  %302 = vmatpush1.bf16.msra.mxu0 %v232
  %303 = vmatprep.subr.bf16.mxu0 0
  %304 = vmatpush1.bf16.msra.mxu0 %v231
  %305 = vmatprep.subr.bf16.mxu0 0
  %306 = vmatpush1.bf16.msra.mxu0 %v230
  %307 = vmatprep.subr.bf16.mxu0 0
  %308 = vmatpush1.bf16.msra.mxu0 %v229
  %309 = vmatprep.subr.bf16.mxu0 0
  %310 = vmatpush2.bf16.msra.mxu0 %v244
  %311 = vmatprep.subr.bf16.mxu0 0
  %312 = vmatpush2.bf16.msra.mxu0 %v243
  %313 = vmatprep.subr.bf16.mxu0 0
  %314 = vmatpush2.bf16.msra.mxu0 %v242
  %315 = vmatprep.subr.bf16.mxu0 0
  %316 = vmatpush2.bf16.msra.mxu0 %v241
  %317 = vmatprep.subr.bf16.mxu0 0
  %318 = vmatpush2.bf16.msra.mxu0 %v240
  %319 = vmatprep.subr.bf16.mxu0 0
  %320 = vmatpush2.bf16.msra.mxu0 %v239
  %321 = vmatprep.subr.bf16.mxu0 0
  %322 = vmatpush2.bf16.msra.mxu0 %v238
  %323 = vmatprep.subr.bf16.mxu0 0
  %324 = vmatpush2.bf16.msra.mxu0 %v237
  %325 = vmatprep.mubr.bf16.mxu0 %v94
  %326 = vmatmul.mubr.bf16.gmra.mxu0 %v93
  %v327 = vpop.f32.mrf.mxu0
  %v328 = vadd.f32 0.0, %v327
  %v329 = vpop.f32.mrf.mxu0
  %v330 = vpop.f32.mrf.mxu0
  %v331 = vpop.f32.mrf.mxu0
  %332 = vdwg.mxu0
  %333 = vmatprep.subr.bf16.mxu0 0
  %334 = vmatpush1.bf16.msra.mxu0 %v252
  %335 = vmatprep.subr.bf16.mxu0 0
  %336 = vmatpush1.bf16.msra.mxu0 %v251
  %337 = vmatprep.subr.bf16.mxu0 0
  %338 = vmatpush1.bf16.msra.mxu0 %v250
  %339 = vmatprep.subr.bf16.mxu0 0
  %340 = vmatpush1.bf16.msra.mxu0 %v249
  %341 = vmatprep.subr.bf16.mxu0 0
  %342 = vmatpush1.bf16.msra.mxu0 %v248
  %343 = vmatprep.subr.bf16.mxu0 0
  %344 = vmatpush1.bf16.msra.mxu0 %v247
  %345 = vmatprep.subr.bf16.mxu0 0
  %346 = vmatpush1.bf16.msra.mxu0 %v246
  %347 = vmatprep.subr.bf16.mxu0 0
  %348 = vmatpush1.bf16.msra.mxu0 %v245
  %349 = vmatprep.subr.bf16.mxu0 0
  %350 = vmatpush2.bf16.msra.mxu0 %v260
  %351 = vmatprep.subr.bf16.mxu0 0
  %352 = vmatpush2.bf16.msra.mxu0 %v259
  %353 = vmatprep.subr.bf16.mxu0 0
  %354 = vmatpush2.bf16.msra.mxu0 %v258
  %355 = vmatprep.subr.bf16.mxu0 0
  %356 = vmatpush2.bf16.msra.mxu0 %v257
  %357 = vmatprep.subr.bf16.mxu0 0
  %358 = vmatpush2.bf16.msra.mxu0 %v256
  %359 = vmatprep.subr.bf16.mxu0 0
  %360 = vmatpush2.bf16.msra.mxu0 %v255
  %361 = vmatprep.subr.bf16.mxu0 0
  %362 = vmatpush2.bf16.msra.mxu0 %v254
  %363 = vmatprep.subr.bf16.mxu0 0
  %364 = vmatpush2.bf16.msra.mxu0 %v253
  %365 = vmatprep.mubr.bf16.mxu0 %v96
  %366 = vmatmul.mubr.bf16.gmra.mxu0 %v95
  %v367 = vpop.f32.mrf.mxu0
  %v368 = vadd.f32 %v328, %v367
  %v369 = vpop.f32.mrf.mxu0
  %v370 = vpop.f32.mrf.mxu0
  %v371 = vpop.f32.mrf.mxu0
  %372 = vdwg.mxu0
  %v373 = vadd.f32 %v20, %v368
  %374 = vst [vmem:[#allocation2] sm:$0xff] %v373
  // Predicated region
  $region18: #{_lambda_.73} parent=0 // pred_check
    %p375 = pneg %p15
  $region19: #{_lambda_.73} parent=0 // pred_check_branch
    %377 = sbr.rel (%p375) target = $region21
  $region20: #{_lambda_.73} parent=0 // pred_region
    %v378 = vld [vmem:[#allocation2] sm:$0xff]
    %v379 = vld [vmem:[%s2] sm:$0x1]
    %v381 = vlaneseq
    %v382 = vshrl.u32 %v381, 7
    %v383 = vsub.s32 0, %v382
    %v384 = vrot.slane %v379, %v383
    %v386 = vadd.f32 %v378, %v384
    %387 = vst [vmem:[%s3] sm:$0xff] %v386
  $region21: #{_lambda_.73} parent=0 // pred_fallthru
    _
  // Predicated region
  $region22: #{_lambda_.73} parent=0 // pred_check
    _
  $region23: #{_lambda_.73} parent=0 // pred_check_branch
    %389 = sbr.rel (0) target = $region25
  $region24: #{_lambda_.73} parent=0 // pred_region
    _
  $region25: #{_lambda_.73} parent=0 // pred_fallthru
    _
  // Predicated region
  $region26: #{_lambda_.73} parent=0 // pred_check
    _
  $region27: #{_lambda_.73} parent=0 // pred_check_branch
    %391 = sbr.rel (0) target = $region29
  $region28: #{_lambda_.73} parent=0 // pred_region
    _
  $region29: #{_lambda_.73} parent=0 // pred_fallthru
    _

// kernel: _lambda_.78
$region0: #{_lambda_.78}
  #allocation0 [shape = 'u32[]', space=smem, size = 0x4, offset = 0x4, fixed_abs, tag = 'smem constant byte address 0x4 - core index']
  #allocation1 [shape = 'u32[144,128]{1,0:T(1,128)}', space=vmem, size = 0x12000, scoped, tag = 'internal scratch']
  %s0 = inlined_call_operand.vmem [shape: f32[8,32], index: 0, kind: input, shape index: {}]
  %s1 = inlined_call_operand.vmem [shape: bf16[8,32], index: 1, kind: output, shape index: {}]
  %s2 = sld [smem:[#allocation0]]
  $region14: #{_lambda_.78} parent=0
    _
  %s4 = ssub.s32 1, %s2
  %s5 = scalar_select 0, %s4, %s2
  // Predicated region
  $region2: #{_lambda_.78} parent=0 // pred_check
    _
  $region3: #{_lambda_.78} parent=0 // pred_check_branch
    %7 = sbr.rel (0) target = $region5
  $region4: #{_lambda_.78} parent=0 // pred_region
    _
  $region5: #{_lambda_.78} parent=0 // pred_fallthru
    _
  %v8 = vld [vmem:[%s0] sm:$0xff]
  %v9 = vmax.f32 %v8, 0.0
  %v10 = vpack.c.bf16 %v9, %v9
  %vm11 = vcmask 257024
  %12 = vst.msk [vmem:[%s1] sm:$0xf] %vm11, %v10
  // Predicated region
  $region6: #{_lambda_.78} parent=0 // pred_check
    _
  $region7: #{_lambda_.78} parent=0 // pred_check_branch
    %14 = sbr.rel (0) target = $region9
  $region8: #{_lambda_.78} parent=0 // pred_region
    _
  $region9: #{_lambda_.78} parent=0 // pred_fallthru
    _
  // Predicated region
  $region10: #{_lambda_.78} parent=0 // pred_check
    _
  $region11: #{_lambda_.78} parent=0 // pred_check_branch
    %16 = sbr.rel (0) target = $region13
  $region12: #{_lambda_.78} parent=0 // pred_region
    _
  $region13: #{_lambda_.78} parent=0 // pred_fallthru
    _

// kernel: _lambda_.81
$region0: #{_lambda_.81}
  #allocation0 [shape = 'u32[]', space=smem, size = 0x4, offset = 0x4, fixed_abs, tag = 'smem constant byte address 0x4 - core index']
  #allocation1 [shape = 'u32[144,128]{1,0:T(1,128)}', space=vmem, size = 0x12000, scoped, tag = 'internal scratch']
  #allocation2 [shape = 'f32[8,128]{1,0:T(8,128)}', space=vmem, size = 0x1000, scoped, tag = 'scratch operand']
  %s0 = inlined_call_operand.vmem [shape: bf16[8,128], index: 0, kind: input, shape index: {}]
  %s1 = inlined_call_operand.vmem [shape: bf16[128,128], index: 1, kind: input, shape index: {}]
  %s2 = inlined_call_operand.vmem [shape: f32[1,128], index: 2, kind: input, shape index: {}]
  %s3 = inlined_call_operand.vmem [shape: f32[8,128], index: 3, kind: output, shape index: {}]
  %s4 = sld [smem:[#allocation0]]
  $region30: #{_lambda_.81} parent=0
    _
  %s6 = ssub.s32 1, %s4
  %s7 = scalar_select 0, %s6, %s4
  // Predicated region
  $region2: #{_lambda_.81} parent=0 // pred_check
    _
  $region3: #{_lambda_.81} parent=0 // pred_check_branch
    %9 = sbr.rel (0) target = $region5
  $region4: #{_lambda_.81} parent=0 // pred_region
    _
  $region5: #{_lambda_.81} parent=0 // pred_fallthru
    _
  // Predicated region
  $region6: #{_lambda_.81} parent=0 // pred_check
    _
  $region7: #{_lambda_.81} parent=0 // pred_check_branch
    %11 = sbr.rel (0) target = $region9
  $region8: #{_lambda_.81} parent=0 // pred_region
    _
  $region9: #{_lambda_.81} parent=0 // pred_fallthru
    _
  // Predicated region
  $region10: #{_lambda_.81} parent=0 // pred_check
    _
  $region11: #{_lambda_.81} parent=0 // pred_check_branch
    %13 = sbr.rel (0) target = $region13
  $region12: #{_lambda_.81} parent=0 // pred_region
    _
  $region13: #{_lambda_.81} parent=0 // pred_fallthru
    _
  %p15 = scmp.eq.s32.totalorder 0, 0
  // Predicated region
  $region14: #{_lambda_.81} parent=0 // pred_check
    %p16 = pneg %p15
  $region15: #{_lambda_.81} parent=0 // pred_check_branch
    %18 = sbr.rel (%p16) target = $region17
  $region16: #{_lambda_.81} parent=0 // pred_region
    %19 = vst [vmem:[#allocation2] sm:$0xff] 0.0
  $region17: #{_lambda_.81} parent=0 // pred_fallthru
    _
  %v20 = vld [vmem:[#allocation2] sm:$0xff]
  %v21 = vld [vmem:[%s0] sm:$0xf]
  %v22 = vld [vmem:[%s1] sm:$0xf]
  %v23 = vld [vmem:[%s1 + $0x4] sm:$0xf]
  %v24 = vld [vmem:[%s1 + $0x8] sm:$0xf]
  %v25 = vld [vmem:[%s1 + $0xc] sm:$0xf]
  %v26 = vld [vmem:[%s1 + $0x10] sm:$0xf]
  %v27 = vld [vmem:[%s1 + $0x14] sm:$0xf]
  %v28 = vld [vmem:[%s1 + $0x18] sm:$0xf]
  %v29 = vld [vmem:[%s1 + $0x1c] sm:$0xf]
  %v30 = vld [vmem:[%s1 + $0x20] sm:$0xf]
  %v31 = vld [vmem:[%s1 + $0x24] sm:$0xf]
  %v32 = vld [vmem:[%s1 + $0x28] sm:$0xf]
  %v33 = vld [vmem:[%s1 + $0x2c] sm:$0xf]
  %v34 = vld [vmem:[%s1 + $0x30] sm:$0xf]
  %v35 = vld [vmem:[%s1 + $0x34] sm:$0xf]
  %v36 = vld [vmem:[%s1 + $0x38] sm:$0xf]
  %v37 = vld [vmem:[%s1 + $0x3c] sm:$0xf]
  %v54 = vunpack.c.l.b16 %v22
  %v55 = vunpack.c.l.b16 %v23
  %v56 = vunpack.c.l.b16 %v24
  %v57 = vunpack.c.l.b16 %v25
  %v58 = vunpack.c.l.b16 %v26
  %v59 = vunpack.c.l.b16 %v27
  %v60 = vunpack.c.l.b16 %v28
  %v61 = vunpack.c.l.b16 %v29
  %v62 = vunpack.c.l.b16 %v30
  %v63 = vunpack.c.l.b16 %v31
  %v64 = vunpack.c.l.b16 %v32
  %v65 = vunpack.c.l.b16 %v33
  %v66 = vunpack.c.l.b16 %v34
  %v67 = vunpack.c.l.b16 %v35
  %v68 = vunpack.c.l.b16 %v36
  %v69 = vunpack.c.l.b16 %v37
  %v70 = vpack.c.b16 %v55, %v54
  %v71 = vpack.c.b16 %v57, %v56
  %v72 = vpack.c.b16 %v59, %v58
  %v73 = vpack.c.b16 %v61, %v60
  %v74 = vpack.c.b16 %v63, %v62
  %v75 = vpack.c.b16 %v65, %v64
  %v76 = vpack.c.b16 %v67, %v66
  %v77 = vpack.c.b16 %v69, %v68
  %86 = vmatprep.subr.bf16.mxu0 0
  %87 = vmatpush1.bf16.msra.mxu0 %v77
  %88 = vmatprep.subr.bf16.mxu0 0
  %89 = vmatpush1.bf16.msra.mxu0 %v76
  %90 = vmatprep.subr.bf16.mxu0 0
  %91 = vmatpush1.bf16.msra.mxu0 %v75
  %92 = vmatprep.subr.bf16.mxu0 0
  %93 = vmatpush1.bf16.msra.mxu0 %v74
  %94 = vmatprep.subr.bf16.mxu0 0
  %95 = vmatpush1.bf16.msra.mxu0 %v73
  %96 = vmatprep.subr.bf16.mxu0 0
  %97 = vmatpush1.bf16.msra.mxu0 %v72
  %98 = vmatprep.subr.bf16.mxu0 0
  %99 = vmatpush1.bf16.msra.mxu0 %v71
  %100 = vmatprep.subr.bf16.mxu0 0
  %101 = vmatpush1.bf16.msra.mxu0 %v70
  %102 = vmatprep.subr.bf16.mxu0 0
  %103 = vmatpush2.bf16.msra.mxu0 0
  %104 = vmatprep.subr.bf16.mxu0 0
  %105 = vmatpush2.bf16.msra.mxu0 0
  %106 = vmatprep.subr.bf16.mxu0 0
  %107 = vmatpush2.bf16.msra.mxu0 0
  %108 = vmatprep.subr.bf16.mxu0 0
  %109 = vmatpush2.bf16.msra.mxu0 0
  %110 = vmatprep.subr.bf16.mxu0 0
  %111 = vmatpush2.bf16.msra.mxu0 0
  %112 = vmatprep.subr.bf16.mxu0 0
  %113 = vmatpush2.bf16.msra.mxu0 0
  %114 = vmatprep.subr.bf16.mxu0 0
  %115 = vmatpush2.bf16.msra.mxu0 0
  %116 = vmatprep.subr.bf16.mxu0 0
  %117 = vmatpush2.bf16.msra.mxu0 0
  %118 = vmatprep.mubr.bf16.mxu0 0
  %119 = vmatmul.mubr.bf16.gmra.mxu0 %v21
  %v120 = vpop.f32.mrf.mxu0
  %v121 = vadd.f32 0.0, %v120
  %v122 = vpop.f32.mrf.mxu0
  %v123 = vpop.f32.mrf.mxu0
  %v124 = vpop.f32.mrf.mxu0
  %125 = vdwg.mxu0
  %v126 = vadd.f32 %v20, %v121
  %127 = vst [vmem:[#allocation2] sm:$0xff] %v126
  // Predicated region
  $region18: #{_lambda_.81} parent=0 // pred_check
    %p128 = pneg %p15
  $region19: #{_lambda_.81} parent=0 // pred_check_branch
    %130 = sbr.rel (%p128) target = $region21
  $region20: #{_lambda_.81} parent=0 // pred_region
    %v131 = vld [vmem:[#allocation2] sm:$0xff]
    %v132 = vld [vmem:[%s2] sm:$0x1]
    %v134 = vlaneseq
    %v135 = vshrl.u32 %v134, 7
    %v136 = vsub.s32 0, %v135
    %v137 = vrot.slane %v132, %v136
    %v139 = vadd.f32 %v131, %v137
    %140 = vst [vmem:[%s3] sm:$0xff] %v139
  $region21: #{_lambda_.81} parent=0 // pred_fallthru
    _
  // Predicated region
  $region22: #{_lambda_.81} parent=0 // pred_check
    _
  $region23: #{_lambda_.81} parent=0 // pred_check_branch
    %142 = sbr.rel (0) target = $region25
  $region24: #{_lambda_.81} parent=0 // pred_region
    _
  $region25: #{_lambda_.81} parent=0 // pred_fallthru
    _
  // Predicated region
  $region26: #{_lambda_.81} parent=0 // pred_check
    _
  $region27: #{_lambda_.81} parent=0 // pred_check_branch
    %144 = sbr.rel (0) target = $region29
  $region28: #{_lambda_.81} parent=0 // pred_region
    _
  $region29: #{_lambda_.81} parent=0 // pred_fallthru
    _

// kernel: _lambda_.85
$region0: #{_lambda_.85}
  #allocation0 [shape = 'u32[]', space=smem, size = 0x4, offset = 0x4, fixed_abs, tag = 'smem constant byte address 0x4 - core index']
  #allocation1 [shape = 'u32[144,128]{1,0:T(1,128)}', space=vmem, size = 0x12000, scoped, tag = 'internal scratch']
  %s0 = inlined_call_operand.vmem [shape: f32[8,128], index: 0, kind: input, shape index: {}]
  %s1 = inlined_call_operand.vmem [shape: bf16[8,128], index: 1, kind: output, shape index: {}]
  %s2 = sld [smem:[#allocation0]]
  $region14: #{_lambda_.85} parent=0
    _
  %s4 = ssub.s32 1, %s2
  %s5 = scalar_select 0, %s4, %s2
  // Predicated region
  $region2: #{_lambda_.85} parent=0 // pred_check
    _
  $region3: #{_lambda_.85} parent=0 // pred_check_branch
    %7 = sbr.rel (0) target = $region5
  $region4: #{_lambda_.85} parent=0 // pred_region
    _
  $region5: #{_lambda_.85} parent=0 // pred_fallthru
    _
  %v8 = vld [vmem:[%s0] sm:$0xff]
  %v9 = vmax.f32 %v8, 0.0
  %v10 = vpack.c.bf16 %v9, %v9
  %11 = vst [vmem:[%s1] sm:$0xf] %v10
  // Predicated region
  $region6: #{_lambda_.85} parent=0 // pred_check
    _
  $region7: #{_lambda_.85} parent=0 // pred_check_branch
    %13 = sbr.rel (0) target = $region9
  $region8: #{_lambda_.85} parent=0 // pred_region
    _
  $region9: #{_lambda_.85} parent=0 // pred_fallthru
    _
  // Predicated region
  $region10: #{_lambda_.85} parent=0 // pred_check
    _
  $region11: #{_lambda_.85} parent=0 // pred_check_branch
    %15 = sbr.rel (0) target = $region13
  $region12: #{_lambda_.85} parent=0 // pred_region
    _
  $region13: #{_lambda_.85} parent=0 // pred_fallthru
    _

// kernel: _lambda_.84
$region0: #{_lambda_.84}
  #allocation0 [shape = 'u32[]', space=smem, size = 0x4, offset = 0x4, fixed_abs, tag = 'smem constant byte address 0x4 - core index']
  #allocation1 [shape = 'u32[144,128]{1,0:T(1,128)}', space=vmem, size = 0x12000, scoped, tag = 'internal scratch']
  %s0 = inlined_call_operand.vmem [shape: f32[8,32], index: 0, kind: input, shape index: {}]
  %s1 = inlined_call_operand.vmem [shape: f32[8,32], index: 1, kind: input, shape index: {}]
  %s2 = inlined_call_operand.vmem [shape: f32[1,32], index: 2, kind: input, shape index: {}]
  %s3 = inlined_call_operand.vmem [shape: f32[1,32], index: 3, kind: input, shape index: {}]
  %s4 = inlined_call_operand.vmem [shape: f32[8,64], index: 4, kind: output, shape index: {}]
  %s5 = sld [smem:[#allocation0]]
  $region26: #{_lambda_.84} parent=0
    _
  %s7 = ssub.s32 1, %s5
  %s8 = scalar_select 0, %s7, %s5
  // Predicated region
  $region2: #{_lambda_.84} parent=0 // pred_check
    _
  $region3: #{_lambda_.84} parent=0 // pred_check_branch
    %10 = sbr.rel (0) target = $region5
  $region4: #{_lambda_.84} parent=0 // pred_region
    _
  $region5: #{_lambda_.84} parent=0 // pred_fallthru
    _
  // Predicated region
  $region6: #{_lambda_.84} parent=0 // pred_check
    _
  $region7: #{_lambda_.84} parent=0 // pred_check_branch
    %12 = sbr.rel (0) target = $region9
  $region8: #{_lambda_.84} parent=0 // pred_region
    _
  $region9: #{_lambda_.84} parent=0 // pred_fallthru
    _
  // Predicated region
  $region10: #{_lambda_.84} parent=0 // pred_check
    _
  $region11: #{_lambda_.84} parent=0 // pred_check_branch
    %14 = sbr.rel (0) target = $region13
  $region12: #{_lambda_.84} parent=0 // pred_region
    _
  $region13: #{_lambda_.84} parent=0 // pred_fallthru
    _
  // Predicated region
  $region14: #{_lambda_.84} parent=0 // pred_check
    _
  $region15: #{_lambda_.84} parent=0 // pred_check_branch
    %16 = sbr.rel (0) target = $region17
  $region16: #{_lambda_.84} parent=0 // pred_region
    _
  $region17: #{_lambda_.84} parent=0 // pred_fallthru
    _
  %v17 = vld [vmem:[%s1] sm:$0xff]
  %v18 = vld [vmem:[%s2] sm:$0x1]
  %v20 = vlaneseq
  %v21 = vshrl.u32 %v20, 7
  %v22 = vsub.s32 0, %v21
  %v23 = vrot.slane %v18, %v22
  %v25 = vmul.f32 %v17, %v23
  %v26 = vld [vmem:[%s3] sm:$0x1]
  %v28 = vlaneseq
  %v29 = vshrl.u32 %v28, 7
  %v30 = vsub.s32 0, %v29
  %v31 = vrot.slane %v26, %v30
  %v33 = vadd.f32 %v25, %v31
  %v34 = vld [vmem:[%s0] sm:$0xff]
  %36 = vrot.lane.b32.xlu0 %v33, 32
  %v37 = vpop.permute.xlu0 %36
  %vm39 = vcmask 261120
  %v40 = vsel %vm39, %v34, %v37
  %vm41 = vcmask 523264
  %42 = vst.msk [vmem:[%s4] sm:$0xff] %vm41, %v40
  // Predicated region
  $region18: #{_lambda_.84} parent=0 // pred_check
    _
  $region19: #{_lambda_.84} parent=0 // pred_check_branch
    %44 = sbr.rel (0) target = $region21
  $region20: #{_lambda_.84} parent=0 // pred_region
    _
  $region21: #{_lambda_.84} parent=0 // pred_fallthru
    _
  // Predicated region
  $region22: #{_lambda_.84} parent=0 // pred_check
    _
  $region23: #{_lambda_.84} parent=0 // pred_check_branch
    %46 = sbr.rel (0) target = $region25
  $region24: #{_lambda_.84} parent=0 // pred_region
    _
  $region25: #{_lambda_.84} parent=0 // pred_fallthru
    _

// kernel: _lambda_.91
$region0: #{_lambda_.91}
  #allocation0 [shape = 'u32[]', space=smem, size = 0x4, offset = 0x4, fixed_abs, tag = 'smem constant byte address 0x4 - core index']
  #allocation1 [shape = 'u32[144,128]{1,0:T(1,128)}', space=vmem, size = 0x12000, scoped, tag = 'internal scratch']
  %s0 = inlined_call_operand.vmem [shape: f32[32,32], index: 0, kind: input, shape index: {}]
  %s1 = inlined_call_operand.vmem [shape: f32[32,32], index: 1, kind: input, shape index: {}]
  %s2 = inlined_call_operand.vmem [shape: f32[1,32], index: 2, kind: input, shape index: {}]
  %s3 = inlined_call_operand.vmem [shape: f32[1,32], index: 3, kind: input, shape index: {}]
  %s4 = inlined_call_operand.vmem [shape: f32[32,64], index: 4, kind: output, shape index: {}]
  %s5 = sld [smem:[#allocation0]]
  $region26: #{_lambda_.91} parent=0
    _
  %s7 = ssub.s32 1, %s5
  %s8 = scalar_select 0, %s7, %s5
  // Predicated region
  $region2: #{_lambda_.91} parent=0 // pred_check
    _
  $region3: #{_lambda_.91} parent=0 // pred_check_branch
    %10 = sbr.rel (0) target = $region5
  $region4: #{_lambda_.91} parent=0 // pred_region
    _
  $region5: #{_lambda_.91} parent=0 // pred_fallthru
    _
  // Predicated region
  $region6: #{_lambda_.91} parent=0 // pred_check
    _
  $region7: #{_lambda_.91} parent=0 // pred_check_branch
    %12 = sbr.rel (0) target = $region9
  $region8: #{_lambda_.91} parent=0 // pred_region
    _
  $region9: #{_lambda_.91} parent=0 // pred_fallthru
    _
  // Predicated region
  $region10: #{_lambda_.91} parent=0 // pred_check
    _
  $region11: #{_lambda_.91} parent=0 // pred_check_branch
    %14 = sbr.rel (0) target = $region13
  $region12: #{_lambda_.91} parent=0 // pred_region
    _
  $region13: #{_lambda_.91} parent=0 // pred_fallthru
    _
  // Predicated region
  $region14: #{_lambda_.91} parent=0 // pred_check
    _
  $region15: #{_lambda_.91} parent=0 // pred_check_branch
    %16 = sbr.rel (0) target = $region17
  $region16: #{_lambda_.91} parent=0 // pred_region
    _
  $region17: #{_lambda_.91} parent=0 // pred_fallthru
    _
  %v17 = vld [vmem:[%s1] sm:$0xff]
  %v18 = vld [vmem:[%s1 + $0x8] sm:$0xff]
  %v19 = vld [vmem:[%s1 + $0x10] sm:$0xff]
  %v20 = vld [vmem:[%s1 + $0x18] sm:$0xff]
  %v21 = vld [vmem:[%s2] sm:$0x1]
  %v23 = vlaneseq
  %v24 = vshrl.u32 %v23, 7
  %v25 = vsub.s32 0, %v24
  %v26 = vrot.slane %v21, %v25
  %v28 = vmul.f32 %v17, %v26
  %v29 = vmul.f32 %v18, %v26
  %v30 = vmul.f32 %v19, %v26
  %v31 = vmul.f32 %v20, %v26
  %v32 = vld [vmem:[%s3] sm:$0x1]
  %v34 = vlaneseq
  %v35 = vshrl.u32 %v34, 7
  %v36 = vsub.s32 0, %v35
  %v37 = vrot.slane %v32, %v36
  %v39 = vadd.f32 %v28, %v37
  %v40 = vadd.f32 %v29, %v37
  %v41 = vadd.f32 %v30, %v37
  %v42 = vadd.f32 %v31, %v37
  %v43 = vld [vmem:[%s0] sm:$0xff]
  %v44 = vld [vmem:[%s0 + $0x8] sm:$0xff]
  %v45 = vld [vmem:[%s0 + $0x10] sm:$0xff]
  %v46 = vld [vmem:[%s0 + $0x18] sm:$0xff]
  %51 = vrot.lane.b32.xlu0 %v39, 32
  %v52 = vpop.permute.xlu0 %51
  %53 = vrot.lane.b32.xlu0 %v40, 32
  %v54 = vpop.permute.xlu0 %53
  %55 = vrot.lane.b32.xlu0 %v41, 32
  %v56 = vpop.permute.xlu0 %55
  %57 = vrot.lane.b32.xlu0 %v42, 32
  %v58 = vpop.permute.xlu0 %57
  %vm63 = vcmask 261120
  %v64 = vsel %vm63, %v43, %v52
  %v65 = vsel %vm63, %v44, %v54
  %v66 = vsel %vm63, %v45, %v56
  %v67 = vsel %vm63, %v46, %v58
  %vm68 = vcmask 523264
  %69 = vst.msk [vmem:[%s4] sm:$0xff] %vm68, %v64
  %70 = vst.msk [vmem:[%s4 + $0x8] sm:$0xff] %vm68, %v65
  %71 = vst.msk [vmem:[%s4 + $0x10] sm:$0xff] %vm68, %v66
  %72 = vst.msk [vmem:[%s4 + $0x18] sm:$0xff] %vm68, %v67
  // Predicated region
  $region18: #{_lambda_.91} parent=0 // pred_check
    _
  $region19: #{_lambda_.91} parent=0 // pred_check_branch
    %74 = sbr.rel (0) target = $region21
  $region20: #{_lambda_.91} parent=0 // pred_region
    _
  $region21: #{_lambda_.91} parent=0 // pred_fallthru
    _
  // Predicated region
  $region22: #{_lambda_.91} parent=0 // pred_check
    _
  $region23: #{_lambda_.91} parent=0 // pred_check_branch
    %76 = sbr.rel (0) target = $region25
  $region24: #{_lambda_.91} parent=0 // pred_region
    _
  $region25: #{_lambda_.91} parent=0 // pred_fallthru
    _

// kernel: _lambda_.88
$region0: #{_lambda_.88}
  #allocation0 [shape = 'u32[]', space=smem, size = 0x4, offset = 0x4, fixed_abs, tag = 'smem constant byte address 0x4 - core index']
  #allocation1 [shape = 'u32[144,128]{1,0:T(1,128)}', space=vmem, size = 0x12000, scoped, tag = 'internal scratch']
  #allocation2 [shape = 'f32[8,128]{1,0:T(8,128)}', space=vmem, size = 0x1000, scoped, tag = 'scratch operand']
  %s0 = inlined_call_operand.vmem [shape: bf16[8,256], index: 0, kind: input, shape index: {}]
  %s1 = inlined_call_operand.vmem [shape: bf16[256,128], index: 1, kind: input, shape index: {}]
  %s2 = inlined_call_operand.vmem [shape: f32[1,128], index: 2, kind: input, shape index: {}]
  %s3 = inlined_call_operand.vmem [shape: f32[8,128], index: 3, kind: output, shape index: {}]
  %s4 = sld [smem:[#allocation0]]
  $region30: #{_lambda_.88} parent=0
    _
  %s6 = ssub.s32 1, %s4
  %s7 = scalar_select 0, %s6, %s4
  // Predicated region
  $region2: #{_lambda_.88} parent=0 // pred_check
    _
  $region3: #{_lambda_.88} parent=0 // pred_check_branch
    %9 = sbr.rel (0) target = $region5
  $region4: #{_lambda_.88} parent=0 // pred_region
    _
  $region5: #{_lambda_.88} parent=0 // pred_fallthru
    _
  // Predicated region
  $region6: #{_lambda_.88} parent=0 // pred_check
    _
  $region7: #{_lambda_.88} parent=0 // pred_check_branch
    %11 = sbr.rel (0) target = $region9
  $region8: #{_lambda_.88} parent=0 // pred_region
    _
  $region9: #{_lambda_.88} parent=0 // pred_fallthru
    _
  // Predicated region
  $region10: #{_lambda_.88} parent=0 // pred_check
    _
  $region11: #{_lambda_.88} parent=0 // pred_check_branch
    %13 = sbr.rel (0) target = $region13
  $region12: #{_lambda_.88} parent=0 // pred_region
    _
  $region13: #{_lambda_.88} parent=0 // pred_fallthru
    _
  %p15 = scmp.eq.s32.totalorder 0, 0
  // Predicated region
  $region14: #{_lambda_.88} parent=0 // pred_check
    %p16 = pneg %p15
  $region15: #{_lambda_.88} parent=0 // pred_check_branch
    %18 = sbr.rel (%p16) target = $region17
  $region16: #{_lambda_.88} parent=0 // pred_region
    %19 = vst [vmem:[#allocation2] sm:$0xff] 0.0
  $region17: #{_lambda_.88} parent=0 // pred_fallthru
    _
  %v20 = vld [vmem:[#allocation2] sm:$0xff]
  %v21 = vld [vmem:[%s0] sm:$0xff]
  %v22 = vld [vmem:[%s1] sm:$0xf]
  %v23 = vld [vmem:[%s1 + $0x4] sm:$0xf]
  %v24 = vld [vmem:[%s1 + $0x8] sm:$0xf]
  %v25 = vld [vmem:[%s1 + $0xc] sm:$0xf]
  %v26 = vld [vmem:[%s1 + $0x10] sm:$0xf]
  %v27 = vld [vmem:[%s1 + $0x14] sm:$0xf]
  %v28 = vld [vmem:[%s1 + $0x18] sm:$0xf]
  %v29 = vld [vmem:[%s1 + $0x1c] sm:$0xf]
  %v30 = vld [vmem:[%s1 + $0x20] sm:$0xf]
  %v31 = vld [vmem:[%s1 + $0x24] sm:$0xf]
  %v32 = vld [vmem:[%s1 + $0x28] sm:$0xf]
  %v33 = vld [vmem:[%s1 + $0x2c] sm:$0xf]
  %v34 = vld [vmem:[%s1 + $0x30] sm:$0xf]
  %v35 = vld [vmem:[%s1 + $0x34] sm:$0xf]
  %v36 = vld [vmem:[%s1 + $0x38] sm:$0xf]
  %v37 = vld [vmem:[%s1 + $0x3c] sm:$0xf]
  %v38 = vld [vmem:[%s1 + $0x40] sm:$0xf]
  %v39 = vld [vmem:[%s1 + $0x44] sm:$0xf]
  %v40 = vld [vmem:[%s1 + $0x48] sm:$0xf]
  %v41 = vld [vmem:[%s1 + $0x4c] sm:$0xf]
  %v42 = vld [vmem:[%s1 + $0x50] sm:$0xf]
  %v43 = vld [vmem:[%s1 + $0x54] sm:$0xf]
  %v44 = vld [vmem:[%s1 + $0x58] sm:$0xf]
  %v45 = vld [vmem:[%s1 + $0x5c] sm:$0xf]
  %v46 = vld [vmem:[%s1 + $0x60] sm:$0xf]
  %v47 = vld [vmem:[%s1 + $0x64] sm:$0xf]
  %v48 = vld [vmem:[%s1 + $0x68] sm:$0xf]
  %v49 = vld [vmem:[%s1 + $0x6c] sm:$0xf]
  %v50 = vld [vmem:[%s1 + $0x70] sm:$0xf]
  %v51 = vld [vmem:[%s1 + $0x74] sm:$0xf]
  %v52 = vld [vmem:[%s1 + $0x78] sm:$0xf]
  %v53 = vld [vmem:[%s1 + $0x7c] sm:$0xf]
  %v55 = vunpack.c.l.b16 %v21
  %v56 = vunpack.c.h.b16 %v21
  %v57 = vpack.c.b16 %v55, %v55
  %v58 = vpack.c.b16 %v56, %v56
  %v93 = vunpack.c.l.b16 %v22
  %v94 = vunpack.c.l.b16 %v23
  %v95 = vunpack.c.l.b16 %v24
  %v96 = vunpack.c.l.b16 %v25
  %v97 = vunpack.c.l.b16 %v26
  %v98 = vunpack.c.l.b16 %v27
  %v99 = vunpack.c.l.b16 %v28
  %v100 = vunpack.c.l.b16 %v29
  %v101 = vunpack.c.l.b16 %v30
  %v102 = vunpack.c.l.b16 %v31
  %v103 = vunpack.c.l.b16 %v32
  %v104 = vunpack.c.l.b16 %v33
  %v105 = vunpack.c.l.b16 %v34
  %v106 = vunpack.c.l.b16 %v35
  %v107 = vunpack.c.l.b16 %v36
  %v108 = vunpack.c.l.b16 %v37
  %v109 = vunpack.c.l.b16 %v38
  %v110 = vunpack.c.l.b16 %v39
  %v111 = vunpack.c.l.b16 %v40
  %v112 = vunpack.c.l.b16 %v41
  %v113 = vunpack.c.l.b16 %v42
  %v114 = vunpack.c.l.b16 %v43
  %v115 = vunpack.c.l.b16 %v44
  %v116 = vunpack.c.l.b16 %v45
  %v117 = vunpack.c.l.b16 %v46
  %v118 = vunpack.c.l.b16 %v47
  %v119 = vunpack.c.l.b16 %v48
  %v120 = vunpack.c.l.b16 %v49
  %v121 = vunpack.c.l.b16 %v50
  %v122 = vunpack.c.l.b16 %v51
  %v123 = vunpack.c.l.b16 %v52
  %v124 = vunpack.c.l.b16 %v53
  %v125 = vpack.c.b16 %v94, %v93
  %v126 = vpack.c.b16 %v96, %v95
  %v127 = vpack.c.b16 %v98, %v97
  %v128 = vpack.c.b16 %v100, %v99
  %v129 = vpack.c.b16 %v102, %v101
  %v130 = vpack.c.b16 %v104, %v103
  %v131 = vpack.c.b16 %v106, %v105
  %v132 = vpack.c.b16 %v108, %v107
  %v133 = vpack.c.b16 %v110, %v109
  %v134 = vpack.c.b16 %v112, %v111
  %v135 = vpack.c.b16 %v114, %v113
  %v136 = vpack.c.b16 %v116, %v115
  %v137 = vpack.c.b16 %v118, %v117
  %v138 = vpack.c.b16 %v120, %v119
  %v139 = vpack.c.b16 %v122, %v121
  %v140 = vpack.c.b16 %v124, %v123
  %157 = vmatprep.subr.bf16.mxu0 0
  %158 = vmatpush1.bf16.msra.mxu0 %v132
  %159 = vmatprep.subr.bf16.mxu0 0
  %160 = vmatpush1.bf16.msra.mxu0 %v131
  %161 = vmatprep.subr.bf16.mxu0 0
  %162 = vmatpush1.bf16.msra.mxu0 %v130
  %163 = vmatprep.subr.bf16.mxu0 0
  %164 = vmatpush1.bf16.msra.mxu0 %v129
  %165 = vmatprep.subr.bf16.mxu0 0
  %166 = vmatpush1.bf16.msra.mxu0 %v128
  %167 = vmatprep.subr.bf16.mxu0 0
  %168 = vmatpush1.bf16.msra.mxu0 %v127
  %169 = vmatprep.subr.bf16.mxu0 0
  %170 = vmatpush1.bf16.msra.mxu0 %v126
  %171 = vmatprep.subr.bf16.mxu0 0
  %172 = vmatpush1.bf16.msra.mxu0 %v125
  %173 = vmatprep.subr.bf16.mxu0 0
  %174 = vmatpush2.bf16.msra.mxu0 %v140
  %175 = vmatprep.subr.bf16.mxu0 0
  %176 = vmatpush2.bf16.msra.mxu0 %v139
  %177 = vmatprep.subr.bf16.mxu0 0
  %178 = vmatpush2.bf16.msra.mxu0 %v138
  %179 = vmatprep.subr.bf16.mxu0 0
  %180 = vmatpush2.bf16.msra.mxu0 %v137
  %181 = vmatprep.subr.bf16.mxu0 0
  %182 = vmatpush2.bf16.msra.mxu0 %v136
  %183 = vmatprep.subr.bf16.mxu0 0
  %184 = vmatpush2.bf16.msra.mxu0 %v135
  %185 = vmatprep.subr.bf16.mxu0 0
  %186 = vmatpush2.bf16.msra.mxu0 %v134
  %187 = vmatprep.subr.bf16.mxu0 0
  %188 = vmatpush2.bf16.msra.mxu0 %v133
  %189 = vmatprep.mubr.bf16.mxu0 %v58
  %190 = vmatmul.mubr.bf16.gmra.mxu0 %v57
  %v191 = vpop.f32.mrf.mxu0
  %v192 = vadd.f32 0.0, %v191
  %v193 = vpop.f32.mrf.mxu0
  %v194 = vpop.f32.mrf.mxu0
  %v195 = vpop.f32.mrf.mxu0
  %196 = vdwg.mxu0
  %v197 = vadd.f32 %v20, %v192
  %198 = vst [vmem:[#allocation2] sm:$0xff] %v197
  // Predicated region
  $region18: #{_lambda_.88} parent=0 // pred_check
    %p199 = pneg %p15
  $region19: #{_lambda_.88} parent=0 // pred_check_branch
    %201 = sbr.rel (%p199) target = $region21
  $region20: #{_lambda_.88} parent=0 // pred_region
    %v202 = vld [vmem:[#allocation2] sm:$0xff]
    %v203 = vld [vmem:[%s2] sm:$0x1]
    %v205 = vlaneseq
    %v206 = vshrl.u32 %v205, 7
    %v207 = vsub.s32 0, %v206
    %v208 = vrot.slane %v203, %v207
    %v210 = vadd.f32 %v202, %v208
    %211 = vst [vmem:[%s3] sm:$0xff] %v210
  $region21: #{_lambda_.88} parent=0 // pred_fallthru
    _
  // Predicated region
  $region22: #{_lambda_.88} parent=0 // pred_check
    _
  $region23: #{_lambda_.88} parent=0 // pred_check_branch
    %213 = sbr.rel (0) target = $region25
  $region24: #{_lambda_.88} parent=0 // pred_region
    _
  $region25: #{_lambda_.88} parent=0 // pred_fallthru
    _
  // Predicated region
  $region26: #{_lambda_.88} parent=0 // pred_check
    _
  $region27: #{_lambda_.88} parent=0 // pred_check_branch
    %215 = sbr.rel (0) target = $region29
  $region28: #{_lambda_.88} parent=0 // pred_region
    _
  $region29: #{_lambda_.88} parent=0 // pred_fallthru
    _

// kernel: _lambda_.92
$region0: #{_lambda_.92}
  #allocation0 [shape = 'u32[]', space=smem, size = 0x4, offset = 0x4, fixed_abs, tag = 'smem constant byte address 0x4 - core index']
  #allocation1 [shape = 'u32[144,128]{1,0:T(1,128)}', space=vmem, size = 0x12000, scoped, tag = 'internal scratch']
  %s0 = inlined_call_operand.vmem [shape: f32[16,128], index: 0, kind: input, shape index: {}]
  %s1 = inlined_call_operand.vmem [shape: bf16[16,128], index: 1, kind: output, shape index: {}]
  %s2 = sld [smem:[#allocation0]]
  $region14: #{_lambda_.92} parent=0
    _
  %s4 = ssub.s32 1, %s2
  %s5 = scalar_select 0, %s4, %s2
  // Predicated region
  $region2: #{_lambda_.92} parent=0 // pred_check
    _
  $region3: #{_lambda_.92} parent=0 // pred_check_branch
    %7 = sbr.rel (0) target = $region5
  $region4: #{_lambda_.92} parent=0 // pred_region
    _
  $region5: #{_lambda_.92} parent=0 // pred_fallthru
    _
  %v8 = vld [vmem:[%s0] sm:$0xff]
  %v9 = vld [vmem:[%s0 + $0x8] sm:$0xff]
  %v10 = vmax.f32 %v8, 0.0
  %v11 = vmax.f32 %v9, 0.0
  %v12 = vpack.c.bf16 %v11, %v10
  %v14 = vunpack.c.l.b16 %v12
  %v15 = vunpack.c.h.b16 %v12
  %v16 = vpack.c.b16 %v14, %v14
  %v17 = vpack.c.b16 %v15, %v15
  %20 = vst [vmem:[%s1] sm:$0xf] %v16
  %21 = vst [vmem:[%s1 + $0x4] sm:$0xf] %v17
  // Predicated region
  $region6: #{_lambda_.92} parent=0 // pred_check
    _
  $region7: #{_lambda_.92} parent=0 // pred_check_branch
    %23 = sbr.rel (0) target = $region9
  $region8: #{_lambda_.92} parent=0 // pred_region
    _
  $region9: #{_lambda_.92} parent=0 // pred_fallthru
    _
  // Predicated region
  $region10: #{_lambda_.92} parent=0 // pred_check
    _
  $region11: #{_lambda_.92} parent=0 // pred_check_branch
    %25 = sbr.rel (0) target = $region13
  $region12: #{_lambda_.92} parent=0 // pred_region
    _
  $region13: #{_lambda_.92} parent=0 // pred_fallthru
    _

// kernel: _lambda_.98
$region0: #{_lambda_.98}
  #allocation0 [shape = 'u32[]', space=smem, size = 0x4, offset = 0x4, fixed_abs, tag = 'smem constant byte address 0x4 - core index']
  #allocation1 [shape = 'u32[144,128]{1,0:T(1,128)}', space=vmem, size = 0x12000, scoped, tag = 'internal scratch']
  %s0 = inlined_call_operand.vmem [shape: f32[128,16], index: 0, kind: input, shape index: {}]
  %s1 = inlined_call_operand.vmem [shape: f32[128,16], index: 1, kind: input, shape index: {}]
  %s2 = inlined_call_operand.vmem [shape: f32[1,16], index: 2, kind: input, shape index: {}]
  %s3 = inlined_call_operand.vmem [shape: f32[1,16], index: 3, kind: input, shape index: {}]
  %s4 = inlined_call_operand.vmem [shape: f32[128,32], index: 4, kind: output, shape index: {}]
  %s5 = sld [smem:[#allocation0]]
  $region26: #{_lambda_.98} parent=0
    _
  %s7 = ssub.s32 1, %s5
  %s8 = scalar_select 0, %s7, %s5
  // Predicated region
  $region2: #{_lambda_.98} parent=0 // pred_check
    _
  $region3: #{_lambda_.98} parent=0 // pred_check_branch
    %10 = sbr.rel (0) target = $region5
  $region4: #{_lambda_.98} parent=0 // pred_region
    _
  $region5: #{_lambda_.98} parent=0 // pred_fallthru
    _
  // Predicated region
  $region6: #{_lambda_.98} parent=0 // pred_check
    _
  $region7: #{_lambda_.98} parent=0 // pred_check_branch
    %12 = sbr.rel (0) target = $region9
  $region8: #{_lambda_.98} parent=0 // pred_region
    _
  $region9: #{_lambda_.98} parent=0 // pred_fallthru
    _
  // Predicated region
  $region10: #{_lambda_.98} parent=0 // pred_check
    _
  $region11: #{_lambda_.98} parent=0 // pred_check_branch
    %14 = sbr.rel (0) target = $region13
  $region12: #{_lambda_.98} parent=0 // pred_region
    _
  $region13: #{_lambda_.98} parent=0 // pred_fallthru
    _
  // Predicated region
  $region14: #{_lambda_.98} parent=0 // pred_check
    _
  $region15: #{_lambda_.98} parent=0 // pred_check_branch
    %16 = sbr.rel (0) target = $region17
  $region16: #{_lambda_.98} parent=0 // pred_region
    _
  $region17: #{_lambda_.98} parent=0 // pred_fallthru
    _
  %v17 = vld [vmem:[%s1] sm:$0xff]
  %v18 = vld [vmem:[%s1 + $0x8] sm:$0xff]
  %v19 = vld [vmem:[%s1 + $0x10] sm:$0xff]
  %v20 = vld [vmem:[%s1 + $0x18] sm:$0xff]
  %v21 = vld [vmem:[%s1 + $0x20] sm:$0xff]
  %v22 = vld [vmem:[%s1 + $0x28] sm:$0xff]
  %v23 = vld [vmem:[%s1 + $0x30] sm:$0xff]
  %v24 = vld [vmem:[%s1 + $0x38] sm:$0xff]
  %v25 = vld [vmem:[%s1 + $0x40] sm:$0xff]
  %v26 = vld [vmem:[%s1 + $0x48] sm:$0xff]
  %v27 = vld [vmem:[%s1 + $0x50] sm:$0xff]
  %v28 = vld [vmem:[%s1 + $0x58] sm:$0xff]
  %v29 = vld [vmem:[%s1 + $0x60] sm:$0xff]
  %v30 = vld [vmem:[%s1 + $0x68] sm:$0xff]
  %v31 = vld [vmem:[%s1 + $0x70] sm:$0xff]
  %v32 = vld [vmem:[%s1 + $0x78] sm:$0xff]
  %v33 = vld [vmem:[%s2] sm:$0x1]
  %v35 = vlaneseq
  %v36 = vshrl.u32 %v35, 7
  %v37 = vsub.s32 0, %v36
  %v38 = vrot.slane %v33, %v37
  %v40 = vmul.f32 %v17, %v38
  %v41 = vmul.f32 %v18, %v38
  %v42 = vmul.f32 %v19, %v38
  %v43 = vmul.f32 %v20, %v38
  %v44 = vmul.f32 %v21, %v38
  %v45 = vmul.f32 %v22, %v38
  %v46 = vmul.f32 %v23, %v38
  %v47 = vmul.f32 %v24, %v38
  %v48 = vmul.f32 %v25, %v38
  %v49 = vmul.f32 %v26, %v38
  %v50 = vmul.f32 %v27, %v38
  %v51 = vmul.f32 %v28, %v38
  %v52 = vmul.f32 %v29, %v38
  %v53 = vmul.f32 %v30, %v38
  %v54 = vmul.f32 %v31, %v38
  %v55 = vmul.f32 %v32, %v38
  %v56 = vld [vmem:[%s3] sm:$0x1]
  %v58 = vlaneseq
  %v59 = vshrl.u32 %v58, 7
  %v60 = vsub.s32 0, %v59
  %v61 = vrot.slane %v56, %v60
  %v63 = vadd.f32 %v40, %v61
  %v64 = vadd.f32 %v41, %v61
  %v65 = vadd.f32 %v42, %v61
  %v66 = vadd.f32 %v43, %v61
  %v67 = vadd.f32 %v44, %v61
  %v68 = vadd.f32 %v45, %v61
  %v69 = vadd.f32 %v46, %v61
  %v70 = vadd.f32 %v47, %v61
  %v71 = vadd.f32 %v48, %v61
  %v72 = vadd.f32 %v49, %v61
  %v73 = vadd.f32 %v50, %v61
  %v74 = vadd.f32 %v51, %v61
  %v75 = vadd.f32 %v52, %v61
  %v76 = vadd.f32 %v53, %v61
  %v77 = vadd.f32 %v54, %v61
  %v78 = vadd.f32 %v55, %v61
  %v79 = vld [vmem:[%s0] sm:$0xff]
  %v80 = vld [vmem:[%s0 + $0x8] sm:$0xff]
  %v81 = vld [vmem:[%s0 + $0x10] sm:$0xff]
  %v82 = vld [vmem:[%s0 + $0x18] sm:$0xff]
  %v83 = vld [vmem:[%s0 + $0x20] sm:$0xff]
  %v84 = vld [vmem:[%s0 + $0x28] sm:$0xff]
  %v85 = vld [vmem:[%s0 + $0x30] sm:$0xff]
  %v86 = vld [vmem:[%s0 + $0x38] sm:$0xff]
  %v87 = vld [vmem:[%s0 + $0x40] sm:$0xff]
  %v88 = vld [vmem:[%s0 + $0x48] sm:$0xff]
  %v89 = vld [vmem:[%s0 + $0x50] sm:$0xff]
  %v90 = vld [vmem:[%s0 + $0x58] sm:$0xff]
  %v91 = vld [vmem:[%s0 + $0x60] sm:$0xff]
  %v92 = vld [vmem:[%s0 + $0x68] sm:$0xff]
  %v93 = vld [vmem:[%s0 + $0x70] sm:$0xff]
  %v94 = vld [vmem:[%s0 + $0x78] sm:$0xff]
  %111 = vrot.lane.b32.xlu0 %v63, 16
  %v112 = vpop.permute.xlu0 %111
  %113 = vrot.lane.b32.xlu0 %v64, 16
  %v114 = vpop.permute.xlu0 %113
  %115 = vrot.lane.b32.xlu0 %v65, 16
  %v116 = vpop.permute.xlu0 %115
  %117 = vrot.lane.b32.xlu0 %v66, 16
  %v118 = vpop.permute.xlu0 %117
  %119 = vrot.lane.b32.xlu0 %v67, 16
  %v120 = vpop.permute.xlu0 %119
  %121 = vrot.lane.b32.xlu0 %v68, 16
  %v122 = vpop.permute.xlu0 %121
  %123 = vrot.lane.b32.xlu0 %v69, 16
  %v124 = vpop.permute.xlu0 %123
  %125 = vrot.lane.b32.xlu0 %v70, 16
  %v126 = vpop.permute.xlu0 %125
  %127 = vrot.lane.b32.xlu0 %v71, 16
  %v128 = vpop.permute.xlu0 %127
  %129 = vrot.lane.b32.xlu0 %v72, 16
  %v130 = vpop.permute.xlu0 %129
  %131 = vrot.lane.b32.xlu0 %v73, 16
  %v132 = vpop.permute.xlu0 %131
  %133 = vrot.lane.b32.xlu0 %v74, 16
  %v134 = vpop.permute.xlu0 %133
  %135 = vrot.lane.b32.xlu0 %v75, 16
  %v136 = vpop.permute.xlu0 %135
  %137 = vrot.lane.b32.xlu0 %v76, 16
  %v138 = vpop.permute.xlu0 %137
  %139 = vrot.lane.b32.xlu0 %v77, 16
  %v140 = vpop.permute.xlu0 %139
  %141 = vrot.lane.b32.xlu0 %v78, 16
  %v142 = vpop.permute.xlu0 %141
  %vm159 = vcmask 130048
  %v160 = vsel %vm159, %v79, %v112
  %v161 = vsel %vm159, %v80, %v114
  %v162 = vsel %vm159, %v81, %v116
  %v163 = vsel %vm159, %v82, %v118
  %v164 = vsel %vm159, %v83, %v120
  %v165 = vsel %vm159, %v84, %v122
  %v166 = vsel %vm159, %v85, %v124
  %v167 = vsel %vm159, %v86, %v126
  %v168 = vsel %vm159, %v87, %v128
  %v169 = vsel %vm159, %v88, %v130
  %v170 = vsel %vm159, %v89, %v132
  %v171 = vsel %vm159, %v90, %v134
  %v172 = vsel %vm159, %v91, %v136
  %v173 = vsel %vm159, %v92, %v138
  %v174 = vsel %vm159, %v93, %v140
  %v175 = vsel %vm159, %v94, %v142
  %vm176 = vcmask 261120
  %177 = vst.msk [vmem:[%s4] sm:$0xff] %vm176, %v160
  %178 = vst.msk [vmem:[%s4 + $0x8] sm:$0xff] %vm176, %v161
  %179 = vst.msk [vmem:[%s4 + $0x10] sm:$0xff] %vm176, %v162
  %180 = vst.msk [vmem:[%s4 + $0x18] sm:$0xff] %vm176, %v163
  %181 = vst.msk [vmem:[%s4 + $0x20] sm:$0xff] %vm176, %v164
  %182 = vst.msk [vmem:[%s4 + $0x28] sm:$0xff] %vm176, %v165
  %183 = vst.msk [vmem:[%s4 + $0x30] sm:$0xff] %vm176, %v166
  %184 = vst.msk [vmem:[%s4 + $0x38] sm:$0xff] %vm176, %v167
  %185 = vst.msk [vmem:[%s4 + $0x40] sm:$0xff] %vm176, %v168
  %186 = vst.msk [vmem:[%s4 + $0x48] sm:$0xff] %vm176, %v169
  %187 = vst.msk [vmem:[%s4 + $0x50] sm:$0xff] %vm176, %v170
  %188 = vst.msk [vmem:[%s4 + $0x58] sm:$0xff] %vm176, %v171
  %189 = vst.msk [vmem:[%s4 + $0x60] sm:$0xff] %vm176, %v172
  %190 = vst.msk [vmem:[%s4 + $0x68] sm:$0xff] %vm176, %v173
  %191 = vst.msk [vmem:[%s4 + $0x70] sm:$0xff] %vm176, %v174
  %192 = vst.msk [vmem:[%s4 + $0x78] sm:$0xff] %vm176, %v175
  // Predicated region
  $region18: #{_lambda_.98} parent=0 // pred_check
    _
  $region19: #{_lambda_.98} parent=0 // pred_check_branch
    %194 = sbr.rel (0) target = $region21
  $region20: #{_lambda_.98} parent=0 // pred_region
    _
  $region21: #{_lambda_.98} parent=0 // pred_fallthru
    _
  // Predicated region
  $region22: #{_lambda_.98} parent=0 // pred_check
    _
  $region23: #{_lambda_.98} parent=0 // pred_check_branch
    %196 = sbr.rel (0) target = $region25
  $region24: #{_lambda_.98} parent=0 // pred_region
    _
  $region25: #{_lambda_.98} parent=0 // pred_fallthru
    _

// kernel: _lambda_.99
$region0: #{_lambda_.99}
  #allocation0 [shape = 'u32[]', space=smem, size = 0x4, offset = 0x4, fixed_abs, tag = 'smem constant byte address 0x4 - core index']
  #allocation1 [shape = 'u32[144,128]{1,0:T(1,128)}', space=vmem, size = 0x12000, scoped, tag = 'internal scratch']
  %s0 = inlined_call_operand.vmem [shape: f32[32,128], index: 0, kind: input, shape index: {}]
  %s1 = inlined_call_operand.vmem [shape: bf16[32,128], index: 1, kind: output, shape index: {}]
  %s2 = sld [smem:[#allocation0]]
  $region14: #{_lambda_.99} parent=0
    _
  %s4 = ssub.s32 1, %s2
  %s5 = scalar_select 0, %s4, %s2
  // Predicated region
  $region2: #{_lambda_.99} parent=0 // pred_check
    _
  $region3: #{_lambda_.99} parent=0 // pred_check_branch
    %7 = sbr.rel (0) target = $region5
  $region4: #{_lambda_.99} parent=0 // pred_region
    _
  $region5: #{_lambda_.99} parent=0 // pred_fallthru
    _
  %v8 = vld [vmem:[%s0] sm:$0xff]
  %v9 = vld [vmem:[%s0 + $0x8] sm:$0xff]
  %v10 = vld [vmem:[%s0 + $0x10] sm:$0xff]
  %v11 = vld [vmem:[%s0 + $0x18] sm:$0xff]
  %v12 = vmax.f32 %v8, 0.0
  %v13 = vmax.f32 %v9, 0.0
  %v14 = vmax.f32 %v10, 0.0
  %v15 = vmax.f32 %v11, 0.0
  %v16 = vpack.c.bf16 %v13, %v12
  %v17 = vpack.c.bf16 %v15, %v14
  %v20 = vunpack.c.l.b16 %v16
  %v21 = vunpack.c.h.b16 %v16
  %v22 = vunpack.c.l.b16 %v17
  %v23 = vunpack.c.h.b16 %v17
  %v24 = vpack.c.b16 %v20, %v20
  %v25 = vpack.c.b16 %v21, %v21
  %v26 = vpack.c.b16 %v22, %v22
  %v27 = vpack.c.b16 %v23, %v23
  %32 = vst [vmem:[%s1] sm:$0xf] %v24
  %33 = vst [vmem:[%s1 + $0x4] sm:$0xf] %v25
  %34 = vst [vmem:[%s1 + $0x8] sm:$0xf] %v26
  %35 = vst [vmem:[%s1 + $0xc] sm:$0xf] %v27
  // Predicated region
  $region6: #{_lambda_.99} parent=0 // pred_check
    _
  $region7: #{_lambda_.99} parent=0 // pred_check_branch
    %37 = sbr.rel (0) target = $region9
  $region8: #{_lambda_.99} parent=0 // pred_region
    _
  $region9: #{_lambda_.99} parent=0 // pred_fallthru
    _
  // Predicated region
  $region10: #{_lambda_.99} parent=0 // pred_check
    _
  $region11: #{_lambda_.99} parent=0 // pred_check_branch
    %39 = sbr.rel (0) target = $region13
  $region12: #{_lambda_.99} parent=0 // pred_region
    _
  $region13: #{_lambda_.99} parent=0 // pred_fallthru
    _

// kernel: _lambda_.105
$region0: #{_lambda_.105}
  #allocation0 [shape = 'u32[]', space=smem, size = 0x4, offset = 0x4, fixed_abs, tag = 'smem constant byte address 0x4 - core index']
  #allocation1 [shape = 'u32[144,128]{1,0:T(1,128)}', space=vmem, size = 0x12000, scoped, tag = 'internal scratch']
  %s0 = inlined_call_operand.vmem [shape: f32[512,8], index: 0, kind: input, shape index: {}]
  %s1 = inlined_call_operand.vmem [shape: f32[512,8], index: 1, kind: input, shape index: {}]
  %s2 = inlined_call_operand.vmem [shape: f32[1,8], index: 2, kind: input, shape index: {}]
  %s3 = inlined_call_operand.vmem [shape: f32[1,8], index: 3, kind: input, shape index: {}]
  %s4 = inlined_call_operand.vmem [shape: f32[512,16], index: 4, kind: output, shape index: {}]
  %s5 = sld [smem:[#allocation0]]
  $region26: #{_lambda_.105} parent=0
    _
  %s7 = ssub.s32 1, %s5
  %s8 = scalar_select 0, %s7, %s5
  // Predicated region
  $region2: #{_lambda_.105} parent=0 // pred_check
    _
  $region3: #{_lambda_.105} parent=0 // pred_check_branch
    %10 = sbr.rel (0) target = $region5
  $region4: #{_lambda_.105} parent=0 // pred_region
    _
  $region5: #{_lambda_.105} parent=0 // pred_fallthru
    _
  // Predicated region
  $region6: #{_lambda_.105} parent=0 // pred_check
    _
  $region7: #{_lambda_.105} parent=0 // pred_check_branch
    %12 = sbr.rel (0) target = $region9
  $region8: #{_lambda_.105} parent=0 // pred_region
    _
  $region9: #{_lambda_.105} parent=0 // pred_fallthru
    _
  // Predicated region
  $region10: #{_lambda_.105} parent=0 // pred_check
    _
  $region11: #{_lambda_.105} parent=0 // pred_check_branch
    %14 = sbr.rel (0) target = $region13
  $region12: #{_lambda_.105} parent=0 // pred_region
    _
  $region13: #{_lambda_.105} parent=0 // pred_fallthru
    _
  // Predicated region
  $region14: #{_lambda_.105} parent=0 // pred_check
    _
  $region15: #{_lambda_.105} parent=0 // pred_check_branch
    %16 = sbr.rel (0) target = $region17
  $region16: #{_lambda_.105} parent=0 // pred_region
    _
  $region17: #{_lambda_.105} parent=0 // pred_fallthru
    _
  %v17 = vld [vmem:[%s1] sm:$0xff]
  %v18 = vld [vmem:[%s1 + $0x8] sm:$0xff]
  %v19 = vld [vmem:[%s1 + $0x10] sm:$0xff]
  %v20 = vld [vmem:[%s1 + $0x18] sm:$0xff]
  %v21 = vld [vmem:[%s1 + $0x20] sm:$0xff]
  %v22 = vld [vmem:[%s1 + $0x28] sm:$0xff]
  %v23 = vld [vmem:[%s1 + $0x30] sm:$0xff]
  %v24 = vld [vmem:[%s1 + $0x38] sm:$0xff]
  %v25 = vld [vmem:[%s1 + $0x40] sm:$0xff]
  %v26 = vld [vmem:[%s1 + $0x48] sm:$0xff]
  %v27 = vld [vmem:[%s1 + $0x50] sm:$0xff]
  %v28 = vld [vmem:[%s1 + $0x58] sm:$0xff]
  %v29 = vld [vmem:[%s1 + $0x60] sm:$0xff]
  %v30 = vld [vmem:[%s1 + $0x68] sm:$0xff]
  %v31 = vld [vmem:[%s1 + $0x70] sm:$0xff]
  %v32 = vld [vmem:[%s1 + $0x78] sm:$0xff]
  %v33 = vld [vmem:[%s1 + $0x80] sm:$0xff]
  %v34 = vld [vmem:[%s1 + $0x88] sm:$0xff]
  %v35 = vld [vmem:[%s1 + $0x90] sm:$0xff]
  %v36 = vld [vmem:[%s1 + $0x98] sm:$0xff]
  %v37 = vld [vmem:[%s1 + $0xa0] sm:$0xff]
  %v38 = vld [vmem:[%s1 + $0xa8] sm:$0xff]
  %v39 = vld [vmem:[%s1 + $0xb0] sm:$0xff]
  %v40 = vld [vmem:[%s1 + $0xb8] sm:$0xff]
  %v41 = vld [vmem:[%s1 + $0xc0] sm:$0xff]
  %v42 = vld [vmem:[%s1 + $0xc8] sm:$0xff]
  %v43 = vld [vmem:[%s1 + $0xd0] sm:$0xff]
  %v44 = vld [vmem:[%s1 + $0xd8] sm:$0xff]
  %v45 = vld [vmem:[%s1 + $0xe0] sm:$0xff]
  %v46 = vld [vmem:[%s1 + $0xe8] sm:$0xff]
  %v47 = vld [vmem:[%s1 + $0xf0] sm:$0xff]
  %v48 = vld [vmem:[%s1 + $0xf8] sm:$0xff]
  %v49 = vld [vmem:[%s1 + $0x100] sm:$0xff]
  %v50 = vld [vmem:[%s1 + $0x108] sm:$0xff]
  %v51 = vld [vmem:[%s1 + $0x110] sm:$0xff]
  %v52 = vld [vmem:[%s1 + $0x118] sm:$0xff]
  %v53 = vld [vmem:[%s1 + $0x120] sm:$0xff]
  %v54 = vld [vmem:[%s1 + $0x128] sm:$0xff]
  %v55 = vld [vmem:[%s1 + $0x130] sm:$0xff]
  %v56 = vld [vmem:[%s1 + $0x138] sm:$0xff]
  %v57 = vld [vmem:[%s1 + $0x140] sm:$0xff]
  %v58 = vld [vmem:[%s1 + $0x148] sm:$0xff]
  %v59 = vld [vmem:[%s1 + $0x150] sm:$0xff]
  %v60 = vld [vmem:[%s1 + $0x158] sm:$0xff]
  %v61 = vld [vmem:[%s1 + $0x160] sm:$0xff]
  %v62 = vld [vmem:[%s1 + $0x168] sm:$0xff]
  %v63 = vld [vmem:[%s1 + $0x170] sm:$0xff]
  %v64 = vld [vmem:[%s1 + $0x178] sm:$0xff]
  %v65 = vld [vmem:[%s1 + $0x180] sm:$0xff]
  %v66 = vld [vmem:[%s1 + $0x188] sm:$0xff]
  %v67 = vld [vmem:[%s1 + $0x190] sm:$0xff]
  %v68 = vld [vmem:[%s1 + $0x198] sm:$0xff]
  %v69 = vld [vmem:[%s1 + $0x1a0] sm:$0xff]
  %v70 = vld [vmem:[%s1 + $0x1a8] sm:$0xff]
  %v71 = vld [vmem:[%s1 + $0x1b0] sm:$0xff]
  %v72 = vld [vmem:[%s1 + $0x1b8] sm:$0xff]
  %v73 = vld [vmem:[%s1 + $0x1c0] sm:$0xff]
  %v74 = vld [vmem:[%s1 + $0x1c8] sm:$0xff]
  %v75 = vld [vmem:[%s1 + $0x1d0] sm:$0xff]
  %v76 = vld [vmem:[%s1 + $0x1d8] sm:$0xff]
  %v77 = vld [vmem:[%s1 + $0x1e0] sm:$0xff]
  %v78 = vld [vmem:[%s1 + $0x1e8] sm:$0xff]
  %v79 = vld [vmem:[%s1 + $0x1f0] sm:$0xff]
  %v80 = vld [vmem:[%s1 + $0x1f8] sm:$0xff]
  %v81 = vld [vmem:[%s2] sm:$0x1]
  %v83 = vlaneseq
  %v84 = vshrl.u32 %v83, 7
  %v85 = vsub.s32 0, %v84
  %v86 = vrot.slane %v81, %v85
  %v88 = vmul.f32 %v17, %v86
  %v89 = vmul.f32 %v18, %v86
  %v90 = vmul.f32 %v19, %v86
  %v91 = vmul.f32 %v20, %v86
  %v92 = vmul.f32 %v21, %v86
  %v93 = vmul.f32 %v22, %v86
  %v94 = vmul.f32 %v23, %v86
  %v95 = vmul.f32 %v24, %v86
  %v96 = vmul.f32 %v25, %v86
  %v97 = vmul.f32 %v26, %v86
  %v98 = vmul.f32 %v27, %v86
  %v99 = vmul.f32 %v28, %v86
  %v100 = vmul.f32 %v29, %v86
  %v101 = vmul.f32 %v30, %v86
  %v102 = vmul.f32 %v31, %v86
  %v103 = vmul.f32 %v32, %v86
  %v104 = vmul.f32 %v33, %v86
  %v105 = vmul.f32 %v34, %v86
  %v106 = vmul.f32 %v35, %v86
  %v107 = vmul.f32 %v36, %v86
  %v108 = vmul.f32 %v37, %v86
  %v109 = vmul.f32 %v38, %v86
  %v110 = vmul.f32 %v39, %v86
  %v111 = vmul.f32 %v40, %v86
  %v112 = vmul.f32 %v41, %v86
  %v113 = vmul.f32 %v42, %v86
  %v114 = vmul.f32 %v43, %v86
  %v115 = vmul.f32 %v44, %v86
  %v116 = vmul.f32 %v45, %v86
  %v117 = vmul.f32 %v46, %v86
  %v118 = vmul.f32 %v47, %v86
  %v119 = vmul.f32 %v48, %v86
  %v120 = vmul.f32 %v49, %v86
  %v121 = vmul.f32 %v50, %v86
  %v122 = vmul.f32 %v51, %v86
  %v123 = vmul.f32 %v52, %v86
  %v124 = vmul.f32 %v53, %v86
  %v125 = vmul.f32 %v54, %v86
  %v126 = vmul.f32 %v55, %v86
  %v127 = vmul.f32 %v56, %v86
  %v128 = vmul.f32 %v57, %v86
  %v129 = vmul.f32 %v58, %v86
  %v130 = vmul.f32 %v59, %v86
  %v131 = vmul.f32 %v60, %v86
  %v132 = vmul.f32 %v61, %v86
  %v133 = vmul.f32 %v62, %v86
  %v134 = vmul.f32 %v63, %v86
  %v135 = vmul.f32 %v64, %v86
  %v136 = vmul.f32 %v65, %v86
  %v137 = vmul.f32 %v66, %v86
  %v138 = vmul.f32 %v67, %v86
  %v139 = vmul.f32 %v68, %v86
  %v140 = vmul.f32 %v69, %v86
  %v141 = vmul.f32 %v70, %v86
  %v142 = vmul.f32 %v71, %v86
  %v143 = vmul.f32 %v72, %v86
  %v144 = vmul.f32 %v73, %v86
  %v145 = vmul.f32 %v74, %v86
  %v146 = vmul.f32 %v75, %v86
  %v147 = vmul.f32 %v76, %v86
  %v148 = vmul.f32 %v77, %v86
  %v149 = vmul.f32 %v78, %v86
  %v150 = vmul.f32 %v79, %v86
  %v151 = vmul.f32 %v80, %v86
  %v152 = vld [vmem:[%s3] sm:$0x1]
  %v154 = vlaneseq
  %v155 = vshrl.u32 %v154, 7
  %v156 = vsub.s32 0, %v155
  %v157 = vrot.slane %v152, %v156
  %v159 = vadd.f32 %v88, %v157
  %v160 = vadd.f32 %v89, %v157
  %v161 = vadd.f32 %v90, %v157
  %v162 = vadd.f32 %v91, %v157
  %v163 = vadd.f32 %v92, %v157
  %v164 = vadd.f32 %v93, %v157
  %v165 = vadd.f32 %v94, %v157
  %v166 = vadd.f32 %v95, %v157
  %v167 = vadd.f32 %v96, %v157
  %v168 = vadd.f32 %v97, %v157
  %v169 = vadd.f32 %v98, %v157
  %v170 = vadd.f32 %v99, %v157
  %v171 = vadd.f32 %v100, %v157
  %v172 = vadd.f32 %v101, %v157
  %v173 = vadd.f32 %v102, %v157
  %v174 = vadd.f32 %v103, %v157
  %v175 = vadd.f32 %v104, %v157
  %v176 = vadd.f32 %v105, %v157
  %v177 = vadd.f32 %v106, %v157
  %v178 = vadd.f32 %v107, %v157
  %v179 = vadd.f32 %v108, %v157
  %v180 = vadd.f32 %v109, %v157
  %v181 = vadd.f32 %v110, %v157
  %v182 = vadd.f32 %v111, %v157
  %v183 = vadd.f32 %v112, %v157
  %v184 = vadd.f32 %v113, %v157
  %v185 = vadd.f32 %v114, %v157
  %v186 = vadd.f32 %v115, %v157
  %v187 = vadd.f32 %v116, %v157
  %v188 = vadd.f32 %v117, %v157
  %v189 = vadd.f32 %v118, %v157
  %v190 = vadd.f32 %v119, %v157
  %v191 = vadd.f32 %v120, %v157
  %v192 = vadd.f32 %v121, %v157
  %v193 = vadd.f32 %v122, %v157
  %v194 = vadd.f32 %v123, %v157
  %v195 = vadd.f32 %v124, %v157
  %v196 = vadd.f32 %v125, %v157
  %v197 = vadd.f32 %v126, %v157
  %v198 = vadd.f32 %v127, %v157
  %v199 = vadd.f32 %v128, %v157
  %v200 = vadd.f32 %v129, %v157
  %v201 = vadd.f32 %v130, %v157
  %v202 = vadd.f32 %v131, %v157
  %v203 = vadd.f32 %v132, %v157
  %v204 = vadd.f32 %v133, %v157
  %v205 = vadd.f32 %v134, %v157
  %v206 = vadd.f32 %v135, %v157
  %v207 = vadd.f32 %v136, %v157
  %v208 = vadd.f32 %v137, %v157
  %v209 = vadd.f32 %v138, %v157
  %v210 = vadd.f32 %v139, %v157
  %v211 = vadd.f32 %v140, %v157
  %v212 = vadd.f32 %v141, %v157
  %v213 = vadd.f32 %v142, %v157
  %v214 = vadd.f32 %v143, %v157
  %v215 = vadd.f32 %v144, %v157
  %v216 = vadd.f32 %v145, %v157
  %v217 = vadd.f32 %v146, %v157
  %v218 = vadd.f32 %v147, %v157
  %v219 = vadd.f32 %v148, %v157
  %v220 = vadd.f32 %v149, %v157
  %v221 = vadd.f32 %v150, %v157
  %v222 = vadd.f32 %v151, %v157
  %v223 = vld [vmem:[%s0] sm:$0xff]
  %v224 = vld [vmem:[%s0 + $0x8] sm:$0xff]
  %v225 = vld [vmem:[%s0 + $0x10] sm:$0xff]
  %v226 = vld [vmem:[%s0 + $0x18] sm:$0xff]
  %v227 = vld [vmem:[%s0 + $0x20] sm:$0xff]
  %v228 = vld [vmem:[%s0 + $0x28] sm:$0xff]
  %v229 = vld [vmem:[%s0 + $0x30] sm:$0xff]
  %v230 = vld [vmem:[%s0 + $0x38] sm:$0xff]
  %v231 = vld [vmem:[%s0 + $0x40] sm:$0xff]
  %v232 = vld [vmem:[%s0 + $0x48] sm:$0xff]
  %v233 = vld [vmem:[%s0 + $0x50] sm:$0xff]
  %v234 = vld [vmem:[%s0 + $0x58] sm:$0xff]
  %v235 = vld [vmem:[%s0 + $0x60] sm:$0xff]
  %v236 = vld [vmem:[%s0 + $0x68] sm:$0xff]
  %v237 = vld [vmem:[%s0 + $0x70] sm:$0xff]
  %v238 = vld [vmem:[%s0 + $0x78] sm:$0xff]
  %v239 = vld [vmem:[%s0 + $0x80] sm:$0xff]
  %v240 = vld [vmem:[%s0 + $0x88] sm:$0xff]
  %v241 = vld [vmem:[%s0 + $0x90] sm:$0xff]
  %v242 = vld [vmem:[%s0 + $0x98] sm:$0xff]
  %v243 = vld [vmem:[%s0 + $0xa0] sm:$0xff]
  %v244 = vld [vmem:[%s0 + $0xa8] sm:$0xff]
  %v245 = vld [vmem:[%s0 + $0xb0] sm:$0xff]
  %v246 = vld [vmem:[%s0 + $0xb8] sm:$0xff]
  %v247 = vld [vmem:[%s0 + $0xc0] sm:$0xff]
  %v248 = vld [vmem:[%s0 + $0xc8] sm:$0xff]
  %v249 = vld [vmem:[%s0 + $0xd0] sm:$0xff]
  %v250 = vld [vmem:[%s0 + $0xd8] sm:$0xff]
  %v251 = vld [vmem:[%s0 + $0xe0] sm:$0xff]
  %v252 = vld [vmem:[%s0 + $0xe8] sm:$0xff]
  %v253 = vld [vmem:[%s0 + $0xf0] sm:$0xff]
  %v254 = vld [vmem:[%s0 + $0xf8] sm:$0xff]
  %v255 = vld [vmem:[%s0 + $0x100] sm:$0xff]
  %v256 = vld [vmem:[%s0 + $0x108] sm:$0xff]
  %v257 = vld [vmem:[%s0 + $0x110] sm:$0xff]
  %v258 = vld [vmem:[%s0 + $0x118] sm:$0xff]
  %v259 = vld [vmem:[%s0 + $0x120] sm:$0xff]
  %v260 = vld [vmem:[%s0 + $0x128] sm:$0xff]
  %v261 = vld [vmem:[%s0 + $0x130] sm:$0xff]
  %v262 = vld [vmem:[%s0 + $0x138] sm:$0xff]
  %v263 = vld [vmem:[%s0 + $0x140] sm:$0xff]
  %v264 = vld [vmem:[%s0 + $0x148] sm:$0xff]
  %v265 = vld [vmem:[%s0 + $0x150] sm:$0xff]
  %v266 = vld [vmem:[%s0 + $0x158] sm:$0xff]
  %v267 = vld [vmem:[%s0 + $0x160] sm:$0xff]
  %v268 = vld [vmem:[%s0 + $0x168] sm:$0xff]
  %v269 = vld [vmem:[%s0 + $0x170] sm:$0xff]
  %v270 = vld [vmem:[%s0 + $0x178] sm:$0xff]
  %v271 = vld [vmem:[%s0 + $0x180] sm:$0xff]
  %v272 = vld [vmem:[%s0 + $0x188] sm:$0xff]
  %v273 = vld [vmem:[%s0 + $0x190] sm:$0xff]
  %v274 = vld [vmem:[%s0 + $0x198] sm:$0xff]
  %v275 = vld [vmem:[%s0 + $0x1a0] sm:$0xff]
  %v276 = vld [vmem:[%s0 + $0x1a8] sm:$0xff]
  %v277 = vld [vmem:[%s0 + $0x1b0] sm:$0xff]
  %v278 = vld [vmem:[%s0 + $0x1b8] sm:$0xff]
  %v279 = vld [vmem:[%s0 + $0x1c0] sm:$0xff]
  %v280 = vld [vmem:[%s0 + $0x1c8] sm:$0xff]
  %v281 = vld [vmem:[%s0 + $0x1d0] sm:$0xff]
  %v282 = vld [vmem:[%s0 + $0x1d8] sm:$0xff]
  %v283 = vld [vmem:[%s0 + $0x1e0] sm:$0xff]
  %v284 = vld [vmem:[%s0 + $0x1e8] sm:$0xff]
  %v285 = vld [vmem:[%s0 + $0x1f0] sm:$0xff]
  %v286 = vld [vmem:[%s0 + $0x1f8] sm:$0xff]
  %351 = vrot.lane.b32.xlu0 %v159, 8
  %v352 = vpop.permute.xlu0 %351
  %353 = vrot.lane.b32.xlu0 %v160, 8
  %v354 = vpop.permute.xlu0 %353
  %355 = vrot.lane.b32.xlu0 %v161, 8
  %v356 = vpop.permute.xlu0 %355
  %357 = vrot.lane.b32.xlu0 %v162, 8
  %v358 = vpop.permute.xlu0 %357
  %359 = vrot.lane.b32.xlu0 %v163, 8
  %v360 = vpop.permute.xlu0 %359
  %361 = vrot.lane.b32.xlu0 %v164, 8
  %v362 = vpop.permute.xlu0 %361
  %363 = vrot.lane.b32.xlu0 %v165, 8
  %v364 = vpop.permute.xlu0 %363
  %365 = vrot.lane.b32.xlu0 %v166, 8
  %v366 = vpop.permute.xlu0 %365
  %367 = vrot.lane.b32.xlu0 %v167, 8
  %v368 = vpop.permute.xlu0 %367
  %369 = vrot.lane.b32.xlu0 %v168, 8
  %v370 = vpop.permute.xlu0 %369
  %371 = vrot.lane.b32.xlu0 %v169, 8
  %v372 = vpop.permute.xlu0 %371
  %373 = vrot.lane.b32.xlu0 %v170, 8
  %v374 = vpop.permute.xlu0 %373
  %375 = vrot.lane.b32.xlu0 %v171, 8
  %v376 = vpop.permute.xlu0 %375
  %377 = vrot.lane.b32.xlu0 %v172, 8
  %v378 = vpop.permute.xlu0 %377
  %379 = vrot.lane.b32.xlu0 %v173, 8
  %v380 = vpop.permute.xlu0 %379
  %381 = vrot.lane.b32.xlu0 %v174, 8
  %v382 = vpop.permute.xlu0 %381
  %383 = vrot.lane.b32.xlu0 %v175, 8
  %v384 = vpop.permute.xlu0 %383
  %385 = vrot.lane.b32.xlu0 %v176, 8
  %v386 = vpop.permute.xlu0 %385
  %387 = vrot.lane.b32.xlu0 %v177, 8
  %v388 = vpop.permute.xlu0 %387
  %389 = vrot.lane.b32.xlu0 %v178, 8
  %v390 = vpop.permute.xlu0 %389
  %391 = vrot.lane.b32.xlu0 %v179, 8
  %v392 = vpop.permute.xlu0 %391
  %393 = vrot.lane.b32.xlu0 %v180, 8
  %v394 = vpop.permute.xlu0 %393
  %395 = vrot.lane.b32.xlu0 %v181, 8
  %v396 = vpop.permute.xlu0 %395
  %397 = vrot.lane.b32.xlu0 %v182, 8
  %v398 = vpop.permute.xlu0 %397
  %399 = vrot.lane.b32.xlu0 %v183, 8
  %v400 = vpop.permute.xlu0 %399
  %401 = vrot.lane.b32.xlu0 %v184, 8
  %v402 = vpop.permute.xlu0 %401
  %403 = vrot.lane.b32.xlu0 %v185, 8
  %v404 = vpop.permute.xlu0 %403
  %405 = vrot.lane.b32.xlu0 %v186, 8
  %v406 = vpop.permute.xlu0 %405
  %407 = vrot.lane.b32.xlu0 %v187, 8
  %v408 = vpop.permute.xlu0 %407
  %409 = vrot.lane.b32.xlu0 %v188, 8
  %v410 = vpop.permute.xlu0 %409
  %411 = vrot.lane.b32.xlu0 %v189, 8
  %v412 = vpop.permute.xlu0 %411
  %413 = vrot.lane.b32.xlu0 %v190, 8
  %v414 = vpop.permute.xlu0 %413
  %415 = vrot.lane.b32.xlu0 %v191, 8
  %v416 = vpop.permute.xlu0 %415
  %417 = vrot.lane.b32.xlu0 %v192, 8
  %v418 = vpop.permute.xlu0 %417
  %419 = vrot.lane.b32.xlu0 %v193, 8
  %v420 = vpop.permute.xlu0 %419
  %421 = vrot.lane.b32.xlu0 %v194, 8
  %v422 = vpop.permute.xlu0 %421
  %423 = vrot.lane.b32.xlu0 %v195, 8
  %v424 = vpop.permute.xlu0 %423
  %425 = vrot.lane.b32.xlu0 %v196, 8
  %v426 = vpop.permute.xlu0 %425
  %427 = vrot.lane.b32.xlu0 %v197, 8
  %v428 = vpop.permute.xlu0 %427
  %429 = vrot.lane.b32.xlu0 %v198, 8
  %v430 = vpop.permute.xlu0 %429
  %431 = vrot.lane.b32.xlu0 %v199, 8
  %v432 = vpop.permute.xlu0 %431
  %433 = vrot.lane.b32.xlu0 %v200, 8
  %v434 = vpop.permute.xlu0 %433
  %435 = vrot.lane.b32.xlu0 %v201, 8
  %v436 = vpop.permute.xlu0 %435
  %437 = vrot.lane.b32.xlu0 %v202, 8
  %v438 = vpop.permute.xlu0 %437
  %439 = vrot.lane.b32.xlu0 %v203, 8
  %v440 = vpop.permute.xlu0 %439
  %441 = vrot.lane.b32.xlu0 %v204, 8
  %v442 = vpop.permute.xlu0 %441
  %443 = vrot.lane.b32.xlu0 %v205, 8
  %v444 = vpop.permute.xlu0 %443
  %445 = vrot.lane.b32.xlu0 %v206, 8
  %v446 = vpop.permute.xlu0 %445
  %447 = vrot.lane.b32.xlu0 %v207, 8
  %v448 = vpop.permute.xlu0 %447
  %449 = vrot.lane.b32.xlu0 %v208, 8
  %v450 = vpop.permute.xlu0 %449
  %451 = vrot.lane.b32.xlu0 %v209, 8
  %v452 = vpop.permute.xlu0 %451
  %453 = vrot.lane.b32.xlu0 %v210, 8
  %v454 = vpop.permute.xlu0 %453
  %455 = vrot.lane.b32.xlu0 %v211, 8
  %v456 = vpop.permute.xlu0 %455
  %457 = vrot.lane.b32.xlu0 %v212, 8
  %v458 = vpop.permute.xlu0 %457
  %459 = vrot.lane.b32.xlu0 %v213, 8
  %v460 = vpop.permute.xlu0 %459
  %461 = vrot.lane.b32.xlu0 %v214, 8
  %v462 = vpop.permute.xlu0 %461
  %463 = vrot.lane.b32.xlu0 %v215, 8
  %v464 = vpop.permute.xlu0 %463
  %465 = vrot.lane.b32.xlu0 %v216, 8
  %v466 = vpop.permute.xlu0 %465
  %467 = vrot.lane.b32.xlu0 %v217, 8
  %v468 = vpop.permute.xlu0 %467
  %469 = vrot.lane.b32.xlu0 %v218, 8
  %v470 = vpop.permute.xlu0 %469
  %471 = vrot.lane.b32.xlu0 %v219, 8
  %v472 = vpop.permute.xlu0 %471
  %473 = vrot.lane.b32.xlu0 %v220, 8
  %v474 = vpop.permute.xlu0 %473
  %475 = vrot.lane.b32.xlu0 %v221, 8
  %v476 = vpop.permute.xlu0 %475
  %477 = vrot.lane.b32.xlu0 %v222, 8
  %v478 = vpop.permute.xlu0 %477
  %vm543 = vcmask 64512
  %v544 = vsel %vm543, %v223, %v352
  %v545 = vsel %vm543, %v224, %v354
  %v546 = vsel %vm543, %v225, %v356
  %v547 = vsel %vm543, %v226, %v358
  %v548 = vsel %vm543, %v227, %v360
  %v549 = vsel %vm543, %v228, %v362
  %v550 = vsel %vm543, %v229, %v364
  %v551 = vsel %vm543, %v230, %v366
  %v552 = vsel %vm543, %v231, %v368
  %v553 = vsel %vm543, %v232, %v370
  %v554 = vsel %vm543, %v233, %v372
  %v555 = vsel %vm543, %v234, %v374
  %v556 = vsel %vm543, %v235, %v376
  %v557 = vsel %vm543, %v236, %v378
  %v558 = vsel %vm543, %v237, %v380
  %v559 = vsel %vm543, %v238, %v382
  %v560 = vsel %vm543, %v239, %v384
  %v561 = vsel %vm543, %v240, %v386
  %v562 = vsel %vm543, %v241, %v388
  %v563 = vsel %vm543, %v242, %v390
  %v564 = vsel %vm543, %v243, %v392
  %v565 = vsel %vm543, %v244, %v394
  %v566 = vsel %vm543, %v245, %v396
  %v567 = vsel %vm543, %v246, %v398
  %v568 = vsel %vm543, %v247, %v400
  %v569 = vsel %vm543, %v248, %v402
  %v570 = vsel %vm543, %v249, %v404
  %v571 = vsel %vm543, %v250, %v406
  %v572 = vsel %vm543, %v251, %v408
  %v573 = vsel %vm543, %v252, %v410
  %v574 = vsel %vm543, %v253, %v412
  %v575 = vsel %vm543, %v254, %v414
  %v576 = vsel %vm543, %v255, %v416
  %v577 = vsel %vm543, %v256, %v418
  %v578 = vsel %vm543, %v257, %v420
  %v579 = vsel %vm543, %v258, %v422
  %v580 = vsel %vm543, %v259, %v424
  %v581 = vsel %vm543, %v260, %v426
  %v582 = vsel %vm543, %v261, %v428
  %v583 = vsel %vm543, %v262, %v430
  %v584 = vsel %vm543, %v263, %v432
  %v585 = vsel %vm543, %v264, %v434
  %v586 = vsel %vm543, %v265, %v436
  %v587 = vsel %vm543, %v266, %v438
  %v588 = vsel %vm543, %v267, %v440
  %v589 = vsel %vm543, %v268, %v442
  %v590 = vsel %vm543, %v269, %v444
  %v591 = vsel %vm543, %v270, %v446
  %v592 = vsel %vm543, %v271, %v448
  %v593 = vsel %vm543, %v272, %v450
  %v594 = vsel %vm543, %v273, %v452
  %v595 = vsel %vm543, %v274, %v454
  %v596 = vsel %vm543, %v275, %v456
  %v597 = vsel %vm543, %v276, %v458
  %v598 = vsel %vm543, %v277, %v460
  %v599 = vsel %vm543, %v278, %v462
  %v600 = vsel %vm543, %v279, %v464
  %v601 = vsel %vm543, %v280, %v466
  %v602 = vsel %vm543, %v281, %v468
  %v603 = vsel %vm543, %v282, %v470
  %v604 = vsel %vm543, %v283, %v472
  %v605 = vsel %vm543, %v284, %v474
  %v606 = vsel %vm543, %v285, %v476
  %v607 = vsel %vm543, %v286, %v478
  %vm608 = vcmask 130048
  %609 = vst.msk [vmem:[%s4] sm:$0xff] %vm608, %v544
  %610 = vst.msk [vmem:[%s4 + $0x8] sm:$0xff] %vm608, %v545
  %611 = vst.msk [vmem:[%s4 + $0x10] sm:$0xff] %vm608, %v546
  %612 = vst.msk [vmem:[%s4 + $0x18] sm:$0xff] %vm608, %v547
  %613 = vst.msk [vmem:[%s4 + $0x20] sm:$0xff] %vm608, %v548
  %614 = vst.msk [vmem:[%s4 + $0x28] sm:$0xff] %vm608, %v549
  %615 = vst.msk [vmem:[%s4 + $0x30] sm:$0xff] %vm608, %v550
  %616 = vst.msk [vmem:[%s4 + $0x38] sm:$0xff] %vm608, %v551
  %617 = vst.msk [vmem:[%s4 + $0x40] sm:$0xff] %vm608, %v552
  %618 = vst.msk [vmem:[%s4 + $0x48] sm:$0xff] %vm608, %v553
  %619 = vst.msk [vmem:[%s4 + $0x50] sm:$0xff] %vm608, %v554
  %620 = vst.msk [vmem:[%s4 + $0x58] sm:$0xff] %vm608, %v555
  %621 = vst.msk [vmem:[%s4 + $0x60] sm:$0xff] %vm608, %v556
  %622 = vst.msk [vmem:[%s4 + $0x68] sm:$0xff] %vm608, %v557
  %623 = vst.msk [vmem:[%s4 + $0x70] sm:$0xff] %vm608, %v558
  %624 = vst.msk [vmem:[%s4 + $0x78] sm:$0xff] %vm608, %v559
  %625 = vst.msk [vmem:[%s4 + $0x80] sm:$0xff] %vm608, %v560
  %626 = vst.msk [vmem:[%s4 + $0x88] sm:$0xff] %vm608, %v561
  %627 = vst.msk [vmem:[%s4 + $0x90] sm:$0xff] %vm608, %v562
  %628 = vst.msk [vmem:[%s4 + $0x98] sm:$0xff] %vm608, %v563
  %629 = vst.msk [vmem:[%s4 + $0xa0] sm:$0xff] %vm608, %v564
  %630 = vst.msk [vmem:[%s4 + $0xa8] sm:$0xff] %vm608, %v565
  %631 = vst.msk [vmem:[%s4 + $0xb0] sm:$0xff] %vm608, %v566
  %632 = vst.msk [vmem:[%s4 + $0xb8] sm:$0xff] %vm608, %v567
  %633 = vst.msk [vmem:[%s4 + $0xc0] sm:$0xff] %vm608, %v568
  %634 = vst.msk [vmem:[%s4 + $0xc8] sm:$0xff] %vm608, %v569
  %635 = vst.msk [vmem:[%s4 + $0xd0] sm:$0xff] %vm608, %v570
  %636 = vst.msk [vmem:[%s4 + $0xd8] sm:$0xff] %vm608, %v571
  %637 = vst.msk [vmem:[%s4 + $0xe0] sm:$0xff] %vm608, %v572
  %638 = vst.msk [vmem:[%s4 + $0xe8] sm:$0xff] %vm608, %v573
  %639 = vst.msk [vmem:[%s4 + $0xf0] sm:$0xff] %vm608, %v574
  %640 = vst.msk [vmem:[%s4 + $0xf8] sm:$0xff] %vm608, %v575
  %641 = vst.msk [vmem:[%s4 + $0x100] sm:$0xff] %vm608, %v576
  %642 = vst.msk [vmem:[%s4 + $0x108] sm:$0xff] %vm608, %v577
  %643 = vst.msk [vmem:[%s4 + $0x110] sm:$0xff] %vm608, %v578
  %644 = vst.msk [vmem:[%s4 + $0x118] sm:$0xff] %vm608, %v579
  %645 = vst.msk [vmem:[%s4 + $0x120] sm:$0xff] %vm608, %v580
  %646 = vst.msk [vmem:[%s4 + $0x128] sm:$0xff] %vm608, %v581
  %647 = vst.msk [vmem:[%s4 + $0x130] sm:$0xff] %vm608, %v582
  %648 = vst.msk [vmem:[%s4 + $0x138] sm:$0xff] %vm608, %v583
  %649 = vst.msk [vmem:[%s4 + $0x140] sm:$0xff] %vm608, %v584
  %650 = vst.msk [vmem:[%s4 + $0x148] sm:$0xff] %vm608, %v585
  %651 = vst.msk [vmem:[%s4 + $0x150] sm:$0xff] %vm608, %v586
  %652 = vst.msk [vmem:[%s4 + $0x158] sm:$0xff] %vm608, %v587
  %653 = vst.msk [vmem:[%s4 + $0x160] sm:$0xff] %vm608, %v588
  %654 = vst.msk [vmem:[%s4 + $0x168] sm:$0xff] %vm608, %v589
  %655 = vst.msk [vmem:[%s4 + $0x170] sm:$0xff] %vm608, %v590
  %656 = vst.msk [vmem:[%s4 + $0x178] sm:$0xff] %vm608, %v591
  %657 = vst.msk [vmem:[%s4 + $0x180] sm:$0xff] %vm608, %v592
  %658 = vst.msk [vmem:[%s4 + $0x188] sm:$0xff] %vm608, %v593
  %659 = vst.msk [vmem:[%s4 + $0x190] sm:$0xff] %vm608, %v594
  %660 = vst.msk [vmem:[%s4 + $0x198] sm:$0xff] %vm608, %v595
  %661 = vst.msk [vmem:[%s4 + $0x1a0] sm:$0xff] %vm608, %v596
  %662 = vst.msk [vmem:[%s4 + $0x1a8] sm:$0xff] %vm608, %v597
  %663 = vst.msk [vmem:[%s4 + $0x1b0] sm:$0xff] %vm608, %v598
  %664 = vst.msk [vmem:[%s4 + $0x1b8] sm:$0xff] %vm608, %v599
  %665 = vst.msk [vmem:[%s4 + $0x1c0] sm:$0xff] %vm608, %v600
  %666 = vst.msk [vmem:[%s4 + $0x1c8] sm:$0xff] %vm608, %v601
  %667 = vst.msk [vmem:[%s4 + $0x1d0] sm:$0xff] %vm608, %v602
  %668 = vst.msk [vmem:[%s4 + $0x1d8] sm:$0xff] %vm608, %v603
  %669 = vst.msk [vmem:[%s4 + $0x1e0] sm:$0xff] %vm608, %v604
  %670 = vst.msk [vmem:[%s4 + $0x1e8] sm:$0xff] %vm608, %v605
  %671 = vst.msk [vmem:[%s4 + $0x1f0] sm:$0xff] %vm608, %v606
  %672 = vst.msk [vmem:[%s4 + $0x1f8] sm:$0xff] %vm608, %v607
  // Predicated region
  $region18: #{_lambda_.105} parent=0 // pred_check
    _
  $region19: #{_lambda_.105} parent=0 // pred_check_branch
    %674 = sbr.rel (0) target = $region21
  $region20: #{_lambda_.105} parent=0 // pred_region
    _
  $region21: #{_lambda_.105} parent=0 // pred_fallthru
    _
  // Predicated region
  $region22: #{_lambda_.105} parent=0 // pred_check
    _
  $region23: #{_lambda_.105} parent=0 // pred_check_branch
    %676 = sbr.rel (0) target = $region25
  $region24: #{_lambda_.105} parent=0 // pred_region
    _
  $region25: #{_lambda_.105} parent=0 // pred_fallthru
    _

// kernel: _lambda_.106
$region0: #{_lambda_.106}
  #allocation0 [shape = 'u32[]', space=smem, size = 0x4, offset = 0x4, fixed_abs, tag = 'smem constant byte address 0x4 - core index']
  #allocation1 [shape = 'u32[144,128]{1,0:T(1,128)}', space=vmem, size = 0x12000, scoped, tag = 'internal scratch']
  %s0 = inlined_call_operand.vmem [shape: f32[64,128], index: 0, kind: input, shape index: {}]
  %s1 = inlined_call_operand.vmem [shape: bf16[64,128], index: 1, kind: output, shape index: {}]
  %s2 = sld [smem:[#allocation0]]
  $region14: #{_lambda_.106} parent=0
    _
  %s4 = ssub.s32 1, %s2
  %s5 = scalar_select 0, %s4, %s2
  // Predicated region
  $region2: #{_lambda_.106} parent=0 // pred_check
    _
  $region3: #{_lambda_.106} parent=0 // pred_check_branch
    %7 = sbr.rel (0) target = $region5
  $region4: #{_lambda_.106} parent=0 // pred_region
    _
  $region5: #{_lambda_.106} parent=0 // pred_fallthru
    _
  %v8 = vld [vmem:[%s0] sm:$0xff]
  %v9 = vld [vmem:[%s0 + $0x8] sm:$0xff]
  %v10 = vld [vmem:[%s0 + $0x10] sm:$0xff]
  %v11 = vld [vmem:[%s0 + $0x18] sm:$0xff]
  %v12 = vld [vmem:[%s0 + $0x20] sm:$0xff]
  %v13 = vld [vmem:[%s0 + $0x28] sm:$0xff]
  %v14 = vld [vmem:[%s0 + $0x30] sm:$0xff]
  %v15 = vld [vmem:[%s0 + $0x38] sm:$0xff]
  %v16 = vmax.f32 %v8, 0.0
  %v17 = vmax.f32 %v9, 0.0
  %v18 = vmax.f32 %v10, 0.0
  %v19 = vmax.f32 %v11, 0.0
  %v20 = vmax.f32 %v12, 0.0
  %v21 = vmax.f32 %v13, 0.0
  %v22 = vmax.f32 %v14, 0.0
  %v23 = vmax.f32 %v15, 0.0
  %v24 = vpack.c.bf16 %v17, %v16
  %v25 = vpack.c.bf16 %v19, %v18
  %v26 = vpack.c.bf16 %v21, %v20
  %v27 = vpack.c.bf16 %v23, %v22
  %v32 = vunpack.c.l.b16 %v24
  %v33 = vunpack.c.h.b16 %v24
  %v34 = vunpack.c.l.b16 %v25
  %v35 = vunpack.c.h.b16 %v25
  %v36 = vunpack.c.l.b16 %v26
  %v37 = vunpack.c.h.b16 %v26
  %v38 = vunpack.c.l.b16 %v27
  %v39 = vunpack.c.h.b16 %v27
  %v40 = vpack.c.b16 %v32, %v32
  %v41 = vpack.c.b16 %v33, %v33
  %v42 = vpack.c.b16 %v34, %v34
  %v43 = vpack.c.b16 %v35, %v35
  %v44 = vpack.c.b16 %v36, %v36
  %v45 = vpack.c.b16 %v37, %v37
  %v46 = vpack.c.b16 %v38, %v38
  %v47 = vpack.c.b16 %v39, %v39
  %56 = vst [vmem:[%s1] sm:$0xf] %v40
  %57 = vst [vmem:[%s1 + $0x4] sm:$0xf] %v41
  %58 = vst [vmem:[%s1 + $0x8] sm:$0xf] %v42
  %59 = vst [vmem:[%s1 + $0xc] sm:$0xf] %v43
  %60 = vst [vmem:[%s1 + $0x10] sm:$0xf] %v44
  %61 = vst [vmem:[%s1 + $0x14] sm:$0xf] %v45
  %62 = vst [vmem:[%s1 + $0x18] sm:$0xf] %v46
  %63 = vst [vmem:[%s1 + $0x1c] sm:$0xf] %v47
  // Predicated region
  $region6: #{_lambda_.106} parent=0 // pred_check
    _
  $region7: #{_lambda_.106} parent=0 // pred_check_branch
    %65 = sbr.rel (0) target = $region9
  $region8: #{_lambda_.106} parent=0 // pred_region
    _
  $region9: #{_lambda_.106} parent=0 // pred_fallthru
    _
  // Predicated region
  $region10: #{_lambda_.106} parent=0 // pred_check
    _
  $region11: #{_lambda_.106} parent=0 // pred_check_branch
    %67 = sbr.rel (0) target = $region13
  $region12: #{_lambda_.106} parent=0 // pred_region
    _
  $region13: #{_lambda_.106} parent=0 // pred_fallthru
    _

// kernel: _lambda_.111
$region0: #{_lambda_.111}
  #allocation0 [shape = 'u32[]', space=smem, size = 0x4, offset = 0x4, fixed_abs, tag = 'smem constant byte address 0x4 - core index']
  #allocation1 [shape = 'u32[144,128]{1,0:T(1,128)}', space=vmem, size = 0x12000, scoped, tag = 'internal scratch']
  %s0 = inlined_call_operand.vmem [shape: f32[2048,4], index: 0, kind: input, shape index: {}]
  %s1 = inlined_call_operand.vmem [shape: f32[1,4], index: 1, kind: output, shape index: {0}]
  %s2 = inlined_call_operand.vmem [shape: f32[1,4], index: 2, kind: output, shape index: {1}]
  %3 = xla_tuple %s1, %s2
  %s4 = sld [smem:[#allocation0]]
  $region49: #{_lambda_.111} parent=0
    _
  %s6 = ssub.s32 1, %s4
  %s7 = scalar_select 0, %s6, %s4
  loop: start=0, step=1, limit=6
  $region2: #{_lambda_.111} parent=0 // loop_pre_header
    _
  $region3: #{_lambda_.111} parent=0 // loop_header
    %s9 = sphi 0, %s13
    %p10 = scmp.ge.s32.totalorder %s9, 6
    %s19 = sphi 0, %s21
    %s22 = sphi 0, %s19
    %s23 = sphi 0, %s22
    %s39 = sphi 0, %s23
    %s43 = sphi 0, %s43
    %s45 = sphi 0, %s43
    %s46 = sphi 0, %s45
    %s60 = sphi 0, %s46
    %s64 = sphi 0, %s64
    %s66 = sphi 0, %s64
    %s67 = sphi 0, %s66
    %s81 = sphi 0, %s67
  $region4: #{_lambda_.111} parent=0 // loop_header_branch
    %12 = sbr.rel (%p10) target = $region8
  $region5: #{_lambda_.111} parent=0 // loop_body
    %s14 = ssub.s32 %s9, 1
    %s15 = ssub.s32 %s9, 2
    %s16 = sadd.s32 %s9, 1
    %s17 = ssub.s32 %s9, %s16
    %p18 = scmp.eq.s32.totalorder %s17, 0
    %s20 = sadd.s32 %s19, 1
    %s21 = scalar_select %p18, %s19, %s20
    %p24 = pneg %p18
    %p25 = scmp.eq.s32.totalorder %s9, 3
    %p26 = por %p24, %p25
    %p27 = scmp.ne.s32.totalorder %s19, %s22
    %p28 = scmp.eq.s32.totalorder %s9, 0
    %p29 = por %p27, %p28
    %p30 = scmp.ne.s32.totalorder %s19, %s22
    %p31 = scmp.eq.s32.totalorder %s14, 3
    %p32 = por %p30, %p31
    %p33 = scmp.ne.s32.totalorder %s22, %s23
    %p34 = scmp.eq.s32.totalorder %s14, 0
    %p35 = por %p33, %p34
    %p36 = scmp.ne.s32.totalorder %s22, %s23
    %p37 = scmp.eq.s32.totalorder %s15, 3
    %p38 = por %p36, %p37
    %p40 = scmp.ne.s32.totalorder %s23, %s39
    %p41 = scmp.eq.s32.totalorder %s15, 0
    %p42 = por %p40, %p41
    %s44 = sadd.s32 %s43, 1
    %p47 = scmp.eq.s32.totalorder %s9, 3
    %p48 = scmp.ne.s32.totalorder %s43, %s45
    %p49 = scmp.eq.s32.totalorder %s9, 0
    %p50 = por %p48, %p49
    %p51 = scmp.ne.s32.totalorder %s43, %s45
    %p52 = scmp.eq.s32.totalorder %s14, 3
    %p53 = por %p51, %p52
    %p54 = scmp.ne.s32.totalorder %s45, %s46
    %p55 = scmp.eq.s32.totalorder %s14, 0
    %p56 = por %p54, %p55
    %p57 = scmp.ne.s32.totalorder %s45, %s46
    %p58 = scmp.eq.s32.totalorder %s15, 3
    %p59 = por %p57, %p58
    %p61 = scmp.ne.s32.totalorder %s46, %s60
    %p62 = scmp.eq.s32.totalorder %s15, 0
    %p63 = por %p61, %p62
    %s65 = sadd.s32 %s64, 1
    %p68 = scmp.eq.s32.totalorder %s9, 3
    %p69 = scmp.ne.s32.totalorder %s64, %s66
    %p70 = scmp.eq.s32.totalorder %s9, 0
    %p71 = por %p69, %p70
    %p72 = scmp.ne.s32.totalorder %s64, %s66
    %p73 = scmp.eq.s32.totalorder %s14, 3
    %p74 = por %p72, %p73
    %p75 = scmp.ne.s32.totalorder %s66, %s67
    %p76 = scmp.eq.s32.totalorder %s14, 0
    %p77 = por %p75, %p76
    %p78 = scmp.ne.s32.totalorder %s66, %s67
    %p79 = scmp.eq.s32.totalorder %s15, 3
    %p80 = por %p78, %p79
    %p82 = scmp.ne.s32.totalorder %s67, %s81
    %p83 = scmp.eq.s32.totalorder %s15, 0
    %p84 = por %p82, %p83
    %p85 = scmp.le.s32.totalorder 1, %s9
    %p86 = scmp.lt.s32.totalorder %s9, 5
    %p87 = pnand %p85, %p86
    %p88 = pneg %p87
    // Predicated region
    $region9: #{_lambda_.111} parent=5 // pred_check
      _
    $region10: #{_lambda_.111} parent=5 // pred_check_branch
      %90 = sbr.rel (%p87) target = $region12
    $region11: #{_lambda_.111} parent=5 // pred_region
      %s91 = ssub.s32 %s9, 1
    $region12: #{_lambda_.111} parent=5 // pred_fallthru
      _
    %p92 = scmp.lt.s32.totalorder %s9, 4
    // Predicated region
    $region13: #{_lambda_.111} parent=5 // pred_check
      %p93 = pneg %p92
    $region14: #{_lambda_.111} parent=5 // pred_check_branch
      %95 = sbr.rel (%p93) target = $region16
    $region15: #{_lambda_.111} parent=5 // pred_region
      // Predicated region
      $region17: #{_lambda_.111} parent=15 // pred_check
        %p96 = pneg %p29
      $region18: #{_lambda_.111} parent=15 // pred_check_branch
        %98 = sbr.rel (%p96) target = $region20
      $region19: #{_lambda_.111} parent=15 // pred_region
        %s99 = smul.u32 64, %s9
        %p100 = scmp.lt.s32.totalorder %s99, 255
        %s101 = scalar_select %p100, %s99, 255
        %s102 = smul.addr %s101, 8
        %s103 = scalar_lea.vmem %s0, %s102
        %s104 = smul.u32 64, %s9
      $region20: #{_lambda_.111} parent=15 // pred_fallthru
        _
    $region16: #{_lambda_.111} parent=5 // pred_fallthru
      _
    %p105 = scmp.le.s32.totalorder 1, %s9
    %p106 = scmp.lt.s32.totalorder %s9, 5
    %p107 = pnand %p105, %p106
    %p108 = pneg %p107
    // Predicated region
    $region21: #{_lambda_.111} parent=5 // pred_check
      _
    $region22: #{_lambda_.111} parent=5 // pred_check_branch
      %110 = sbr.rel (%p107) target = $region24
    $region23: #{_lambda_.111} parent=5 // pred_region
      %s111 = ssub.s32 %s9, 1
      %s112 = smul.u32 64, %s14
      %p113 = scmp.lt.s32.totalorder %s112, 255
      %s114 = scalar_select %p113, %s112, 255
      %s115 = smul.addr %s114, 8
      %s116 = scalar_lea.vmem %s0, %s115
      %p117 = pneg %p35
      %p118 = pneg %p32
      %p119 = pneg %p56
      %p120 = pneg %p53
      %p121 = pneg %p77
      %p122 = pneg %p74
      %s123 = smul.u32 64, %s14
      %p124 = scmp.lt.s32.totalorder %s123, 255
      %s125 = scalar_select %p124, %s123, 255
      %s126 = smul.addr %s125, 8
      %s127 = scalar_lea.vmem %s0, %s126
      %s128 = smul.u32 64, %s14
      %p129 = scmp.eq.s32.totalorder %s14, 0
      // Predicated region
      $region25: #{_lambda_.111} parent=23 // pred_check
        %p130 = pneg %p129
      $region26: #{_lambda_.111} parent=23 // pred_check_branch
        %132 = sbr.rel (%p130) target = $region28
      $region27: #{_lambda_.111} parent=23 // pred_region
        %vm133 = vcmask 24576
        %134 = vst.msk [vmem:[%s1] sm:$0x1] %vm133, 0.0
        %135 = vst.msk [vmem:[%s2] sm:$0x1] %vm133, 0.0
      $region28: #{_lambda_.111} parent=23 // pred_fallthru
        _
      %v136 = vld [vmem:[%s127] sm:$0xff]
      %v137 = vld [vmem:[%s127 + $0x8] sm:$0xff]
      %v138 = vld [vmem:[%s127 + $0x10] sm:$0xff]
      %v139 = vld [vmem:[%s127 + $0x18] sm:$0xff]
      %v140 = vld [vmem:[%s127 + $0x20] sm:$0xff]
      %v141 = vld [vmem:[%s127 + $0x28] sm:$0xff]
      %v142 = vld [vmem:[%s127 + $0x30] sm:$0xff]
      %v143 = vld [vmem:[%s127 + $0x38] sm:$0xff]
      %v144 = vld [vmem:[%s127 + $0x40] sm:$0xff]
      %v145 = vld [vmem:[%s127 + $0x48] sm:$0xff]
      %v146 = vld [vmem:[%s127 + $0x50] sm:$0xff]
      %v147 = vld [vmem:[%s127 + $0x58] sm:$0xff]
      %v148 = vld [vmem:[%s127 + $0x60] sm:$0xff]
      %v149 = vld [vmem:[%s127 + $0x68] sm:$0xff]
      %v150 = vld [vmem:[%s127 + $0x70] sm:$0xff]
      %v151 = vld [vmem:[%s127 + $0x78] sm:$0xff]
      %v152 = vld [vmem:[%s127 + $0x80] sm:$0xff]
      %v153 = vld [vmem:[%s127 + $0x88] sm:$0xff]
      %v154 = vld [vmem:[%s127 + $0x90] sm:$0xff]
      %v155 = vld [vmem:[%s127 + $0x98] sm:$0xff]
      %v156 = vld [vmem:[%s127 + $0xa0] sm:$0xff]
      %v157 = vld [vmem:[%s127 + $0xa8] sm:$0xff]
      %v158 = vld [vmem:[%s127 + $0xb0] sm:$0xff]
      %v159 = vld [vmem:[%s127 + $0xb8] sm:$0xff]
      %v160 = vld [vmem:[%s127 + $0xc0] sm:$0xff]
      %v161 = vld [vmem:[%s127 + $0xc8] sm:$0xff]
      %v162 = vld [vmem:[%s127 + $0xd0] sm:$0xff]
      %v163 = vld [vmem:[%s127 + $0xd8] sm:$0xff]
      %v164 = vld [vmem:[%s127 + $0xe0] sm:$0xff]
      %v165 = vld [vmem:[%s127 + $0xe8] sm:$0xff]
      %v166 = vld [vmem:[%s127 + $0xf0] sm:$0xff]
      %v167 = vld [vmem:[%s127 + $0xf8] sm:$0xff]
      %v168 = vld [vmem:[%s127 + $0x100] sm:$0xff]
      %v169 = vld [vmem:[%s127 + $0x108] sm:$0xff]
      %v170 = vld [vmem:[%s127 + $0x110] sm:$0xff]
      %v171 = vld [vmem:[%s127 + $0x118] sm:$0xff]
      %v172 = vld [vmem:[%s127 + $0x120] sm:$0xff]
      %v173 = vld [vmem:[%s127 + $0x128] sm:$0xff]
      %v174 = vld [vmem:[%s127 + $0x130] sm:$0xff]
      %v175 = vld [vmem:[%s127 + $0x138] sm:$0xff]
      %v176 = vld [vmem:[%s127 + $0x140] sm:$0xff]
      %v177 = vld [vmem:[%s127 + $0x148] sm:$0xff]
      %v178 = vld [vmem:[%s127 + $0x150] sm:$0xff]
      %v179 = vld [vmem:[%s127 + $0x158] sm:$0xff]
      %v180 = vld [vmem:[%s127 + $0x160] sm:$0xff]
      %v181 = vld [vmem:[%s127 + $0x168] sm:$0xff]
      %v182 = vld [vmem:[%s127 + $0x170] sm:$0xff]
      %v183 = vld [vmem:[%s127 + $0x178] sm:$0xff]
      %v184 = vld [vmem:[%s127 + $0x180] sm:$0xff]
      %v185 = vld [vmem:[%s127 + $0x188] sm:$0xff]
      %v186 = vld [vmem:[%s127 + $0x190] sm:$0xff]
      %v187 = vld [vmem:[%s127 + $0x198] sm:$0xff]
      %v188 = vld [vmem:[%s127 + $0x1a0] sm:$0xff]
      %v189 = vld [vmem:[%s127 + $0x1a8] sm:$0xff]
      %v190 = vld [vmem:[%s127 + $0x1b0] sm:$0xff]
      %v191 = vld [vmem:[%s127 + $0x1b8] sm:$0xff]
      %v192 = vld [vmem:[%s127 + $0x1c0] sm:$0xff]
      %v193 = vld [vmem:[%s127 + $0x1c8] sm:$0xff]
      %v194 = vld [vmem:[%s127 + $0x1d0] sm:$0xff]
      %v195 = vld [vmem:[%s127 + $0x1d8] sm:$0xff]
      %v196 = vld [vmem:[%s127 + $0x1e0] sm:$0xff]
      %v197 = vld [vmem:[%s127 + $0x1e8] sm:$0xff]
      %v198 = vld [vmem:[%s127 + $0x1f0] sm:$0xff]
      %v199 = vld [vmem:[%s127 + $0x1f8] sm:$0xff]
      %v200 = vld [vmem:[%s1] sm:$0x1]
      %vm201 = vcmask 31744
      %v202 = vsel %vm201, %v136, 0.0
      %v203 = vsel %vm201, %v137, 0.0
      %v204 = vadd.f32 %v202, %v203
      %v205 = vsel %vm201, %v138, 0.0
      %v206 = vadd.f32 %v204, %v205
      %v207 = vsel %vm201, %v139, 0.0
      %v208 = vadd.f32 %v206, %v207
      %v209 = vsel %vm201, %v140, 0.0
      %v210 = vadd.f32 %v208, %v209
      %v211 = vsel %vm201, %v141, 0.0
      %v212 = vadd.f32 %v210, %v211
      %v213 = vsel %vm201, %v142, 0.0
      %v214 = vadd.f32 %v212, %v213
      %v215 = vsel %vm201, %v143, 0.0
      %v216 = vadd.f32 %v214, %v215
      %v217 = vsel %vm201, %v144, 0.0
      %v218 = vadd.f32 %v216, %v217
      %v219 = vsel %vm201, %v145, 0.0
      %v220 = vadd.f32 %v218, %v219
      %v221 = vsel %vm201, %v146, 0.0
      %v222 = vadd.f32 %v220, %v221
      %v223 = vsel %vm201, %v147, 0.0
      %v224 = vadd.f32 %v222, %v223
      %v225 = vsel %vm201, %v148, 0.0
      %v226 = vadd.f32 %v224, %v225
      %v227 = vsel %vm201, %v149, 0.0
      %v228 = vadd.f32 %v226, %v227
      %v229 = vsel %vm201, %v150, 0.0
      %v230 = vadd.f32 %v228, %v229
      %v231 = vsel %vm201, %v151, 0.0
      %v232 = vadd.f32 %v230, %v231
      %v233 = vsel %vm201, %v152, 0.0
      %v234 = vadd.f32 %v232, %v233
      %v235 = vsel %vm201, %v153, 0.0
      %v236 = vadd.f32 %v234, %v235
      %v237 = vsel %vm201, %v154, 0.0
      %v238 = vadd.f32 %v236, %v237
      %v239 = vsel %vm201, %v155, 0.0
      %v240 = vadd.f32 %v238, %v239
      %v241 = vsel %vm201, %v156, 0.0
      %v242 = vadd.f32 %v240, %v241
      %v243 = vsel %vm201, %v157, 0.0
      %v244 = vadd.f32 %v242, %v243
      %v245 = vsel %vm201, %v158, 0.0
      %v246 = vadd.f32 %v244, %v245
      %v247 = vsel %vm201, %v159, 0.0
      %v248 = vadd.f32 %v246, %v247
      %v249 = vsel %vm201, %v160, 0.0
      %v250 = vadd.f32 %v248, %v249
      %v251 = vsel %vm201, %v161, 0.0
      %v252 = vadd.f32 %v250, %v251
      %v253 = vsel %vm201, %v162, 0.0
      %v254 = vadd.f32 %v252, %v253
      %v255 = vsel %vm201, %v163, 0.0
      %v256 = vadd.f32 %v254, %v255
      %v257 = vsel %vm201, %v164, 0.0
      %v258 = vadd.f32 %v256, %v257
      %v259 = vsel %vm201, %v165, 0.0
      %v260 = vadd.f32 %v258, %v259
      %v261 = vsel %vm201, %v166, 0.0
      %v262 = vadd.f32 %v260, %v261
      %v263 = vsel %vm201, %v167, 0.0
      %v264 = vadd.f32 %v262, %v263
      %v265 = vsel %vm201, %v168, 0.0
      %v266 = vadd.f32 %v264, %v265
      %v267 = vsel %vm201, %v169, 0.0
      %v268 = vadd.f32 %v266, %v267
      %v269 = vsel %vm201, %v170, 0.0
      %v270 = vadd.f32 %v268, %v269
      %v271 = vsel %vm201, %v171, 0.0
      %v272 = vadd.f32 %v270, %v271
      %v273 = vsel %vm201, %v172, 0.0
      %v274 = vadd.f32 %v272, %v273
      %v275 = vsel %vm201, %v173, 0.0
      %v276 = vadd.f32 %v274, %v275
      %v277 = vsel %vm201, %v174, 0.0
      %v278 = vadd.f32 %v276, %v277
      %v279 = vsel %vm201, %v175, 0.0
      %v280 = vadd.f32 %v278, %v279
      %v281 = vsel %vm201, %v176, 0.0
      %v282 = vadd.f32 %v280, %v281
      %v283 = vsel %vm201, %v177, 0.0
      %v284 = vadd.f32 %v282, %v283
      %v285 = vsel %vm201, %v178, 0.0
      %v286 = vadd.f32 %v284, %v285
      %v287 = vsel %vm201, %v179, 0.0
      %v288 = vadd.f32 %v286, %v287
      %v289 = vsel %vm201, %v180, 0.0
      %v290 = vadd.f32 %v288, %v289
      %v291 = vsel %vm201, %v181, 0.0
      %v292 = vadd.f32 %v290, %v291
      %v293 = vsel %vm201, %v182, 0.0
      %v294 = vadd.f32 %v292, %v293
      %v295 = vsel %vm201, %v183, 0.0
      %v296 = vadd.f32 %v294, %v295
      %v297 = vsel %vm201, %v184, 0.0
      %v298 = vadd.f32 %v296, %v297
      %v299 = vsel %vm201, %v185, 0.0
      %v300 = vadd.f32 %v298, %v299
      %v301 = vsel %vm201, %v186, 0.0
      %v302 = vadd.f32 %v300, %v301
      %v303 = vsel %vm201, %v187, 0.0
      %v304 = vadd.f32 %v302, %v303
      %v305 = vsel %vm201, %v188, 0.0
      %v306 = vadd.f32 %v304, %v305
      %v307 = vsel %vm201, %v189, 0.0
      %v308 = vadd.f32 %v306, %v307
      %v309 = vsel %vm201, %v190, 0.0
      %v310 = vadd.f32 %v308, %v309
      %v311 = vsel %vm201, %v191, 0.0
      %v312 = vadd.f32 %v310, %v311
      %v313 = vsel %vm201, %v192, 0.0
      %v314 = vadd.f32 %v312, %v313
      %v315 = vsel %vm201, %v193, 0.0
      %v316 = vadd.f32 %v314, %v315
      %v317 = vsel %vm201, %v194, 0.0
      %v318 = vadd.f32 %v316, %v317
      %v319 = vsel %vm201, %v195, 0.0
      %v320 = vadd.f32 %v318, %v319
      %v321 = vsel %vm201, %v196, 0.0
      %v322 = vadd.f32 %v320, %v321
      %v323 = vsel %vm201, %v197, 0.0
      %v324 = vadd.f32 %v322, %v323
      %v325 = vsel %vm201, %v198, 0.0
      %v326 = vadd.f32 %v324, %v325
      %v327 = vsel %vm201, %v199, 0.0
      %v328 = vadd.f32 %v326, %v327
      %v329 = vrot.slane %v328, 4
      %v330 = vadd.f32 %v328, %v329
      %v331 = vrot.slane %v330, 2
      %v332 = vadd.f32 %v330, %v331
      %v333 = vrot.slane %v332, 1
      %v334 = vadd.f32 %v332, %v333
      %v335 = vadd.f32 %v200, %v334
      %vm336 = vcmask 24576
      %337 = vst.msk [vmem:[%s1] sm:$0x1] %vm336, %v335
      %v338 = vld [vmem:[%s2] sm:$0x1]
      %v339 = vmul.f32 %v136, %v136
      %v340 = vmul.f32 %v137, %v137
      %v341 = vmul.f32 %v138, %v138
      %v342 = vmul.f32 %v139, %v139
      %v343 = vmul.f32 %v140, %v140
      %v344 = vmul.f32 %v141, %v141
      %v345 = vmul.f32 %v142, %v142
      %v346 = vmul.f32 %v143, %v143
      %v347 = vmul.f32 %v144, %v144
      %v348 = vmul.f32 %v145, %v145
      %v349 = vmul.f32 %v146, %v146
      %v350 = vmul.f32 %v147, %v147
      %v351 = vmul.f32 %v148, %v148
      %v352 = vmul.f32 %v149, %v149
      %v353 = vmul.f32 %v150, %v150
      %v354 = vmul.f32 %v151, %v151
      %v355 = vmul.f32 %v152, %v152
      %v356 = vmul.f32 %v153, %v153
      %v357 = vmul.f32 %v154, %v154
      %v358 = vmul.f32 %v155, %v155
      %v359 = vmul.f32 %v156, %v156
      %v360 = vmul.f32 %v157, %v157
      %v361 = vmul.f32 %v158, %v158
      %v362 = vmul.f32 %v159, %v159
      %v363 = vmul.f32 %v160, %v160
      %v364 = vmul.f32 %v161, %v161
      %v365 = vmul.f32 %v162, %v162
      %v366 = vmul.f32 %v163, %v163
      %v367 = vmul.f32 %v164, %v164
      %v368 = vmul.f32 %v165, %v165
      %v369 = vmul.f32 %v166, %v166
      %v370 = vmul.f32 %v167, %v167
      %v371 = vmul.f32 %v168, %v168
      %v372 = vmul.f32 %v169, %v169
      %v373 = vmul.f32 %v170, %v170
      %v374 = vmul.f32 %v171, %v171
      %v375 = vmul.f32 %v172, %v172
      %v376 = vmul.f32 %v173, %v173
      %v377 = vmul.f32 %v174, %v174
      %v378 = vmul.f32 %v175, %v175
      %v379 = vmul.f32 %v176, %v176
      %v380 = vmul.f32 %v177, %v177
      %v381 = vmul.f32 %v178, %v178
      %v382 = vmul.f32 %v179, %v179
      %v383 = vmul.f32 %v180, %v180
      %v384 = vmul.f32 %v181, %v181
      %v385 = vmul.f32 %v182, %v182
      %v386 = vmul.f32 %v183, %v183
      %v387 = vmul.f32 %v184, %v184
      %v388 = vmul.f32 %v185, %v185
      %v389 = vmul.f32 %v186, %v186
      %v390 = vmul.f32 %v187, %v187
      %v391 = vmul.f32 %v188, %v188
      %v392 = vmul.f32 %v189, %v189
      %v393 = vmul.f32 %v190, %v190
      %v394 = vmul.f32 %v191, %v191
      %v395 = vmul.f32 %v192, %v192
      %v396 = vmul.f32 %v193, %v193
      %v397 = vmul.f32 %v194, %v194
      %v398 = vmul.f32 %v195, %v195
      %v399 = vmul.f32 %v196, %v196
      %v400 = vmul.f32 %v197, %v197
      %v401 = vmul.f32 %v198, %v198
      %v402 = vmul.f32 %v199, %v199
      %v403 = vsel %vm201, %v339, 0.0
      %v404 = vsel %vm201, %v340, 0.0
      %v405 = vadd.f32 %v403, %v404
      %v406 = vsel %vm201, %v341, 0.0
      %v407 = vadd.f32 %v405, %v406
      %v408 = vsel %vm201, %v342, 0.0
      %v409 = vadd.f32 %v407, %v408
      %v410 = vsel %vm201, %v343, 0.0
      %v411 = vadd.f32 %v409, %v410
      %v412 = vsel %vm201, %v344, 0.0
      %v413 = vadd.f32 %v411, %v412
      %v414 = vsel %vm201, %v345, 0.0
      %v415 = vadd.f32 %v413, %v414
      %v416 = vsel %vm201, %v346, 0.0
      %v417 = vadd.f32 %v415, %v416
      %v418 = vsel %vm201, %v347, 0.0
      %v419 = vadd.f32 %v417, %v418
      %v420 = vsel %vm201, %v348, 0.0
      %v421 = vadd.f32 %v419, %v420
      %v422 = vsel %vm201, %v349, 0.0
      %v423 = vadd.f32 %v421, %v422
      %v424 = vsel %vm201, %v350, 0.0
      %v425 = vadd.f32 %v423, %v424
      %v426 = vsel %vm201, %v351, 0.0
      %v427 = vadd.f32 %v425, %v426
      %v428 = vsel %vm201, %v352, 0.0
      %v429 = vadd.f32 %v427, %v428
      %v430 = vsel %vm201, %v353, 0.0
      %v431 = vadd.f32 %v429, %v430
      %v432 = vsel %vm201, %v354, 0.0
      %v433 = vadd.f32 %v431, %v432
      %v434 = vsel %vm201, %v355, 0.0
      %v435 = vadd.f32 %v433, %v434
      %v436 = vsel %vm201, %v356, 0.0
      %v437 = vadd.f32 %v435, %v436
      %v438 = vsel %vm201, %v357, 0.0
      %v439 = vadd.f32 %v437, %v438
      %v440 = vsel %vm201, %v358, 0.0
      %v441 = vadd.f32 %v439, %v440
      %v442 = vsel %vm201, %v359, 0.0
      %v443 = vadd.f32 %v441, %v442
      %v444 = vsel %vm201, %v360, 0.0
      %v445 = vadd.f32 %v443, %v444
      %v446 = vsel %vm201, %v361, 0.0
      %v447 = vadd.f32 %v445, %v446
      %v448 = vsel %vm201, %v362, 0.0
      %v449 = vadd.f32 %v447, %v448
      %v450 = vsel %vm201, %v363, 0.0
      %v451 = vadd.f32 %v449, %v450
      %v452 = vsel %vm201, %v364, 0.0
      %v453 = vadd.f32 %v451, %v452
      %v454 = vsel %vm201, %v365, 0.0
      %v455 = vadd.f32 %v453, %v454
      %v456 = vsel %vm201, %v366, 0.0
      %v457 = vadd.f32 %v455, %v456
      %v458 = vsel %vm201, %v367, 0.0
      %v459 = vadd.f32 %v457, %v458
      %v460 = vsel %vm201, %v368, 0.0
      %v461 = vadd.f32 %v459, %v460
      %v462 = vsel %vm201, %v369, 0.0
      %v463 = vadd.f32 %v461, %v462
      %v464 = vsel %vm201, %v370, 0.0
      %v465 = vadd.f32 %v463, %v464
      %v466 = vsel %vm201, %v371, 0.0
      %v467 = vadd.f32 %v465, %v466
      %v468 = vsel %vm201, %v372, 0.0
      %v469 = vadd.f32 %v467, %v468
      %v470 = vsel %vm201, %v373, 0.0
      %v471 = vadd.f32 %v469, %v470
      %v472 = vsel %vm201, %v374, 0.0
      %v473 = vadd.f32 %v471, %v472
      %v474 = vsel %vm201, %v375, 0.0
      %v475 = vadd.f32 %v473, %v474
      %v476 = vsel %vm201, %v376, 0.0
      %v477 = vadd.f32 %v475, %v476
      %v478 = vsel %vm201, %v377, 0.0
      %v479 = vadd.f32 %v477, %v478
      %v480 = vsel %vm201, %v378, 0.0
      %v481 = vadd.f32 %v479, %v480
      %v482 = vsel %vm201, %v379, 0.0
      %v483 = vadd.f32 %v481, %v482
      %v484 = vsel %vm201, %v380, 0.0
      %v485 = vadd.f32 %v483, %v484
      %v486 = vsel %vm201, %v381, 0.0
      %v487 = vadd.f32 %v485, %v486
      %v488 = vsel %vm201, %v382, 0.0
      %v489 = vadd.f32 %v487, %v488
      %v490 = vsel %vm201, %v383, 0.0
      %v491 = vadd.f32 %v489, %v490
      %v492 = vsel %vm201, %v384, 0.0
      %v493 = vadd.f32 %v491, %v492
      %v494 = vsel %vm201, %v385, 0.0
      %v495 = vadd.f32 %v493, %v494
      %v496 = vsel %vm201, %v386, 0.0
      %v497 = vadd.f32 %v495, %v496
      %v498 = vsel %vm201, %v387, 0.0
      %v499 = vadd.f32 %v497, %v498
      %v500 = vsel %vm201, %v388, 0.0
      %v501 = vadd.f32 %v499, %v500
      %v502 = vsel %vm201, %v389, 0.0
      %v503 = vadd.f32 %v501, %v502
      %v504 = vsel %vm201, %v390, 0.0
      %v505 = vadd.f32 %v503, %v504
      %v506 = vsel %vm201, %v391, 0.0
      %v507 = vadd.f32 %v505, %v506
      %v508 = vsel %vm201, %v392, 0.0
      %v509 = vadd.f32 %v507, %v508
      %v510 = vsel %vm201, %v393, 0.0
      %v511 = vadd.f32 %v509, %v510
      %v512 = vsel %vm201, %v394, 0.0
      %v513 = vadd.f32 %v511, %v512
      %v514 = vsel %vm201, %v395, 0.0
      %v515 = vadd.f32 %v513, %v514
      %v516 = vsel %vm201, %v396, 0.0
      %v517 = vadd.f32 %v515, %v516
      %v518 = vsel %vm201, %v397, 0.0
      %v519 = vadd.f32 %v517, %v518
      %v520 = vsel %vm201, %v398, 0.0
      %v521 = vadd.f32 %v519, %v520
      %v522 = vsel %vm201, %v399, 0.0
      %v523 = vadd.f32 %v521, %v522
      %v524 = vsel %vm201, %v400, 0.0
      %v525 = vadd.f32 %v523, %v524
      %v526 = vsel %vm201, %v401, 0.0
      %v527 = vadd.f32 %v525, %v526
      %v528 = vsel %vm201, %v402, 0.0
      %v529 = vadd.f32 %v527, %v528
      %v530 = vrot.slane %v529, 4
      %v531 = vadd.f32 %v529, %v530
      %v532 = vrot.slane %v531, 2
      %v533 = vadd.f32 %v531, %v532
      %v534 = vrot.slane %v533, 1
      %v535 = vadd.f32 %v533, %v534
      %v536 = vadd.f32 %v338, %v535
      %537 = vst.msk [vmem:[%s2] sm:$0x1] %vm336, %v536
      // Predicated region
      $region29: #{_lambda_.111} parent=23 // pred_check
        %p538 = pneg %p53
      $region30: #{_lambda_.111} parent=23 // pred_check_branch
        %540 = sbr.rel (%p538) target = $region32
      $region31: #{_lambda_.111} parent=23 // pred_region
        _
      $region32: #{_lambda_.111} parent=23 // pred_fallthru
        _
      // Predicated region
      $region33: #{_lambda_.111} parent=23 // pred_check
        %p541 = pneg %p74
      $region34: #{_lambda_.111} parent=23 // pred_check_branch
        %543 = sbr.rel (%p541) target = $region36
      $region35: #{_lambda_.111} parent=23 // pred_region
        _
      $region36: #{_lambda_.111} parent=23 // pred_fallthru
        _
      // Predicated region
      $region37: #{_lambda_.111} parent=23 // pred_check
        %p544 = pneg %p53
      $region38: #{_lambda_.111} parent=23 // pred_check_branch
        %546 = sbr.rel (%p544) target = $region40
      $region39: #{_lambda_.111} parent=23 // pred_region
        _
      $region40: #{_lambda_.111} parent=23 // pred_fallthru
        _
      // Predicated region
      $region41: #{_lambda_.111} parent=23 // pred_check
        %p547 = pneg %p74
      $region42: #{_lambda_.111} parent=23 // pred_check_branch
        %549 = sbr.rel (%p547) target = $region44
      $region43: #{_lambda_.111} parent=23 // pred_region
        _
      $region44: #{_lambda_.111} parent=23 // pred_fallthru
        _
    $region24: #{_lambda_.111} parent=5 // pred_fallthru
      _
    %p550 = scmp.le.s32.totalorder 2, %s9
    // Predicated region
    $region45: #{_lambda_.111} parent=5 // pred_check
      %p551 = pneg %p550
    $region46: #{_lambda_.111} parent=5 // pred_check_branch
      %553 = sbr.rel (%p551) target = $region48
    $region47: #{_lambda_.111} parent=5 // pred_region
      %s554 = ssub.s32 %s9, 2
    $region48: #{_lambda_.111} parent=5 // pred_fallthru
      _
  $region6: #{_lambda_.111} parent=0 // loop_footer
    %s13 = sadd.s32 1, %s9
  $region7: #{_lambda_.111} parent=0 // loop_footer_branch
    %8 = sbr.rel target = $region3
  $region8: #{_lambda_.111} parent=0 // loop_exit
    _

// kernel: _lambda_.112
$region0: #{_lambda_.112}
  #allocation0 [shape = 'u32[]', space=smem, size = 0x4, offset = 0x4, fixed_abs, tag = 'smem constant byte address 0x4 - core index']
  #allocation1 [shape = 'u32[144,128]{1,0:T(1,128)}', space=vmem, size = 0x12000, scoped, tag = 'internal scratch']
  %s0 = inlined_call_operand.vmem [shape: f32[2048,4], index: 0, kind: input, shape index: {}]
  %s1 = inlined_call_operand.vmem [shape: f32[2048,4], index: 1, kind: input, shape index: {}]
  %s2 = inlined_call_operand.vmem [shape: f32[1,4], index: 2, kind: input, shape index: {}]
  %s3 = inlined_call_operand.vmem [shape: f32[1,4], index: 3, kind: input, shape index: {}]
  %s4 = inlined_call_operand.vmem [shape: f32[2048,8], index: 4, kind: output, shape index: {}]
  %s5 = sld [smem:[#allocation0]]
  $region49: #{_lambda_.112} parent=0
    _
  %s7 = ssub.s32 1, %s5
  %s8 = scalar_select 0, %s7, %s5
  loop: start=0, step=1, limit=6
  $region2: #{_lambda_.112} parent=0 // loop_pre_header
    _
  $region3: #{_lambda_.112} parent=0 // loop_header
    %s10 = sphi 0, %s14
    %p11 = scmp.ge.s32.totalorder %s10, 6
    %s20 = sphi 0, %s22
    %s23 = sphi 0, %s20
    %s24 = sphi 0, %s23
    %s40 = sphi 0, %s24
    %s46 = sphi 0, %s48
    %s49 = sphi 0, %s46
    %s50 = sphi 0, %s49
    %s66 = sphi 0, %s50
    %s70 = sphi 0, %s70
    %s72 = sphi 0, %s70
    %s73 = sphi 0, %s72
    %s87 = sphi 0, %s73
    %s91 = sphi 0, %s91
    %s93 = sphi 0, %s91
    %s94 = sphi 0, %s93
    %s108 = sphi 0, %s94
    %s114 = sphi 0, %s116
    %s117 = sphi 0, %s114
    %s118 = sphi 0, %s117
    %s134 = sphi 0, %s118
  $region4: #{_lambda_.112} parent=0 // loop_header_branch
    %13 = sbr.rel (%p11) target = $region8
  $region5: #{_lambda_.112} parent=0 // loop_body
    %s15 = ssub.s32 %s10, 1
    %s16 = ssub.s32 %s10, 2
    %s17 = sadd.s32 %s10, 1
    %s18 = ssub.s32 %s10, %s17
    %p19 = scmp.eq.s32.totalorder %s18, 0
    %s21 = sadd.s32 %s20, 1
    %s22 = scalar_select %p19, %s20, %s21
    %p25 = pneg %p19
    %p26 = scmp.eq.s32.totalorder %s10, 3
    %p27 = por %p25, %p26
    %p28 = scmp.ne.s32.totalorder %s20, %s23
    %p29 = scmp.eq.s32.totalorder %s10, 0
    %p30 = por %p28, %p29
    %p31 = scmp.ne.s32.totalorder %s20, %s23
    %p32 = scmp.eq.s32.totalorder %s15, 3
    %p33 = por %p31, %p32
    %p34 = scmp.ne.s32.totalorder %s23, %s24
    %p35 = scmp.eq.s32.totalorder %s15, 0
    %p36 = por %p34, %p35
    %p37 = scmp.ne.s32.totalorder %s23, %s24
    %p38 = scmp.eq.s32.totalorder %s16, 3
    %p39 = por %p37, %p38
    %p41 = scmp.ne.s32.totalorder %s24, %s40
    %p42 = scmp.eq.s32.totalorder %s16, 0
    %p43 = por %p41, %p42
    %s44 = ssub.s32 %s10, %s17
    %p45 = scmp.eq.s32.totalorder %s44, 0
    %s47 = sadd.s32 %s46, 1
    %s48 = scalar_select %p45, %s46, %s47
    %p51 = pneg %p45
    %p52 = scmp.eq.s32.totalorder %s10, 3
    %p53 = por %p51, %p52
    %p54 = scmp.ne.s32.totalorder %s46, %s49
    %p55 = scmp.eq.s32.totalorder %s10, 0
    %p56 = por %p54, %p55
    %p57 = scmp.ne.s32.totalorder %s46, %s49
    %p58 = scmp.eq.s32.totalorder %s15, 3
    %p59 = por %p57, %p58
    %p60 = scmp.ne.s32.totalorder %s49, %s50
    %p61 = scmp.eq.s32.totalorder %s15, 0
    %p62 = por %p60, %p61
    %p63 = scmp.ne.s32.totalorder %s49, %s50
    %p64 = scmp.eq.s32.totalorder %s16, 3
    %p65 = por %p63, %p64
    %p67 = scmp.ne.s32.totalorder %s50, %s66
    %p68 = scmp.eq.s32.totalorder %s16, 0
    %p69 = por %p67, %p68
    %s71 = sadd.s32 %s70, 1
    %p74 = scmp.eq.s32.totalorder %s10, 3
    %p75 = scmp.ne.s32.totalorder %s70, %s72
    %p76 = scmp.eq.s32.totalorder %s10, 0
    %p77 = por %p75, %p76
    %p78 = scmp.ne.s32.totalorder %s70, %s72
    %p79 = scmp.eq.s32.totalorder %s15, 3
    %p80 = por %p78, %p79
    %p81 = scmp.ne.s32.totalorder %s72, %s73
    %p82 = scmp.eq.s32.totalorder %s15, 0
    %p83 = por %p81, %p82
    %p84 = scmp.ne.s32.totalorder %s72, %s73
    %p85 = scmp.eq.s32.totalorder %s16, 3
    %p86 = por %p84, %p85
    %p88 = scmp.ne.s32.totalorder %s73, %s87
    %p89 = scmp.eq.s32.totalorder %s16, 0
    %p90 = por %p88, %p89
    %s92 = sadd.s32 %s91, 1
    %p95 = scmp.eq.s32.totalorder %s10, 3
    %p96 = scmp.ne.s32.totalorder %s91, %s93
    %p97 = scmp.eq.s32.totalorder %s10, 0
    %p98 = por %p96, %p97
    %p99 = scmp.ne.s32.totalorder %s91, %s93
    %p100 = scmp.eq.s32.totalorder %s15, 3
    %p101 = por %p99, %p100
    %p102 = scmp.ne.s32.totalorder %s93, %s94
    %p103 = scmp.eq.s32.totalorder %s15, 0
    %p104 = por %p102, %p103
    %p105 = scmp.ne.s32.totalorder %s93, %s94
    %p106 = scmp.eq.s32.totalorder %s16, 3
    %p107 = por %p105, %p106
    %p109 = scmp.ne.s32.totalorder %s94, %s108
    %p110 = scmp.eq.s32.totalorder %s16, 0
    %p111 = por %p109, %p110
    %s112 = ssub.s32 %s10, %s17
    %p113 = scmp.eq.s32.totalorder %s112, 0
    %s115 = sadd.s32 %s114, 1
    %s116 = scalar_select %p113, %s114, %s115
    %p119 = pneg %p113
    %p120 = scmp.eq.s32.totalorder %s10, 3
    %p121 = por %p119, %p120
    %p122 = scmp.ne.s32.totalorder %s114, %s117
    %p123 = scmp.eq.s32.totalorder %s10, 0
    %p124 = por %p122, %p123
    %p125 = scmp.ne.s32.totalorder %s114, %s117
    %p126 = scmp.eq.s32.totalorder %s15, 3
    %p127 = por %p125, %p126
    %p128 = scmp.ne.s32.totalorder %s117, %s118
    %p129 = scmp.eq.s32.totalorder %s15, 0
    %p130 = por %p128, %p129
    %p131 = scmp.ne.s32.totalorder %s117, %s118
    %p132 = scmp.eq.s32.totalorder %s16, 3
    %p133 = por %p131, %p132
    %p135 = scmp.ne.s32.totalorder %s118, %s134
    %p136 = scmp.eq.s32.totalorder %s16, 0
    %p137 = por %p135, %p136
    %p138 = scmp.le.s32.totalorder 1, %s10
    %p139 = scmp.lt.s32.totalorder %s10, 5
    %p140 = pnand %p138, %p139
    %p141 = pneg %p140
    // Predicated region
    $region9: #{_lambda_.112} parent=5 // pred_check
      _
    $region10: #{_lambda_.112} parent=5 // pred_check_branch
      %143 = sbr.rel (%p140) target = $region12
    $region11: #{_lambda_.112} parent=5 // pred_region
      %s144 = ssub.s32 %s10, 1
      // Predicated region
      $region13: #{_lambda_.112} parent=11 // pred_check
        %p145 = pneg %p83
      $region14: #{_lambda_.112} parent=11 // pred_check_branch
        %147 = sbr.rel (%p145) target = $region16
      $region15: #{_lambda_.112} parent=11 // pred_region
        _
      $region16: #{_lambda_.112} parent=11 // pred_fallthru
        _
      // Predicated region
      $region17: #{_lambda_.112} parent=11 // pred_check
        %p148 = pneg %p104
      $region18: #{_lambda_.112} parent=11 // pred_check_branch
        %150 = sbr.rel (%p148) target = $region20
      $region19: #{_lambda_.112} parent=11 // pred_region
        _
      $region20: #{_lambda_.112} parent=11 // pred_fallthru
        _
    $region12: #{_lambda_.112} parent=5 // pred_fallthru
      _
    %p151 = scmp.lt.s32.totalorder %s10, 4
    // Predicated region
    $region21: #{_lambda_.112} parent=5 // pred_check
      %p152 = pneg %p151
    $region22: #{_lambda_.112} parent=5 // pred_check_branch
      %154 = sbr.rel (%p152) target = $region24
    $region23: #{_lambda_.112} parent=5 // pred_region
      // Predicated region
      $region25: #{_lambda_.112} parent=23 // pred_check
        %p155 = pneg %p30
      $region26: #{_lambda_.112} parent=23 // pred_check_branch
        %157 = sbr.rel (%p155) target = $region28
      $region27: #{_lambda_.112} parent=23 // pred_region
        %s158 = smul.u32 64, %s10
        %p159 = scmp.lt.s32.totalorder %s158, 255
        %s160 = scalar_select %p159, %s158, 255
        %s161 = smul.addr %s160, 8
        %s162 = scalar_lea.vmem %s0, %s161
        %s163 = smul.u32 64, %s10
      $region28: #{_lambda_.112} parent=23 // pred_fallthru
        _
      // Predicated region
      $region29: #{_lambda_.112} parent=23 // pred_check
        %p164 = pneg %p56
      $region30: #{_lambda_.112} parent=23 // pred_check_branch
        %166 = sbr.rel (%p164) target = $region32
      $region31: #{_lambda_.112} parent=23 // pred_region
        %s167 = smul.u32 64, %s10
        %p168 = scmp.lt.s32.totalorder %s167, 255
        %s169 = scalar_select %p168, %s167, 255
        %s170 = smul.addr %s169, 8
        %s171 = scalar_lea.vmem %s1, %s170
        %s172 = smul.u32 64, %s10
      $region32: #{_lambda_.112} parent=23 // pred_fallthru
        _
    $region24: #{_lambda_.112} parent=5 // pred_fallthru
      _
    %p173 = scmp.le.s32.totalorder 1, %s10
    %p174 = scmp.lt.s32.totalorder %s10, 5
    %p175 = pnand %p173, %p174
    %p176 = pneg %p175
    // Predicated region
    $region33: #{_lambda_.112} parent=5 // pred_check
      _
    $region34: #{_lambda_.112} parent=5 // pred_check_branch
      %178 = sbr.rel (%p175) target = $region36
    $region35: #{_lambda_.112} parent=5 // pred_region
      %s179 = ssub.s32 %s10, 1
      %s180 = smul.u32 64, %s15
      %p181 = scmp.lt.s32.totalorder %s180, 255
      %s182 = scalar_select %p181, %s180, 255
      %s183 = smul.addr %s182, 8
      %s184 = scalar_lea.vmem %s0, %s183
      %p185 = pneg %p36
      %p186 = pneg %p33
      %s187 = smul.u32 64, %s15
      %p188 = scmp.lt.s32.totalorder %s187, 255
      %s189 = scalar_select %p188, %s187, 255
      %s190 = smul.addr %s189, 8
      %s191 = scalar_lea.vmem %s1, %s190
      %p192 = pneg %p62
      %p193 = pneg %p59
      %p194 = pneg %p83
      %p195 = pneg %p80
      %p196 = pneg %p104
      %p197 = pneg %p101
      %p198 = pneg %p130
      %p199 = pneg %p127
      %s200 = smul.u32 64, %s15
      %p201 = scmp.lt.s32.totalorder %s200, 255
      %s202 = scalar_select %p201, %s200, 255
      %s203 = smul.addr %s202, 8
      %s204 = scalar_lea.vmem %s4, %s203
      %s205 = smul.u32 64, %s15
      %p206 = scmp.lt.s32.totalorder %s205, 255
      %s207 = scalar_select %p206, %s205, 255
      %s208 = smul.addr %s207, 8
      %s209 = scalar_lea.vmem %s0, %s208
      %s210 = smul.u32 64, %s15
      %s211 = smul.u32 64, %s15
      %p212 = scmp.lt.s32.totalorder %s211, 255
      %s213 = scalar_select %p212, %s211, 255
      %s214 = smul.addr %s213, 8
      %s215 = scalar_lea.vmem %s1, %s214
      %s216 = smul.u32 64, %s15
      %s217 = smul.u32 64, %s15
      %p218 = scmp.lt.s32.totalorder %s217, 255
      %s219 = scalar_select %p218, %s217, 255
      %s220 = smul.addr %s219, 8
      %s221 = scalar_lea.vmem %s4, %s220
      %s222 = smul.u32 64, %s15
      %v223 = vld [vmem:[%s215] sm:$0xff]
      %v224 = vld [vmem:[%s215 + $0x8] sm:$0xff]
      %v225 = vld [vmem:[%s215 + $0x10] sm:$0xff]
      %v226 = vld [vmem:[%s215 + $0x18] sm:$0xff]
      %v227 = vld [vmem:[%s215 + $0x20] sm:$0xff]
      %v228 = vld [vmem:[%s215 + $0x28] sm:$0xff]
      %v229 = vld [vmem:[%s215 + $0x30] sm:$0xff]
      %v230 = vld [vmem:[%s215 + $0x38] sm:$0xff]
      %v231 = vld [vmem:[%s215 + $0x40] sm:$0xff]
      %v232 = vld [vmem:[%s215 + $0x48] sm:$0xff]
      %v233 = vld [vmem:[%s215 + $0x50] sm:$0xff]
      %v234 = vld [vmem:[%s215 + $0x58] sm:$0xff]
      %v235 = vld [vmem:[%s215 + $0x60] sm:$0xff]
      %v236 = vld [vmem:[%s215 + $0x68] sm:$0xff]
      %v237 = vld [vmem:[%s215 + $0x70] sm:$0xff]
      %v238 = vld [vmem:[%s215 + $0x78] sm:$0xff]
      %v239 = vld [vmem:[%s215 + $0x80] sm:$0xff]
      %v240 = vld [vmem:[%s215 + $0x88] sm:$0xff]
      %v241 = vld [vmem:[%s215 + $0x90] sm:$0xff]
      %v242 = vld [vmem:[%s215 + $0x98] sm:$0xff]
      %v243 = vld [vmem:[%s215 + $0xa0] sm:$0xff]
      %v244 = vld [vmem:[%s215 + $0xa8] sm:$0xff]
      %v245 = vld [vmem:[%s215 + $0xb0] sm:$0xff]
      %v246 = vld [vmem:[%s215 + $0xb8] sm:$0xff]
      %v247 = vld [vmem:[%s215 + $0xc0] sm:$0xff]
      %v248 = vld [vmem:[%s215 + $0xc8] sm:$0xff]
      %v249 = vld [vmem:[%s215 + $0xd0] sm:$0xff]
      %v250 = vld [vmem:[%s215 + $0xd8] sm:$0xff]
      %v251 = vld [vmem:[%s215 + $0xe0] sm:$0xff]
      %v252 = vld [vmem:[%s215 + $0xe8] sm:$0xff]
      %v253 = vld [vmem:[%s215 + $0xf0] sm:$0xff]
      %v254 = vld [vmem:[%s215 + $0xf8] sm:$0xff]
      %v255 = vld [vmem:[%s215 + $0x100] sm:$0xff]
      %v256 = vld [vmem:[%s215 + $0x108] sm:$0xff]
      %v257 = vld [vmem:[%s215 + $0x110] sm:$0xff]
      %v258 = vld [vmem:[%s215 + $0x118] sm:$0xff]
      %v259 = vld [vmem:[%s215 + $0x120] sm:$0xff]
      %v260 = vld [vmem:[%s215 + $0x128] sm:$0xff]
      %v261 = vld [vmem:[%s215 + $0x130] sm:$0xff]
      %v262 = vld [vmem:[%s215 + $0x138] sm:$0xff]
      %v263 = vld [vmem:[%s215 + $0x140] sm:$0xff]
      %v264 = vld [vmem:[%s215 + $0x148] sm:$0xff]
      %v265 = vld [vmem:[%s215 + $0x150] sm:$0xff]
      %v266 = vld [vmem:[%s215 + $0x158] sm:$0xff]
      %v267 = vld [vmem:[%s215 + $0x160] sm:$0xff]
      %v268 = vld [vmem:[%s215 + $0x168] sm:$0xff]
      %v269 = vld [vmem:[%s215 + $0x170] sm:$0xff]
      %v270 = vld [vmem:[%s215 + $0x178] sm:$0xff]
      %v271 = vld [vmem:[%s215 + $0x180] sm:$0xff]
      %v272 = vld [vmem:[%s215 + $0x188] sm:$0xff]
      %v273 = vld [vmem:[%s215 + $0x190] sm:$0xff]
      %v274 = vld [vmem:[%s215 + $0x198] sm:$0xff]
      %v275 = vld [vmem:[%s215 + $0x1a0] sm:$0xff]
      %v276 = vld [vmem:[%s215 + $0x1a8] sm:$0xff]
      %v277 = vld [vmem:[%s215 + $0x1b0] sm:$0xff]
      %v278 = vld [vmem:[%s215 + $0x1b8] sm:$0xff]
      %v279 = vld [vmem:[%s215 + $0x1c0] sm:$0xff]
      %v280 = vld [vmem:[%s215 + $0x1c8] sm:$0xff]
      %v281 = vld [vmem:[%s215 + $0x1d0] sm:$0xff]
      %v282 = vld [vmem:[%s215 + $0x1d8] sm:$0xff]
      %v283 = vld [vmem:[%s215 + $0x1e0] sm:$0xff]
      %v284 = vld [vmem:[%s215 + $0x1e8] sm:$0xff]
      %v285 = vld [vmem:[%s215 + $0x1f0] sm:$0xff]
      %v286 = vld [vmem:[%s215 + $0x1f8] sm:$0xff]
      %v287 = vld [vmem:[%s2] sm:$0x1]
      %v289 = vlaneseq
      %v290 = vshrl.u32 %v289, 7
      %v291 = vsub.s32 0, %v290
      %v292 = vrot.slane %v287, %v291
      %v294 = vmul.f32 %v223, %v292
      %v295 = vmul.f32 %v224, %v292
      %v296 = vmul.f32 %v225, %v292
      %v297 = vmul.f32 %v226, %v292
      %v298 = vmul.f32 %v227, %v292
      %v299 = vmul.f32 %v228, %v292
      %v300 = vmul.f32 %v229, %v292
      %v301 = vmul.f32 %v230, %v292
      %v302 = vmul.f32 %v231, %v292
      %v303 = vmul.f32 %v232, %v292
      %v304 = vmul.f32 %v233, %v292
      %v305 = vmul.f32 %v234, %v292
      %v306 = vmul.f32 %v235, %v292
      %v307 = vmul.f32 %v236, %v292
      %v308 = vmul.f32 %v237, %v292
      %v309 = vmul.f32 %v238, %v292
      %v310 = vmul.f32 %v239, %v292
      %v311 = vmul.f32 %v240, %v292
      %v312 = vmul.f32 %v241, %v292
      %v313 = vmul.f32 %v242, %v292
      %v314 = vmul.f32 %v243, %v292
      %v315 = vmul.f32 %v244, %v292
      %v316 = vmul.f32 %v245, %v292
      %v317 = vmul.f32 %v246, %v292
      %v318 = vmul.f32 %v247, %v292
      %v319 = vmul.f32 %v248, %v292
      %v320 = vmul.f32 %v249, %v292
      %v321 = vmul.f32 %v250, %v292
      %v322 = vmul.f32 %v251, %v292
      %v323 = vmul.f32 %v252, %v292
      %v324 = vmul.f32 %v253, %v292
      %v325 = vmul.f32 %v254, %v292
      %v326 = vmul.f32 %v255, %v292
      %v327 = vmul.f32 %v256, %v292
      %v328 = vmul.f32 %v257, %v292
      %v329 = vmul.f32 %v258, %v292
      %v330 = vmul.f32 %v259, %v292
      %v331 = vmul.f32 %v260, %v292
      %v332 = vmul.f32 %v261, %v292
      %v333 = vmul.f32 %v262, %v292
      %v334 = vmul.f32 %v263, %v292
      %v335 = vmul.f32 %v264, %v292
      %v336 = vmul.f32 %v265, %v292
      %v337 = vmul.f32 %v266, %v292
      %v338 = vmul.f32 %v267, %v292
      %v339 = vmul.f32 %v268, %v292
      %v340 = vmul.f32 %v269, %v292
      %v341 = vmul.f32 %v270, %v292
      %v342 = vmul.f32 %v271, %v292
      %v343 = vmul.f32 %v272, %v292
      %v344 = vmul.f32 %v273, %v292
      %v345 = vmul.f32 %v274, %v292
      %v346 = vmul.f32 %v275, %v292
      %v347 = vmul.f32 %v276, %v292
      %v348 = vmul.f32 %v277, %v292
      %v349 = vmul.f32 %v278, %v292
      %v350 = vmul.f32 %v279, %v292
      %v351 = vmul.f32 %v280, %v292
      %v352 = vmul.f32 %v281, %v292
      %v353 = vmul.f32 %v282, %v292
      %v354 = vmul.f32 %v283, %v292
      %v355 = vmul.f32 %v284, %v292
      %v356 = vmul.f32 %v285, %v292
      %v357 = vmul.f32 %v286, %v292
      %v358 = vld [vmem:[%s3] sm:$0x1]
      %v360 = vlaneseq
      %v361 = vshrl.u32 %v360, 7
      %v362 = vsub.s32 0, %v361
      %v363 = vrot.slane %v358, %v362
      %v365 = vadd.f32 %v294, %v363
      %v366 = vadd.f32 %v295, %v363
      %v367 = vadd.f32 %v296, %v363
      %v368 = vadd.f32 %v297, %v363
      %v369 = vadd.f32 %v298, %v363
      %v370 = vadd.f32 %v299, %v363
      %v371 = vadd.f32 %v300, %v363
      %v372 = vadd.f32 %v301, %v363
      %v373 = vadd.f32 %v302, %v363
      %v374 = vadd.f32 %v303, %v363
      %v375 = vadd.f32 %v304, %v363
      %v376 = vadd.f32 %v305, %v363
      %v377 = vadd.f32 %v306, %v363
      %v378 = vadd.f32 %v307, %v363
      %v379 = vadd.f32 %v308, %v363
      %v380 = vadd.f32 %v309, %v363
      %v381 = vadd.f32 %v310, %v363
      %v382 = vadd.f32 %v311, %v363
      %v383 = vadd.f32 %v312, %v363
      %v384 = vadd.f32 %v313, %v363
      %v385 = vadd.f32 %v314, %v363
      %v386 = vadd.f32 %v315, %v363
      %v387 = vadd.f32 %v316, %v363
      %v388 = vadd.f32 %v317, %v363
      %v389 = vadd.f32 %v318, %v363
      %v390 = vadd.f32 %v319, %v363
      %v391 = vadd.f32 %v320, %v363
      %v392 = vadd.f32 %v321, %v363
      %v393 = vadd.f32 %v322, %v363
      %v394 = vadd.f32 %v323, %v363
      %v395 = vadd.f32 %v324, %v363
      %v396 = vadd.f32 %v325, %v363
      %v397 = vadd.f32 %v326, %v363
      %v398 = vadd.f32 %v327, %v363
      %v399 = vadd.f32 %v328, %v363
      %v400 = vadd.f32 %v329, %v363
      %v401 = vadd.f32 %v330, %v363
      %v402 = vadd.f32 %v331, %v363
      %v403 = vadd.f32 %v332, %v363
      %v404 = vadd.f32 %v333, %v363
      %v405 = vadd.f32 %v334, %v363
      %v406 = vadd.f32 %v335, %v363
      %v407 = vadd.f32 %v336, %v363
      %v408 = vadd.f32 %v337, %v363
      %v409 = vadd.f32 %v338, %v363
      %v410 = vadd.f32 %v339, %v363
      %v411 = vadd.f32 %v340, %v363
      %v412 = vadd.f32 %v341, %v363
      %v413 = vadd.f32 %v342, %v363
      %v414 = vadd.f32 %v343, %v363
      %v415 = vadd.f32 %v344, %v363
      %v416 = vadd.f32 %v345, %v363
      %v417 = vadd.f32 %v346, %v363
      %v418 = vadd.f32 %v347, %v363
      %v419 = vadd.f32 %v348, %v363
      %v420 = vadd.f32 %v349, %v363
      %v421 = vadd.f32 %v350, %v363
      %v422 = vadd.f32 %v351, %v363
      %v423 = vadd.f32 %v352, %v363
      %v424 = vadd.f32 %v353, %v363
      %v425 = vadd.f32 %v354, %v363
      %v426 = vadd.f32 %v355, %v363
      %v427 = vadd.f32 %v356, %v363
      %v428 = vadd.f32 %v357, %v363
      %v429 = vld [vmem:[%s209] sm:$0xff]
      %v430 = vld [vmem:[%s209 + $0x8] sm:$0xff]
      %v431 = vld [vmem:[%s209 + $0x10] sm:$0xff]
      %v432 = vld [vmem:[%s209 + $0x18] sm:$0xff]
      %v433 = vld [vmem:[%s209 + $0x20] sm:$0xff]
      %v434 = vld [vmem:[%s209 + $0x28] sm:$0xff]
      %v435 = vld [vmem:[%s209 + $0x30] sm:$0xff]
      %v436 = vld [vmem:[%s209 + $0x38] sm:$0xff]
      %v437 = vld [vmem:[%s209 + $0x40] sm:$0xff]
      %v438 = vld [vmem:[%s209 + $0x48] sm:$0xff]
      %v439 = vld [vmem:[%s209 + $0x50] sm:$0xff]
      %v440 = vld [vmem:[%s209 + $0x58] sm:$0xff]
      %v441 = vld [vmem:[%s209 + $0x60] sm:$0xff]
      %v442 = vld [vmem:[%s209 + $0x68] sm:$0xff]
      %v443 = vld [vmem:[%s209 + $0x70] sm:$0xff]
      %v444 = vld [vmem:[%s209 + $0x78] sm:$0xff]
      %v445 = vld [vmem:[%s209 + $0x80] sm:$0xff]
      %v446 = vld [vmem:[%s209 + $0x88] sm:$0xff]
      %v447 = vld [vmem:[%s209 + $0x90] sm:$0xff]
      %v448 = vld [vmem:[%s209 + $0x98] sm:$0xff]
      %v449 = vld [vmem:[%s209 + $0xa0] sm:$0xff]
      %v450 = vld [vmem:[%s209 + $0xa8] sm:$0xff]
      %v451 = vld [vmem:[%s209 + $0xb0] sm:$0xff]
      %v452 = vld [vmem:[%s209 + $0xb8] sm:$0xff]
      %v453 = vld [vmem:[%s209 + $0xc0] sm:$0xff]
      %v454 = vld [vmem:[%s209 + $0xc8] sm:$0xff]
      %v455 = vld [vmem:[%s209 + $0xd0] sm:$0xff]
      %v456 = vld [vmem:[%s209 + $0xd8] sm:$0xff]
      %v457 = vld [vmem:[%s209 + $0xe0] sm:$0xff]
      %v458 = vld [vmem:[%s209 + $0xe8] sm:$0xff]
      %v459 = vld [vmem:[%s209 + $0xf0] sm:$0xff]
      %v460 = vld [vmem:[%s209 + $0xf8] sm:$0xff]
      %v461 = vld [vmem:[%s209 + $0x100] sm:$0xff]
      %v462 = vld [vmem:[%s209 + $0x108] sm:$0xff]
      %v463 = vld [vmem:[%s209 + $0x110] sm:$0xff]
      %v464 = vld [vmem:[%s209 + $0x118] sm:$0xff]
      %v465 = vld [vmem:[%s209 + $0x120] sm:$0xff]
      %v466 = vld [vmem:[%s209 + $0x128] sm:$0xff]
      %v467 = vld [vmem:[%s209 + $0x130] sm:$0xff]
      %v468 = vld [vmem:[%s209 + $0x138] sm:$0xff]
      %v469 = vld [vmem:[%s209 + $0x140] sm:$0xff]
      %v470 = vld [vmem:[%s209 + $0x148] sm:$0xff]
      %v471 = vld [vmem:[%s209 + $0x150] sm:$0xff]
      %v472 = vld [vmem:[%s209 + $0x158] sm:$0xff]
      %v473 = vld [vmem:[%s209 + $0x160] sm:$0xff]
      %v474 = vld [vmem:[%s209 + $0x168] sm:$0xff]
      %v475 = vld [vmem:[%s209 + $0x170] sm:$0xff]
      %v476 = vld [vmem:[%s209 + $0x178] sm:$0xff]
      %v477 = vld [vmem:[%s209 + $0x180] sm:$0xff]
      %v478 = vld [vmem:[%s209 + $0x188] sm:$0xff]
      %v479 = vld [vmem:[%s209 + $0x190] sm:$0xff]
      %v480 = vld [vmem:[%s209 + $0x198] sm:$0xff]
      %v481 = vld [vmem:[%s209 + $0x1a0] sm:$0xff]
      %v482 = vld [vmem:[%s209 + $0x1a8] sm:$0xff]
      %v483 = vld [vmem:[%s209 + $0x1b0] sm:$0xff]
      %v484 = vld [vmem:[%s209 + $0x1b8] sm:$0xff]
      %v485 = vld [vmem:[%s209 + $0x1c0] sm:$0xff]
      %v486 = vld [vmem:[%s209 + $0x1c8] sm:$0xff]
      %v487 = vld [vmem:[%s209 + $0x1d0] sm:$0xff]
      %v488 = vld [vmem:[%s209 + $0x1d8] sm:$0xff]
      %v489 = vld [vmem:[%s209 + $0x1e0] sm:$0xff]
      %v490 = vld [vmem:[%s209 + $0x1e8] sm:$0xff]
      %v491 = vld [vmem:[%s209 + $0x1f0] sm:$0xff]
      %v492 = vld [vmem:[%s209 + $0x1f8] sm:$0xff]
      %557 = vrot.lane.b32.xlu0 %v365, 4
      %v558 = vpop.permute.xlu0 %557
      %559 = vrot.lane.b32.xlu0 %v366, 4
      %v560 = vpop.permute.xlu0 %559
      %561 = vrot.lane.b32.xlu0 %v367, 4
      %v562 = vpop.permute.xlu0 %561
      %563 = vrot.lane.b32.xlu0 %v368, 4
      %v564 = vpop.permute.xlu0 %563
      %565 = vrot.lane.b32.xlu0 %v369, 4
      %v566 = vpop.permute.xlu0 %565
      %567 = vrot.lane.b32.xlu0 %v370, 4
      %v568 = vpop.permute.xlu0 %567
      %569 = vrot.lane.b32.xlu0 %v371, 4
      %v570 = vpop.permute.xlu0 %569
      %571 = vrot.lane.b32.xlu0 %v372, 4
      %v572 = vpop.permute.xlu0 %571
      %573 = vrot.lane.b32.xlu0 %v373, 4
      %v574 = vpop.permute.xlu0 %573
      %575 = vrot.lane.b32.xlu0 %v374, 4
      %v576 = vpop.permute.xlu0 %575
      %577 = vrot.lane.b32.xlu0 %v375, 4
      %v578 = vpop.permute.xlu0 %577
      %579 = vrot.lane.b32.xlu0 %v376, 4
      %v580 = vpop.permute.xlu0 %579
      %581 = vrot.lane.b32.xlu0 %v377, 4
      %v582 = vpop.permute.xlu0 %581
      %583 = vrot.lane.b32.xlu0 %v378, 4
      %v584 = vpop.permute.xlu0 %583
      %585 = vrot.lane.b32.xlu0 %v379, 4
      %v586 = vpop.permute.xlu0 %585
      %587 = vrot.lane.b32.xlu0 %v380, 4
      %v588 = vpop.permute.xlu0 %587
      %589 = vrot.lane.b32.xlu0 %v381, 4
      %v590 = vpop.permute.xlu0 %589
      %591 = vrot.lane.b32.xlu0 %v382, 4
      %v592 = vpop.permute.xlu0 %591
      %593 = vrot.lane.b32.xlu0 %v383, 4
      %v594 = vpop.permute.xlu0 %593
      %595 = vrot.lane.b32.xlu0 %v384, 4
      %v596 = vpop.permute.xlu0 %595
      %597 = vrot.lane.b32.xlu0 %v385, 4
      %v598 = vpop.permute.xlu0 %597
      %599 = vrot.lane.b32.xlu0 %v386, 4
      %v600 = vpop.permute.xlu0 %599
      %601 = vrot.lane.b32.xlu0 %v387, 4
      %v602 = vpop.permute.xlu0 %601
      %603 = vrot.lane.b32.xlu0 %v388, 4
      %v604 = vpop.permute.xlu0 %603
      %605 = vrot.lane.b32.xlu0 %v389, 4
      %v606 = vpop.permute.xlu0 %605
      %607 = vrot.lane.b32.xlu0 %v390, 4
      %v608 = vpop.permute.xlu0 %607
      %609 = vrot.lane.b32.xlu0 %v391, 4
      %v610 = vpop.permute.xlu0 %609
      %611 = vrot.lane.b32.xlu0 %v392, 4
      %v612 = vpop.permute.xlu0 %611
      %613 = vrot.lane.b32.xlu0 %v393, 4
      %v614 = vpop.permute.xlu0 %613
      %615 = vrot.lane.b32.xlu0 %v394, 4
      %v616 = vpop.permute.xlu0 %615
      %617 = vrot.lane.b32.xlu0 %v395, 4
      %v618 = vpop.permute.xlu0 %617
      %619 = vrot.lane.b32.xlu0 %v396, 4
      %v620 = vpop.permute.xlu0 %619
      %621 = vrot.lane.b32.xlu0 %v397, 4
      %v622 = vpop.permute.xlu0 %621
      %623 = vrot.lane.b32.xlu0 %v398, 4
      %v624 = vpop.permute.xlu0 %623
      %625 = vrot.lane.b32.xlu0 %v399, 4
      %v626 = vpop.permute.xlu0 %625
      %627 = vrot.lane.b32.xlu0 %v400, 4
      %v628 = vpop.permute.xlu0 %627
      %629 = vrot.lane.b32.xlu0 %v401, 4
      %v630 = vpop.permute.xlu0 %629
      %631 = vrot.lane.b32.xlu0 %v402, 4
      %v632 = vpop.permute.xlu0 %631
      %633 = vrot.lane.b32.xlu0 %v403, 4
      %v634 = vpop.permute.xlu0 %633
      %635 = vrot.lane.b32.xlu0 %v404, 4
      %v636 = vpop.permute.xlu0 %635
      %637 = vrot.lane.b32.xlu0 %v405, 4
      %v638 = vpop.permute.xlu0 %637
      %639 = vrot.lane.b32.xlu0 %v406, 4
      %v640 = vpop.permute.xlu0 %639
      %641 = vrot.lane.b32.xlu0 %v407, 4
      %v642 = vpop.permute.xlu0 %641
      %643 = vrot.lane.b32.xlu0 %v408, 4
      %v644 = vpop.permute.xlu0 %643
      %645 = vrot.lane.b32.xlu0 %v409, 4
      %v646 = vpop.permute.xlu0 %645
      %647 = vrot.lane.b32.xlu0 %v410, 4
      %v648 = vpop.permute.xlu0 %647
      %649 = vrot.lane.b32.xlu0 %v411, 4
      %v650 = vpop.permute.xlu0 %649
      %651 = vrot.lane.b32.xlu0 %v412, 4
      %v652 = vpop.permute.xlu0 %651
      %653 = vrot.lane.b32.xlu0 %v413, 4
      %v654 = vpop.permute.xlu0 %653
      %655 = vrot.lane.b32.xlu0 %v414, 4
      %v656 = vpop.permute.xlu0 %655
      %657 = vrot.lane.b32.xlu0 %v415, 4
      %v658 = vpop.permute.xlu0 %657
      %659 = vrot.lane.b32.xlu0 %v416, 4
      %v660 = vpop.permute.xlu0 %659
      %661 = vrot.lane.b32.xlu0 %v417, 4
      %v662 = vpop.permute.xlu0 %661
      %663 = vrot.lane.b32.xlu0 %v418, 4
      %v664 = vpop.permute.xlu0 %663
      %665 = vrot.lane.b32.xlu0 %v419, 4
      %v666 = vpop.permute.xlu0 %665
      %667 = vrot.lane.b32.xlu0 %v420, 4
      %v668 = vpop.permute.xlu0 %667
      %669 = vrot.lane.b32.xlu0 %v421, 4
      %v670 = vpop.permute.xlu0 %669
      %671 = vrot.lane.b32.xlu0 %v422, 4
      %v672 = vpop.permute.xlu0 %671
      %673 = vrot.lane.b32.xlu0 %v423, 4
      %v674 = vpop.permute.xlu0 %673
      %675 = vrot.lane.b32.xlu0 %v424, 4
      %v676 = vpop.permute.xlu0 %675
      %677 = vrot.lane.b32.xlu0 %v425, 4
      %v678 = vpop.permute.xlu0 %677
      %679 = vrot.lane.b32.xlu0 %v426, 4
      %v680 = vpop.permute.xlu0 %679
      %681 = vrot.lane.b32.xlu0 %v427, 4
      %v682 = vpop.permute.xlu0 %681
      %683 = vrot.lane.b32.xlu0 %v428, 4
      %v684 = vpop.permute.xlu0 %683
      %vm749 = vcmask 31744
      %v750 = vsel %vm749, %v429, %v558
      %v751 = vsel %vm749, %v430, %v560
      %v752 = vsel %vm749, %v431, %v562
      %v753 = vsel %vm749, %v432, %v564
      %v754 = vsel %vm749, %v433, %v566
      %v755 = vsel %vm749, %v434, %v568
      %v756 = vsel %vm749, %v435, %v570
      %v757 = vsel %vm749, %v436, %v572
      %v758 = vsel %vm749, %v437, %v574
      %v759 = vsel %vm749, %v438, %v576
      %v760 = vsel %vm749, %v439, %v578
      %v761 = vsel %vm749, %v440, %v580
      %v762 = vsel %vm749, %v441, %v582
      %v763 = vsel %vm749, %v442, %v584
      %v764 = vsel %vm749, %v443, %v586
      %v765 = vsel %vm749, %v444, %v588
      %v766 = vsel %vm749, %v445, %v590
      %v767 = vsel %vm749, %v446, %v592
      %v768 = vsel %vm749, %v447, %v594
      %v769 = vsel %vm749, %v448, %v596
      %v770 = vsel %vm749, %v449, %v598
      %v771 = vsel %vm749, %v450, %v600
      %v772 = vsel %vm749, %v451, %v602
      %v773 = vsel %vm749, %v452, %v604
      %v774 = vsel %vm749, %v453, %v606
      %v775 = vsel %vm749, %v454, %v608
      %v776 = vsel %vm749, %v455, %v610
      %v777 = vsel %vm749, %v456, %v612
      %v778 = vsel %vm749, %v457, %v614
      %v779 = vsel %vm749, %v458, %v616
      %v780 = vsel %vm749, %v459, %v618
      %v781 = vsel %vm749, %v460, %v620
      %v782 = vsel %vm749, %v461, %v622
      %v783 = vsel %vm749, %v462, %v624
      %v784 = vsel %vm749, %v463, %v626
      %v785 = vsel %vm749, %v464, %v628
      %v786 = vsel %vm749, %v465, %v630
      %v787 = vsel %vm749, %v466, %v632
      %v788 = vsel %vm749, %v467, %v634
      %v789 = vsel %vm749, %v468, %v636
      %v790 = vsel %vm749, %v469, %v638
      %v791 = vsel %vm749, %v470, %v640
      %v792 = vsel %vm749, %v471, %v642
      %v793 = vsel %vm749, %v472, %v644
      %v794 = vsel %vm749, %v473, %v646
      %v795 = vsel %vm749, %v474, %v648
      %v796 = vsel %vm749, %v475, %v650
      %v797 = vsel %vm749, %v476, %v652
      %v798 = vsel %vm749, %v477, %v654
      %v799 = vsel %vm749, %v478, %v656
      %v800 = vsel %vm749, %v479, %v658
      %v801 = vsel %vm749, %v480, %v660
      %v802 = vsel %vm749, %v481, %v662
      %v803 = vsel %vm749, %v482, %v664
      %v804 = vsel %vm749, %v483, %v666
      %v805 = vsel %vm749, %v484, %v668
      %v806 = vsel %vm749, %v485, %v670
      %v807 = vsel %vm749, %v486, %v672
      %v808 = vsel %vm749, %v487, %v674
      %v809 = vsel %vm749, %v488, %v676
      %v810 = vsel %vm749, %v489, %v678
      %v811 = vsel %vm749, %v490, %v680
      %v812 = vsel %vm749, %v491, %v682
      %v813 = vsel %vm749, %v492, %v684
      %vm814 = vcmask 64512
      %815 = vst.msk [vmem:[%s221] sm:$0xff] %vm814, %v750
      %816 = vst.msk [vmem:[%s221 + $0x8] sm:$0xff] %vm814, %v751
      %817 = vst.msk [vmem:[%s221 + $0x10] sm:$0xff] %vm814, %v752
      %818 = vst.msk [vmem:[%s221 + $0x18] sm:$0xff] %vm814, %v753
      %819 = vst.msk [vmem:[%s221 + $0x20] sm:$0xff] %vm814, %v754
      %820 = vst.msk [vmem:[%s221 + $0x28] sm:$0xff] %vm814, %v755
      %821 = vst.msk [vmem:[%s221 + $0x30] sm:$0xff] %vm814, %v756
      %822 = vst.msk [vmem:[%s221 + $0x38] sm:$0xff] %vm814, %v757
      %823 = vst.msk [vmem:[%s221 + $0x40] sm:$0xff] %vm814, %v758
      %824 = vst.msk [vmem:[%s221 + $0x48] sm:$0xff] %vm814, %v759
      %825 = vst.msk [vmem:[%s221 + $0x50] sm:$0xff] %vm814, %v760
      %826 = vst.msk [vmem:[%s221 + $0x58] sm:$0xff] %vm814, %v761
      %827 = vst.msk [vmem:[%s221 + $0x60] sm:$0xff] %vm814, %v762
      %828 = vst.msk [vmem:[%s221 + $0x68] sm:$0xff] %vm814, %v763
      %829 = vst.msk [vmem:[%s221 + $0x70] sm:$0xff] %vm814, %v764
      %830 = vst.msk [vmem:[%s221 + $0x78] sm:$0xff] %vm814, %v765
      %831 = vst.msk [vmem:[%s221 + $0x80] sm:$0xff] %vm814, %v766
      %832 = vst.msk [vmem:[%s221 + $0x88] sm:$0xff] %vm814, %v767
      %833 = vst.msk [vmem:[%s221 + $0x90] sm:$0xff] %vm814, %v768
      %834 = vst.msk [vmem:[%s221 + $0x98] sm:$0xff] %vm814, %v769
      %835 = vst.msk [vmem:[%s221 + $0xa0] sm:$0xff] %vm814, %v770
      %836 = vst.msk [vmem:[%s221 + $0xa8] sm:$0xff] %vm814, %v771
      %837 = vst.msk [vmem:[%s221 + $0xb0] sm:$0xff] %vm814, %v772
      %838 = vst.msk [vmem:[%s221 + $0xb8] sm:$0xff] %vm814, %v773
      %839 = vst.msk [vmem:[%s221 + $0xc0] sm:$0xff] %vm814, %v774
      %840 = vst.msk [vmem:[%s221 + $0xc8] sm:$0xff] %vm814, %v775
      %841 = vst.msk [vmem:[%s221 + $0xd0] sm:$0xff] %vm814, %v776
      %842 = vst.msk [vmem:[%s221 + $0xd8] sm:$0xff] %vm814, %v777
      %843 = vst.msk [vmem:[%s221 + $0xe0] sm:$0xff] %vm814, %v778
      %844 = vst.msk [vmem:[%s221 + $0xe8] sm:$0xff] %vm814, %v779
      %845 = vst.msk [vmem:[%s221 + $0xf0] sm:$0xff] %vm814, %v780
      %846 = vst.msk [vmem:[%s221 + $0xf8] sm:$0xff] %vm814, %v781
      %847 = vst.msk [vmem:[%s221 + $0x100] sm:$0xff] %vm814, %v782
      %848 = vst.msk [vmem:[%s221 + $0x108] sm:$0xff] %vm814, %v783
      %849 = vst.msk [vmem:[%s221 + $0x110] sm:$0xff] %vm814, %v784
      %850 = vst.msk [vmem:[%s221 + $0x118] sm:$0xff] %vm814, %v785
      %851 = vst.msk [vmem:[%s221 + $0x120] sm:$0xff] %vm814, %v786
      %852 = vst.msk [vmem:[%s221 + $0x128] sm:$0xff] %vm814, %v787
      %853 = vst.msk [vmem:[%s221 + $0x130] sm:$0xff] %vm814, %v788
      %854 = vst.msk [vmem:[%s221 + $0x138] sm:$0xff] %vm814, %v789
      %855 = vst.msk [vmem:[%s221 + $0x140] sm:$0xff] %vm814, %v790
      %856 = vst.msk [vmem:[%s221 + $0x148] sm:$0xff] %vm814, %v791
      %857 = vst.msk [vmem:[%s221 + $0x150] sm:$0xff] %vm814, %v792
      %858 = vst.msk [vmem:[%s221 + $0x158] sm:$0xff] %vm814, %v793
      %859 = vst.msk [vmem:[%s221 + $0x160] sm:$0xff] %vm814, %v794
      %860 = vst.msk [vmem:[%s221 + $0x168] sm:$0xff] %vm814, %v795
      %861 = vst.msk [vmem:[%s221 + $0x170] sm:$0xff] %vm814, %v796
      %862 = vst.msk [vmem:[%s221 + $0x178] sm:$0xff] %vm814, %v797
      %863 = vst.msk [vmem:[%s221 + $0x180] sm:$0xff] %vm814, %v798
      %864 = vst.msk [vmem:[%s221 + $0x188] sm:$0xff] %vm814, %v799
      %865 = vst.msk [vmem:[%s221 + $0x190] sm:$0xff] %vm814, %v800
      %866 = vst.msk [vmem:[%s221 + $0x198] sm:$0xff] %vm814, %v801
      %867 = vst.msk [vmem:[%s221 + $0x1a0] sm:$0xff] %vm814, %v802
      %868 = vst.msk [vmem:[%s221 + $0x1a8] sm:$0xff] %vm814, %v803
      %869 = vst.msk [vmem:[%s221 + $0x1b0] sm:$0xff] %vm814, %v804
      %870 = vst.msk [vmem:[%s221 + $0x1b8] sm:$0xff] %vm814, %v805
      %871 = vst.msk [vmem:[%s221 + $0x1c0] sm:$0xff] %vm814, %v806
      %872 = vst.msk [vmem:[%s221 + $0x1c8] sm:$0xff] %vm814, %v807
      %873 = vst.msk [vmem:[%s221 + $0x1d0] sm:$0xff] %vm814, %v808
      %874 = vst.msk [vmem:[%s221 + $0x1d8] sm:$0xff] %vm814, %v809
      %875 = vst.msk [vmem:[%s221 + $0x1e0] sm:$0xff] %vm814, %v810
      %876 = vst.msk [vmem:[%s221 + $0x1e8] sm:$0xff] %vm814, %v811
      %877 = vst.msk [vmem:[%s221 + $0x1f0] sm:$0xff] %vm814, %v812
      %878 = vst.msk [vmem:[%s221 + $0x1f8] sm:$0xff] %vm814, %v813
      %s879 = smul.u32 64, %s15
      %p880 = scmp.lt.s32.totalorder %s879, 255
      %s881 = scalar_select %p880, %s879, 255
      %s882 = smul.addr %s881, 8
      %s883 = scalar_lea.vmem %s4, %s882
      // Predicated region
      $region37: #{_lambda_.112} parent=35 // pred_check
        %p884 = pneg %p127
      $region38: #{_lambda_.112} parent=35 // pred_check_branch
        %886 = sbr.rel (%p884) target = $region40
      $region39: #{_lambda_.112} parent=35 // pred_region
        %s887 = smul.u32 64, %s15
      $region40: #{_lambda_.112} parent=35 // pred_fallthru
        _
    $region36: #{_lambda_.112} parent=5 // pred_fallthru
      _
    %p888 = scmp.le.s32.totalorder 2, %s10
    // Predicated region
    $region41: #{_lambda_.112} parent=5 // pred_check
      %p889 = pneg %p888
    $region42: #{_lambda_.112} parent=5 // pred_check_branch
      %891 = sbr.rel (%p889) target = $region44
    $region43: #{_lambda_.112} parent=5 // pred_region
      %s892 = ssub.s32 %s10, 2
      // Predicated region
      $region45: #{_lambda_.112} parent=43 // pred_check
        %p893 = pneg %p133
      $region46: #{_lambda_.112} parent=43 // pred_check_branch
        %895 = sbr.rel (%p893) target = $region48
      $region47: #{_lambda_.112} parent=43 // pred_region
        %s896 = smul.u32 64, %s16
        %p897 = scmp.lt.s32.totalorder %s896, 255
        %s898 = scalar_select %p897, %s896, 255
        %s899 = smul.addr %s898, 8
        %s900 = scalar_lea.vmem %s4, %s899
      $region48: #{_lambda_.112} parent=43 // pred_fallthru
        _
    $region44: #{_lambda_.112} parent=5 // pred_fallthru
      _
  $region6: #{_lambda_.112} parent=0 // loop_footer
    %s14 = sadd.s32 1, %s10
  $region7: #{_lambda_.112} parent=0 // loop_footer_branch
    %9 = sbr.rel target = $region3
  $region8: #{_lambda_.112} parent=0 // loop_exit
    _

// kernel: _lambda_.113
$region0: #{_lambda_.113}
  #allocation0 [shape = 'u32[]', space=smem, size = 0x4, offset = 0x4, fixed_abs, tag = 'smem constant byte address 0x4 - core index']
  #allocation1 [shape = 'u32[144,128]{1,0:T(1,128)}', space=vmem, size = 0x12000, scoped, tag = 'internal scratch']
  %s0 = inlined_call_operand.vmem [shape: f32[128,128], index: 0, kind: input, shape index: {}]
  %s1 = inlined_call_operand.vmem [shape: bf16[128,128], index: 1, kind: output, shape index: {}]
  %s2 = sld [smem:[#allocation0]]
  $region14: #{_lambda_.113} parent=0
    _
  %s4 = ssub.s32 1, %s2
  %s5 = scalar_select 0, %s4, %s2
  // Predicated region
  $region2: #{_lambda_.113} parent=0 // pred_check
    _
  $region3: #{_lambda_.113} parent=0 // pred_check_branch
    %7 = sbr.rel (0) target = $region5
  $region4: #{_lambda_.113} parent=0 // pred_region
    _
  $region5: #{_lambda_.113} parent=0 // pred_fallthru
    _
  %v8 = vld [vmem:[%s0] sm:$0xff]
  %v9 = vld [vmem:[%s0 + $0x8] sm:$0xff]
  %v10 = vld [vmem:[%s0 + $0x10] sm:$0xff]
  %v11 = vld [vmem:[%s0 + $0x18] sm:$0xff]
  %v12 = vld [vmem:[%s0 + $0x20] sm:$0xff]
  %v13 = vld [vmem:[%s0 + $0x28] sm:$0xff]
  %v14 = vld [vmem:[%s0 + $0x30] sm:$0xff]
  %v15 = vld [vmem:[%s0 + $0x38] sm:$0xff]
  %v16 = vld [vmem:[%s0 + $0x40] sm:$0xff]
  %v17 = vld [vmem:[%s0 + $0x48] sm:$0xff]
  %v18 = vld [vmem:[%s0 + $0x50] sm:$0xff]
  %v19 = vld [vmem:[%s0 + $0x58] sm:$0xff]
  %v20 = vld [vmem:[%s0 + $0x60] sm:$0xff]
  %v21 = vld [vmem:[%s0 + $0x68] sm:$0xff]
  %v22 = vld [vmem:[%s0 + $0x70] sm:$0xff]
  %v23 = vld [vmem:[%s0 + $0x78] sm:$0xff]
  %v24 = vmax.f32 %v8, 0.0
  %v25 = vmax.f32 %v9, 0.0
  %v26 = vmax.f32 %v10, 0.0
  %v27 = vmax.f32 %v11, 0.0
  %v28 = vmax.f32 %v12, 0.0
  %v29 = vmax.f32 %v13, 0.0
  %v30 = vmax.f32 %v14, 0.0
  %v31 = vmax.f32 %v15, 0.0
  %v32 = vmax.f32 %v16, 0.0
  %v33 = vmax.f32 %v17, 0.0
  %v34 = vmax.f32 %v18, 0.0
  %v35 = vmax.f32 %v19, 0.0
  %v36 = vmax.f32 %v20, 0.0
  %v37 = vmax.f32 %v21, 0.0
  %v38 = vmax.f32 %v22, 0.0
  %v39 = vmax.f32 %v23, 0.0
  %v40 = vpack.c.bf16 %v25, %v24
  %v41 = vpack.c.bf16 %v27, %v26
  %v42 = vpack.c.bf16 %v29, %v28
  %v43 = vpack.c.bf16 %v31, %v30
  %v44 = vpack.c.bf16 %v33, %v32
  %v45 = vpack.c.bf16 %v35, %v34
  %v46 = vpack.c.bf16 %v37, %v36
  %v47 = vpack.c.bf16 %v39, %v38
  %v56 = vunpack.c.l.b16 %v40
  %v57 = vunpack.c.h.b16 %v40
  %v58 = vunpack.c.l.b16 %v41
  %v59 = vunpack.c.h.b16 %v41
  %v60 = vunpack.c.l.b16 %v42
  %v61 = vunpack.c.h.b16 %v42
  %v62 = vunpack.c.l.b16 %v43
  %v63 = vunpack.c.h.b16 %v43
  %v64 = vunpack.c.l.b16 %v44
  %v65 = vunpack.c.h.b16 %v44
  %v66 = vunpack.c.l.b16 %v45
  %v67 = vunpack.c.h.b16 %v45
  %v68 = vunpack.c.l.b16 %v46
  %v69 = vunpack.c.h.b16 %v46
  %v70 = vunpack.c.l.b16 %v47
  %v71 = vunpack.c.h.b16 %v47
  %v72 = vpack.c.b16 %v56, %v56
  %v73 = vpack.c.b16 %v57, %v57
  %v74 = vpack.c.b16 %v58, %v58
  %v75 = vpack.c.b16 %v59, %v59
  %v76 = vpack.c.b16 %v60, %v60
  %v77 = vpack.c.b16 %v61, %v61
  %v78 = vpack.c.b16 %v62, %v62
  %v79 = vpack.c.b16 %v63, %v63
  %v80 = vpack.c.b16 %v64, %v64
  %v81 = vpack.c.b16 %v65, %v65
  %v82 = vpack.c.b16 %v66, %v66
  %v83 = vpack.c.b16 %v67, %v67
  %v84 = vpack.c.b16 %v68, %v68
  %v85 = vpack.c.b16 %v69, %v69
  %v86 = vpack.c.b16 %v70, %v70
  %v87 = vpack.c.b16 %v71, %v71
  %104 = vst [vmem:[%s1] sm:$0xf] %v72
  %105 = vst [vmem:[%s1 + $0x4] sm:$0xf] %v73
  %106 = vst [vmem:[%s1 + $0x8] sm:$0xf] %v74
  %107 = vst [vmem:[%s1 + $0xc] sm:$0xf] %v75
  %108 = vst [vmem:[%s1 + $0x10] sm:$0xf] %v76
  %109 = vst [vmem:[%s1 + $0x14] sm:$0xf] %v77
  %110 = vst [vmem:[%s1 + $0x18] sm:$0xf] %v78
  %111 = vst [vmem:[%s1 + $0x1c] sm:$0xf] %v79
  %112 = vst [vmem:[%s1 + $0x20] sm:$0xf] %v80
  %113 = vst [vmem:[%s1 + $0x24] sm:$0xf] %v81
  %114 = vst [vmem:[%s1 + $0x28] sm:$0xf] %v82
  %115 = vst [vmem:[%s1 + $0x2c] sm:$0xf] %v83
  %116 = vst [vmem:[%s1 + $0x30] sm:$0xf] %v84
  %117 = vst [vmem:[%s1 + $0x34] sm:$0xf] %v85
  %118 = vst [vmem:[%s1 + $0x38] sm:$0xf] %v86
  %119 = vst [vmem:[%s1 + $0x3c] sm:$0xf] %v87
  // Predicated region
  $region6: #{_lambda_.113} parent=0 // pred_check
    _
  $region7: #{_lambda_.113} parent=0 // pred_check_branch
    %121 = sbr.rel (0) target = $region9
  $region8: #{_lambda_.113} parent=0 // pred_region
    _
  $region9: #{_lambda_.113} parent=0 // pred_fallthru
    _
  // Predicated region
  $region10: #{_lambda_.113} parent=0 // pred_check
    _
  $region11: #{_lambda_.113} parent=0 // pred_check_branch
    %123 = sbr.rel (0) target = $region13
  $region12: #{_lambda_.113} parent=0 // pred_region
    _
  $region13: #{_lambda_.113} parent=0 // pred_fallthru
    _

// kernel: _lambda_.114
$region0: #{_lambda_.114}
  #allocation0 [shape = 'u32[]', space=smem, size = 0x4, offset = 0x4, fixed_abs, tag = 'smem constant byte address 0x4 - core index']
  #allocation1 [shape = 'u32[144,128]{1,0:T(1,128)}', space=vmem, size = 0x12000, scoped, tag = 'internal scratch']
  #allocation2 [shape = 'f32[256,128]{1,0:T(8,128)}', space=vmem, size = 0x20000, scoped, tag = 'scratch operand']
  %s0 = inlined_call_operand.vmem [shape: bf16[2048,32], index: 0, kind: input, shape index: {}]
  %s1 = inlined_call_operand.vmem [shape: bf16[32,128], index: 1, kind: input, shape index: {}]
  %s2 = inlined_call_operand.vmem [shape: f32[1,128], index: 2, kind: input, shape index: {}]
  %s3 = inlined_call_operand.vmem [shape: f32[2048,128], index: 3, kind: output, shape index: {}]
  %s4 = sld [smem:[#allocation0]]
  $region53: #{_lambda_.114} parent=0
    _
  %s6 = ssub.s32 1, %s4
  %s7 = scalar_select 0, %s6, %s4
  loop: start=0, step=1, limit=10
  $region2: #{_lambda_.114} parent=0 // loop_pre_header
    _
  $region3: #{_lambda_.114} parent=0 // loop_header
    %s9 = sphi 0, %s13
    %p10 = scmp.ge.s32.totalorder %s9, 10
    %s16 = sphi 0, %s35
    %s17 = sphi 0, %s31
    %s18 = sphi 0, %s27
    %s19 = sphi 0, %s16
    %s20 = sphi 0, %s17
    %s21 = sphi 0, %s18
    %s22 = sphi 0, %s19
    %s23 = sphi 0, %s20
    %s24 = sphi 0, %s21
    %s40 = sphi 0, %s42
    %s43 = sphi 0, %s40
    %s44 = sphi 0, %s43
    %s60 = sphi 0, %s44
    %s68 = sphi 0, %s70
    %s71 = sphi 0, %s68
    %s72 = sphi 0, %s71
    %s88 = sphi 0, %s72
    %s94 = sphi 0, %s96
    %s97 = sphi 0, %s94
    %s98 = sphi 0, %s97
    %s114 = sphi 0, %s98
    %s122 = sphi 0, %s124
    %s125 = sphi 0, %s122
    %s126 = sphi 0, %s125
    %s142 = sphi 0, %s126
  $region4: #{_lambda_.114} parent=0 // loop_header_branch
    %12 = sbr.rel (%p10) target = $region8
  $region5: #{_lambda_.114} parent=0 // loop_body
    %s14 = ssub.s32 %s9, 1
    %s15 = ssub.s32 %s9, 2
    %s25 = sadd.s32 1, %s18
    %p26 = scmp.ge.s32.totalorder %s25, 1
    %s27 = scalar_select %p26, 0, %s25
    %s28 = sadd.s32 1, %s17
    %s29 = scalar_select %p26, %s28, %s17
    %p30 = scmp.ge.s32.totalorder %s29, 1
    %s31 = scalar_select %p30, 0, %s29
    %s32 = sadd.s32 1, %s16
    %s33 = scalar_select %p30, %s32, %s16
    %p34 = scmp.ge.s32.totalorder %s33, 8
    %s35 = scalar_select %p34, 0, %s33
    %s36 = ssub.s32 %s16, %s35
    %s37 = ssub.s32 %s18, %s27
    %s38 = sor.u32 %s36, %s37
    %p39 = scmp.eq.s32.totalorder %s38, 0
    %s41 = sadd.s32 %s40, 1
    %s42 = scalar_select %p39, %s40, %s41
    %p45 = pneg %p39
    %p46 = scmp.eq.s32.totalorder %s9, 7
    %p47 = por %p45, %p46
    %p48 = scmp.ne.s32.totalorder %s40, %s43
    %p49 = scmp.eq.s32.totalorder %s9, 0
    %p50 = por %p48, %p49
    %p51 = scmp.ne.s32.totalorder %s40, %s43
    %p52 = scmp.eq.s32.totalorder %s14, 7
    %p53 = por %p51, %p52
    %p54 = scmp.ne.s32.totalorder %s43, %s44
    %p55 = scmp.eq.s32.totalorder %s14, 0
    %p56 = por %p54, %p55
    %p57 = scmp.ne.s32.totalorder %s43, %s44
    %p58 = scmp.eq.s32.totalorder %s15, 7
    %p59 = por %p57, %p58
    %p61 = scmp.ne.s32.totalorder %s44, %s60
    %p62 = scmp.eq.s32.totalorder %s15, 0
    %p63 = por %p61, %p62
    %s64 = ssub.s32 %s18, %s27
    %s65 = ssub.s32 %s17, %s31
    %s66 = sor.u32 %s64, %s65
    %p67 = scmp.eq.s32.totalorder %s66, 0
    %s69 = sadd.s32 %s68, 1
    %s70 = scalar_select %p67, %s68, %s69
    %p73 = pneg %p67
    %p74 = scmp.eq.s32.totalorder %s9, 7
    %p75 = por %p73, %p74
    %p76 = scmp.ne.s32.totalorder %s68, %s71
    %p77 = scmp.eq.s32.totalorder %s9, 0
    %p78 = por %p76, %p77
    %p79 = scmp.ne.s32.totalorder %s68, %s71
    %p80 = scmp.eq.s32.totalorder %s14, 7
    %p81 = por %p79, %p80
    %p82 = scmp.ne.s32.totalorder %s71, %s72
    %p83 = scmp.eq.s32.totalorder %s14, 0
    %p84 = por %p82, %p83
    %p85 = scmp.ne.s32.totalorder %s71, %s72
    %p86 = scmp.eq.s32.totalorder %s15, 7
    %p87 = por %p85, %p86
    %p89 = scmp.ne.s32.totalorder %s72, %s88
    %p90 = scmp.eq.s32.totalorder %s15, 0
    %p91 = por %p89, %p90
    %s92 = ssub.s32 %s17, %s31
    %p93 = scmp.eq.s32.totalorder %s92, 0
    %s95 = sadd.s32 %s94, 1
    %s96 = scalar_select %p93, %s94, %s95
    %p99 = pneg %p93
    %p100 = scmp.eq.s32.totalorder %s9, 7
    %p101 = por %p99, %p100
    %p102 = scmp.ne.s32.totalorder %s94, %s97
    %p103 = scmp.eq.s32.totalorder %s9, 0
    %p104 = por %p102, %p103
    %p105 = scmp.ne.s32.totalorder %s94, %s97
    %p106 = scmp.eq.s32.totalorder %s14, 7
    %p107 = por %p105, %p106
    %p108 = scmp.ne.s32.totalorder %s97, %s98
    %p109 = scmp.eq.s32.totalorder %s14, 0
    %p110 = por %p108, %p109
    %p111 = scmp.ne.s32.totalorder %s97, %s98
    %p112 = scmp.eq.s32.totalorder %s15, 7
    %p113 = por %p111, %p112
    %p115 = scmp.ne.s32.totalorder %s98, %s114
    %p116 = scmp.eq.s32.totalorder %s15, 0
    %p117 = por %p115, %p116
    %s118 = ssub.s32 %s16, %s35
    %s119 = ssub.s32 %s17, %s31
    %s120 = sor.u32 %s118, %s119
    %p121 = scmp.eq.s32.totalorder %s120, 0
    %s123 = sadd.s32 %s122, 1
    %s124 = scalar_select %p121, %s122, %s123
    %p127 = pneg %p121
    %p128 = scmp.eq.s32.totalorder %s9, 7
    %p129 = por %p127, %p128
    %p130 = scmp.ne.s32.totalorder %s122, %s125
    %p131 = scmp.eq.s32.totalorder %s9, 0
    %p132 = por %p130, %p131
    %p133 = scmp.ne.s32.totalorder %s122, %s125
    %p134 = scmp.eq.s32.totalorder %s14, 7
    %p135 = por %p133, %p134
    %p136 = scmp.ne.s32.totalorder %s125, %s126
    %p137 = scmp.eq.s32.totalorder %s14, 0
    %p138 = por %p136, %p137
    %p139 = scmp.ne.s32.totalorder %s125, %s126
    %p140 = scmp.eq.s32.totalorder %s15, 7
    %p141 = por %p139, %p140
    %p143 = scmp.ne.s32.totalorder %s126, %s142
    %p144 = scmp.eq.s32.totalorder %s15, 0
    %p145 = por %p143, %p144
    %p146 = scmp.le.s32.totalorder 1, %s9
    %p147 = scmp.lt.s32.totalorder %s9, 9
    %p148 = pnand %p146, %p147
    %p149 = pneg %p148
    // Predicated region
    $region9: #{_lambda_.114} parent=5 // pred_check
      _
    $region10: #{_lambda_.114} parent=5 // pred_check_branch
      %151 = sbr.rel (%p148) target = $region12
    $region11: #{_lambda_.114} parent=5 // pred_region
      %s152 = ssub.s32 %s9, 1
      // Predicated region
      $region13: #{_lambda_.114} parent=11 // pred_check
        %p153 = pneg %p84
      $region14: #{_lambda_.114} parent=11 // pred_check_branch
        %155 = sbr.rel (%p153) target = $region16
      $region15: #{_lambda_.114} parent=11 // pred_region
        %s156 = smul.u32 4, %s21
        %p157 = scmp.lt.s32.totalorder %s156, 3
        %s158 = scalar_select %p157, %s156, 3
        %p159 = scmp.lt.s32.totalorder %s20, 0
        %s160 = scalar_select %p159, %s20, 0
        %s161 = sadd.s32 %s160, %s158
        %s162 = smul.addr %s161, 4
        %s163 = scalar_lea.vmem %s1, %s162
        %s164 = smul.u32 4, %s21
      $region16: #{_lambda_.114} parent=11 // pred_fallthru
        _
      // Predicated region
      $region17: #{_lambda_.114} parent=11 // pred_check
        %p165 = pneg %p110
      $region18: #{_lambda_.114} parent=11 // pred_check_branch
        %167 = sbr.rel (%p165) target = $region20
      $region19: #{_lambda_.114} parent=11 // pred_region
        %p168 = scmp.lt.s32.totalorder %s20, 0
        %s169 = scalar_select %p168, %s20, 0
        %s170 = scalar_lea.vmem %s2, %s169
      $region20: #{_lambda_.114} parent=11 // pred_fallthru
        _
    $region12: #{_lambda_.114} parent=5 // pred_fallthru
      _
    %p171 = scmp.lt.s32.totalorder %s9, 8
    // Predicated region
    $region21: #{_lambda_.114} parent=5 // pred_check
      %p172 = pneg %p171
    $region22: #{_lambda_.114} parent=5 // pred_check_branch
      %174 = sbr.rel (%p172) target = $region24
    $region23: #{_lambda_.114} parent=5 // pred_region
      // Predicated region
      $region25: #{_lambda_.114} parent=23 // pred_check
        %p175 = pneg %p50
      $region26: #{_lambda_.114} parent=23 // pred_check_branch
        %177 = sbr.rel (%p175) target = $region28
      $region27: #{_lambda_.114} parent=23 // pred_region
        %s178 = smul.u32 32, %s16
        %p179 = scmp.lt.s32.totalorder %s178, 255
        %s180 = scalar_select %p179, %s178, 255
        %p181 = scmp.lt.s32.totalorder %s18, 0
        %s182 = scalar_select %p181, %s18, 0
        %s183 = sadd.s32 %s182, %s180
        %s184 = smul.addr %s183, 4
        %s185 = scalar_lea.vmem %s0, %s184
        %s186 = smul.u32 32, %s16
      $region28: #{_lambda_.114} parent=23 // pred_fallthru
        _
    $region24: #{_lambda_.114} parent=5 // pred_fallthru
      _
    %p187 = scmp.le.s32.totalorder 1, %s9
    %p188 = scmp.lt.s32.totalorder %s9, 9
    %p189 = pnand %p187, %p188
    %p190 = pneg %p189
    // Predicated region
    $region29: #{_lambda_.114} parent=5 // pred_check
      _
    $region30: #{_lambda_.114} parent=5 // pred_check_branch
      %192 = sbr.rel (%p189) target = $region32
    $region31: #{_lambda_.114} parent=5 // pred_region
      %s193 = ssub.s32 %s9, 1
      %s194 = smul.u32 32, %s19
      %p195 = scmp.lt.s32.totalorder %s194, 255
      %s196 = scalar_select %p195, %s194, 255
      %p197 = scmp.lt.s32.totalorder %s21, 0
      %s198 = scalar_select %p197, %s21, 0
      %s199 = sadd.s32 %s198, %s196
      %s200 = smul.addr %s199, 4
      %s201 = scalar_lea.vmem %s0, %s200
      %p202 = pneg %p56
      %p203 = pneg %p53
      %s204 = smul.u32 4, %s21
      %p205 = scmp.lt.s32.totalorder %s204, 3
      %s206 = scalar_select %p205, %s204, 3
      %p207 = scmp.lt.s32.totalorder %s20, 0
      %s208 = scalar_select %p207, %s20, 0
      %s209 = sadd.s32 %s208, %s206
      %s210 = smul.addr %s209, 4
      %s211 = scalar_lea.vmem %s1, %s210
      %p212 = pneg %p84
      %p213 = pneg %p81
      %p214 = scmp.lt.s32.totalorder %s20, 0
      %s215 = scalar_select %p214, %s20, 0
      %s216 = scalar_lea.vmem %s2, %s215
      %p217 = pneg %p110
      %p218 = pneg %p107
      %p219 = pneg %p138
      %p220 = pneg %p135
      %s221 = smul.u32 32, %s19
      %p222 = scmp.lt.s32.totalorder %s221, 255
      %s223 = scalar_select %p222, %s221, 255
      %p224 = scmp.lt.s32.totalorder %s20, 0
      %s225 = scalar_select %p224, %s20, 0
      %s226 = sadd.s32 %s225, %s223
      %s227 = smul.addr %s226, 8
      %s228 = scalar_lea.vmem %s3, %s227
      %s229 = smul.u32 32, %s19
      %p230 = scmp.lt.s32.totalorder %s229, 255
      %s231 = scalar_select %p230, %s229, 255
      %p232 = scmp.lt.s32.totalorder %s21, 0
      %s233 = scalar_select %p232, %s21, 0
      %s234 = sadd.s32 %s233, %s231
      %s235 = smul.addr %s234, 4
      %s236 = scalar_lea.vmem %s0, %s235
      %s237 = smul.u32 32, %s19
      %s238 = smul.u32 4, %s21
      %p239 = scmp.lt.s32.totalorder %s238, 3
      %s240 = scalar_select %p239, %s238, 3
      %p241 = scmp.lt.s32.totalorder %s20, 0
      %s242 = scalar_select %p241, %s20, 0
      %s243 = sadd.s32 %s242, %s240
      %s244 = smul.addr %s243, 4
      %s245 = scalar_lea.vmem %s1, %s244
      %s246 = smul.u32 4, %s21
      %p247 = scmp.lt.s32.totalorder %s20, 0
      %s248 = scalar_select %p247, %s20, 0
      %s249 = scalar_lea.vmem %s2, %s248
      %s250 = smul.u32 32, %s19
      %p251 = scmp.lt.s32.totalorder %s250, 255
      %s252 = scalar_select %p251, %s250, 255
      %p253 = scmp.lt.s32.totalorder %s20, 0
      %s254 = scalar_select %p253, %s20, 0
      %s255 = sadd.s32 %s254, %s252
      %s256 = smul.addr %s255, 8
      %s257 = scalar_lea.vmem %s3, %s256
      %s258 = smul.u32 32, %s19
      %p260 = scmp.eq.s32.totalorder %s21, 0
      // Predicated region
      $region33: #{_lambda_.114} parent=31 // pred_check
        %p261 = pneg %p260
      $region34: #{_lambda_.114} parent=31 // pred_check_branch
        %263 = sbr.rel (%p261) target = $region36
      $region35: #{_lambda_.114} parent=31 // pred_region
        %264 = vst [vmem:[#allocation2] sm:$0xff] 0.0
        %265 = vst [vmem:[#allocation2 + $0x8] sm:$0xff] 0.0
        %266 = vst [vmem:[#allocation2 + $0x10] sm:$0xff] 0.0
        %267 = vst [vmem:[#allocation2 + $0x18] sm:$0xff] 0.0
        %268 = vst [vmem:[#allocation2 + $0x20] sm:$0xff] 0.0
        %269 = vst [vmem:[#allocation2 + $0x28] sm:$0xff] 0.0
        %270 = vst [vmem:[#allocation2 + $0x30] sm:$0xff] 0.0
        %271 = vst [vmem:[#allocation2 + $0x38] sm:$0xff] 0.0
        %272 = vst [vmem:[#allocation2 + $0x40] sm:$0xff] 0.0
        %273 = vst [vmem:[#allocation2 + $0x48] sm:$0xff] 0.0
        %274 = vst [vmem:[#allocation2 + $0x50] sm:$0xff] 0.0
        %275 = vst [vmem:[#allocation2 + $0x58] sm:$0xff] 0.0
        %276 = vst [vmem:[#allocation2 + $0x60] sm:$0xff] 0.0
        %277 = vst [vmem:[#allocation2 + $0x68] sm:$0xff] 0.0
        %278 = vst [vmem:[#allocation2 + $0x70] sm:$0xff] 0.0
        %279 = vst [vmem:[#allocation2 + $0x78] sm:$0xff] 0.0
        %280 = vst [vmem:[#allocation2 + $0x80] sm:$0xff] 0.0
        %281 = vst [vmem:[#allocation2 + $0x88] sm:$0xff] 0.0
        %282 = vst [vmem:[#allocation2 + $0x90] sm:$0xff] 0.0
        %283 = vst [vmem:[#allocation2 + $0x98] sm:$0xff] 0.0
        %284 = vst [vmem:[#allocation2 + $0xa0] sm:$0xff] 0.0
        %285 = vst [vmem:[#allocation2 + $0xa8] sm:$0xff] 0.0
        %286 = vst [vmem:[#allocation2 + $0xb0] sm:$0xff] 0.0
        %287 = vst [vmem:[#allocation2 + $0xb8] sm:$0xff] 0.0
        %288 = vst [vmem:[#allocation2 + $0xc0] sm:$0xff] 0.0
        %289 = vst [vmem:[#allocation2 + $0xc8] sm:$0xff] 0.0
        %290 = vst [vmem:[#allocation2 + $0xd0] sm:$0xff] 0.0
        %291 = vst [vmem:[#allocation2 + $0xd8] sm:$0xff] 0.0
        %292 = vst [vmem:[#allocation2 + $0xe0] sm:$0xff] 0.0
        %293 = vst [vmem:[#allocation2 + $0xe8] sm:$0xff] 0.0
        %294 = vst [vmem:[#allocation2 + $0xf0] sm:$0xff] 0.0
        %295 = vst [vmem:[#allocation2 + $0xf8] sm:$0xff] 0.0
      $region36: #{_lambda_.114} parent=31 // pred_fallthru
        _
      %v296 = vld [vmem:[#allocation2] sm:$0xff]
      %v297 = vld [vmem:[#allocation2 + $0x8] sm:$0xff]
      %v298 = vld [vmem:[#allocation2 + $0x10] sm:$0xff]
      %v299 = vld [vmem:[#allocation2 + $0x18] sm:$0xff]
      %v300 = vld [vmem:[#allocation2 + $0x20] sm:$0xff]
      %v301 = vld [vmem:[#allocation2 + $0x28] sm:$0xff]
      %v302 = vld [vmem:[#allocation2 + $0x30] sm:$0xff]
      %v303 = vld [vmem:[#allocation2 + $0x38] sm:$0xff]
      %v304 = vld [vmem:[#allocation2 + $0x40] sm:$0xff]
      %v305 = vld [vmem:[#allocation2 + $0x48] sm:$0xff]
      %v306 = vld [vmem:[#allocation2 + $0x50] sm:$0xff]
      %v307 = vld [vmem:[#allocation2 + $0x58] sm:$0xff]
      %v308 = vld [vmem:[#allocation2 + $0x60] sm:$0xff]
      %v309 = vld [vmem:[#allocation2 + $0x68] sm:$0xff]
      %v310 = vld [vmem:[#allocation2 + $0x70] sm:$0xff]
      %v311 = vld [vmem:[#allocation2 + $0x78] sm:$0xff]
      %v312 = vld [vmem:[#allocation2 + $0x80] sm:$0xff]
      %v313 = vld [vmem:[#allocation2 + $0x88] sm:$0xff]
      %v314 = vld [vmem:[#allocation2 + $0x90] sm:$0xff]
      %v315 = vld [vmem:[#allocation2 + $0x98] sm:$0xff]
      %v316 = vld [vmem:[#allocation2 + $0xa0] sm:$0xff]
      %v317 = vld [vmem:[#allocation2 + $0xa8] sm:$0xff]
      %v318 = vld [vmem:[#allocation2 + $0xb0] sm:$0xff]
      %v319 = vld [vmem:[#allocation2 + $0xb8] sm:$0xff]
      %v320 = vld [vmem:[#allocation2 + $0xc0] sm:$0xff]
      %v321 = vld [vmem:[#allocation2 + $0xc8] sm:$0xff]
      %v322 = vld [vmem:[#allocation2 + $0xd0] sm:$0xff]
      %v323 = vld [vmem:[#allocation2 + $0xd8] sm:$0xff]
      %v324 = vld [vmem:[#allocation2 + $0xe0] sm:$0xff]
      %v325 = vld [vmem:[#allocation2 + $0xe8] sm:$0xff]
      %v326 = vld [vmem:[#allocation2 + $0xf0] sm:$0xff]
      %v327 = vld [vmem:[#allocation2 + $0xf8] sm:$0xff]
      %v328 = vld [vmem:[%s236] sm:$0xf]
      %v329 = vld [vmem:[%s236 + $0x4] sm:$0xf]
      %v330 = vld [vmem:[%s236 + $0x8] sm:$0xf]
      %v331 = vld [vmem:[%s236 + $0xc] sm:$0xf]
      %v332 = vld [vmem:[%s236 + $0x10] sm:$0xf]
      %v333 = vld [vmem:[%s236 + $0x14] sm:$0xf]
      %v334 = vld [vmem:[%s236 + $0x18] sm:$0xf]
      %v335 = vld [vmem:[%s236 + $0x1c] sm:$0xf]
      %v336 = vld [vmem:[%s236 + $0x20] sm:$0xf]
      %v337 = vld [vmem:[%s236 + $0x24] sm:$0xf]
      %v338 = vld [vmem:[%s236 + $0x28] sm:$0xf]
      %v339 = vld [vmem:[%s236 + $0x2c] sm:$0xf]
      %v340 = vld [vmem:[%s236 + $0x30] sm:$0xf]
      %v341 = vld [vmem:[%s236 + $0x34] sm:$0xf]
      %v342 = vld [vmem:[%s236 + $0x38] sm:$0xf]
      %v343 = vld [vmem:[%s236 + $0x3c] sm:$0xf]
      %v344 = vld [vmem:[%s236 + $0x40] sm:$0xf]
      %v345 = vld [vmem:[%s236 + $0x44] sm:$0xf]
      %v346 = vld [vmem:[%s236 + $0x48] sm:$0xf]
      %v347 = vld [vmem:[%s236 + $0x4c] sm:$0xf]
      %v348 = vld [vmem:[%s236 + $0x50] sm:$0xf]
      %v349 = vld [vmem:[%s236 + $0x54] sm:$0xf]
      %v350 = vld [vmem:[%s236 + $0x58] sm:$0xf]
      %v351 = vld [vmem:[%s236 + $0x5c] sm:$0xf]
      %v352 = vld [vmem:[%s236 + $0x60] sm:$0xf]
      %v353 = vld [vmem:[%s236 + $0x64] sm:$0xf]
      %v354 = vld [vmem:[%s236 + $0x68] sm:$0xf]
      %v355 = vld [vmem:[%s236 + $0x6c] sm:$0xf]
      %v356 = vld [vmem:[%s236 + $0x70] sm:$0xf]
      %v357 = vld [vmem:[%s236 + $0x74] sm:$0xf]
      %v358 = vld [vmem:[%s236 + $0x78] sm:$0xf]
      %v359 = vld [vmem:[%s236 + $0x7c] sm:$0xf]
      %v360 = vld [vmem:[%s245] sm:$0xf]
      %v361 = vld [vmem:[%s245 + $0x4] sm:$0xf]
      %v362 = vld [vmem:[%s245 + $0x8] sm:$0xf]
      %v363 = vld [vmem:[%s245 + $0xc] sm:$0xf]
      %v396 = vunpack.c.l.b16 %v328
      %v397 = vunpack.c.l.b16 %v329
      %v398 = vunpack.c.l.b16 %v330
      %v399 = vunpack.c.l.b16 %v331
      %v400 = vunpack.c.l.b16 %v332
      %v401 = vunpack.c.l.b16 %v333
      %v402 = vunpack.c.l.b16 %v334
      %v403 = vunpack.c.l.b16 %v335
      %v404 = vunpack.c.l.b16 %v336
      %v405 = vunpack.c.l.b16 %v337
      %v406 = vunpack.c.l.b16 %v338
      %v407 = vunpack.c.l.b16 %v339
      %v408 = vunpack.c.l.b16 %v340
      %v409 = vunpack.c.l.b16 %v341
      %v410 = vunpack.c.l.b16 %v342
      %v411 = vunpack.c.l.b16 %v343
      %v412 = vunpack.c.l.b16 %v344
      %v413 = vunpack.c.l.b16 %v345
      %v414 = vunpack.c.l.b16 %v346
      %v415 = vunpack.c.l.b16 %v347
      %v416 = vunpack.c.l.b16 %v348
      %v417 = vunpack.c.l.b16 %v349
      %v418 = vunpack.c.l.b16 %v350
      %v419 = vunpack.c.l.b16 %v351
      %v420 = vunpack.c.l.b16 %v352
      %v421 = vunpack.c.l.b16 %v353
      %v422 = vunpack.c.l.b16 %v354
      %v423 = vunpack.c.l.b16 %v355
      %v424 = vunpack.c.l.b16 %v356
      %v425 = vunpack.c.l.b16 %v357
      %v426 = vunpack.c.l.b16 %v358
      %v427 = vunpack.c.l.b16 %v359
      %v428 = vpack.c.b16 %v397, %v396
      %v429 = vpack.c.b16 %v399, %v398
      %v430 = vpack.c.b16 %v401, %v400
      %v431 = vpack.c.b16 %v403, %v402
      %v432 = vpack.c.b16 %v405, %v404
      %v433 = vpack.c.b16 %v407, %v406
      %v434 = vpack.c.b16 %v409, %v408
      %v435 = vpack.c.b16 %v411, %v410
      %v436 = vpack.c.b16 %v413, %v412
      %v437 = vpack.c.b16 %v415, %v414
      %v438 = vpack.c.b16 %v417, %v416
      %v439 = vpack.c.b16 %v419, %v418
      %v440 = vpack.c.b16 %v421, %v420
      %v441 = vpack.c.b16 %v423, %v422
      %v442 = vpack.c.b16 %v425, %v424
      %v443 = vpack.c.b16 %v427, %v426
      %v448 = vunpack.c.l.b16 %v360
      %v449 = vunpack.c.l.b16 %v361
      %v450 = vunpack.c.l.b16 %v362
      %v451 = vunpack.c.l.b16 %v363
      %v452 = vpack.c.b16 %v449, %v448
      %v453 = vpack.c.b16 %v451, %v450
      %vm456 = vcmask 261120
      %v458 = vsel %vm456, %v428, 0
      %v461 = vsel %vm456, %v429, 0
      %v464 = vsel %vm456, %v430, 0
      %v467 = vsel %vm456, %v431, 0
      %v470 = vsel %vm456, %v432, 0
      %v473 = vsel %vm456, %v433, 0
      %v476 = vsel %vm456, %v434, 0
      %v479 = vsel %vm456, %v435, 0
      %v482 = vsel %vm456, %v436, 0
      %v485 = vsel %vm456, %v437, 0
      %v488 = vsel %vm456, %v438, 0
      %v491 = vsel %vm456, %v439, 0
      %v494 = vsel %vm456, %v440, 0
      %v497 = vsel %vm456, %v441, 0
      %v500 = vsel %vm456, %v442, 0
      %v503 = vsel %vm456, %v443, 0
      %505 = vmatprep.subr.bf16.mxu0 0
      %506 = vmatpush1.bf16.msra.mxu0 0
      %507 = vmatprep.subr.bf16.mxu0 0
      %508 = vmatpush1.bf16.msra.mxu0 0
      %509 = vmatprep.subr.bf16.mxu0 0
      %510 = vmatpush1.bf16.msra.mxu0 0
      %511 = vmatprep.subr.bf16.mxu0 0
      %512 = vmatpush1.bf16.msra.mxu0 0
      %513 = vmatprep.subr.bf16.mxu0 0
      %514 = vmatpush1.bf16.msra.mxu0 0
      %515 = vmatprep.subr.bf16.mxu0 0
      %516 = vmatpush1.bf16.msra.mxu0 0
      %517 = vmatprep.subr.bf16.mxu0 0
      %518 = vmatpush1.bf16.msra.mxu0 %v453
      %519 = vmatprep.subr.bf16.mxu0 0
      %520 = vmatpush1.bf16.msra.mxu0 %v452
      %521 = vmatprep.subr.bf16.mxu0 0
      %522 = vmatpush2.bf16.msra.mxu0 0
      %523 = vmatprep.subr.bf16.mxu0 0
      %524 = vmatpush2.bf16.msra.mxu0 0
      %525 = vmatprep.subr.bf16.mxu0 0
      %526 = vmatpush2.bf16.msra.mxu0 0
      %527 = vmatprep.subr.bf16.mxu0 0
      %528 = vmatpush2.bf16.msra.mxu0 0
      %529 = vmatprep.subr.bf16.mxu0 0
      %530 = vmatpush2.bf16.msra.mxu0 0
      %531 = vmatprep.subr.bf16.mxu0 0
      %532 = vmatpush2.bf16.msra.mxu0 0
      %533 = vmatprep.subr.bf16.mxu0 0
      %534 = vmatpush2.bf16.msra.mxu0 0
      %535 = vmatprep.subr.bf16.mxu0 0
      %536 = vmatpush2.bf16.msra.mxu0 0
      %537 = vmatprep.mubr.bf16.mxu0 0
      %538 = vmatmul.mubr.bf16.gmra.mxu0 %v458
      %v539 = vpop.f32.mrf.mxu0
      %v540 = vadd.f32 0.0, %v539
      %v541 = vpop.f32.mrf.mxu0
      %v542 = vpop.f32.mrf.mxu0
      %v543 = vadd.f32 0.0, %v542
      %v544 = vpop.f32.mrf.mxu0
      %545 = vmatprep.mubr.bf16.mxu0 0
      %546 = vmatmul.mubr.bf16.gmra.mxu0 %v461
      %v547 = vpop.f32.mrf.mxu0
      %v548 = vadd.f32 0.0, %v547
      %v549 = vpop.f32.mrf.mxu0
      %v550 = vpop.f32.mrf.mxu0
      %v551 = vadd.f32 0.0, %v550
      %v552 = vpop.f32.mrf.mxu0
      %553 = vmatprep.mubr.bf16.mxu0 0
      %554 = vmatmul.mubr.bf16.gmra.mxu0 %v464
      %v555 = vpop.f32.mrf.mxu0
      %v556 = vadd.f32 0.0, %v555
      %v557 = vpop.f32.mrf.mxu0
      %v558 = vpop.f32.mrf.mxu0
      %v559 = vadd.f32 0.0, %v558
      %v560 = vpop.f32.mrf.mxu0
      %561 = vmatprep.mubr.bf16.mxu0 0
      %562 = vmatmul.mubr.bf16.gmra.mxu0 %v467
      %v563 = vpop.f32.mrf.mxu0
      %v564 = vadd.f32 0.0, %v563
      %v565 = vpop.f32.mrf.mxu0
      %v566 = vpop.f32.mrf.mxu0
      %v567 = vadd.f32 0.0, %v566
      %v568 = vpop.f32.mrf.mxu0
      %569 = vmatprep.mubr.bf16.mxu0 0
      %570 = vmatmul.mubr.bf16.gmra.mxu0 %v470
      %v571 = vpop.f32.mrf.mxu0
      %v572 = vadd.f32 0.0, %v571
      %v573 = vpop.f32.mrf.mxu0
      %v574 = vpop.f32.mrf.mxu0
      %v575 = vadd.f32 0.0, %v574
      %v576 = vpop.f32.mrf.mxu0
      %577 = vmatprep.mubr.bf16.mxu0 0
      %578 = vmatmul.mubr.bf16.gmra.mxu0 %v473
      %v579 = vpop.f32.mrf.mxu0
      %v580 = vadd.f32 0.0, %v579
      %v581 = vpop.f32.mrf.mxu0
      %v582 = vpop.f32.mrf.mxu0
      %v583 = vadd.f32 0.0, %v582
      %v584 = vpop.f32.mrf.mxu0
      %585 = vmatprep.mubr.bf16.mxu0 0
      %586 = vmatmul.mubr.bf16.gmra.mxu0 %v476
      %v587 = vpop.f32.mrf.mxu0
      %v588 = vadd.f32 0.0, %v587
      %v589 = vpop.f32.mrf.mxu0
      %v590 = vpop.f32.mrf.mxu0
      %v591 = vadd.f32 0.0, %v590
      %v592 = vpop.f32.mrf.mxu0
      %593 = vmatprep.mubr.bf16.mxu0 0
      %594 = vmatmul.mubr.bf16.gmra.mxu0 %v479
      %v595 = vpop.f32.mrf.mxu0
      %v596 = vadd.f32 0.0, %v595
      %v597 = vpop.f32.mrf.mxu0
      %v598 = vpop.f32.mrf.mxu0
      %v599 = vadd.f32 0.0, %v598
      %v600 = vpop.f32.mrf.mxu0
      %601 = vmatprep.mubr.bf16.mxu0 0
      %602 = vmatmul.mubr.bf16.gmra.mxu0 %v482
      %v603 = vpop.f32.mrf.mxu0
      %v604 = vadd.f32 0.0, %v603
      %v605 = vpop.f32.mrf.mxu0
      %v606 = vpop.f32.mrf.mxu0
      %v607 = vadd.f32 0.0, %v606
      %v608 = vpop.f32.mrf.mxu0
      %609 = vmatprep.mubr.bf16.mxu0 0
      %610 = vmatmul.mubr.bf16.gmra.mxu0 %v485
      %v611 = vpop.f32.mrf.mxu0
      %v612 = vadd.f32 0.0, %v611
      %v613 = vpop.f32.mrf.mxu0
      %v614 = vpop.f32.mrf.mxu0
      %v615 = vadd.f32 0.0, %v614
      %v616 = vpop.f32.mrf.mxu0
      %617 = vmatprep.mubr.bf16.mxu0 0
      %618 = vmatmul.mubr.bf16.gmra.mxu0 %v488
      %v619 = vpop.f32.mrf.mxu0
      %v620 = vadd.f32 0.0, %v619
      %v621 = vpop.f32.mrf.mxu0
      %v622 = vpop.f32.mrf.mxu0
      %v623 = vadd.f32 0.0, %v622
      %v624 = vpop.f32.mrf.mxu0
      %625 = vmatprep.mubr.bf16.mxu0 0
      %626 = vmatmul.mubr.bf16.gmra.mxu0 %v491
      %v627 = vpop.f32.mrf.mxu0
      %v628 = vadd.f32 0.0, %v627
      %v629 = vpop.f32.mrf.mxu0
      %v630 = vpop.f32.mrf.mxu0
      %v631 = vadd.f32 0.0, %v630
      %v632 = vpop.f32.mrf.mxu0
      %633 = vmatprep.mubr.bf16.mxu0 0
      %634 = vmatmul.mubr.bf16.gmra.mxu0 %v494
      %v635 = vpop.f32.mrf.mxu0
      %v636 = vadd.f32 0.0, %v635
      %v637 = vpop.f32.mrf.mxu0
      %v638 = vpop.f32.mrf.mxu0
      %v639 = vadd.f32 0.0, %v638
      %v640 = vpop.f32.mrf.mxu0
      %641 = vmatprep.mubr.bf16.mxu0 0
      %642 = vmatmul.mubr.bf16.gmra.mxu0 %v497
      %v643 = vpop.f32.mrf.mxu0
      %v644 = vadd.f32 0.0, %v643
      %v645 = vpop.f32.mrf.mxu0
      %v646 = vpop.f32.mrf.mxu0
      %v647 = vadd.f32 0.0, %v646
      %v648 = vpop.f32.mrf.mxu0
      %649 = vmatprep.mubr.bf16.mxu0 0
      %650 = vmatmul.mubr.bf16.gmra.mxu0 %v500
      %v651 = vpop.f32.mrf.mxu0
      %v652 = vadd.f32 0.0, %v651
      %v653 = vpop.f32.mrf.mxu0
      %v654 = vpop.f32.mrf.mxu0
      %v655 = vadd.f32 0.0, %v654
      %v656 = vpop.f32.mrf.mxu0
      %657 = vmatprep.mubr.bf16.mxu0 0
      %658 = vmatmul.mubr.bf16.gmra.mxu0 %v503
      %v659 = vpop.f32.mrf.mxu0
      %v660 = vadd.f32 0.0, %v659
      %v661 = vpop.f32.mrf.mxu0
      %v662 = vpop.f32.mrf.mxu0
      %v663 = vadd.f32 0.0, %v662
      %v664 = vpop.f32.mrf.mxu0
      %665 = vdwg.mxu0
      %v666 = vadd.f32 %v296, %v540
      %v667 = vadd.f32 %v297, %v543
      %v668 = vadd.f32 %v298, %v548
      %v669 = vadd.f32 %v299, %v551
      %v670 = vadd.f32 %v300, %v556
      %v671 = vadd.f32 %v301, %v559
      %v672 = vadd.f32 %v302, %v564
      %v673 = vadd.f32 %v303, %v567
      %v674 = vadd.f32 %v304, %v572
      %v675 = vadd.f32 %v305, %v575
      %v676 = vadd.f32 %v306, %v580
      %v677 = vadd.f32 %v307, %v583
      %v678 = vadd.f32 %v308, %v588
      %v679 = vadd.f32 %v309, %v591
      %v680 = vadd.f32 %v310, %v596
      %v681 = vadd.f32 %v311, %v599
      %v682 = vadd.f32 %v312, %v604
      %v683 = vadd.f32 %v313, %v607
      %v684 = vadd.f32 %v314, %v612
      %v685 = vadd.f32 %v315, %v615
      %v686 = vadd.f32 %v316, %v620
      %v687 = vadd.f32 %v317, %v623
      %v688 = vadd.f32 %v318, %v628
      %v689 = vadd.f32 %v319, %v631
      %v690 = vadd.f32 %v320, %v636
      %v691 = vadd.f32 %v321, %v639
      %v692 = vadd.f32 %v322, %v644
      %v693 = vadd.f32 %v323, %v647
      %v694 = vadd.f32 %v324, %v652
      %v695 = vadd.f32 %v325, %v655
      %v696 = vadd.f32 %v326, %v660
      %v697 = vadd.f32 %v327, %v663
      %698 = vst [vmem:[#allocation2] sm:$0xff] %v666
      %699 = vst [vmem:[#allocation2 + $0x8] sm:$0xff] %v667
      %700 = vst [vmem:[#allocation2 + $0x10] sm:$0xff] %v668
      %701 = vst [vmem:[#allocation2 + $0x18] sm:$0xff] %v669
      %702 = vst [vmem:[#allocation2 + $0x20] sm:$0xff] %v670
      %703 = vst [vmem:[#allocation2 + $0x28] sm:$0xff] %v671
      %704 = vst [vmem:[#allocation2 + $0x30] sm:$0xff] %v672
      %705 = vst [vmem:[#allocation2 + $0x38] sm:$0xff] %v673
      %706 = vst [vmem:[#allocation2 + $0x40] sm:$0xff] %v674
      %707 = vst [vmem:[#allocation2 + $0x48] sm:$0xff] %v675
      %708 = vst [vmem:[#allocation2 + $0x50] sm:$0xff] %v676
      %709 = vst [vmem:[#allocation2 + $0x58] sm:$0xff] %v677
      %710 = vst [vmem:[#allocation2 + $0x60] sm:$0xff] %v678
      %711 = vst [vmem:[#allocation2 + $0x68] sm:$0xff] %v679
      %712 = vst [vmem:[#allocation2 + $0x70] sm:$0xff] %v680
      %713 = vst [vmem:[#allocation2 + $0x78] sm:$0xff] %v681
      %714 = vst [vmem:[#allocation2 + $0x80] sm:$0xff] %v682
      %715 = vst [vmem:[#allocation2 + $0x88] sm:$0xff] %v683
      %716 = vst [vmem:[#allocation2 + $0x90] sm:$0xff] %v684
      %717 = vst [vmem:[#allocation2 + $0x98] sm:$0xff] %v685
      %718 = vst [vmem:[#allocation2 + $0xa0] sm:$0xff] %v686
      %719 = vst [vmem:[#allocation2 + $0xa8] sm:$0xff] %v687
      %720 = vst [vmem:[#allocation2 + $0xb0] sm:$0xff] %v688
      %721 = vst [vmem:[#allocation2 + $0xb8] sm:$0xff] %v689
      %722 = vst [vmem:[#allocation2 + $0xc0] sm:$0xff] %v690
      %723 = vst [vmem:[#allocation2 + $0xc8] sm:$0xff] %v691
      %724 = vst [vmem:[#allocation2 + $0xd0] sm:$0xff] %v692
      %725 = vst [vmem:[#allocation2 + $0xd8] sm:$0xff] %v693
      %726 = vst [vmem:[#allocation2 + $0xe0] sm:$0xff] %v694
      %727 = vst [vmem:[#allocation2 + $0xe8] sm:$0xff] %v695
      %728 = vst [vmem:[#allocation2 + $0xf0] sm:$0xff] %v696
      %729 = vst [vmem:[#allocation2 + $0xf8] sm:$0xff] %v697
      // Predicated region
      $region37: #{_lambda_.114} parent=31 // pred_check
        %p730 = pneg %p260
      $region38: #{_lambda_.114} parent=31 // pred_check_branch
        %732 = sbr.rel (%p730) target = $region40
      $region39: #{_lambda_.114} parent=31 // pred_region
        %v733 = vld [vmem:[#allocation2] sm:$0xff]
        %v734 = vld [vmem:[#allocation2 + $0x8] sm:$0xff]
        %v735 = vld [vmem:[#allocation2 + $0x10] sm:$0xff]
        %v736 = vld [vmem:[#allocation2 + $0x18] sm:$0xff]
        %v737 = vld [vmem:[#allocation2 + $0x20] sm:$0xff]
        %v738 = vld [vmem:[#allocation2 + $0x28] sm:$0xff]
        %v739 = vld [vmem:[#allocation2 + $0x30] sm:$0xff]
        %v740 = vld [vmem:[#allocation2 + $0x38] sm:$0xff]
        %v741 = vld [vmem:[#allocation2 + $0x40] sm:$0xff]
        %v742 = vld [vmem:[#allocation2 + $0x48] sm:$0xff]
        %v743 = vld [vmem:[#allocation2 + $0x50] sm:$0xff]
        %v744 = vld [vmem:[#allocation2 + $0x58] sm:$0xff]
        %v745 = vld [vmem:[#allocation2 + $0x60] sm:$0xff]
        %v746 = vld [vmem:[#allocation2 + $0x68] sm:$0xff]
        %v747 = vld [vmem:[#allocation2 + $0x70] sm:$0xff]
        %v748 = vld [vmem:[#allocation2 + $0x78] sm:$0xff]
        %v749 = vld [vmem:[#allocation2 + $0x80] sm:$0xff]
        %v750 = vld [vmem:[#allocation2 + $0x88] sm:$0xff]
        %v751 = vld [vmem:[#allocation2 + $0x90] sm:$0xff]
        %v752 = vld [vmem:[#allocation2 + $0x98] sm:$0xff]
        %v753 = vld [vmem:[#allocation2 + $0xa0] sm:$0xff]
        %v754 = vld [vmem:[#allocation2 + $0xa8] sm:$0xff]
        %v755 = vld [vmem:[#allocation2 + $0xb0] sm:$0xff]
        %v756 = vld [vmem:[#allocation2 + $0xb8] sm:$0xff]
        %v757 = vld [vmem:[#allocation2 + $0xc0] sm:$0xff]
        %v758 = vld [vmem:[#allocation2 + $0xc8] sm:$0xff]
        %v759 = vld [vmem:[#allocation2 + $0xd0] sm:$0xff]
        %v760 = vld [vmem:[#allocation2 + $0xd8] sm:$0xff]
        %v761 = vld [vmem:[#allocation2 + $0xe0] sm:$0xff]
        %v762 = vld [vmem:[#allocation2 + $0xe8] sm:$0xff]
        %v763 = vld [vmem:[#allocation2 + $0xf0] sm:$0xff]
        %v764 = vld [vmem:[#allocation2 + $0xf8] sm:$0xff]
        %v765 = vld [vmem:[%s249] sm:$0x1]
        %v767 = vlaneseq
        %v768 = vshrl.u32 %v767, 7
        %v769 = vsub.s32 0, %v768
        %v770 = vrot.slane %v765, %v769
        %v772 = vadd.f32 %v733, %v770
        %v773 = vadd.f32 %v734, %v770
        %v774 = vadd.f32 %v735, %v770
        %v775 = vadd.f32 %v736, %v770
        %v776 = vadd.f32 %v737, %v770
        %v777 = vadd.f32 %v738, %v770
        %v778 = vadd.f32 %v739, %v770
        %v779 = vadd.f32 %v740, %v770
        %v780 = vadd.f32 %v741, %v770
        %v781 = vadd.f32 %v742, %v770
        %v782 = vadd.f32 %v743, %v770
        %v783 = vadd.f32 %v744, %v770
        %v784 = vadd.f32 %v745, %v770
        %v785 = vadd.f32 %v746, %v770
        %v786 = vadd.f32 %v747, %v770
        %v787 = vadd.f32 %v748, %v770
        %v788 = vadd.f32 %v749, %v770
        %v789 = vadd.f32 %v750, %v770
        %v790 = vadd.f32 %v751, %v770
        %v791 = vadd.f32 %v752, %v770
        %v792 = vadd.f32 %v753, %v770
        %v793 = vadd.f32 %v754, %v770
        %v794 = vadd.f32 %v755, %v770
        %v795 = vadd.f32 %v756, %v770
        %v796 = vadd.f32 %v757, %v770
        %v797 = vadd.f32 %v758, %v770
        %v798 = vadd.f32 %v759, %v770
        %v799 = vadd.f32 %v760, %v770
        %v800 = vadd.f32 %v761, %v770
        %v801 = vadd.f32 %v762, %v770
        %v802 = vadd.f32 %v763, %v770
        %v803 = vadd.f32 %v764, %v770
        %v804 = vtanh.pop %v772
        %v805 = vtanh.pop %v773
        %v806 = vtanh.pop %v774
        %v807 = vtanh.pop %v775
        %v808 = vtanh.pop %v776
        %v809 = vtanh.pop %v777
        %v810 = vtanh.pop %v778
        %v811 = vtanh.pop %v779
        %v812 = vtanh.pop %v780
        %v813 = vtanh.pop %v781
        %v814 = vtanh.pop %v782
        %v815 = vtanh.pop %v783
        %v816 = vtanh.pop %v784
        %v817 = vtanh.pop %v785
        %v818 = vtanh.pop %v786
        %v819 = vtanh.pop %v787
        %v820 = vtanh.pop %v788
        %v821 = vtanh.pop %v789
        %v822 = vtanh.pop %v790
        %v823 = vtanh.pop %v791
        %v824 = vtanh.pop %v792
        %v825 = vtanh.pop %v793
        %v826 = vtanh.pop %v794
        %v827 = vtanh.pop %v795
        %v828 = vtanh.pop %v796
        %v829 = vtanh.pop %v797
        %v830 = vtanh.pop %v798
        %v831 = vtanh.pop %v799
        %v832 = vtanh.pop %v800
        %v833 = vtanh.pop %v801
        %v834 = vtanh.pop %v802
        %v835 = vtanh.pop %v803
        %836 = vst [vmem:[%s257] sm:$0xff] %v804
        %837 = vst [vmem:[%s257 + $0x8] sm:$0xff] %v805
        %838 = vst [vmem:[%s257 + $0x10] sm:$0xff] %v806
        %839 = vst [vmem:[%s257 + $0x18] sm:$0xff] %v807
        %840 = vst [vmem:[%s257 + $0x20] sm:$0xff] %v808
        %841 = vst [vmem:[%s257 + $0x28] sm:$0xff] %v809
        %842 = vst [vmem:[%s257 + $0x30] sm:$0xff] %v810
        %843 = vst [vmem:[%s257 + $0x38] sm:$0xff] %v811
        %844 = vst [vmem:[%s257 + $0x40] sm:$0xff] %v812
        %845 = vst [vmem:[%s257 + $0x48] sm:$0xff] %v813
        %846 = vst [vmem:[%s257 + $0x50] sm:$0xff] %v814
        %847 = vst [vmem:[%s257 + $0x58] sm:$0xff] %v815
        %848 = vst [vmem:[%s257 + $0x60] sm:$0xff] %v816
        %849 = vst [vmem:[%s257 + $0x68] sm:$0xff] %v817
        %850 = vst [vmem:[%s257 + $0x70] sm:$0xff] %v818
        %851 = vst [vmem:[%s257 + $0x78] sm:$0xff] %v819
        %852 = vst [vmem:[%s257 + $0x80] sm:$0xff] %v820
        %853 = vst [vmem:[%s257 + $0x88] sm:$0xff] %v821
        %854 = vst [vmem:[%s257 + $0x90] sm:$0xff] %v822
        %855 = vst [vmem:[%s257 + $0x98] sm:$0xff] %v823
        %856 = vst [vmem:[%s257 + $0xa0] sm:$0xff] %v824
        %857 = vst [vmem:[%s257 + $0xa8] sm:$0xff] %v825
        %858 = vst [vmem:[%s257 + $0xb0] sm:$0xff] %v826
        %859 = vst [vmem:[%s257 + $0xb8] sm:$0xff] %v827
        %860 = vst [vmem:[%s257 + $0xc0] sm:$0xff] %v828
        %861 = vst [vmem:[%s257 + $0xc8] sm:$0xff] %v829
        %862 = vst [vmem:[%s257 + $0xd0] sm:$0xff] %v830
        %863 = vst [vmem:[%s257 + $0xd8] sm:$0xff] %v831
        %864 = vst [vmem:[%s257 + $0xe0] sm:$0xff] %v832
        %865 = vst [vmem:[%s257 + $0xe8] sm:$0xff] %v833
        %866 = vst [vmem:[%s257 + $0xf0] sm:$0xff] %v834
        %867 = vst [vmem:[%s257 + $0xf8] sm:$0xff] %v835
      $region40: #{_lambda_.114} parent=31 // pred_fallthru
        _
      %s868 = smul.u32 32, %s19
      %p869 = scmp.lt.s32.totalorder %s868, 255
      %s870 = scalar_select %p869, %s868, 255
      %p871 = scmp.lt.s32.totalorder %s20, 0
      %s872 = scalar_select %p871, %s20, 0
      %s873 = sadd.s32 %s872, %s870
      %s874 = smul.addr %s873, 8
      %s875 = scalar_lea.vmem %s3, %s874
      // Predicated region
      $region41: #{_lambda_.114} parent=31 // pred_check
        %p876 = pneg %p135
      $region42: #{_lambda_.114} parent=31 // pred_check_branch
        %878 = sbr.rel (%p876) target = $region44
      $region43: #{_lambda_.114} parent=31 // pred_region
        %s879 = smul.u32 32, %s19
      $region44: #{_lambda_.114} parent=31 // pred_fallthru
        _
    $region32: #{_lambda_.114} parent=5 // pred_fallthru
      _
    %p880 = scmp.le.s32.totalorder 2, %s9
    // Predicated region
    $region45: #{_lambda_.114} parent=5 // pred_check
      %p881 = pneg %p880
    $region46: #{_lambda_.114} parent=5 // pred_check_branch
      %883 = sbr.rel (%p881) target = $region48
    $region47: #{_lambda_.114} parent=5 // pred_region
      %s884 = ssub.s32 %s9, 2
      // Predicated region
      $region49: #{_lambda_.114} parent=47 // pred_check
        %p885 = pneg %p141
      $region50: #{_lambda_.114} parent=47 // pred_check_branch
        %887 = sbr.rel (%p885) target = $region52
      $region51: #{_lambda_.114} parent=47 // pred_region
        %s888 = smul.u32 32, %s22
        %p889 = scmp.lt.s32.totalorder %s888, 255
        %s890 = scalar_select %p889, %s888, 255
        %p891 = scmp.lt.s32.totalorder %s23, 0
        %s892 = scalar_select %p891, %s23, 0
        %s893 = sadd.s32 %s892, %s890
        %s894 = smul.addr %s893, 8
        %s895 = scalar_lea.vmem %s3, %s894
      $region52: #{_lambda_.114} parent=47 // pred_fallthru
        _
    $region48: #{_lambda_.114} parent=5 // pred_fallthru
      _
  $region6: #{_lambda_.114} parent=0 // loop_footer
    %s13 = sadd.s32 1, %s9
  $region7: #{_lambda_.114} parent=0 // loop_footer_branch
    %8 = sbr.rel target = $region3
  $region8: #{_lambda_.114} parent=0 // loop_exit
    _

</llo_original>
